<compile_context>
chip_gen: v6e
topology: v6e:2x2x1
jax: 0.10.0
libtpu: 0.0.40
codegen_flags: <defaults>
</compile_context>

<pallas_src>
import functools

import jax
import jax.numpy as jnp
import numpy as np
from jax.experimental import pallas as pl
from jax.experimental.pallas import tpu as pltpu

LANE = 128   # lane width -> channel padding target
SUB = 8      # f32 sublane packing -> batch padding target


def _conv_out(size, pad, k=3, stride=2):
    return (size + 2 * pad - k) // stride + 1


def _round_up(x, m):
    return (x + m - 1) // m * m


def mnist_block_kernel(x_ref, w1_ref, g1_ref, be1_ref, w2_ref, g2_ref, be2_ref,
                       o_ref, y1_ref, *, H, W, H1, W1, H2, W2, pad, n_real,
                       n_pad, cp, eps, cdtype, fuse_residual):
    # x_ref / y1_ref : (Hp//2, 2, Wp//2, 2, n_pad, cp)  parity-split spatial, f32
    # w*_ref         : (9, cp, cp)   per-tap weights (matmul dtype)
    # g/be refs      : (1, cp)
    # o_ref          : (H2*W2*n_pad, cp)  lane-dense output slab
    delta = pad % 2
    border = pad + delta          # always even
    b0 = border // 2

    def conv(src_ref, w_ref, Ho, Wo):
        # 9 accumulating tap matmuls — no im2col scratch.  Every stride-2 tap is
        # a contiguous slice of the parity-split ref.
        m = Ho * Wo * n_pad
        acc = None
        for t, (kh, kw) in enumerate((a, b) for a in range(3) for b in range(3)):
            a = kh + delta
            b = kw + delta
            tap = src_ref[a // 2:a // 2 + Ho, a % 2,
                          b // 2:b // 2 + Wo, b % 2, :, :]       # (Ho,Wo,n_pad,cp)
            tap = tap.reshape(m, cp).astype(cdtype)
            part = jnp.dot(tap, w_ref[t], preferred_element_type=jnp.float32)
            acc = part if acc is None else acc + part
        return acc                                               # (m, cp) f32

    def bn_relu(y, g_ref, be_ref, Ho, Wo, mask_out):
        # Training-mode BN (biased batch stats over the real N*Ho*Wo rows).
        # Rows are ordered (oh, ow, n); pad-batch rows of y are exactly zero
        # (zero inputs + conv bias dropped), so the unmasked sum is correct.
        count = float(n_real * Ho * Wo)
        mean = jnp.sum(y, axis=0, keepdims=True) * (1.0 / count)
        if n_real != n_pad:
            n_iota = jax.lax.broadcasted_iota(jnp.int32, (Ho, Wo, n_pad, 1), 2)
            valid = (n_iota < n_real).reshape(Ho * Wo * n_pad, 1)
            d = jnp.where(valid, y - mean, 0.0)
        else:
            valid = None
            d = y - mean
        var = jnp.sum(d * d, axis=0, keepdims=True) * (1.0 / count)
        scale = g_ref[...] * jax.lax.rsqrt(var + eps)
        out = jnp.maximum(d * scale + be_ref[...], 0.0)
        if mask_out and valid is not None:
            out = jnp.where(valid, out, 0.0)     # keep pad-batch rows exactly 0
        return out

    # ---------------- conv1 (9 tap matmuls) -> BN1 -> ReLU ----------------
    y1 = bn_relu(conv(x_ref, w1_ref, H1, W1), g1_ref, be1_ref, H1, W1,
                 mask_out=True)

    # Stage conv1 output into the parity-split scratch conv2 reads from.  Only
    # the zero border blocks are memset; the interior gets the data directly.
    nbh, nbw = y1_ref.shape[0], y1_ref.shape[2]
    if H1 % 2 == 0 and W1 % 2 == 0:
        hb_lo, hb_hi = b0, b0 + H1 // 2
        wb_lo, wb_hi = b0, b0 + W1 // 2
        zdt = y1_ref.dtype
        if hb_lo > 0:
            y1_ref[0:hb_lo] = jnp.zeros((hb_lo,) + y1_ref.shape[1:], zdt)
        if hb_hi < nbh:
            y1_ref[hb_hi:nbh] = jnp.zeros((nbh - hb_hi,) + y1_ref.shape[1:], zdt)
        if wb_lo > 0:
            y1_ref[hb_lo:hb_hi, :, 0:wb_lo] = jnp.zeros(
                (hb_hi - hb_lo, 2, wb_lo) + y1_ref.shape[3:], zdt)
        if wb_hi < nbw:
            y1_ref[hb_lo:hb_hi, :, wb_hi:nbw] = jnp.zeros(
                (hb_hi - hb_lo, 2, nbw - wb_hi) + y1_ref.shape[3:], zdt)
        y1_ref[hb_lo:hb_hi, :, wb_lo:wb_hi] = y1.reshape(
            H1 // 2, 2, W1 // 2, 2, n_pad, cp)
    else:
        # TODO(synk): odd conv1 output sizes fall back to the simpler full-zero
        # + concat staging path (never hit by ResNet_Mnist's 28x28 / pad=15).
        y1_ref[...] = jnp.zeros(y1_ref.shape, y1_ref.dtype)
        y1v = y1.reshape(H1, W1, n_pad, cp)
        H1u, W1u = H1 + (H1 % 2), W1 + (W1 % 2)
        if H1u != H1:
            y1v = jnp.concatenate(
                [y1v, jnp.zeros((1, W1, n_pad, cp), y1v.dtype)], axis=0)
        if W1u != W1:
            y1v = jnp.concatenate(
                [y1v, jnp.zeros((H1u, 1, n_pad, cp), y1v.dtype)], axis=1)
        y1_ref[b0:b0 + H1u // 2, :, b0:b0 + W1u // 2, :, :, :] = (
            y1v.reshape(H1u // 2, 2, W1u // 2, 2, n_pad, cp))

    # ---------------- conv2 (9 tap matmuls) -> BN2 -> ReLU ----------------
    # No trailing pad-batch mask on y2: the wrapper discards pad rows/lanes.
    y2 = bn_relu(conv(y1_ref, w2_ref, H2, W2), g2_ref, be2_ref, H2, W2,
                 mask_out=False)

    # ---------------- fused residual add + lane-dense flat store ----------------
    if fuse_residual:
        xin = x_ref[b0:b0 + H // 2, :, b0:b0 + W // 2, :, :, :]
        y2 = y2 + xin.reshape(H * W * n_pad, cp)
    o_ref[...] = y2.astype(o_ref.dtype)


def mnist_block_pallas(x_nchw, params, pad, *, matmul_dtype=jnp.bfloat16):
    """MnistBlock forward: x + relu(bn2(conv2(relu(bn1(conv1(x)))))).

    PyTorch training-mode BatchNorm semantics (biased batch stats, eps=1e-5).
    Conv biases are dropped inside the kernel — batch-stat BN cancels them
    exactly (the pure-JAX reference keeps them as proof).  MXU operands default
    to bf16 (f32 accumulation, f32 BN/ReLU on every chip); pass
    matmul_dtype=jnp.float32 for the high-precision path.
    """
    w1, _b1, g1, be1, w2, _b2, g2, be2 = params
    N, Cin, H, W = x_nchw.shape
    Chid, Cout = w1.shape[0], w2.shape[0]

    H1, W1 = _conv_out(H, pad), _conv_out(W, pad)
    H2, W2 = _conv_out(H1, pad), _conv_out(W1, pad)
    assert min(H1, W1, H2, W2) >= 1

    cp = _round_up(max(Cin, Chid, Cout, LANE), LANE)   # lane-dense channel pad
    n_pad = _round_up(max(N, SUB), SUB)                # sublane-aligned batch pad
    delta = pad % 2
    border = pad + delta                               # even top/left zero border
    Hp, Wp = 2 * H1 + 2, 2 * W1 + 2
    H2p, W2p = 2 * H2 + 2, 2 * W2 + 2

    # Residual is fused in-kernel whenever the module's "size-preserving" shape
    # contract holds (it does for ResNet_Mnist: 28x28, pad=15, even sizes).
    fuse_residual = (H2 == H and W2 == W and H % 2 == 0 and W % 2 == 0
                     and (Cin == Cout or Cin == 1))

    xin = x_nchw.astype(jnp.float32)
    cin_k = Cin
    if fuse_residual and Cin == 1 and Cout > 1:
        # Channel-broadcast residual (first block: 1 -> 16).  The extra channel
        # copies see zero-padded conv1 weights, so conv1 output is unchanged.
        xin = jnp.tile(xin, (1, Cout, 1, 1))
        cin_k = Cout

    # ---- wrapper-side layout plumbing (free XLA reshapes / pads) ----
    # NCHW -> (H, W, N, C) -> zero-pad to (Hp, Wp, n_pad, cp) with an even
    # border, then split H/W into (block, parity) so every stride-2 conv tap in
    # the kernel is a contiguous slice.
    xk = jnp.transpose(xin, (2, 3, 0, 1))
    xk = jnp.pad(xk, ((border, Hp - border - H), (border, Wp - border - W),
                      (0, n_pad - N), (0, cp - cin_k)))
    xk = xk.reshape(Hp // 2, 2, Wp // 2, 2, n_pad, cp)

    def prep_w(w, ci, co):
        wt = jnp.transpose(w, (2, 3, 1, 0)).astype(jnp.float32)    # (3,3,ci,co)
        wt = jnp.pad(wt, ((0, 0), (0, 0), (0, cp - ci), (0, cp - co)))
        return wt.reshape(9, cp, cp).astype(matmul_dtype)

    def prep_v(v, c):
        return jnp.pad(v.astype(jnp.float32), (0, cp - c)).reshape(1, cp)

    w1k, w2k = prep_w(w1, Cin, Chid), prep_w(w2, Chid, Cout)
    g1k, be1k = prep_v(g1, Chid), prep_v(be1, Chid)
    g2k, be2k = prep_v(g2, Cout), prep_v(be2, Cout)

    # VMEM budget computed from the actual shapes (no hard-coded 32 MiB).
    f32b = 4
    mmb = np.dtype(matmul_dtype).itemsize
    m_max = max(H1 * W1, H2 * W2) * n_pad
    resident = (Hp * Wp * n_pad * cp * f32b          # x (parity layout)
                + H2p * W2p * n_pad * cp * f32b      # y1 staging scratch
                + H2 * W2 * n_pad * cp * f32b        # output slab
                + 2 * 9 * cp * cp * mmb              # weights
                + 4 * cp * f32b)                     # gammas / betas
    transient = 3 * m_max * cp * f32b                # conv acc + live tap values
    vmem_limit = min(max(int(1.25 * (resident + transient)) + (4 << 20),
                         16 << 20), 100 << 20)

    kernel = functools.partial(
        mnist_block_kernel, H=H, W=W, H1=H1, W1=W1, H2=H2, W2=W2, pad=pad,
        n_real=N, n_pad=n_pad, cp=cp, eps=1e-5, cdtype=matmul_dtype,
        fuse_residual=fuse_residual)

    vmem = pl.BlockSpec(memory_space=pltpu.MemorySpace.VMEM)
    out_flat = pl.pallas_call(
        kernel,
        out_shape=jax.ShapeDtypeStruct((H2 * W2 * n_pad, cp), jnp.float32),
        in_specs=[vmem] * 7,
        out_specs=vmem,
        scratch_shapes=[
            pltpu.VMEM((H2p // 2, 2, W2p // 2, 2, n_pad, cp), jnp.float32)],
        compiler_params=pltpu.CompilerParams(vmem_limit_bytes=vmem_limit),
    )(xk, w1k, g1k, be1k, w2k, g2k, be2k)

    # Un-pad + back to NCHW.
    out = out_flat.reshape(H2, W2, n_pad, cp)[:, :, :N, :Cout]
    out = jnp.transpose(out, (2, 3, 0, 1))             # (N, Cout, H2, W2)
    if fuse_residual:
        return out                                     # residual added in-kernel
    return x_nchw + out                                # PyTorch broadcast add


def mnist_block_reference(x, params, pad, eps=1e-5):
    """Pure-JAX reference mirroring the PyTorch forward (training-mode BN,
    conv bias included)."""
    w1, b1, g1, be1, w2, b2, g2, be2 = params

    def conv(xi, w, b):
        y = jax.lax.conv_general_dilated(
            xi, w, window_strides=(2, 2),
            padding=[(pad, pad), (pad, pad)],
            dimension_numbers=('NCHW', 'OIHW', 'NCHW'))
        return y + b[None, :, None, None]

    def bn(y, g, be):
        mean = y.mean(axis=(0, 2, 3), keepdims=True)
        var = y.var(axis=(0, 2, 3), keepdims=True)          # biased
        return (y - mean) / jnp.sqrt(var + eps) * g[None, :, None, None] \
               + be[None, :, None, None]

    h = jax.nn.relu(bn(conv(x, w1, b1), g1, be1))
    h = jax.nn.relu(bn(conv(h, w2, b2), g2, be2))
    return x + h


if __name__ == "__main__":
    key = jax.random.PRNGKey(0)
    ks = jax.random.split(key, 9)

    # Small, module-consistent shapes.  Like the real ResNet_Mnist blocks
    # (28x28, pad=15), the padding is chosen so both stride-2 convs preserve
    # the spatial size and the residual add is elementwise: 8x8 with pad=5.
    N, Cin, H, W = 2, 4, 8, 8
    Chid, Cout, pad = 8, 4, 5

    x = jax.random.normal(ks[0], (N, Cin, H, W), jnp.float32)
    w1 = 0.3 * jax.random.normal(ks[1], (Chid, Cin, 3, 3), jnp.float32)
    b1 = 0.1 * jax.random.normal(ks[2], (Chid,), jnp.float32)
    g1 = 1.0 + 0.1 * jax.random.normal(ks[3], (Chid,), jnp.float32)
    be1 = 0.1 * jax.random.normal(ks[4], (Chid,), jnp.float32)
    w2 = 0.3 * jax.random.normal(ks[5], (Cout, Chid, 3, 3), jnp.float32)
    b2 = 0.1 * jax.random.normal(ks[6], (Cout,), jnp.float32)
    g2 = 1.0 + 0.1 * jax.random.normal(ks[7], (Cout,), jnp.float32)
    be2 = 0.1 * jax.random.normal(ks[8], (Cout,), jnp.float32)
    params = (w1, b1, g1, be1, w2, b2, g2, be2)

    ref = mnist_block_reference(x, params, pad)

    # Default fast path: bf16 MXU operands, f32 accumulation + f32 BN.
    out_bf16 = jax.block_until_ready(mnist_block_pallas(x, params, pad))
    assert out_bf16.shape == ref.shape == (N, Cin, H, W), (out_bf16.shape, ref.shape)
    np.testing.assert_allclose(np.asarray(out_bf16), np.asarray(ref),
                               rtol=3e-2, atol=3e-2)

    # f32 MXU operand path (tight check).
    out_f32 = jax.block_until_ready(
        mnist_block_pallas(x, params, pad, matmul_dtype=jnp.float32))
    np.testing.assert_allclose(np.asarray(out_f32), np.asarray(ref),
                               rtol=1e-3, atol=1e-3)

    print("KERNEL_OK")
</pallas_src>

<mosaic_0001>
module attributes {stable_mosaic.version = 11 : i64} {
  func.func @mnist_block_kernel(%arg0: memref<9x2x9x2x8x128xf32, #tpu.memory_space<vmem>>, %arg1: memref<9x128x128xbf16, #tpu.memory_space<vmem>>, %arg2: memref<1x128xf32, #tpu.memory_space<vmem>>, %arg3: memref<1x128xf32, #tpu.memory_space<vmem>>, %arg4: memref<9x128x128xbf16, #tpu.memory_space<vmem>>, %arg5: memref<1x128xf32, #tpu.memory_space<vmem>>, %arg6: memref<1x128xf32, #tpu.memory_space<vmem>>, %arg7: memref<512x128xf32, #tpu.memory_space<vmem>>, %arg8: memref<9x2x9x2x8x128xf32, #tpu.memory_space<vmem>>) attributes {dimension_semantics = [], scalar_prefetch = 0 : i64, scratch_operands = 1 : i64, tpu.core_type = #tpu.core_type<tc>} {
    %c0 = arith.constant 0 : index
    %c1 = arith.constant 1 : index
    %c0_0 = arith.constant 0 : index
    %c1_1 = arith.constant 1 : index
    %c0_2 = arith.constant 0 : index
    %c0_3 = arith.constant 0 : index
    %0 = vector.load %arg0[%c0, %c1, %c0_0, %c1_1, %c0_2, %c0_3] : memref<9x2x9x2x8x128xf32, #tpu.memory_space<vmem>>, vector<8x1x8x1x8x128xf32>
    %1 = vector.shape_cast %0 : vector<8x1x8x1x8x128xf32> to vector<8x8x8x128xf32>
    %2 = vector.shape_cast %1 : vector<8x8x8x128xf32> to vector<512x128xf32>
    %3 = arith.truncf %2 : vector<512x128xf32> to vector<512x128xbf16>
    %c0_4 = arith.constant 0 : index
    %c0_5 = arith.constant 0 : index
    %c0_6 = arith.constant 0 : index
    %4 = vector.load %arg1[%c0_4, %c0_5, %c0_6] : memref<9x128x128xbf16, #tpu.memory_space<vmem>>, vector<1x128x128xbf16>
    %5 = vector.shape_cast %4 : vector<1x128x128xbf16> to vector<128x128xbf16>
    %cst = arith.constant dense<0.000000e+00> : vector<512x128xf32>
    %6 = tpu.matmul %3, %5, %cst {dimension_numbers = #tpu.dot_dimension_numbers<[1], [0], [0], [1], [0, 0, 1, 1], [], []>} : vector<512x128xbf16>, vector<128x128xbf16>, vector<512x128xf32> -> vector<512x128xf32>
    %c0_7 = arith.constant 0 : index
    %c1_8 = arith.constant 1 : index
    %c1_9 = arith.constant 1 : index
    %c0_10 = arith.constant 0 : index
    %c0_11 = arith.constant 0 : index
    %c0_12 = arith.constant 0 : index
    %7 = vector.load %arg0[%c0_7, %c1_8, %c1_9, %c0_10, %c0_11, %c0_12] : memref<9x2x9x2x8x128xf32, #tpu.memory_space<vmem>>, vector<8x1x8x1x8x128xf32>
    %8 = vector.shape_cast %7 : vector<8x1x8x1x8x128xf32> to vector<8x8x8x128xf32>
    %9 = vector.shape_cast %8 : vector<8x8x8x128xf32> to vector<512x128xf32>
    %10 = arith.truncf %9 : vector<512x128xf32> to vector<512x128xbf16>
    %c1_13 = arith.constant 1 : index
    %c0_14 = arith.constant 0 : index
    %c0_15 = arith.constant 0 : index
    %11 = vector.load %arg1[%c1_13, %c0_14, %c0_15] : memref<9x128x128xbf16, #tpu.memory_space<vmem>>, vector<1x128x128xbf16>
    %12 = vector.shape_cast %11 : vector<1x128x128xbf16> to vector<128x128xbf16>
    %cst_16 = arith.constant dense<0.000000e+00> : vector<512x128xf32>
    %13 = tpu.matmul %10, %12, %cst_16 {dimension_numbers = #tpu.dot_dimension_numbers<[1], [0], [0], [1], [0, 0, 1, 1], [], []>} : vector<512x128xbf16>, vector<128x128xbf16>, vector<512x128xf32> -> vector<512x128xf32>
    %14 = arith.addf %6, %13 : vector<512x128xf32>
    %c0_17 = arith.constant 0 : index
    %c1_18 = arith.constant 1 : index
    %c1_19 = arith.constant 1 : index
    %c1_20 = arith.constant 1 : index
    %c0_21 = arith.constant 0 : index
    %c0_22 = arith.constant 0 : index
    %15 = vector.load %arg0[%c0_17, %c1_18, %c1_19, %c1_20, %c0_21, %c0_22] : memref<9x2x9x2x8x128xf32, #tpu.memory_space<vmem>>, vector<8x1x8x1x8x128xf32>
    %16 = vector.shape_cast %15 : vector<8x1x8x1x8x128xf32> to vector<8x8x8x128xf32>
    %17 = vector.shape_cast %16 : vector<8x8x8x128xf32> to vector<512x128xf32>
    %18 = arith.truncf %17 : vector<512x128xf32> to vector<512x128xbf16>
    %c2 = arith.constant 2 : index
    %c0_23 = arith.constant 0 : index
    %c0_24 = arith.constant 0 : index
    %19 = vector.load %arg1[%c2, %c0_23, %c0_24] : memref<9x128x128xbf16, #tpu.memory_space<vmem>>, vector<1x128x128xbf16>
    %20 = vector.shape_cast %19 : vector<1x128x128xbf16> to vector<128x128xbf16>
    %cst_25 = arith.constant dense<0.000000e+00> : vector<512x128xf32>
    %21 = tpu.matmul %18, %20, %cst_25 {dimension_numbers = #tpu.dot_dimension_numbers<[1], [0], [0], [1], [0, 0, 1, 1], [], []>} : vector<512x128xbf16>, vector<128x128xbf16>, vector<512x128xf32> -> vector<512x128xf32>
    %22 = arith.addf %14, %21 : vector<512x128xf32>
    %c1_26 = arith.constant 1 : index
    %c0_27 = arith.constant 0 : index
    %c0_28 = arith.constant 0 : index
    %c1_29 = arith.constant 1 : index
    %c0_30 = arith.constant 0 : index
    %c0_31 = arith.constant 0 : index
    %23 = vector.load %arg0[%c1_26, %c0_27, %c0_28, %c1_29, %c0_30, %c0_31] : memref<9x2x9x2x8x128xf32, #tpu.memory_space<vmem>>, vector<8x1x8x1x8x128xf32>
    %24 = vector.shape_cast %23 : vector<8x1x8x1x8x128xf32> to vector<8x8x8x128xf32>
    %25 = vector.shape_cast %24 : vector<8x8x8x128xf32> to vector<512x128xf32>
    %26 = arith.truncf %25 : vector<512x128xf32> to vector<512x128xbf16>
    %c3 = arith.constant 3 : index
    %c0_32 = arith.constant 0 : index
    %c0_33 = arith.constant 0 : index
    %27 = vector.load %arg1[%c3, %c0_32, %c0_33] : memref<9x128x128xbf16, #tpu.memory_space<vmem>>, vector<1x128x128xbf16>
    %28 = vector.shape_cast %27 : vector<1x128x128xbf16> to vector<128x128xbf16>
    %cst_34 = arith.constant dense<0.000000e+00> : vector<512x128xf32>
    %29 = tpu.matmul %26, %28, %cst_34 {dimension_numbers = #tpu.dot_dimension_numbers<[1], [0], [0], [1], [0, 0, 1, 1], [], []>} : vector<512x128xbf16>, vector<128x128xbf16>, vector<512x128xf32> -> vector<512x128xf32>
    %30 = arith.addf %22, %29 : vector<512x128xf32>
    %c1_35 = arith.constant 1 : index
    %c0_36 = arith.constant 0 : index
    %c1_37 = arith.constant 1 : index
    %c0_38 = arith.constant 0 : index
    %c0_39 = arith.constant 0 : index
    %c0_40 = arith.constant 0 : index
    %31 = vector.load %arg0[%c1_35, %c0_36, %c1_37, %c0_38, %c0_39, %c0_40] : memref<9x2x9x2x8x128xf32, #tpu.memory_space<vmem>>, vector<8x1x8x1x8x128xf32>
    %32 = vector.shape_cast %31 : vector<8x1x8x1x8x128xf32> to vector<8x8x8x128xf32>
    %33 = vector.shape_cast %32 : vector<8x8x8x128xf32> to vector<512x128xf32>
    %34 = arith.truncf %33 : vector<512x128xf32> to vector<512x128xbf16>
    %c4 = arith.constant 4 : index
    %c0_41 = arith.constant 0 : index
    %c0_42 = arith.constant 0 : index
    %35 = vector.load %arg1[%c4, %c0_41, %c0_42] : memref<9x128x128xbf16, #tpu.memory_space<vmem>>, vector<1x128x128xbf16>
    %36 = vector.shape_cast %35 : vector<1x128x128xbf16> to vector<128x128xbf16>
    %cst_43 = arith.constant dense<0.000000e+00> : vector<512x128xf32>
    %37 = tpu.matmul %34, %36, %cst_43 {dimension_numbers = #tpu.dot_dimension_numbers<[1], [0], [0], [1], [0, 0, 1, 1], [], []>} : vector<512x128xbf16>, vector<128x128xbf16>, vector<512x128xf32> -> vector<512x128xf32>
    %38 = arith.addf %30, %37 : vector<512x128xf32>
    %c1_44 = arith.constant 1 : index
    %c0_45 = arith.constant 0 : index
    %c1_46 = arith.constant 1 : index
    %c1_47 = arith.constant 1 : index
    %c0_48 = arith.constant 0 : index
    %c0_49 = arith.constant 0 : index
    %39 = vector.load %arg0[%c1_44, %c0_45, %c1_46, %c1_47, %c0_48, %c0_49] : memref<9x2x9x2x8x128xf32, #tpu.memory_space<vmem>>, vector<8x1x8x1x8x128xf32>
    %40 = vector.shape_cast %39 : vector<8x1x8x1x8x128xf32> to vector<8x8x8x128xf32>
    %41 = vector.shape_cast %40 : vector<8x8x8x128xf32> to vector<512x128xf32>
    %42 = arith.truncf %41 : vector<512x128xf32> to vector<512x128xbf16>
    %c5 = arith.constant 5 : index
    %c0_50 = arith.constant 0 : index
    %c0_51 = arith.constant 0 : index
    %43 = vector.load %arg1[%c5, %c0_50, %c0_51] : memref<9x128x128xbf16, #tpu.memory_space<vmem>>, vector<1x128x128xbf16>
    %44 = vector.shape_cast %43 : vector<1x128x128xbf16> to vector<128x128xbf16>
    %cst_52 = arith.constant dense<0.000000e+00> : vector<512x128xf32>
    %45 = tpu.matmul %42, %44, %cst_52 {dimension_numbers = #tpu.dot_dimension_numbers<[1], [0], [0], [1], [0, 0, 1, 1], [], []>} : vector<512x128xbf16>, vector<128x128xbf16>, vector<512x128xf32> -> vector<512x128xf32>
    %46 = arith.addf %38, %45 : vector<512x128xf32>
    %c1_53 = arith.constant 1 : index
    %c1_54 = arith.constant 1 : index
    %c0_55 = arith.constant 0 : index
    %c1_56 = arith.constant 1 : index
    %c0_57 = arith.constant 0 : index
    %c0_58 = arith.constant 0 : index
    %47 = vector.load %arg0[%c1_53, %c1_54, %c0_55, %c1_56, %c0_57, %c0_58] : memref<9x2x9x2x8x128xf32, #tpu.memory_space<vmem>>, vector<8x1x8x1x8x128xf32>
    %48 = vector.shape_cast %47 : vector<8x1x8x1x8x128xf32> to vector<8x8x8x128xf32>
    %49 = vector.shape_cast %48 : vector<8x8x8x128xf32> to vector<512x128xf32>
    %50 = arith.truncf %49 : vector<512x128xf32> to vector<512x128xbf16>
    %c6 = arith.constant 6 : index
    %c0_59 = arith.constant 0 : index
    %c0_60 = arith.constant 0 : index
    %51 = vector.load %arg1[%c6, %c0_59, %c0_60] : memref<9x128x128xbf16, #tpu.memory_space<vmem>>, vector<1x128x128xbf16>
    %52 = vector.shape_cast %51 : vector<1x128x128xbf16> to vector<128x128xbf16>
    %cst_61 = arith.constant dense<0.000000e+00> : vector<512x128xf32>
    %53 = tpu.matmul %50, %52, %cst_61 {dimension_numbers = #tpu.dot_dimension_numbers<[1], [0], [0], [1], [0, 0, 1, 1], [], []>} : vector<512x128xbf16>, vector<128x128xbf16>, vector<512x128xf32> -> vector<512x128xf32>
    %54 = arith.addf %46, %53 : vector<512x128xf32>
    %c1_62 = arith.constant 1 : index
    %c1_63 = arith.constant 1 : index
    %c1_64 = arith.constant 1 : index
    %c0_65 = arith.constant 0 : index
    %c0_66 = arith.constant 0 : index
    %c0_67 = arith.constant 0 : index
    %55 = vector.load %arg0[%c1_62, %c1_63, %c1_64, %c0_65, %c0_66, %c0_67] : memref<9x2x9x2x8x128xf32, #tpu.memory_space<vmem>>, vector<8x1x8x1x8x128xf32>
    %56 = vector.shape_cast %55 : vector<8x1x8x1x8x128xf32> to vector<8x8x8x128xf32>
    %57 = vector.shape_cast %56 : vector<8x8x8x128xf32> to vector<512x128xf32>
    %58 = arith.truncf %57 : vector<512x128xf32> to vector<512x128xbf16>
    %c7 = arith.constant 7 : index
    %c0_68 = arith.constant 0 : index
    %c0_69 = arith.constant 0 : index
    %59 = vector.load %arg1[%c7, %c0_68, %c0_69] : memref<9x128x128xbf16, #tpu.memory_space<vmem>>, vector<1x128x128xbf16>
    %60 = vector.shape_cast %59 : vector<1x128x128xbf16> to vector<128x128xbf16>
    %cst_70 = arith.constant dense<0.000000e+00> : vector<512x128xf32>
    %61 = tpu.matmul %58, %60, %cst_70 {dimension_numbers = #tpu.dot_dimension_numbers<[1], [0], [0], [1], [0, 0, 1, 1], [], []>} : vector<512x128xbf16>, vector<128x128xbf16>, vector<512x128xf32> -> vector<512x128xf32>
    %62 = arith.addf %54, %61 : vector<512x128xf32>
    %c1_71 = arith.constant 1 : index
    %c1_72 = arith.constant 1 : index
    %c1_73 = arith.constant 1 : index
    %c1_74 = arith.constant 1 : index
    %c0_75 = arith.constant 0 : index
    %c0_76 = arith.constant 0 : index
    %63 = vector.load %arg0[%c1_71, %c1_72, %c1_73, %c1_74, %c0_75, %c0_76] : memref<9x2x9x2x8x128xf32, #tpu.memory_space<vmem>>, vector<8x1x8x1x8x128xf32>
    %64 = vector.shape_cast %63 : vector<8x1x8x1x8x128xf32> to vector<8x8x8x128xf32>
    %65 = vector.shape_cast %64 : vector<8x8x8x128xf32> to vector<512x128xf32>
    %66 = arith.truncf %65 : vector<512x128xf32> to vector<512x128xbf16>
    %c8 = arith.constant 8 : index
    %c0_77 = arith.constant 0 : index
    %c0_78 = arith.constant 0 : index
    %67 = vector.load %arg1[%c8, %c0_77, %c0_78] : memref<9x128x128xbf16, #tpu.memory_space<vmem>>, vector<1x128x128xbf16>
    %68 = vector.shape_cast %67 : vector<1x128x128xbf16> to vector<128x128xbf16>
    %cst_79 = arith.constant dense<0.000000e+00> : vector<512x128xf32>
    %69 = tpu.matmul %66, %68, %cst_79 {dimension_numbers = #tpu.dot_dimension_numbers<[1], [0], [0], [1], [0, 0, 1, 1], [], []>} : vector<512x128xbf16>, vector<128x128xbf16>, vector<512x128xf32> -> vector<512x128xf32>
    %70 = arith.addf %62, %69 : vector<512x128xf32>
    %cst_80 = arith.constant dense<0.000000e+00> : vector<128xf32>
    %71 = vector.multi_reduction <add>, %70, %cst_80 [0] : vector<512x128xf32> to vector<128xf32>
    %72 = vector.shape_cast %71 : vector<128xf32> to vector<1x128xf32>
    %cst_81 = arith.constant 7.812500e-03 : f32
    %73 = vector.broadcast %cst_81 : f32 to vector<1x128xf32>
    %74 = arith.mulf %72, %73 : vector<1x128xf32>
    %75 = tpu.iota {dimensions = array<i32: 2>} : vector<8x8x8x1xi32>
    %c2_i32 = arith.constant 2 : i32
    %76 = vector.broadcast %c2_i32 : i32 to vector<8x8x8x1xi32>
    %77 = arith.cmpi slt, %75, %76 : vector<8x8x8x1xi32>
    %78 = vector.shape_cast %77 : vector<8x8x8x1xi1> to vector<512x1xi1>
    %79 = vector.broadcast %74 : vector<1x128xf32> to vector<512x128xf32>
    %80 = arith.subf %70, %79 : vector<512x128xf32>
    %cst_82 = arith.constant 0.000000e+00 : f32
    %81 = vector.shape_cast %78 : vector<512x1xi1> to vector<512x1xi1>
    %82 = vector.broadcast %81 : vector<512x1xi1> to vector<512x128xi1>
    %83 = vector.broadcast %cst_82 : f32 to vector<512x128xf32>
    %84 = arith.select %82, %80, %83 : vector<512x128xi1>, vector<512x128xf32>
    %85 = arith.mulf %84, %84 : vector<512x128xf32>
    %cst_83 = arith.constant dense<0.000000e+00> : vector<128xf32>
    %86 = vector.multi_reduction <add>, %85, %cst_83 [0] : vector<512x128xf32> to vector<128xf32>
    %87 = vector.shape_cast %86 : vector<128xf32> to vector<1x128xf32>
    %cst_84 = arith.constant 7.812500e-03 : f32
    %88 = vector.broadcast %cst_84 : f32 to vector<1x128xf32>
    %89 = arith.mulf %87, %88 : vector<1x128xf32>
    %c0_85 = arith.constant 0 : index
    %c0_86 = arith.constant 0 : index
    %90 = vector.load %arg2[%c0_85, %c0_86] : memref<1x128xf32, #tpu.memory_space<vmem>>, vector<1x128xf32>
    %cst_87 = arith.constant 9.99999974E-6 : f32
    %91 = vector.broadcast %cst_87 : f32 to vector<1x128xf32>
    %92 = arith.addf %89, %91 : vector<1x128xf32>
    %93 = math.rsqrt %92 : vector<1x128xf32>
    %94 = arith.mulf %90, %93 : vector<1x128xf32>
    %95 = vector.broadcast %94 : vector<1x128xf32> to vector<512x128xf32>
    %96 = arith.mulf %84, %95 : vector<512x128xf32>
    %c0_88 = arith.constant 0 : index
    %c0_89 = arith.constant 0 : index
    %97 = vector.load %arg3[%c0_88, %c0_89] : memref<1x128xf32, #tpu.memory_space<vmem>>, vector<1x128xf32>
    %98 = vector.broadcast %97 : vector<1x128xf32> to vector<512x128xf32>
    %99 = arith.addf %96, %98 : vector<512x128xf32>
    %cst_90 = arith.constant 0.000000e+00 : f32
    %100 = vector.broadcast %cst_90 : f32 to vector<512x128xf32>
    %101 = arith.maximumf %99, %100 : vector<512x128xf32>
    %cst_91 = arith.constant 0.000000e+00 : f32
    %102 = vector.shape_cast %78 : vector<512x1xi1> to vector<512x1xi1>
    %103 = vector.broadcast %102 : vector<512x1xi1> to vector<512x128xi1>
    %104 = vector.broadcast %cst_91 : f32 to vector<512x128xf32>
    %105 = arith.select %103, %101, %104 : vector<512x128xi1>, vector<512x128xf32>
    %cst_92 = arith.constant 0.000000e+00 : f32
    %106 = vector.broadcast %cst_92 : f32 to vector<3x2x9x2x8x128xf32>
    %c0_93 = arith.constant 0 : index
    %c0_94 = arith.constant 0 : index
    %c0_95 = arith.constant 0 : index
    %c0_96 = arith.constant 0 : index
    %c0_97 = arith.constant 0 : index
    %c0_98 = arith.constant 0 : index
    %107 = vector.load %arg8[%c0_93, %c0_94, %c0_95, %c0_96, %c0_97, %c0_98] : memref<9x2x9x2x8x128xf32, #tpu.memory_space<vmem>>, vector<3x2x9x2x8x128xf32>
    tpu.vector_store %arg8[%c0_93, %c0_94, %c0_95, %c0_96, %c0_97, %c0_98], %106 {strides = array<i32>} : memref<9x2x9x2x8x128xf32, #tpu.memory_space<vmem>>, vector<3x2x9x2x8x128xf32>,
    %cst_99 = arith.constant 0.000000e+00 : f32
    %108 = vector.broadcast %cst_99 : f32 to vector<2x2x9x2x8x128xf32>
    %c7_100 = arith.constant 7 : index
    %c0_101 = arith.constant 0 : index
    %c0_102 = arith.constant 0 : index
    %c0_103 = arith.constant 0 : index
    %c0_104 = arith.constant 0 : index
    %c0_105 = arith.constant 0 : index
    %109 = vector.load %arg8[%c7_100, %c0_101, %c0_102, %c0_103, %c0_104, %c0_105] : memref<9x2x9x2x8x128xf32, #tpu.memory_space<vmem>>, vector<2x2x9x2x8x128xf32>
    tpu.vector_store %arg8[%c7_100, %c0_101, %c0_102, %c0_103, %c0_104, %c0_105], %108 {strides = array<i32>} : memref<9x2x9x2x8x128xf32, #tpu.memory_space<vmem>>, vector<2x2x9x2x8x128xf32>,
    %cst_106 = arith.constant 0.000000e+00 : f32
    %110 = vector.broadcast %cst_106 : f32 to vector<4x2x3x2x8x128xf32>
    %c3_107 = arith.constant 3 : index
    %c0_108 = arith.constant 0 : index
    %c0_109 = arith.constant 0 : index
    %c0_110 = arith.constant 0 : index
    %c0_111 = arith.constant 0 : index
    %c0_112 = arith.constant 0 : index
    %111 = vector.load %arg8[%c3_107, %c0_108, %c0_109, %c0_110, %c0_111, %c0_112] : memref<9x2x9x2x8x128xf32, #tpu.memory_space<vmem>>, vector<4x2x3x2x8x128xf32>
    tpu.vector_store %arg8[%c3_107, %c0_108, %c0_109, %c0_110, %c0_111, %c0_112], %110 {strides = array<i32>} : memref<9x2x9x2x8x128xf32, #tpu.memory_space<vmem>>, vector<4x2x3x2x8x128xf32>,
    %cst_113 = arith.constant 0.000000e+00 : f32
    %112 = vector.broadcast %cst_113 : f32 to vector<4x2x2x2x8x128xf32>
    %c3_114 = arith.constant 3 : index
    %c0_115 = arith.constant 0 : index
    %c7_116 = arith.constant 7 : index
    %c0_117 = arith.constant 0 : index
    %c0_118 = arith.constant 0 : index
    %c0_119 = arith.constant 0 : index
    %113 = vector.load %arg8[%c3_114, %c0_115, %c7_116, %c0_117, %c0_118, %c0_119] : memref<9x2x9x2x8x128xf32, #tpu.memory_space<vmem>>, vector<4x2x2x2x8x128xf32>
    tpu.vector_store %arg8[%c3_114, %c0_115, %c7_116, %c0_117, %c0_118, %c0_119], %112 {strides = array<i32>} : memref<9x2x9x2x8x128xf32, #tpu.memory_space<vmem>>, vector<4x2x2x2x8x128xf32>,
    %114 = vector.shape_cast %105 : vector<512x128xf32> to vector<4x2x4x2x8x128xf32>
    %c3_120 = arith.constant 3 : index
    %c0_121 = arith.constant 0 : index
    %c3_122 = arith.constant 3 : index
    %c0_123 = arith.constant 0 : index
    %c0_124 = arith.constant 0 : index
    %c0_125 = arith.constant 0 : index
    %115 = vector.load %arg8[%c3_120, %c0_121, %c3_122, %c0_123, %c0_124, %c0_125] : memref<9x2x9x2x8x128xf32, #tpu.memory_space<vmem>>, vector<4x2x4x2x8x128xf32>
    tpu.vector_store %arg8[%c3_120, %c0_121, %c3_122, %c0_123, %c0_124, %c0_125], %114 {strides = array<i32>} : memref<9x2x9x2x8x128xf32, #tpu.memory_space<vmem>>, vector<4x2x4x2x8x128xf32>,
    %c0_126 = arith.constant 0 : index
    %c1_127 = arith.constant 1 : index
    %c0_128 = arith.constant 0 : index
    %c1_129 = arith.constant 1 : index
    %c0_130 = arith.constant 0 : index
    %c0_131 = arith.constant 0 : index
    %116 = vector.load %arg8[%c0_126, %c1_127, %c0_128, %c1_129, %c0_130, %c0_131] : memref<9x2x9x2x8x128xf32, #tpu.memory_space<vmem>>, vector<8x1x8x1x8x128xf32>
    %117 = vector.shape_cast %116 : vector<8x1x8x1x8x128xf32> to vector<8x8x8x128xf32>
    %118 = vector.shape_cast %117 : vector<8x8x8x128xf32> to vector<512x128xf32>
    %119 = arith.truncf %118 : vector<512x128xf32> to vector<512x128xbf16>
    %c0_132 = arith.constant 0 : index
    %c0_133 = arith.constant 0 : index
    %c0_134 = arith.constant 0 : index
    %120 = vector.load %arg4[%c0_132, %c0_133, %c0_134] : memref<9x128x128xbf16, #tpu.memory_space<vmem>>, vector<1x128x128xbf16>
    %121 = vector.shape_cast %120 : vector<1x128x128xbf16> to vector<128x128xbf16>
    %cst_135 = arith.constant dense<0.000000e+00> : vector<512x128xf32>
    %122 = tpu.matmul %119, %121, %cst_135 {dimension_numbers = #tpu.dot_dimension_numbers<[1], [0], [0], [1], [0, 0, 1, 1], [], []>} : vector<512x128xbf16>, vector<128x128xbf16>, vector<512x128xf32> -> vector<512x128xf32>
    %c0_136 = arith.constant 0 : index
    %c1_137 = arith.constant 1 : index
    %c1_138 = arith.constant 1 : index
    %c0_139 = arith.constant 0 : index
    %c0_140 = arith.constant 0 : index
    %c0_141 = arith.constant 0 : index
    %123 = vector.load %arg8[%c0_136, %c1_137, %c1_138, %c0_139, %c0_140, %c0_141] : memref<9x2x9x2x8x128xf32, #tpu.memory_space<vmem>>, vector<8x1x8x1x8x128xf32>
    %124 = vector.shape_cast %123 : vector<8x1x8x1x8x128xf32> to vector<8x8x8x128xf32>
    %125 = vector.shape_cast %124 : vector<8x8x8x128xf32> to vector<512x128xf32>
    %126 = arith.truncf %125 : vector<512x128xf32> to vector<512x128xbf16>
    %c1_142 = arith.constant 1 : index
    %c0_143 = arith.constant 0 : index
    %c0_144 = arith.constant 0 : index
    %127 = vector.load %arg4[%c1_142, %c0_143, %c0_144] : memref<9x128x128xbf16, #tpu.memory_space<vmem>>, vector<1x128x128xbf16>
    %128 = vector.shape_cast %127 : vector<1x128x128xbf16> to vector<128x128xbf16>
    %cst_145 = arith.constant dense<0.000000e+00> : vector<512x128xf32>
    %129 = tpu.matmul %126, %128, %cst_145 {dimension_numbers = #tpu.dot_dimension_numbers<[1], [0], [0], [1], [0, 0, 1, 1], [], []>} : vector<512x128xbf16>, vector<128x128xbf16>, vector<512x128xf32> -> vector<512x128xf32>
    %130 = arith.addf %122, %129 : vector<512x128xf32>
    %c0_146 = arith.constant 0 : index
    %c1_147 = arith.constant 1 : index
    %c1_148 = arith.constant 1 : index
    %c1_149 = arith.constant 1 : index
    %c0_150 = arith.constant 0 : index
    %c0_151 = arith.constant 0 : index
    %131 = vector.load %arg8[%c0_146, %c1_147, %c1_148, %c1_149, %c0_150, %c0_151] : memref<9x2x9x2x8x128xf32, #tpu.memory_space<vmem>>, vector<8x1x8x1x8x128xf32>
    %132 = vector.shape_cast %131 : vector<8x1x8x1x8x128xf32> to vector<8x8x8x128xf32>
    %133 = vector.shape_cast %132 : vector<8x8x8x128xf32> to vector<512x128xf32>
    %134 = arith.truncf %133 : vector<512x128xf32> to vector<512x128xbf16>
    %c2_152 = arith.constant 2 : index
    %c0_153 = arith.constant 0 : index
    %c0_154 = arith.constant 0 : index
    %135 = vector.load %arg4[%c2_152, %c0_153, %c0_154] : memref<9x128x128xbf16, #tpu.memory_space<vmem>>, vector<1x128x128xbf16>
    %136 = vector.shape_cast %135 : vector<1x128x128xbf16> to vector<128x128xbf16>
    %cst_155 = arith.constant dense<0.000000e+00> : vector<512x128xf32>
    %137 = tpu.matmul %134, %136, %cst_155 {dimension_numbers = #tpu.dot_dimension_numbers<[1], [0], [0], [1], [0, 0, 1, 1], [], []>} : vector<512x128xbf16>, vector<128x128xbf16>, vector<512x128xf32> -> vector<512x128xf32>
    %138 = arith.addf %130, %137 : vector<512x128xf32>
    %c1_156 = arith.constant 1 : index
    %c0_157 = arith.constant 0 : index
    %c0_158 = arith.constant 0 : index
    %c1_159 = arith.constant 1 : index
    %c0_160 = arith.constant 0 : index
    %c0_161 = arith.constant 0 : index
    %139 = vector.load %arg8[%c1_156, %c0_157, %c0_158, %c1_159, %c0_160, %c0_161] : memref<9x2x9x2x8x128xf32, #tpu.memory_space<vmem>>, vector<8x1x8x1x8x128xf32>
    %140 = vector.shape_cast %139 : vector<8x1x8x1x8x128xf32> to vector<8x8x8x128xf32>
    %141 = vector.shape_cast %140 : vector<8x8x8x128xf32> to vector<512x128xf32>
    %142 = arith.truncf %141 : vector<512x128xf32> to vector<512x128xbf16>
    %c3_162 = arith.constant 3 : index
    %c0_163 = arith.constant 0 : index
    %c0_164 = arith.constant 0 : index
    %143 = vector.load %arg4[%c3_162, %c0_163, %c0_164] : memref<9x128x128xbf16, #tpu.memory_space<vmem>>, vector<1x128x128xbf16>
    %144 = vector.shape_cast %143 : vector<1x128x128xbf16> to vector<128x128xbf16>
    %cst_165 = arith.constant dense<0.000000e+00> : vector<512x128xf32>
    %145 = tpu.matmul %142, %144, %cst_165 {dimension_numbers = #tpu.dot_dimension_numbers<[1], [0], [0], [1], [0, 0, 1, 1], [], []>} : vector<512x128xbf16>, vector<128x128xbf16>, vector<512x128xf32> -> vector<512x128xf32>
    %146 = arith.addf %138, %145 : vector<512x128xf32>
    %c1_166 = arith.constant 1 : index
    %c0_167 = arith.constant 0 : index
    %c1_168 = arith.constant 1 : index
    %c0_169 = arith.constant 0 : index
    %c0_170 = arith.constant 0 : index
    %c0_171 = arith.constant 0 : index
    %147 = vector.load %arg8[%c1_166, %c0_167, %c1_168, %c0_169, %c0_170, %c0_171] : memref<9x2x9x2x8x128xf32, #tpu.memory_space<vmem>>, vector<8x1x8x1x8x128xf32>
    %148 = vector.shape_cast %147 : vector<8x1x8x1x8x128xf32> to vector<8x8x8x128xf32>
    %149 = vector.shape_cast %148 : vector<8x8x8x128xf32> to vector<512x128xf32>
    %150 = arith.truncf %149 : vector<512x128xf32> to vector<512x128xbf16>
    %c4_172 = arith.constant 4 : index
    %c0_173 = arith.constant 0 : index
    %c0_174 = arith.constant 0 : index
    %151 = vector.load %arg4[%c4_172, %c0_173, %c0_174] : memref<9x128x128xbf16, #tpu.memory_space<vmem>>, vector<1x128x128xbf16>
    %152 = vector.shape_cast %151 : vector<1x128x128xbf16> to vector<128x128xbf16>
    %cst_175 = arith.constant dense<0.000000e+00> : vector<512x128xf32>
    %153 = tpu.matmul %150, %152, %cst_175 {dimension_numbers = #tpu.dot_dimension_numbers<[1], [0], [0], [1], [0, 0, 1, 1], [], []>} : vector<512x128xbf16>, vector<128x128xbf16>, vector<512x128xf32> -> vector<512x128xf32>
    %154 = arith.addf %146, %153 : vector<512x128xf32>
    %c1_176 = arith.constant 1 : index
    %c0_177 = arith.constant 0 : index
    %c1_178 = arith.constant 1 : index
    %c1_179 = arith.constant 1 : index
    %c0_180 = arith.constant 0 : index
    %c0_181 = arith.constant 0 : index
    %155 = vector.load %arg8[%c1_176, %c0_177, %c1_178, %c1_179, %c0_180, %c0_181] : memref<9x2x9x2x8x128xf32, #tpu.memory_space<vmem>>, vector<8x1x8x1x8x128xf32>
    %156 = vector.shape_cast %155 : vector<8x1x8x1x8x128xf32> to vector<8x8x8x128xf32>
    %157 = vector.shape_cast %156 : vector<8x8x8x128xf32> to vector<512x128xf32>
    %158 = arith.truncf %157 : vector<512x128xf32> to vector<512x128xbf16>
    %c5_182 = arith.constant 5 : index
    %c0_183 = arith.constant 0 : index
    %c0_184 = arith.constant 0 : index
    %159 = vector.load %arg4[%c5_182, %c0_183, %c0_184] : memref<9x128x128xbf16, #tpu.memory_space<vmem>>, vector<1x128x128xbf16>
    %160 = vector.shape_cast %159 : vector<1x128x128xbf16> to vector<128x128xbf16>
    %cst_185 = arith.constant dense<0.000000e+00> : vector<512x128xf32>
    %161 = tpu.matmul %158, %160, %cst_185 {dimension_numbers = #tpu.dot_dimension_numbers<[1], [0], [0], [1], [0, 0, 1, 1], [], []>} : vector<512x128xbf16>, vector<128x128xbf16>, vector<512x128xf32> -> vector<512x128xf32>
    %162 = arith.addf %154, %161 : vector<512x128xf32>
    %c1_186 = arith.constant 1 : index
    %c1_187 = arith.constant 1 : index
    %c0_188 = arith.constant 0 : index
    %c1_189 = arith.constant 1 : index
    %c0_190 = arith.constant 0 : index
    %c0_191 = arith.constant 0 : index
    %163 = vector.load %arg8[%c1_186, %c1_187, %c0_188, %c1_189, %c0_190, %c0_191] : memref<9x2x9x2x8x128xf32, #tpu.memory_space<vmem>>, vector<8x1x8x1x8x128xf32>
    %164 = vector.shape_cast %163 : vector<8x1x8x1x8x128xf32> to vector<8x8x8x128xf32>
    %165 = vector.shape_cast %164 : vector<8x8x8x128xf32> to vector<512x128xf32>
    %166 = arith.truncf %165 : vector<512x128xf32> to vector<512x128xbf16>
    %c6_192 = arith.constant 6 : index
    %c0_193 = arith.constant 0 : index
    %c0_194 = arith.constant 0 : index
    %167 = vector.load %arg4[%c6_192, %c0_193, %c0_194] : memref<9x128x128xbf16, #tpu.memory_space<vmem>>, vector<1x128x128xbf16>
    %168 = vector.shape_cast %167 : vector<1x128x128xbf16> to vector<128x128xbf16>
    %cst_195 = arith.constant dense<0.000000e+00> : vector<512x128xf32>
    %169 = tpu.matmul %166, %168, %cst_195 {dimension_numbers = #tpu.dot_dimension_numbers<[1], [0], [0], [1], [0, 0, 1, 1], [], []>} : vector<512x128xbf16>, vector<128x128xbf16>, vector<512x128xf32> -> vector<512x128xf32>
    %170 = arith.addf %162, %169 : vector<512x128xf32>
    %c1_196 = arith.constant 1 : index
    %c1_197 = arith.constant 1 : index
    %c1_198 = arith.constant 1 : index
    %c0_199 = arith.constant 0 : index
    %c0_200 = arith.constant 0 : index
    %c0_201 = arith.constant 0 : index
    %171 = vector.load %arg8[%c1_196, %c1_197, %c1_198, %c0_199, %c0_200, %c0_201] : memref<9x2x9x2x8x128xf32, #tpu.memory_space<vmem>>, vector<8x1x8x1x8x128xf32>
    %172 = vector.shape_cast %171 : vector<8x1x8x1x8x128xf32> to vector<8x8x8x128xf32>
    %173 = vector.shape_cast %172 : vector<8x8x8x128xf32> to vector<512x128xf32>
    %174 = arith.truncf %173 : vector<512x128xf32> to vector<512x128xbf16>
    %c7_202 = arith.constant 7 : index
    %c0_203 = arith.constant 0 : index
    %c0_204 = arith.constant 0 : index
    %175 = vector.load %arg4[%c7_202, %c0_203, %c0_204] : memref<9x128x128xbf16, #tpu.memory_space<vmem>>, vector<1x128x128xbf16>
    %176 = vector.shape_cast %175 : vector<1x128x128xbf16> to vector<128x128xbf16>
    %cst_205 = arith.constant dense<0.000000e+00> : vector<512x128xf32>
    %177 = tpu.matmul %174, %176, %cst_205 {dimension_numbers = #tpu.dot_dimension_numbers<[1], [0], [0], [1], [0, 0, 1, 1], [], []>} : vector<512x128xbf16>, vector<128x128xbf16>, vector<512x128xf32> -> vector<512x128xf32>
    %178 = arith.addf %170, %177 : vector<512x128xf32>
    %c1_206 = arith.constant 1 : index
    %c1_207 = arith.constant 1 : index
    %c1_208 = arith.constant 1 : index
    %c1_209 = arith.constant 1 : index
    %c0_210 = arith.constant 0 : index
    %c0_211 = arith.constant 0 : index
    %179 = vector.load %arg8[%c1_206, %c1_207, %c1_208, %c1_209, %c0_210, %c0_211] : memref<9x2x9x2x8x128xf32, #tpu.memory_space<vmem>>, vector<8x1x8x1x8x128xf32>
    %180 = vector.shape_cast %179 : vector<8x1x8x1x8x128xf32> to vector<8x8x8x128xf32>
    %181 = vector.shape_cast %180 : vector<8x8x8x128xf32> to vector<512x128xf32>
    %182 = arith.truncf %181 : vector<512x128xf32> to vector<512x128xbf16>
    %c8_212 = arith.constant 8 : index
    %c0_213 = arith.constant 0 : index
    %c0_214 = arith.constant 0 : index
    %183 = vector.load %arg4[%c8_212, %c0_213, %c0_214] : memref<9x128x128xbf16, #tpu.memory_space<vmem>>, vector<1x128x128xbf16>
    %184 = vector.shape_cast %183 : vector<1x128x128xbf16> to vector<128x128xbf16>
    %cst_215 = arith.constant dense<0.000000e+00> : vector<512x128xf32>
    %185 = tpu.matmul %182, %184, %cst_215 {dimension_numbers = #tpu.dot_dimension_numbers<[1], [0], [0], [1], [0, 0, 1, 1], [], []>} : vector<512x128xbf16>, vector<128x128xbf16>, vector<512x128xf32> -> vector<512x128xf32>
    %186 = arith.addf %178, %185 : vector<512x128xf32>
    %cst_216 = arith.constant dense<0.000000e+00> : vector<128xf32>
    %187 = vector.multi_reduction <add>, %186, %cst_216 [0] : vector<512x128xf32> to vector<128xf32>
    %188 = vector.shape_cast %187 : vector<128xf32> to vector<1x128xf32>
    %cst_217 = arith.constant 7.812500e-03 : f32
    %189 = vector.broadcast %cst_217 : f32 to vector<1x128xf32>
    %190 = arith.mulf %188, %189 : vector<1x128xf32>
    %191 = tpu.iota {dimensions = array<i32: 2>} : vector<8x8x8x1xi32>
    %c2_i32_218 = arith.constant 2 : i32
    %192 = vector.broadcast %c2_i32_218 : i32 to vector<8x8x8x1xi32>
    %193 = arith.cmpi slt, %191, %192 : vector<8x8x8x1xi32>
    %194 = vector.shape_cast %193 : vector<8x8x8x1xi1> to vector<512x1xi1>
    %195 = vector.broadcast %190 : vector<1x128xf32> to vector<512x128xf32>
    %196 = arith.subf %186, %195 : vector<512x128xf32>
    %cst_219 = arith.constant 0.000000e+00 : f32
    %197 = vector.shape_cast %194 : vector<512x1xi1> to vector<512x1xi1>
    %198 = vector.broadcast %197 : vector<512x1xi1> to vector<512x128xi1>
    %199 = vector.broadcast %cst_219 : f32 to vector<512x128xf32>
    %200 = arith.select %198, %196, %199 : vector<512x128xi1>, vector<512x128xf32>
    %201 = arith.mulf %200, %200 : vector<512x128xf32>
    %cst_220 = arith.constant dense<0.000000e+00> : vector<128xf32>
    %202 = vector.multi_reduction <add>, %201, %cst_220 [0] : vector<512x128xf32> to vector<128xf32>
    %203 = vector.shape_cast %202 : vector<128xf32> to vector<1x128xf32>
    %cst_221 = arith.constant 7.812500e-03 : f32
    %204 = vector.broadcast %cst_221 : f32 to vector<1x128xf32>
    %205 = arith.mulf %203, %204 : vector<1x128xf32>
    %c0_222 = arith.constant 0 : index
    %c0_223 = arith.constant 0 : index
    %206 = vector.load %arg5[%c0_222, %c0_223] : memref<1x128xf32, #tpu.memory_space<vmem>>, vector<1x128xf32>
    %cst_224 = arith.constant 9.99999974E-6 : f32
    %207 = vector.broadcast %cst_224 : f32 to vector<1x128xf32>
    %208 = arith.addf %205, %207 : vector<1x128xf32>
    %209 = math.rsqrt %208 : vector<1x128xf32>
    %210 = arith.mulf %206, %209 : vector<1x128xf32>
    %211 = vector.broadcast %210 : vector<1x128xf32> to vector<512x128xf32>
    %212 = arith.mulf %200, %211 : vector<512x128xf32>
    %c0_225 = arith.constant 0 : index
    %c0_226 = arith.constant 0 : index
    %213 = vector.load %arg6[%c0_225, %c0_226] : memref<1x128xf32, #tpu.memory_space<vmem>>, vector<1x128xf32>
    %214 = vector.broadcast %213 : vector<1x128xf32> to vector<512x128xf32>
    %215 = arith.addf %212, %214 : vector<512x128xf32>
    %cst_227 = arith.constant 0.000000e+00 : f32
    %216 = vector.broadcast %cst_227 : f32 to vector<512x128xf32>
    %217 = arith.maximumf %215, %216 : vector<512x128xf32>
    %c3_228 = arith.constant 3 : index
    %c0_229 = arith.constant 0 : index
    %c3_230 = arith.constant 3 : index
    %c0_231 = arith.constant 0 : index
    %c0_232 = arith.constant 0 : index
    %c0_233 = arith.constant 0 : index
    %218 = vector.load %arg0[%c3_228, %c0_229, %c3_230, %c0_231, %c0_232, %c0_233] : memref<9x2x9x2x8x128xf32, #tpu.memory_space<vmem>>, vector<4x2x4x2x8x128xf32>
    %219 = vector.shape_cast %218 : vector<4x2x4x2x8x128xf32> to vector<512x128xf32>
    %220 = arith.addf %217, %219 : vector<512x128xf32>
    %c0_234 = arith.constant 0 : index
    %c0_235 = arith.constant 0 : index
    %221 = vector.load %arg7[%c0_234, %c0_235] : memref<512x128xf32, #tpu.memory_space<vmem>>, vector<512x128xf32>
    tpu.vector_store %arg7[%c0_234, %c0_235], %220 {strides = array<i32>} : memref<512x128xf32, #tpu.memory_space<vmem>>, vector<512x128xf32>,
    return
  }
}

</mosaic_0001>

<llo_original>
// kernel: tpu_custom_call.1
$region0: #{tpu_custom_call.1}
  #allocation0 [shape = 'u32[]', space=smem, size = 0x4, offset = 0x4, fixed_abs, tag = 'smem constant byte address 0x4 - core index']
  #allocation1 [shape = 'u32[144,128]{1,0:T(1,128)}', space=vmem, size = 0x12000, scoped, tag = 'internal scratch']
  #allocation2 [shape = 'f32[9,2,9,2,8,128]{5,4,3,2,1,0:T(8,128)}', space=vmem, size = 0x144000, scoped, tag = 'scratch operand']
  %s0 = inlined_call_operand.hbm [shape: f32[9,2,9,2,8,128], index: 0, kind: input, shape index: {}]
  %s1 = inlined_call_operand.hbm [shape: bf16[9,128,128], index: 1, kind: input, shape index: {}]
  %s2 = inlined_call_operand.hbm [shape: f32[1,128], index: 2, kind: input, shape index: {}]
  %s3 = inlined_call_operand.hbm [shape: f32[1,128], index: 3, kind: input, shape index: {}]
  %s4 = inlined_call_operand.hbm [shape: bf16[9,128,128], index: 4, kind: input, shape index: {}]
  %s5 = inlined_call_operand.hbm [shape: f32[1,128], index: 5, kind: input, shape index: {}]
  %s6 = inlined_call_operand.hbm [shape: f32[1,128], index: 6, kind: input, shape index: {}]
  %s7 = inlined_call_operand.hbm [shape: f32[512,128], index: 7, kind: output, shape index: {}]
  %s8 = sld [smem:[#allocation0]]
  $region66: #{tpu_custom_call.1} parent=0
    _
  %s10 = ssub.s32 1, %s8
  %s11 = scalar_select 0, %s10, %s8
  $region1: #{tpu_custom_call.1} parent=0
    #allocation3 [shape = 'u8[1327104]{0}', space=vmem, size = 0x144000, scoped, tag = 'input window, operand 0, single buffered']
    #allocation4 [shape = 's32[1]{0}', space=sflag, size = 0x4, scoped, tag = 'scoped memory for tpu_custom_call.1']
    #allocation5 [shape = 's32[1]{0}', space=sflag, size = 0x4, scoped, tag = 'scoped memory for tpu_custom_call.1']
    #allocation6 [shape = 'u8[294912]{0}', space=vmem, size = 0x48000, scoped, tag = 'input window, operand 1, single buffered']
    #allocation7 [shape = 's32[1]{0}', space=sflag, size = 0x4, scoped, tag = 'scoped memory for tpu_custom_call.1']
    #allocation8 [shape = 'u8[512]{0}', space=vmem, size = 0x400, scoped, tag = 'input window, operand 2, single buffered']
    #allocation9 [shape = 'u8[512]{0}', space=vmem, size = 0x400, scoped, tag = 'input window, operand 3, single buffered']
    #allocation10 [shape = 's32[1]{0}', space=sflag, size = 0x4, scoped, tag = 'scoped memory for tpu_custom_call.1']
    #allocation11 [shape = 'u8[294912]{0}', space=vmem, size = 0x48000, scoped, tag = 'input window, operand 4, single buffered']
    #allocation12 [shape = 'u8[512]{0}', space=vmem, size = 0x400, scoped, tag = 'input window, operand 5, single buffered']
    #allocation13 [shape = 's32[1]{0}', space=sflag, size = 0x4, scoped, tag = 'scoped memory for tpu_custom_call.1']
    #allocation14 [shape = 'u8[512]{0}', space=vmem, size = 0x400, scoped, tag = 'input window, operand 6, single buffered']
    #allocation15 [shape = 'u8[262144]{0}', space=vmem, size = 0x40000, scoped, tag = 'output window, operand 0, single buffered']
    %12 = vsyncpa [#allocation4], 0
    %13 = vsyncpa [#allocation7], 0
    %14 = vsyncpa [#allocation10], 0
    %15 = vsyncpa [#allocation13], 0
    %16 = vsyncpa [#allocation5], 0
    // Predicated region
    $region2: #{tpu_custom_call.1} parent=1 // pred_check
      _
    $region3: #{tpu_custom_call.1} parent=1 // pred_check_branch
      %18 = sbr.rel (0) target = $region5
    $region4: #{tpu_custom_call.1} parent=1 // pred_region
      %s20 = ssub.s32 41472, 41472
      %21 = vsyncadd [#allocation4], %s20
      %s22 = sshll.u32 [#allocation3], 4
      %s23 = int_to_ptr.vmem [resolvable:$true] %s22
      %28 = dma.hbm_to_vmem [thread:$0]  %s0, 41472, %s23, [#allocation4], 128, 128, 8
    $region5: #{tpu_custom_call.1} parent=1 // pred_fallthru
      _
    // Predicated region
    $region6: #{tpu_custom_call.1} parent=1 // pred_check
      _
    $region7: #{tpu_custom_call.1} parent=1 // pred_check_branch
      %30 = sbr.rel (0) target = $region9
    $region8: #{tpu_custom_call.1} parent=1 // pred_region
      %s32 = ssub.s32 9216, 9216
      %33 = vsyncadd [#allocation7], %s32
      %s34 = sshll.u32 [#allocation6], 4
      %s35 = int_to_ptr.vmem [resolvable:$true] %s34
      %40 = dma.hbm_to_vmem [thread:$0]  %s1, 9216, %s35, [#allocation7], 64, 64, 4
    $region9: #{tpu_custom_call.1} parent=1 // pred_fallthru
      _
    // Predicated region
    $region10: #{tpu_custom_call.1} parent=1 // pred_check
      _
    $region11: #{tpu_custom_call.1} parent=1 // pred_check_branch
      %42 = sbr.rel (0) target = $region13
    $region12: #{tpu_custom_call.1} parent=1 // pred_region
      %s44 = ssub.s32 16, 16
      %45 = vsyncadd [#allocation7], %s44
      %s47 = sshll.u32 [#allocation8], 4
      %s48 = int_to_ptr.vmem [resolvable:$true] %s47
      %50 = dma.hbm_to_vmem [thread:$0]  %s2, 16, %s48, [#allocation7]
    $region13: #{tpu_custom_call.1} parent=1 // pred_fallthru
      _
    // Predicated region
    $region14: #{tpu_custom_call.1} parent=1 // pred_check
      _
    $region15: #{tpu_custom_call.1} parent=1 // pred_check_branch
      %52 = sbr.rel (0) target = $region17
    $region16: #{tpu_custom_call.1} parent=1 // pred_region
      %s54 = ssub.s32 16, 16
      %55 = vsyncadd [#allocation10], %s54
      %s57 = sshll.u32 [#allocation9], 4
      %s58 = int_to_ptr.vmem [resolvable:$true] %s57
      %60 = dma.hbm_to_vmem [thread:$0]  %s3, 16, %s58, [#allocation10]
    $region17: #{tpu_custom_call.1} parent=1 // pred_fallthru
      _
    // Predicated region
    $region18: #{tpu_custom_call.1} parent=1 // pred_check
      _
    $region19: #{tpu_custom_call.1} parent=1 // pred_check_branch
      %62 = sbr.rel (0) target = $region21
    $region20: #{tpu_custom_call.1} parent=1 // pred_region
      %s64 = ssub.s32 9216, 9216
      %65 = vsyncadd [#allocation10], %s64
      %s66 = sshll.u32 [#allocation11], 4
      %s67 = int_to_ptr.vmem [resolvable:$true] %s66
      %72 = dma.hbm_to_vmem [thread:$0]  %s4, 9216, %s67, [#allocation10], 64, 64, 4
    $region21: #{tpu_custom_call.1} parent=1 // pred_fallthru
      _
    // Predicated region
    $region22: #{tpu_custom_call.1} parent=1 // pred_check
      _
    $region23: #{tpu_custom_call.1} parent=1 // pred_check_branch
      %74 = sbr.rel (0) target = $region25
    $region24: #{tpu_custom_call.1} parent=1 // pred_region
      %s76 = ssub.s32 16, 16
      %77 = vsyncadd [#allocation13], %s76
      %s79 = sshll.u32 [#allocation12], 4
      %s80 = int_to_ptr.vmem [resolvable:$true] %s79
      %82 = dma.hbm_to_vmem [thread:$0]  %s5, 16, %s80, [#allocation13]
    $region25: #{tpu_custom_call.1} parent=1 // pred_fallthru
      _
    // Predicated region
    $region26: #{tpu_custom_call.1} parent=1 // pred_check
      _
    $region27: #{tpu_custom_call.1} parent=1 // pred_check_branch
      %84 = sbr.rel (0) target = $region29
    $region28: #{tpu_custom_call.1} parent=1 // pred_region
      %s86 = ssub.s32 16, 16
      %87 = vsyncadd [#allocation13], %s86
      %s89 = sshll.u32 [#allocation14], 4
      %s90 = int_to_ptr.vmem [resolvable:$true] %s89
      %92 = dma.hbm_to_vmem [thread:$0]  %s6, 16, %s90, [#allocation13]
    $region29: #{tpu_custom_call.1} parent=1 // pred_fallthru
      _
    // Predicated region
    $region30: #{tpu_custom_call.1} parent=1 // pred_check
      _
    $region31: #{tpu_custom_call.1} parent=1 // pred_check_branch
      %94 = sbr.rel (0) target = $region33
    $region32: #{tpu_custom_call.1} parent=1 // pred_region
      %95 = dma.done [#allocation4], 41472
    $region33: #{tpu_custom_call.1} parent=1 // pred_fallthru
      _
    // Predicated region
    $region34: #{tpu_custom_call.1} parent=1 // pred_check
      _
    $region35: #{tpu_custom_call.1} parent=1 // pred_check_branch
      %97 = sbr.rel (0) target = $region37
    $region36: #{tpu_custom_call.1} parent=1 // pred_region
      %98 = dma.done [#allocation7], 9216
    $region37: #{tpu_custom_call.1} parent=1 // pred_fallthru
      _
    // Predicated region
    $region38: #{tpu_custom_call.1} parent=1 // pred_check
      _
    $region39: #{tpu_custom_call.1} parent=1 // pred_check_branch
      %100 = sbr.rel (0) target = $region41
    $region40: #{tpu_custom_call.1} parent=1 // pred_region
      %101 = dma.done [#allocation7], 16
    $region41: #{tpu_custom_call.1} parent=1 // pred_fallthru
      _
    // Predicated region
    $region42: #{tpu_custom_call.1} parent=1 // pred_check
      _
    $region43: #{tpu_custom_call.1} parent=1 // pred_check_branch
      %103 = sbr.rel (0) target = $region45
    $region44: #{tpu_custom_call.1} parent=1 // pred_region
      %104 = dma.done [#allocation10], 16
    $region45: #{tpu_custom_call.1} parent=1 // pred_fallthru
      _
    // Predicated region
    $region46: #{tpu_custom_call.1} parent=1 // pred_check
      _
    $region47: #{tpu_custom_call.1} parent=1 // pred_check_branch
      %106 = sbr.rel (0) target = $region49
    $region48: #{tpu_custom_call.1} parent=1 // pred_region
      %107 = dma.done [#allocation10], 9216
    $region49: #{tpu_custom_call.1} parent=1 // pred_fallthru
      _
    // Predicated region
    $region50: #{tpu_custom_call.1} parent=1 // pred_check
      _
    $region51: #{tpu_custom_call.1} parent=1 // pred_check_branch
      %109 = sbr.rel (0) target = $region53
    $region52: #{tpu_custom_call.1} parent=1 // pred_region
      %110 = dma.done [#allocation13], 16
    $region53: #{tpu_custom_call.1} parent=1 // pred_fallthru
      _
    // Predicated region
    $region54: #{tpu_custom_call.1} parent=1 // pred_check
      _
    $region55: #{tpu_custom_call.1} parent=1 // pred_check_branch
      %112 = sbr.rel (0) target = $region57
    $region56: #{tpu_custom_call.1} parent=1 // pred_region
      %113 = dma.done [#allocation13], 16
    $region57: #{tpu_custom_call.1} parent=1 // pred_fallthru
      _
    %s115 = scalar_lea.vmem [#allocation3], 152
    %v116 = vld [vmem:[%s115] sm:$0xff]
    %v117 = vld [vmem:[%s115 + $0x10] sm:$0xff]
    %v118 = vld [vmem:[%s115 + $0x20] sm:$0xff]
    %v119 = vld [vmem:[%s115 + $0x30] sm:$0xff]
    %v120 = vld [vmem:[%s115 + $0x40] sm:$0xff]
    %v121 = vld [vmem:[%s115 + $0x50] sm:$0xff]
    %v122 = vld [vmem:[%s115 + $0x60] sm:$0xff]
    %v123 = vld [vmem:[%s115 + $0x70] sm:$0xff]
    %v124 = vld [vmem:[%s115 + $0x120] sm:$0xff]
    %v125 = vld [vmem:[%s115 + $0x130] sm:$0xff]
    %v126 = vld [vmem:[%s115 + $0x140] sm:$0xff]
    %v127 = vld [vmem:[%s115 + $0x150] sm:$0xff]
    %v128 = vld [vmem:[%s115 + $0x160] sm:$0xff]
    %v129 = vld [vmem:[%s115 + $0x170] sm:$0xff]
    %v130 = vld [vmem:[%s115 + $0x180] sm:$0xff]
    %v131 = vld [vmem:[%s115 + $0x190] sm:$0xff]
    %v132 = vld [vmem:[%s115 + $0x240] sm:$0xff]
    %v133 = vld [vmem:[%s115 + $0x250] sm:$0xff]
    %v134 = vld [vmem:[%s115 + $0x260] sm:$0xff]
    %v135 = vld [vmem:[%s115 + $0x270] sm:$0xff]
    %v136 = vld [vmem:[%s115 + $0x280] sm:$0xff]
    %v137 = vld [vmem:[%s115 + $0x290] sm:$0xff]
    %v138 = vld [vmem:[%s115 + $0x2a0] sm:$0xff]
    %v139 = vld [vmem:[%s115 + $0x2b0] sm:$0xff]
    %v140 = vld [vmem:[%s115 + $0x360] sm:$0xff]
    %v141 = vld [vmem:[%s115 + $0x370] sm:$0xff]
    %v142 = vld [vmem:[%s115 + $0x380] sm:$0xff]
    %v143 = vld [vmem:[%s115 + $0x390] sm:$0xff]
    %v144 = vld [vmem:[%s115 + $0x3a0] sm:$0xff]
    %v145 = vld [vmem:[%s115 + $0x3b0] sm:$0xff]
    %v146 = vld [vmem:[%s115 + $0x3c0] sm:$0xff]
    %v147 = vld [vmem:[%s115 + $0x3d0] sm:$0xff]
    %v148 = vld [vmem:[%s115 + $0x480] sm:$0xff]
    %v149 = vld [vmem:[%s115 + $0x490] sm:$0xff]
    %v150 = vld [vmem:[%s115 + $0x4a0] sm:$0xff]
    %v151 = vld [vmem:[%s115 + $0x4b0] sm:$0xff]
    %v152 = vld [vmem:[%s115 + $0x4c0] sm:$0xff]
    %v153 = vld [vmem:[%s115 + $0x4d0] sm:$0xff]
    %v154 = vld [vmem:[%s115 + $0x4e0] sm:$0xff]
    %v155 = vld [vmem:[%s115 + $0x4f0] sm:$0xff]
    %v156 = vld [vmem:[%s115 + $0x5a0] sm:$0xff]
    %v157 = vld [vmem:[%s115 + $0x5b0] sm:$0xff]
    %v158 = vld [vmem:[%s115 + $0x5c0] sm:$0xff]
    %v159 = vld [vmem:[%s115 + $0x5d0] sm:$0xff]
    %v160 = vld [vmem:[%s115 + $0x5e0] sm:$0xff]
    %v161 = vld [vmem:[%s115 + $0x5f0] sm:$0xff]
    %v162 = vld [vmem:[%s115 + $0x600] sm:$0xff]
    %v163 = vld [vmem:[%s115 + $0x610] sm:$0xff]
    %v164 = vld [vmem:[%s115 + $0x6c0] sm:$0xff]
    %v165 = vld [vmem:[%s115 + $0x6d0] sm:$0xff]
    %v166 = vld [vmem:[%s115 + $0x6e0] sm:$0xff]
    %v167 = vld [vmem:[%s115 + $0x6f0] sm:$0xff]
    %v168 = vld [vmem:[%s115 + $0x700] sm:$0xff]
    %v169 = vld [vmem:[%s115 + $0x710] sm:$0xff]
    %v170 = vld [vmem:[%s115 + $0x720] sm:$0xff]
    %v171 = vld [vmem:[%s115 + $0x730] sm:$0xff]
    %v172 = vld [vmem:[%s115 + $0x7e0] sm:$0xff]
    %v173 = vld [vmem:[%s115 + $0x7f0] sm:$0xff]
    %v174 = vld [vmem:[%s115 + $0x800] sm:$0xff]
    %v175 = vld [vmem:[%s115 + $0x810] sm:$0xff]
    %v176 = vld [vmem:[%s115 + $0x820] sm:$0xff]
    %v177 = vld [vmem:[%s115 + $0x830] sm:$0xff]
    %v178 = vld [vmem:[%s115 + $0x840] sm:$0xff]
    %v179 = vld [vmem:[%s115 + $0x850] sm:$0xff]
    %v180 = vpack.c.bf16 %v117, %v116
    %v181 = vpack.c.bf16 %v119, %v118
    %v182 = vpack.c.bf16 %v121, %v120
    %v183 = vpack.c.bf16 %v123, %v122
    %v184 = vpack.c.bf16 %v125, %v124
    %v185 = vpack.c.bf16 %v127, %v126
    %v186 = vpack.c.bf16 %v129, %v128
    %v187 = vpack.c.bf16 %v131, %v130
    %v188 = vpack.c.bf16 %v133, %v132
    %v189 = vpack.c.bf16 %v135, %v134
    %v190 = vpack.c.bf16 %v137, %v136
    %v191 = vpack.c.bf16 %v139, %v138
    %v192 = vpack.c.bf16 %v141, %v140
    %v193 = vpack.c.bf16 %v143, %v142
    %v194 = vpack.c.bf16 %v145, %v144
    %v195 = vpack.c.bf16 %v147, %v146
    %v196 = vpack.c.bf16 %v149, %v148
    %v197 = vpack.c.bf16 %v151, %v150
    %v198 = vpack.c.bf16 %v153, %v152
    %v199 = vpack.c.bf16 %v155, %v154
    %v200 = vpack.c.bf16 %v157, %v156
    %v201 = vpack.c.bf16 %v159, %v158
    %v202 = vpack.c.bf16 %v161, %v160
    %v203 = vpack.c.bf16 %v163, %v162
    %v204 = vpack.c.bf16 %v165, %v164
    %v205 = vpack.c.bf16 %v167, %v166
    %v206 = vpack.c.bf16 %v169, %v168
    %v207 = vpack.c.bf16 %v171, %v170
    %v208 = vpack.c.bf16 %v173, %v172
    %v209 = vpack.c.bf16 %v175, %v174
    %v210 = vpack.c.bf16 %v177, %v176
    %v211 = vpack.c.bf16 %v179, %v178
    %v212 = vld [vmem:[#allocation6] sm:$0xf]
    %v213 = vld [vmem:[#allocation6 + $0x4] sm:$0xf]
    %v214 = vld [vmem:[#allocation6 + $0x8] sm:$0xf]
    %v215 = vld [vmem:[#allocation6 + $0xc] sm:$0xf]
    %v216 = vld [vmem:[#allocation6 + $0x10] sm:$0xf]
    %v217 = vld [vmem:[#allocation6 + $0x14] sm:$0xf]
    %v218 = vld [vmem:[#allocation6 + $0x18] sm:$0xf]
    %v219 = vld [vmem:[#allocation6 + $0x1c] sm:$0xf]
    %v220 = vld [vmem:[#allocation6 + $0x20] sm:$0xf]
    %v221 = vld [vmem:[#allocation6 + $0x24] sm:$0xf]
    %v222 = vld [vmem:[#allocation6 + $0x28] sm:$0xf]
    %v223 = vld [vmem:[#allocation6 + $0x2c] sm:$0xf]
    %v224 = vld [vmem:[#allocation6 + $0x30] sm:$0xf]
    %v225 = vld [vmem:[#allocation6 + $0x34] sm:$0xf]
    %v226 = vld [vmem:[#allocation6 + $0x38] sm:$0xf]
    %v227 = vld [vmem:[#allocation6 + $0x3c] sm:$0xf]
    %s228 = scalar_lea.vmem [#allocation3], 160
    %v229 = vld [vmem:[%s228] sm:$0xff]
    %v230 = vld [vmem:[%s228 + $0x10] sm:$0xff]
    %v231 = vld [vmem:[%s228 + $0x20] sm:$0xff]
    %v232 = vld [vmem:[%s228 + $0x30] sm:$0xff]
    %v233 = vld [vmem:[%s228 + $0x40] sm:$0xff]
    %v234 = vld [vmem:[%s228 + $0x50] sm:$0xff]
    %v235 = vld [vmem:[%s228 + $0x60] sm:$0xff]
    %v236 = vld [vmem:[%s228 + $0x70] sm:$0xff]
    %v237 = vld [vmem:[%s228 + $0x120] sm:$0xff]
    %v238 = vld [vmem:[%s228 + $0x130] sm:$0xff]
    %v239 = vld [vmem:[%s228 + $0x140] sm:$0xff]
    %v240 = vld [vmem:[%s228 + $0x150] sm:$0xff]
    %v241 = vld [vmem:[%s228 + $0x160] sm:$0xff]
    %v242 = vld [vmem:[%s228 + $0x170] sm:$0xff]
    %v243 = vld [vmem:[%s228 + $0x180] sm:$0xff]
    %v244 = vld [vmem:[%s228 + $0x190] sm:$0xff]
    %v245 = vld [vmem:[%s228 + $0x240] sm:$0xff]
    %v246 = vld [vmem:[%s228 + $0x250] sm:$0xff]
    %v247 = vld [vmem:[%s228 + $0x260] sm:$0xff]
    %v248 = vld [vmem:[%s228 + $0x270] sm:$0xff]
    %v249 = vld [vmem:[%s228 + $0x280] sm:$0xff]
    %v250 = vld [vmem:[%s228 + $0x290] sm:$0xff]
    %v251 = vld [vmem:[%s228 + $0x2a0] sm:$0xff]
    %v252 = vld [vmem:[%s228 + $0x2b0] sm:$0xff]
    %v253 = vld [vmem:[%s228 + $0x360] sm:$0xff]
    %v254 = vld [vmem:[%s228 + $0x370] sm:$0xff]
    %v255 = vld [vmem:[%s228 + $0x380] sm:$0xff]
    %v256 = vld [vmem:[%s228 + $0x390] sm:$0xff]
    %v257 = vld [vmem:[%s228 + $0x3a0] sm:$0xff]
    %v258 = vld [vmem:[%s228 + $0x3b0] sm:$0xff]
    %v259 = vld [vmem:[%s228 + $0x3c0] sm:$0xff]
    %v260 = vld [vmem:[%s228 + $0x3d0] sm:$0xff]
    %v261 = vld [vmem:[%s228 + $0x480] sm:$0xff]
    %v262 = vld [vmem:[%s228 + $0x490] sm:$0xff]
    %v263 = vld [vmem:[%s228 + $0x4a0] sm:$0xff]
    %v264 = vld [vmem:[%s228 + $0x4b0] sm:$0xff]
    %v265 = vld [vmem:[%s228 + $0x4c0] sm:$0xff]
    %v266 = vld [vmem:[%s228 + $0x4d0] sm:$0xff]
    %v267 = vld [vmem:[%s228 + $0x4e0] sm:$0xff]
    %v268 = vld [vmem:[%s228 + $0x4f0] sm:$0xff]
    %v269 = vld [vmem:[%s228 + $0x5a0] sm:$0xff]
    %v270 = vld [vmem:[%s228 + $0x5b0] sm:$0xff]
    %v271 = vld [vmem:[%s228 + $0x5c0] sm:$0xff]
    %v272 = vld [vmem:[%s228 + $0x5d0] sm:$0xff]
    %v273 = vld [vmem:[%s228 + $0x5e0] sm:$0xff]
    %v274 = vld [vmem:[%s228 + $0x5f0] sm:$0xff]
    %v275 = vld [vmem:[%s228 + $0x600] sm:$0xff]
    %v276 = vld [vmem:[%s228 + $0x610] sm:$0xff]
    %v277 = vld [vmem:[%s228 + $0x6c0] sm:$0xff]
    %v278 = vld [vmem:[%s228 + $0x6d0] sm:$0xff]
    %v279 = vld [vmem:[%s228 + $0x6e0] sm:$0xff]
    %v280 = vld [vmem:[%s228 + $0x6f0] sm:$0xff]
    %v281 = vld [vmem:[%s228 + $0x700] sm:$0xff]
    %v282 = vld [vmem:[%s228 + $0x710] sm:$0xff]
    %v283 = vld [vmem:[%s228 + $0x720] sm:$0xff]
    %v284 = vld [vmem:[%s228 + $0x730] sm:$0xff]
    %v285 = vld [vmem:[%s228 + $0x7e0] sm:$0xff]
    %v286 = vld [vmem:[%s228 + $0x7f0] sm:$0xff]
    %v287 = vld [vmem:[%s228 + $0x800] sm:$0xff]
    %v288 = vld [vmem:[%s228 + $0x810] sm:$0xff]
    %v289 = vld [vmem:[%s228 + $0x820] sm:$0xff]
    %v290 = vld [vmem:[%s228 + $0x830] sm:$0xff]
    %v291 = vld [vmem:[%s228 + $0x840] sm:$0xff]
    %v292 = vld [vmem:[%s228 + $0x850] sm:$0xff]
    %v293 = vpack.c.bf16 %v230, %v229
    %v294 = vpack.c.bf16 %v232, %v231
    %v295 = vpack.c.bf16 %v234, %v233
    %v296 = vpack.c.bf16 %v236, %v235
    %v297 = vpack.c.bf16 %v238, %v237
    %v298 = vpack.c.bf16 %v240, %v239
    %v299 = vpack.c.bf16 %v242, %v241
    %v300 = vpack.c.bf16 %v244, %v243
    %v301 = vpack.c.bf16 %v246, %v245
    %v302 = vpack.c.bf16 %v248, %v247
    %v303 = vpack.c.bf16 %v250, %v249
    %v304 = vpack.c.bf16 %v252, %v251
    %v305 = vpack.c.bf16 %v254, %v253
    %v306 = vpack.c.bf16 %v256, %v255
    %v307 = vpack.c.bf16 %v258, %v257
    %v308 = vpack.c.bf16 %v260, %v259
    %v309 = vpack.c.bf16 %v262, %v261
    %v310 = vpack.c.bf16 %v264, %v263
    %v311 = vpack.c.bf16 %v266, %v265
    %v312 = vpack.c.bf16 %v268, %v267
    %v313 = vpack.c.bf16 %v270, %v269
    %v314 = vpack.c.bf16 %v272, %v271
    %v315 = vpack.c.bf16 %v274, %v273
    %v316 = vpack.c.bf16 %v276, %v275
    %v317 = vpack.c.bf16 %v278, %v277
    %v318 = vpack.c.bf16 %v280, %v279
    %v319 = vpack.c.bf16 %v282, %v281
    %v320 = vpack.c.bf16 %v284, %v283
    %v321 = vpack.c.bf16 %v286, %v285
    %v322 = vpack.c.bf16 %v288, %v287
    %v323 = vpack.c.bf16 %v290, %v289
    %v324 = vpack.c.bf16 %v292, %v291
    %s325 = scalar_lea.vmem [#allocation6], 64
    %v326 = vld [vmem:[%s325] sm:$0xf]
    %v327 = vld [vmem:[%s325 + $0x4] sm:$0xf]
    %v328 = vld [vmem:[%s325 + $0x8] sm:$0xf]
    %v329 = vld [vmem:[%s325 + $0xc] sm:$0xf]
    %v330 = vld [vmem:[%s325 + $0x10] sm:$0xf]
    %v331 = vld [vmem:[%s325 + $0x14] sm:$0xf]
    %v332 = vld [vmem:[%s325 + $0x18] sm:$0xf]
    %v333 = vld [vmem:[%s325 + $0x1c] sm:$0xf]
    %v334 = vld [vmem:[%s325 + $0x20] sm:$0xf]
    %v335 = vld [vmem:[%s325 + $0x24] sm:$0xf]
    %v336 = vld [vmem:[%s325 + $0x28] sm:$0xf]
    %v337 = vld [vmem:[%s325 + $0x2c] sm:$0xf]
    %v338 = vld [vmem:[%s325 + $0x30] sm:$0xf]
    %v339 = vld [vmem:[%s325 + $0x34] sm:$0xf]
    %v340 = vld [vmem:[%s325 + $0x38] sm:$0xf]
    %v341 = vld [vmem:[%s325 + $0x3c] sm:$0xf]
    %v358 = vunpack.c.l.b16 %v326
    %v359 = vunpack.c.l.b16 %v327
    %v360 = vunpack.c.l.b16 %v328
    %v361 = vunpack.c.l.b16 %v329
    %v362 = vunpack.c.l.b16 %v330
    %v363 = vunpack.c.l.b16 %v331
    %v364 = vunpack.c.l.b16 %v332
    %v365 = vunpack.c.l.b16 %v333
    %v366 = vunpack.c.l.b16 %v334
    %v367 = vunpack.c.l.b16 %v335
    %v368 = vunpack.c.l.b16 %v336
    %v369 = vunpack.c.l.b16 %v337
    %v370 = vunpack.c.l.b16 %v338
    %v371 = vunpack.c.l.b16 %v339
    %v372 = vunpack.c.l.b16 %v340
    %v373 = vunpack.c.l.b16 %v341
    %v374 = vpack.c.b16 %v359, %v358
    %v375 = vpack.c.b16 %v361, %v360
    %v376 = vpack.c.b16 %v363, %v362
    %v377 = vpack.c.b16 %v365, %v364
    %v378 = vpack.c.b16 %v367, %v366
    %v379 = vpack.c.b16 %v369, %v368
    %v380 = vpack.c.b16 %v371, %v370
    %v381 = vpack.c.b16 %v373, %v372
    %390 = vmatprep.subr.bf16.mxu0 0
    %391 = vmatpush1.bf16.msra.mxu0 %v381
    %392 = vmatprep.subr.bf16.mxu0 0
    %393 = vmatpush1.bf16.msra.mxu0 %v380
    %394 = vmatprep.subr.bf16.mxu0 0
    %395 = vmatpush1.bf16.msra.mxu0 %v379
    %396 = vmatprep.subr.bf16.mxu0 0
    %397 = vmatpush1.bf16.msra.mxu0 %v378
    %398 = vmatprep.subr.bf16.mxu0 0
    %399 = vmatpush1.bf16.msra.mxu0 %v377
    %400 = vmatprep.subr.bf16.mxu0 0
    %401 = vmatpush1.bf16.msra.mxu0 %v376
    %402 = vmatprep.subr.bf16.mxu0 0
    %403 = vmatpush1.bf16.msra.mxu0 %v375
    %404 = vmatprep.subr.bf16.mxu0 0
    %405 = vmatpush1.bf16.msra.mxu0 %v374
    %406 = vmatprep.subr.bf16.mxu0 0
    %407 = vmatpush2.bf16.msra.mxu0 0
    %408 = vmatprep.subr.bf16.mxu0 0
    %409 = vmatpush2.bf16.msra.mxu0 0
    %410 = vmatprep.subr.bf16.mxu0 0
    %411 = vmatpush2.bf16.msra.mxu0 0
    %412 = vmatprep.subr.bf16.mxu0 0
    %413 = vmatpush2.bf16.msra.mxu0 0
    %414 = vmatprep.subr.bf16.mxu0 0
    %415 = vmatpush2.bf16.msra.mxu0 0
    %416 = vmatprep.subr.bf16.mxu0 0
    %417 = vmatpush2.bf16.msra.mxu0 0
    %418 = vmatprep.subr.bf16.mxu0 0
    %419 = vmatpush2.bf16.msra.mxu0 0
    %420 = vmatprep.subr.bf16.mxu0 0
    %421 = vmatpush2.bf16.msra.mxu0 0
    %422 = vmatprep.mubr.bf16.mxu0 0
    %423 = vmatmul.mubr.bf16.gmra.mxu0 %v293
    %v424 = vpop.f32.mrf.mxu0
    %v425 = vadd.f32 0.0, %v424
    %v426 = vpop.f32.mrf.mxu0
    %v427 = vpop.f32.mrf.mxu0
    %v428 = vadd.f32 0.0, %v427
    %v429 = vpop.f32.mrf.mxu0
    %430 = vmatprep.mubr.bf16.mxu0 0
    %431 = vmatmul.mubr.bf16.gmra.mxu0 %v294
    %v432 = vpop.f32.mrf.mxu0
    %v433 = vadd.f32 0.0, %v432
    %v434 = vpop.f32.mrf.mxu0
    %v435 = vpop.f32.mrf.mxu0
    %v436 = vadd.f32 0.0, %v435
    %v437 = vpop.f32.mrf.mxu0
    %438 = vmatprep.mubr.bf16.mxu0 0
    %439 = vmatmul.mubr.bf16.gmra.mxu0 %v295
    %v440 = vpop.f32.mrf.mxu0
    %v441 = vadd.f32 0.0, %v440
    %v442 = vpop.f32.mrf.mxu0
    %v443 = vpop.f32.mrf.mxu0
    %v444 = vadd.f32 0.0, %v443
    %v445 = vpop.f32.mrf.mxu0
    %446 = vmatprep.mubr.bf16.mxu0 0
    %447 = vmatmul.mubr.bf16.gmra.mxu0 %v296
    %v448 = vpop.f32.mrf.mxu0
    %v449 = vadd.f32 0.0, %v448
    %v450 = vpop.f32.mrf.mxu0
    %v451 = vpop.f32.mrf.mxu0
    %v452 = vadd.f32 0.0, %v451
    %v453 = vpop.f32.mrf.mxu0
    %454 = vmatprep.mubr.bf16.mxu0 0
    %455 = vmatmul.mubr.bf16.gmra.mxu0 %v297
    %v456 = vpop.f32.mrf.mxu0
    %v457 = vadd.f32 0.0, %v456
    %v458 = vpop.f32.mrf.mxu0
    %v459 = vpop.f32.mrf.mxu0
    %v460 = vadd.f32 0.0, %v459
    %v461 = vpop.f32.mrf.mxu0
    %462 = vmatprep.mubr.bf16.mxu0 0
    %463 = vmatmul.mubr.bf16.gmra.mxu0 %v298
    %v464 = vpop.f32.mrf.mxu0
    %v465 = vadd.f32 0.0, %v464
    %v466 = vpop.f32.mrf.mxu0
    %v467 = vpop.f32.mrf.mxu0
    %v468 = vadd.f32 0.0, %v467
    %v469 = vpop.f32.mrf.mxu0
    %470 = vmatprep.mubr.bf16.mxu0 0
    %471 = vmatmul.mubr.bf16.gmra.mxu0 %v299
    %v472 = vpop.f32.mrf.mxu0
    %v473 = vadd.f32 0.0, %v472
    %v474 = vpop.f32.mrf.mxu0
    %v475 = vpop.f32.mrf.mxu0
    %v476 = vadd.f32 0.0, %v475
    %v477 = vpop.f32.mrf.mxu0
    %478 = vmatprep.mubr.bf16.mxu0 0
    %479 = vmatmul.mubr.bf16.gmra.mxu0 %v300
    %v480 = vpop.f32.mrf.mxu0
    %v481 = vadd.f32 0.0, %v480
    %v482 = vpop.f32.mrf.mxu0
    %v483 = vpop.f32.mrf.mxu0
    %v484 = vadd.f32 0.0, %v483
    %v485 = vpop.f32.mrf.mxu0
    %486 = vmatprep.mubr.bf16.mxu0 0
    %487 = vmatmul.mubr.bf16.gmra.mxu0 %v301
    %v488 = vpop.f32.mrf.mxu0
    %v489 = vadd.f32 0.0, %v488
    %v490 = vpop.f32.mrf.mxu0
    %v491 = vpop.f32.mrf.mxu0
    %v492 = vadd.f32 0.0, %v491
    %v493 = vpop.f32.mrf.mxu0
    %494 = vmatprep.mubr.bf16.mxu0 0
    %495 = vmatmul.mubr.bf16.gmra.mxu0 %v302
    %v496 = vpop.f32.mrf.mxu0
    %v497 = vadd.f32 0.0, %v496
    %v498 = vpop.f32.mrf.mxu0
    %v499 = vpop.f32.mrf.mxu0
    %v500 = vadd.f32 0.0, %v499
    %v501 = vpop.f32.mrf.mxu0
    %502 = vmatprep.mubr.bf16.mxu0 0
    %503 = vmatmul.mubr.bf16.gmra.mxu0 %v303
    %v504 = vpop.f32.mrf.mxu0
    %v505 = vadd.f32 0.0, %v504
    %v506 = vpop.f32.mrf.mxu0
    %v507 = vpop.f32.mrf.mxu0
    %v508 = vadd.f32 0.0, %v507
    %v509 = vpop.f32.mrf.mxu0
    %510 = vmatprep.mubr.bf16.mxu0 0
    %511 = vmatmul.mubr.bf16.gmra.mxu0 %v304
    %v512 = vpop.f32.mrf.mxu0
    %v513 = vadd.f32 0.0, %v512
    %v514 = vpop.f32.mrf.mxu0
    %v515 = vpop.f32.mrf.mxu0
    %v516 = vadd.f32 0.0, %v515
    %v517 = vpop.f32.mrf.mxu0
    %518 = vmatprep.mubr.bf16.mxu0 0
    %519 = vmatmul.mubr.bf16.gmra.mxu0 %v305
    %v520 = vpop.f32.mrf.mxu0
    %v521 = vadd.f32 0.0, %v520
    %v522 = vpop.f32.mrf.mxu0
    %v523 = vpop.f32.mrf.mxu0
    %v524 = vadd.f32 0.0, %v523
    %v525 = vpop.f32.mrf.mxu0
    %526 = vmatprep.mubr.bf16.mxu0 0
    %527 = vmatmul.mubr.bf16.gmra.mxu0 %v306
    %v528 = vpop.f32.mrf.mxu0
    %v529 = vadd.f32 0.0, %v528
    %v530 = vpop.f32.mrf.mxu0
    %v531 = vpop.f32.mrf.mxu0
    %v532 = vadd.f32 0.0, %v531
    %v533 = vpop.f32.mrf.mxu0
    %534 = vmatprep.mubr.bf16.mxu0 0
    %535 = vmatmul.mubr.bf16.gmra.mxu0 %v307
    %v536 = vpop.f32.mrf.mxu0
    %v537 = vadd.f32 0.0, %v536
    %v538 = vpop.f32.mrf.mxu0
    %v539 = vpop.f32.mrf.mxu0
    %v540 = vadd.f32 0.0, %v539
    %v541 = vpop.f32.mrf.mxu0
    %542 = vmatprep.mubr.bf16.mxu0 0
    %543 = vmatmul.mubr.bf16.gmra.mxu0 %v308
    %v544 = vpop.f32.mrf.mxu0
    %v545 = vadd.f32 0.0, %v544
    %v546 = vpop.f32.mrf.mxu0
    %v547 = vpop.f32.mrf.mxu0
    %v548 = vadd.f32 0.0, %v547
    %v549 = vpop.f32.mrf.mxu0
    %550 = vmatprep.mubr.bf16.mxu0 0
    %551 = vmatmul.mubr.bf16.gmra.mxu0 %v309
    %v552 = vpop.f32.mrf.mxu0
    %v553 = vadd.f32 0.0, %v552
    %v554 = vpop.f32.mrf.mxu0
    %v555 = vpop.f32.mrf.mxu0
    %v556 = vadd.f32 0.0, %v555
    %v557 = vpop.f32.mrf.mxu0
    %558 = vmatprep.mubr.bf16.mxu0 0
    %559 = vmatmul.mubr.bf16.gmra.mxu0 %v310
    %v560 = vpop.f32.mrf.mxu0
    %v561 = vadd.f32 0.0, %v560
    %v562 = vpop.f32.mrf.mxu0
    %v563 = vpop.f32.mrf.mxu0
    %v564 = vadd.f32 0.0, %v563
    %v565 = vpop.f32.mrf.mxu0
    %566 = vmatprep.mubr.bf16.mxu0 0
    %567 = vmatmul.mubr.bf16.gmra.mxu0 %v311
    %v568 = vpop.f32.mrf.mxu0
    %v569 = vadd.f32 0.0, %v568
    %v570 = vpop.f32.mrf.mxu0
    %v571 = vpop.f32.mrf.mxu0
    %v572 = vadd.f32 0.0, %v571
    %v573 = vpop.f32.mrf.mxu0
    %574 = vmatprep.mubr.bf16.mxu0 0
    %575 = vmatmul.mubr.bf16.gmra.mxu0 %v312
    %v576 = vpop.f32.mrf.mxu0
    %v577 = vadd.f32 0.0, %v576
    %v578 = vpop.f32.mrf.mxu0
    %v579 = vpop.f32.mrf.mxu0
    %v580 = vadd.f32 0.0, %v579
    %v581 = vpop.f32.mrf.mxu0
    %582 = vmatprep.mubr.bf16.mxu0 0
    %583 = vmatmul.mubr.bf16.gmra.mxu0 %v313
    %v584 = vpop.f32.mrf.mxu0
    %v585 = vadd.f32 0.0, %v584
    %v586 = vpop.f32.mrf.mxu0
    %v587 = vpop.f32.mrf.mxu0
    %v588 = vadd.f32 0.0, %v587
    %v589 = vpop.f32.mrf.mxu0
    %590 = vmatprep.mubr.bf16.mxu0 0
    %591 = vmatmul.mubr.bf16.gmra.mxu0 %v314
    %v592 = vpop.f32.mrf.mxu0
    %v593 = vadd.f32 0.0, %v592
    %v594 = vpop.f32.mrf.mxu0
    %v595 = vpop.f32.mrf.mxu0
    %v596 = vadd.f32 0.0, %v595
    %v597 = vpop.f32.mrf.mxu0
    %598 = vmatprep.mubr.bf16.mxu0 0
    %599 = vmatmul.mubr.bf16.gmra.mxu0 %v315
    %v600 = vpop.f32.mrf.mxu0
    %v601 = vadd.f32 0.0, %v600
    %v602 = vpop.f32.mrf.mxu0
    %v603 = vpop.f32.mrf.mxu0
    %v604 = vadd.f32 0.0, %v603
    %v605 = vpop.f32.mrf.mxu0
    %606 = vmatprep.mubr.bf16.mxu0 0
    %607 = vmatmul.mubr.bf16.gmra.mxu0 %v316
    %v608 = vpop.f32.mrf.mxu0
    %v609 = vadd.f32 0.0, %v608
    %v610 = vpop.f32.mrf.mxu0
    %v611 = vpop.f32.mrf.mxu0
    %v612 = vadd.f32 0.0, %v611
    %v613 = vpop.f32.mrf.mxu0
    %614 = vmatprep.mubr.bf16.mxu0 0
    %615 = vmatmul.mubr.bf16.gmra.mxu0 %v317
    %v616 = vpop.f32.mrf.mxu0
    %v617 = vadd.f32 0.0, %v616
    %v618 = vpop.f32.mrf.mxu0
    %v619 = vpop.f32.mrf.mxu0
    %v620 = vadd.f32 0.0, %v619
    %v621 = vpop.f32.mrf.mxu0
    %622 = vmatprep.mubr.bf16.mxu0 0
    %623 = vmatmul.mubr.bf16.gmra.mxu0 %v318
    %v624 = vpop.f32.mrf.mxu0
    %v625 = vadd.f32 0.0, %v624
    %v626 = vpop.f32.mrf.mxu0
    %v627 = vpop.f32.mrf.mxu0
    %v628 = vadd.f32 0.0, %v627
    %v629 = vpop.f32.mrf.mxu0
    %630 = vmatprep.mubr.bf16.mxu0 0
    %631 = vmatmul.mubr.bf16.gmra.mxu0 %v319
    %v632 = vpop.f32.mrf.mxu0
    %v633 = vadd.f32 0.0, %v632
    %v634 = vpop.f32.mrf.mxu0
    %v635 = vpop.f32.mrf.mxu0
    %v636 = vadd.f32 0.0, %v635
    %v637 = vpop.f32.mrf.mxu0
    %638 = vmatprep.mubr.bf16.mxu0 0
    %639 = vmatmul.mubr.bf16.gmra.mxu0 %v320
    %v640 = vpop.f32.mrf.mxu0
    %v641 = vadd.f32 0.0, %v640
    %v642 = vpop.f32.mrf.mxu0
    %v643 = vpop.f32.mrf.mxu0
    %v644 = vadd.f32 0.0, %v643
    %v645 = vpop.f32.mrf.mxu0
    %646 = vmatprep.mubr.bf16.mxu0 0
    %647 = vmatmul.mubr.bf16.gmra.mxu0 %v321
    %v648 = vpop.f32.mrf.mxu0
    %v649 = vadd.f32 0.0, %v648
    %v650 = vpop.f32.mrf.mxu0
    %v651 = vpop.f32.mrf.mxu0
    %v652 = vadd.f32 0.0, %v651
    %v653 = vpop.f32.mrf.mxu0
    %654 = vmatprep.mubr.bf16.mxu0 0
    %655 = vmatmul.mubr.bf16.gmra.mxu0 %v322
    %v656 = vpop.f32.mrf.mxu0
    %v657 = vadd.f32 0.0, %v656
    %v658 = vpop.f32.mrf.mxu0
    %v659 = vpop.f32.mrf.mxu0
    %v660 = vadd.f32 0.0, %v659
    %v661 = vpop.f32.mrf.mxu0
    %662 = vmatprep.mubr.bf16.mxu0 0
    %663 = vmatmul.mubr.bf16.gmra.mxu0 %v323
    %v664 = vpop.f32.mrf.mxu0
    %v665 = vadd.f32 0.0, %v664
    %v666 = vpop.f32.mrf.mxu0
    %v667 = vpop.f32.mrf.mxu0
    %v668 = vadd.f32 0.0, %v667
    %v669 = vpop.f32.mrf.mxu0
    %670 = vmatprep.mubr.bf16.mxu0 0
    %671 = vmatmul.mubr.bf16.gmra.mxu0 %v324
    %v672 = vpop.f32.mrf.mxu0
    %v673 = vadd.f32 0.0, %v672
    %v674 = vpop.f32.mrf.mxu0
    %v675 = vpop.f32.mrf.mxu0
    %v676 = vadd.f32 0.0, %v675
    %v677 = vpop.f32.mrf.mxu0
    %678 = vdwg.mxu0
    %v695 = vunpack.c.l.b16 %v212
    %v696 = vunpack.c.l.b16 %v213
    %v697 = vunpack.c.l.b16 %v214
    %v698 = vunpack.c.l.b16 %v215
    %v699 = vunpack.c.l.b16 %v216
    %v700 = vunpack.c.l.b16 %v217
    %v701 = vunpack.c.l.b16 %v218
    %v702 = vunpack.c.l.b16 %v219
    %v703 = vunpack.c.l.b16 %v220
    %v704 = vunpack.c.l.b16 %v221
    %v705 = vunpack.c.l.b16 %v222
    %v706 = vunpack.c.l.b16 %v223
    %v707 = vunpack.c.l.b16 %v224
    %v708 = vunpack.c.l.b16 %v225
    %v709 = vunpack.c.l.b16 %v226
    %v710 = vunpack.c.l.b16 %v227
    %v711 = vpack.c.b16 %v696, %v695
    %v712 = vpack.c.b16 %v698, %v697
    %v713 = vpack.c.b16 %v700, %v699
    %v714 = vpack.c.b16 %v702, %v701
    %v715 = vpack.c.b16 %v704, %v703
    %v716 = vpack.c.b16 %v706, %v705
    %v717 = vpack.c.b16 %v708, %v707
    %v718 = vpack.c.b16 %v710, %v709
    %727 = vmatprep.subr.bf16.mxu0 0
    %728 = vmatpush1.bf16.msra.mxu0 %v718
    %729 = vmatprep.subr.bf16.mxu0 0
    %730 = vmatpush1.bf16.msra.mxu0 %v717
    %731 = vmatprep.subr.bf16.mxu0 0
    %732 = vmatpush1.bf16.msra.mxu0 %v716
    %733 = vmatprep.subr.bf16.mxu0 0
    %734 = vmatpush1.bf16.msra.mxu0 %v715
    %735 = vmatprep.subr.bf16.mxu0 0
    %736 = vmatpush1.bf16.msra.mxu0 %v714
    %737 = vmatprep.subr.bf16.mxu0 0
    %738 = vmatpush1.bf16.msra.mxu0 %v713
    %739 = vmatprep.subr.bf16.mxu0 0
    %740 = vmatpush1.bf16.msra.mxu0 %v712
    %741 = vmatprep.subr.bf16.mxu0 0
    %742 = vmatpush1.bf16.msra.mxu0 %v711
    %743 = vmatprep.subr.bf16.mxu0 0
    %744 = vmatpush2.bf16.msra.mxu0 0
    %745 = vmatprep.subr.bf16.mxu0 0
    %746 = vmatpush2.bf16.msra.mxu0 0
    %747 = vmatprep.subr.bf16.mxu0 0
    %748 = vmatpush2.bf16.msra.mxu0 0
    %749 = vmatprep.subr.bf16.mxu0 0
    %750 = vmatpush2.bf16.msra.mxu0 0
    %751 = vmatprep.subr.bf16.mxu0 0
    %752 = vmatpush2.bf16.msra.mxu0 0
    %753 = vmatprep.subr.bf16.mxu0 0
    %754 = vmatpush2.bf16.msra.mxu0 0
    %755 = vmatprep.subr.bf16.mxu0 0
    %756 = vmatpush2.bf16.msra.mxu0 0
    %757 = vmatprep.subr.bf16.mxu0 0
    %758 = vmatpush2.bf16.msra.mxu0 0
    %759 = vmatprep.mubr.bf16.mxu0 0
    %760 = vmatmul.mubr.bf16.gmra.mxu0 %v180
    %v761 = vpop.f32.mrf.mxu0
    %v762 = vadd.f32 %v425, %v761
    %v763 = vpop.f32.mrf.mxu0
    %v764 = vpop.f32.mrf.mxu0
    %v765 = vadd.f32 %v428, %v764
    %v766 = vpop.f32.mrf.mxu0
    %767 = vmatprep.mubr.bf16.mxu0 0
    %768 = vmatmul.mubr.bf16.gmra.mxu0 %v181
    %v769 = vpop.f32.mrf.mxu0
    %v770 = vadd.f32 %v433, %v769
    %v771 = vpop.f32.mrf.mxu0
    %v772 = vpop.f32.mrf.mxu0
    %v773 = vadd.f32 %v436, %v772
    %v774 = vpop.f32.mrf.mxu0
    %775 = vmatprep.mubr.bf16.mxu0 0
    %776 = vmatmul.mubr.bf16.gmra.mxu0 %v182
    %v777 = vpop.f32.mrf.mxu0
    %v778 = vadd.f32 %v441, %v777
    %v779 = vpop.f32.mrf.mxu0
    %v780 = vpop.f32.mrf.mxu0
    %v781 = vadd.f32 %v444, %v780
    %v782 = vpop.f32.mrf.mxu0
    %783 = vmatprep.mubr.bf16.mxu0 0
    %784 = vmatmul.mubr.bf16.gmra.mxu0 %v183
    %v785 = vpop.f32.mrf.mxu0
    %v786 = vadd.f32 %v449, %v785
    %v787 = vpop.f32.mrf.mxu0
    %v788 = vpop.f32.mrf.mxu0
    %v789 = vadd.f32 %v452, %v788
    %v790 = vpop.f32.mrf.mxu0
    %791 = vmatprep.mubr.bf16.mxu0 0
    %792 = vmatmul.mubr.bf16.gmra.mxu0 %v184
    %v793 = vpop.f32.mrf.mxu0
    %v794 = vadd.f32 %v457, %v793
    %v795 = vpop.f32.mrf.mxu0
    %v796 = vpop.f32.mrf.mxu0
    %v797 = vadd.f32 %v460, %v796
    %v798 = vpop.f32.mrf.mxu0
    %799 = vmatprep.mubr.bf16.mxu0 0
    %800 = vmatmul.mubr.bf16.gmra.mxu0 %v185
    %v801 = vpop.f32.mrf.mxu0
    %v802 = vadd.f32 %v465, %v801
    %v803 = vpop.f32.mrf.mxu0
    %v804 = vpop.f32.mrf.mxu0
    %v805 = vadd.f32 %v468, %v804
    %v806 = vpop.f32.mrf.mxu0
    %807 = vmatprep.mubr.bf16.mxu0 0
    %808 = vmatmul.mubr.bf16.gmra.mxu0 %v186
    %v809 = vpop.f32.mrf.mxu0
    %v810 = vadd.f32 %v473, %v809
    %v811 = vpop.f32.mrf.mxu0
    %v812 = vpop.f32.mrf.mxu0
    %v813 = vadd.f32 %v476, %v812
    %v814 = vpop.f32.mrf.mxu0
    %815 = vmatprep.mubr.bf16.mxu0 0
    %816 = vmatmul.mubr.bf16.gmra.mxu0 %v187
    %v817 = vpop.f32.mrf.mxu0
    %v818 = vadd.f32 %v481, %v817
    %v819 = vpop.f32.mrf.mxu0
    %v820 = vpop.f32.mrf.mxu0
    %v821 = vadd.f32 %v484, %v820
    %v822 = vpop.f32.mrf.mxu0
    %823 = vmatprep.mubr.bf16.mxu0 0
    %824 = vmatmul.mubr.bf16.gmra.mxu0 %v188
    %v825 = vpop.f32.mrf.mxu0
    %v826 = vadd.f32 %v489, %v825
    %v827 = vpop.f32.mrf.mxu0
    %v828 = vpop.f32.mrf.mxu0
    %v829 = vadd.f32 %v492, %v828
    %v830 = vpop.f32.mrf.mxu0
    %831 = vmatprep.mubr.bf16.mxu0 0
    %832 = vmatmul.mubr.bf16.gmra.mxu0 %v189
    %v833 = vpop.f32.mrf.mxu0
    %v834 = vadd.f32 %v497, %v833
    %v835 = vpop.f32.mrf.mxu0
    %v836 = vpop.f32.mrf.mxu0
    %v837 = vadd.f32 %v500, %v836
    %v838 = vpop.f32.mrf.mxu0
    %839 = vmatprep.mubr.bf16.mxu0 0
    %840 = vmatmul.mubr.bf16.gmra.mxu0 %v190
    %v841 = vpop.f32.mrf.mxu0
    %v842 = vadd.f32 %v505, %v841
    %v843 = vpop.f32.mrf.mxu0
    %v844 = vpop.f32.mrf.mxu0
    %v845 = vadd.f32 %v508, %v844
    %v846 = vpop.f32.mrf.mxu0
    %847 = vmatprep.mubr.bf16.mxu0 0
    %848 = vmatmul.mubr.bf16.gmra.mxu0 %v191
    %v849 = vpop.f32.mrf.mxu0
    %v850 = vadd.f32 %v513, %v849
    %v851 = vpop.f32.mrf.mxu0
    %v852 = vpop.f32.mrf.mxu0
    %v853 = vadd.f32 %v516, %v852
    %v854 = vpop.f32.mrf.mxu0
    %855 = vmatprep.mubr.bf16.mxu0 0
    %856 = vmatmul.mubr.bf16.gmra.mxu0 %v192
    %v857 = vpop.f32.mrf.mxu0
    %v858 = vadd.f32 %v521, %v857
    %v859 = vpop.f32.mrf.mxu0
    %v860 = vpop.f32.mrf.mxu0
    %v861 = vadd.f32 %v524, %v860
    %v862 = vpop.f32.mrf.mxu0
    %863 = vmatprep.mubr.bf16.mxu0 0
    %864 = vmatmul.mubr.bf16.gmra.mxu0 %v193
    %v865 = vpop.f32.mrf.mxu0
    %v866 = vadd.f32 %v529, %v865
    %v867 = vpop.f32.mrf.mxu0
    %v868 = vpop.f32.mrf.mxu0
    %v869 = vadd.f32 %v532, %v868
    %v870 = vpop.f32.mrf.mxu0
    %871 = vmatprep.mubr.bf16.mxu0 0
    %872 = vmatmul.mubr.bf16.gmra.mxu0 %v194
    %v873 = vpop.f32.mrf.mxu0
    %v874 = vadd.f32 %v537, %v873
    %v875 = vpop.f32.mrf.mxu0
    %v876 = vpop.f32.mrf.mxu0
    %v877 = vadd.f32 %v540, %v876
    %v878 = vpop.f32.mrf.mxu0
    %879 = vmatprep.mubr.bf16.mxu0 0
    %880 = vmatmul.mubr.bf16.gmra.mxu0 %v195
    %v881 = vpop.f32.mrf.mxu0
    %v882 = vadd.f32 %v545, %v881
    %v883 = vpop.f32.mrf.mxu0
    %v884 = vpop.f32.mrf.mxu0
    %v885 = vadd.f32 %v548, %v884
    %v886 = vpop.f32.mrf.mxu0
    %887 = vmatprep.mubr.bf16.mxu0 0
    %888 = vmatmul.mubr.bf16.gmra.mxu0 %v196
    %v889 = vpop.f32.mrf.mxu0
    %v890 = vadd.f32 %v553, %v889
    %v891 = vpop.f32.mrf.mxu0
    %v892 = vpop.f32.mrf.mxu0
    %v893 = vadd.f32 %v556, %v892
    %v894 = vpop.f32.mrf.mxu0
    %895 = vmatprep.mubr.bf16.mxu0 0
    %896 = vmatmul.mubr.bf16.gmra.mxu0 %v197
    %v897 = vpop.f32.mrf.mxu0
    %v898 = vadd.f32 %v561, %v897
    %v899 = vpop.f32.mrf.mxu0
    %v900 = vpop.f32.mrf.mxu0
    %v901 = vadd.f32 %v564, %v900
    %v902 = vpop.f32.mrf.mxu0
    %903 = vmatprep.mubr.bf16.mxu0 0
    %904 = vmatmul.mubr.bf16.gmra.mxu0 %v198
    %v905 = vpop.f32.mrf.mxu0
    %v906 = vadd.f32 %v569, %v905
    %v907 = vpop.f32.mrf.mxu0
    %v908 = vpop.f32.mrf.mxu0
    %v909 = vadd.f32 %v572, %v908
    %v910 = vpop.f32.mrf.mxu0
    %911 = vmatprep.mubr.bf16.mxu0 0
    %912 = vmatmul.mubr.bf16.gmra.mxu0 %v199
    %v913 = vpop.f32.mrf.mxu0
    %v914 = vadd.f32 %v577, %v913
    %v915 = vpop.f32.mrf.mxu0
    %v916 = vpop.f32.mrf.mxu0
    %v917 = vadd.f32 %v580, %v916
    %v918 = vpop.f32.mrf.mxu0
    %919 = vmatprep.mubr.bf16.mxu0 0
    %920 = vmatmul.mubr.bf16.gmra.mxu0 %v200
    %v921 = vpop.f32.mrf.mxu0
    %v922 = vadd.f32 %v585, %v921
    %v923 = vpop.f32.mrf.mxu0
    %v924 = vpop.f32.mrf.mxu0
    %v925 = vadd.f32 %v588, %v924
    %v926 = vpop.f32.mrf.mxu0
    %927 = vmatprep.mubr.bf16.mxu0 0
    %928 = vmatmul.mubr.bf16.gmra.mxu0 %v201
    %v929 = vpop.f32.mrf.mxu0
    %v930 = vadd.f32 %v593, %v929
    %v931 = vpop.f32.mrf.mxu0
    %v932 = vpop.f32.mrf.mxu0
    %v933 = vadd.f32 %v596, %v932
    %v934 = vpop.f32.mrf.mxu0
    %935 = vmatprep.mubr.bf16.mxu0 0
    %936 = vmatmul.mubr.bf16.gmra.mxu0 %v202
    %v937 = vpop.f32.mrf.mxu0
    %v938 = vadd.f32 %v601, %v937
    %v939 = vpop.f32.mrf.mxu0
    %v940 = vpop.f32.mrf.mxu0
    %v941 = vadd.f32 %v604, %v940
    %v942 = vpop.f32.mrf.mxu0
    %943 = vmatprep.mubr.bf16.mxu0 0
    %944 = vmatmul.mubr.bf16.gmra.mxu0 %v203
    %v945 = vpop.f32.mrf.mxu0
    %v946 = vadd.f32 %v609, %v945
    %v947 = vpop.f32.mrf.mxu0
    %v948 = vpop.f32.mrf.mxu0
    %v949 = vadd.f32 %v612, %v948
    %v950 = vpop.f32.mrf.mxu0
    %951 = vmatprep.mubr.bf16.mxu0 0
    %952 = vmatmul.mubr.bf16.gmra.mxu0 %v204
    %v953 = vpop.f32.mrf.mxu0
    %v954 = vadd.f32 %v617, %v953
    %v955 = vpop.f32.mrf.mxu0
    %v956 = vpop.f32.mrf.mxu0
    %v957 = vadd.f32 %v620, %v956
    %v958 = vpop.f32.mrf.mxu0
    %959 = vmatprep.mubr.bf16.mxu0 0
    %960 = vmatmul.mubr.bf16.gmra.mxu0 %v205
    %v961 = vpop.f32.mrf.mxu0
    %v962 = vadd.f32 %v625, %v961
    %v963 = vpop.f32.mrf.mxu0
    %v964 = vpop.f32.mrf.mxu0
    %v965 = vadd.f32 %v628, %v964
    %v966 = vpop.f32.mrf.mxu0
    %967 = vmatprep.mubr.bf16.mxu0 0
    %968 = vmatmul.mubr.bf16.gmra.mxu0 %v206
    %v969 = vpop.f32.mrf.mxu0
    %v970 = vadd.f32 %v633, %v969
    %v971 = vpop.f32.mrf.mxu0
    %v972 = vpop.f32.mrf.mxu0
    %v973 = vadd.f32 %v636, %v972
    %v974 = vpop.f32.mrf.mxu0
    %975 = vmatprep.mubr.bf16.mxu0 0
    %976 = vmatmul.mubr.bf16.gmra.mxu0 %v207
    %v977 = vpop.f32.mrf.mxu0
    %v978 = vadd.f32 %v641, %v977
    %v979 = vpop.f32.mrf.mxu0
    %v980 = vpop.f32.mrf.mxu0
    %v981 = vadd.f32 %v644, %v980
    %v982 = vpop.f32.mrf.mxu0
    %983 = vmatprep.mubr.bf16.mxu0 0
    %984 = vmatmul.mubr.bf16.gmra.mxu0 %v208
    %v985 = vpop.f32.mrf.mxu0
    %v986 = vadd.f32 %v649, %v985
    %v987 = vpop.f32.mrf.mxu0
    %v988 = vpop.f32.mrf.mxu0
    %v989 = vadd.f32 %v652, %v988
    %v990 = vpop.f32.mrf.mxu0
    %991 = vmatprep.mubr.bf16.mxu0 0
    %992 = vmatmul.mubr.bf16.gmra.mxu0 %v209
    %v993 = vpop.f32.mrf.mxu0
    %v994 = vadd.f32 %v657, %v993
    %v995 = vpop.f32.mrf.mxu0
    %v996 = vpop.f32.mrf.mxu0
    %v997 = vadd.f32 %v660, %v996
    %v998 = vpop.f32.mrf.mxu0
    %999 = vmatprep.mubr.bf16.mxu0 0
    %1000 = vmatmul.mubr.bf16.gmra.mxu0 %v210
    %v1001 = vpop.f32.mrf.mxu0
    %v1002 = vadd.f32 %v665, %v1001
    %v1003 = vpop.f32.mrf.mxu0
    %v1004 = vpop.f32.mrf.mxu0
    %v1005 = vadd.f32 %v668, %v1004
    %v1006 = vpop.f32.mrf.mxu0
    %1007 = vmatprep.mubr.bf16.mxu0 0
    %1008 = vmatmul.mubr.bf16.gmra.mxu0 %v211
    %v1009 = vpop.f32.mrf.mxu0
    %v1010 = vadd.f32 %v673, %v1009
    %v1011 = vpop.f32.mrf.mxu0
    %v1012 = vpop.f32.mrf.mxu0
    %v1013 = vadd.f32 %v676, %v1012
    %v1014 = vpop.f32.mrf.mxu0
    %1015 = vdwg.mxu0
    %s1016 = scalar_lea.vmem [#allocation3], 168
    %v1017 = vld [vmem:[%s1016] sm:$0xff]
    %v1018 = vld [vmem:[%s1016 + $0x10] sm:$0xff]
    %v1019 = vld [vmem:[%s1016 + $0x20] sm:$0xff]
    %v1020 = vld [vmem:[%s1016 + $0x30] sm:$0xff]
    %v1021 = vld [vmem:[%s1016 + $0x40] sm:$0xff]
    %v1022 = vld [vmem:[%s1016 + $0x50] sm:$0xff]
    %v1023 = vld [vmem:[%s1016 + $0x60] sm:$0xff]
    %v1024 = vld [vmem:[%s1016 + $0x70] sm:$0xff]
    %v1025 = vld [vmem:[%s1016 + $0x120] sm:$0xff]
    %v1026 = vld [vmem:[%s1016 + $0x130] sm:$0xff]
    %v1027 = vld [vmem:[%s1016 + $0x140] sm:$0xff]
    %v1028 = vld [vmem:[%s1016 + $0x150] sm:$0xff]
    %v1029 = vld [vmem:[%s1016 + $0x160] sm:$0xff]
    %v1030 = vld [vmem:[%s1016 + $0x170] sm:$0xff]
    %v1031 = vld [vmem:[%s1016 + $0x180] sm:$0xff]
    %v1032 = vld [vmem:[%s1016 + $0x190] sm:$0xff]
    %v1033 = vld [vmem:[%s1016 + $0x240] sm:$0xff]
    %v1034 = vld [vmem:[%s1016 + $0x250] sm:$0xff]
    %v1035 = vld [vmem:[%s1016 + $0x260] sm:$0xff]
    %v1036 = vld [vmem:[%s1016 + $0x270] sm:$0xff]
    %v1037 = vld [vmem:[%s1016 + $0x280] sm:$0xff]
    %v1038 = vld [vmem:[%s1016 + $0x290] sm:$0xff]
    %v1039 = vld [vmem:[%s1016 + $0x2a0] sm:$0xff]
    %v1040 = vld [vmem:[%s1016 + $0x2b0] sm:$0xff]
    %v1041 = vld [vmem:[%s1016 + $0x360] sm:$0xff]
    %v1042 = vld [vmem:[%s1016 + $0x370] sm:$0xff]
    %v1043 = vld [vmem:[%s1016 + $0x380] sm:$0xff]
    %v1044 = vld [vmem:[%s1016 + $0x390] sm:$0xff]
    %v1045 = vld [vmem:[%s1016 + $0x3a0] sm:$0xff]
    %v1046 = vld [vmem:[%s1016 + $0x3b0] sm:$0xff]
    %v1047 = vld [vmem:[%s1016 + $0x3c0] sm:$0xff]
    %v1048 = vld [vmem:[%s1016 + $0x3d0] sm:$0xff]
    %v1049 = vld [vmem:[%s1016 + $0x480] sm:$0xff]
    %v1050 = vld [vmem:[%s1016 + $0x490] sm:$0xff]
    %v1051 = vld [vmem:[%s1016 + $0x4a0] sm:$0xff]
    %v1052 = vld [vmem:[%s1016 + $0x4b0] sm:$0xff]
    %v1053 = vld [vmem:[%s1016 + $0x4c0] sm:$0xff]
    %v1054 = vld [vmem:[%s1016 + $0x4d0] sm:$0xff]
    %v1055 = vld [vmem:[%s1016 + $0x4e0] sm:$0xff]
    %v1056 = vld [vmem:[%s1016 + $0x4f0] sm:$0xff]
    %v1057 = vld [vmem:[%s1016 + $0x5a0] sm:$0xff]
    %v1058 = vld [vmem:[%s1016 + $0x5b0] sm:$0xff]
    %v1059 = vld [vmem:[%s1016 + $0x5c0] sm:$0xff]
    %v1060 = vld [vmem:[%s1016 + $0x5d0] sm:$0xff]
    %v1061 = vld [vmem:[%s1016 + $0x5e0] sm:$0xff]
    %v1062 = vld [vmem:[%s1016 + $0x5f0] sm:$0xff]
    %v1063 = vld [vmem:[%s1016 + $0x600] sm:$0xff]
    %v1064 = vld [vmem:[%s1016 + $0x610] sm:$0xff]
    %v1065 = vld [vmem:[%s1016 + $0x6c0] sm:$0xff]
    %v1066 = vld [vmem:[%s1016 + $0x6d0] sm:$0xff]
    %v1067 = vld [vmem:[%s1016 + $0x6e0] sm:$0xff]
    %v1068 = vld [vmem:[%s1016 + $0x6f0] sm:$0xff]
    %v1069 = vld [vmem:[%s1016 + $0x700] sm:$0xff]
    %v1070 = vld [vmem:[%s1016 + $0x710] sm:$0xff]
    %v1071 = vld [vmem:[%s1016 + $0x720] sm:$0xff]
    %v1072 = vld [vmem:[%s1016 + $0x730] sm:$0xff]
    %v1073 = vld [vmem:[%s1016 + $0x7e0] sm:$0xff]
    %v1074 = vld [vmem:[%s1016 + $0x7f0] sm:$0xff]
    %v1075 = vld [vmem:[%s1016 + $0x800] sm:$0xff]
    %v1076 = vld [vmem:[%s1016 + $0x810] sm:$0xff]
    %v1077 = vld [vmem:[%s1016 + $0x820] sm:$0xff]
    %v1078 = vld [vmem:[%s1016 + $0x830] sm:$0xff]
    %v1079 = vld [vmem:[%s1016 + $0x840] sm:$0xff]
    %v1080 = vld [vmem:[%s1016 + $0x850] sm:$0xff]
    %v1081 = vpack.c.bf16 %v1018, %v1017
    %v1082 = vpack.c.bf16 %v1020, %v1019
    %v1083 = vpack.c.bf16 %v1022, %v1021
    %v1084 = vpack.c.bf16 %v1024, %v1023
    %v1085 = vpack.c.bf16 %v1026, %v1025
    %v1086 = vpack.c.bf16 %v1028, %v1027
    %v1087 = vpack.c.bf16 %v1030, %v1029
    %v1088 = vpack.c.bf16 %v1032, %v1031
    %v1089 = vpack.c.bf16 %v1034, %v1033
    %v1090 = vpack.c.bf16 %v1036, %v1035
    %v1091 = vpack.c.bf16 %v1038, %v1037
    %v1092 = vpack.c.bf16 %v1040, %v1039
    %v1093 = vpack.c.bf16 %v1042, %v1041
    %v1094 = vpack.c.bf16 %v1044, %v1043
    %v1095 = vpack.c.bf16 %v1046, %v1045
    %v1096 = vpack.c.bf16 %v1048, %v1047
    %v1097 = vpack.c.bf16 %v1050, %v1049
    %v1098 = vpack.c.bf16 %v1052, %v1051
    %v1099 = vpack.c.bf16 %v1054, %v1053
    %v1100 = vpack.c.bf16 %v1056, %v1055
    %v1101 = vpack.c.bf16 %v1058, %v1057
    %v1102 = vpack.c.bf16 %v1060, %v1059
    %v1103 = vpack.c.bf16 %v1062, %v1061
    %v1104 = vpack.c.bf16 %v1064, %v1063
    %v1105 = vpack.c.bf16 %v1066, %v1065
    %v1106 = vpack.c.bf16 %v1068, %v1067
    %v1107 = vpack.c.bf16 %v1070, %v1069
    %v1108 = vpack.c.bf16 %v1072, %v1071
    %v1109 = vpack.c.bf16 %v1074, %v1073
    %v1110 = vpack.c.bf16 %v1076, %v1075
    %v1111 = vpack.c.bf16 %v1078, %v1077
    %v1112 = vpack.c.bf16 %v1080, %v1079
    %s1113 = scalar_lea.vmem [#allocation6], 128
    %v1114 = vld [vmem:[%s1113] sm:$0xf]
    %v1115 = vld [vmem:[%s1113 + $0x4] sm:$0xf]
    %v1116 = vld [vmem:[%s1113 + $0x8] sm:$0xf]
    %v1117 = vld [vmem:[%s1113 + $0xc] sm:$0xf]
    %v1118 = vld [vmem:[%s1113 + $0x10] sm:$0xf]
    %v1119 = vld [vmem:[%s1113 + $0x14] sm:$0xf]
    %v1120 = vld [vmem:[%s1113 + $0x18] sm:$0xf]
    %v1121 = vld [vmem:[%s1113 + $0x1c] sm:$0xf]
    %v1122 = vld [vmem:[%s1113 + $0x20] sm:$0xf]
    %v1123 = vld [vmem:[%s1113 + $0x24] sm:$0xf]
    %v1124 = vld [vmem:[%s1113 + $0x28] sm:$0xf]
    %v1125 = vld [vmem:[%s1113 + $0x2c] sm:$0xf]
    %v1126 = vld [vmem:[%s1113 + $0x30] sm:$0xf]
    %v1127 = vld [vmem:[%s1113 + $0x34] sm:$0xf]
    %v1128 = vld [vmem:[%s1113 + $0x38] sm:$0xf]
    %v1129 = vld [vmem:[%s1113 + $0x3c] sm:$0xf]
    %v1146 = vunpack.c.l.b16 %v1114
    %v1147 = vunpack.c.l.b16 %v1115
    %v1148 = vunpack.c.l.b16 %v1116
    %v1149 = vunpack.c.l.b16 %v1117
    %v1150 = vunpack.c.l.b16 %v1118
    %v1151 = vunpack.c.l.b16 %v1119
    %v1152 = vunpack.c.l.b16 %v1120
    %v1153 = vunpack.c.l.b16 %v1121
    %v1154 = vunpack.c.l.b16 %v1122
    %v1155 = vunpack.c.l.b16 %v1123
    %v1156 = vunpack.c.l.b16 %v1124
    %v1157 = vunpack.c.l.b16 %v1125
    %v1158 = vunpack.c.l.b16 %v1126
    %v1159 = vunpack.c.l.b16 %v1127
    %v1160 = vunpack.c.l.b16 %v1128
    %v1161 = vunpack.c.l.b16 %v1129
    %v1162 = vpack.c.b16 %v1147, %v1146
    %v1163 = vpack.c.b16 %v1149, %v1148
    %v1164 = vpack.c.b16 %v1151, %v1150
    %v1165 = vpack.c.b16 %v1153, %v1152
    %v1166 = vpack.c.b16 %v1155, %v1154
    %v1167 = vpack.c.b16 %v1157, %v1156
    %v1168 = vpack.c.b16 %v1159, %v1158
    %v1169 = vpack.c.b16 %v1161, %v1160
    %1178 = vmatprep.subr.bf16.mxu0 0
    %1179 = vmatpush1.bf16.msra.mxu0 %v1169
    %1180 = vmatprep.subr.bf16.mxu0 0
    %1181 = vmatpush1.bf16.msra.mxu0 %v1168
    %1182 = vmatprep.subr.bf16.mxu0 0
    %1183 = vmatpush1.bf16.msra.mxu0 %v1167
    %1184 = vmatprep.subr.bf16.mxu0 0
    %1185 = vmatpush1.bf16.msra.mxu0 %v1166
    %1186 = vmatprep.subr.bf16.mxu0 0
    %1187 = vmatpush1.bf16.msra.mxu0 %v1165
    %1188 = vmatprep.subr.bf16.mxu0 0
    %1189 = vmatpush1.bf16.msra.mxu0 %v1164
    %1190 = vmatprep.subr.bf16.mxu0 0
    %1191 = vmatpush1.bf16.msra.mxu0 %v1163
    %1192 = vmatprep.subr.bf16.mxu0 0
    %1193 = vmatpush1.bf16.msra.mxu0 %v1162
    %1194 = vmatprep.subr.bf16.mxu0 0
    %1195 = vmatpush2.bf16.msra.mxu0 0
    %1196 = vmatprep.subr.bf16.mxu0 0
    %1197 = vmatpush2.bf16.msra.mxu0 0
    %1198 = vmatprep.subr.bf16.mxu0 0
    %1199 = vmatpush2.bf16.msra.mxu0 0
    %1200 = vmatprep.subr.bf16.mxu0 0
    %1201 = vmatpush2.bf16.msra.mxu0 0
    %1202 = vmatprep.subr.bf16.mxu0 0
    %1203 = vmatpush2.bf16.msra.mxu0 0
    %1204 = vmatprep.subr.bf16.mxu0 0
    %1205 = vmatpush2.bf16.msra.mxu0 0
    %1206 = vmatprep.subr.bf16.mxu0 0
    %1207 = vmatpush2.bf16.msra.mxu0 0
    %1208 = vmatprep.subr.bf16.mxu0 0
    %1209 = vmatpush2.bf16.msra.mxu0 0
    %1210 = vmatprep.mubr.bf16.mxu0 0
    %1211 = vmatmul.mubr.bf16.gmra.mxu0 %v1081
    %v1212 = vpop.f32.mrf.mxu0
    %v1213 = vadd.f32 0.0, %v1212
    %v1214 = vpop.f32.mrf.mxu0
    %v1215 = vpop.f32.mrf.mxu0
    %v1216 = vadd.f32 0.0, %v1215
    %v1217 = vpop.f32.mrf.mxu0
    %1218 = vmatprep.mubr.bf16.mxu0 0
    %1219 = vmatmul.mubr.bf16.gmra.mxu0 %v1082
    %v1220 = vpop.f32.mrf.mxu0
    %v1221 = vadd.f32 0.0, %v1220
    %v1222 = vpop.f32.mrf.mxu0
    %v1223 = vpop.f32.mrf.mxu0
    %v1224 = vadd.f32 0.0, %v1223
    %v1225 = vpop.f32.mrf.mxu0
    %1226 = vmatprep.mubr.bf16.mxu0 0
    %1227 = vmatmul.mubr.bf16.gmra.mxu0 %v1083
    %v1228 = vpop.f32.mrf.mxu0
    %v1229 = vadd.f32 0.0, %v1228
    %v1230 = vpop.f32.mrf.mxu0
    %v1231 = vpop.f32.mrf.mxu0
    %v1232 = vadd.f32 0.0, %v1231
    %v1233 = vpop.f32.mrf.mxu0
    %1234 = vmatprep.mubr.bf16.mxu0 0
    %1235 = vmatmul.mubr.bf16.gmra.mxu0 %v1084
    %v1236 = vpop.f32.mrf.mxu0
    %v1237 = vadd.f32 0.0, %v1236
    %v1238 = vpop.f32.mrf.mxu0
    %v1239 = vpop.f32.mrf.mxu0
    %v1240 = vadd.f32 0.0, %v1239
    %v1241 = vpop.f32.mrf.mxu0
    %1242 = vmatprep.mubr.bf16.mxu0 0
    %1243 = vmatmul.mubr.bf16.gmra.mxu0 %v1085
    %v1244 = vpop.f32.mrf.mxu0
    %v1245 = vadd.f32 0.0, %v1244
    %v1246 = vpop.f32.mrf.mxu0
    %v1247 = vpop.f32.mrf.mxu0
    %v1248 = vadd.f32 0.0, %v1247
    %v1249 = vpop.f32.mrf.mxu0
    %1250 = vmatprep.mubr.bf16.mxu0 0
    %1251 = vmatmul.mubr.bf16.gmra.mxu0 %v1086
    %v1252 = vpop.f32.mrf.mxu0
    %v1253 = vadd.f32 0.0, %v1252
    %v1254 = vpop.f32.mrf.mxu0
    %v1255 = vpop.f32.mrf.mxu0
    %v1256 = vadd.f32 0.0, %v1255
    %v1257 = vpop.f32.mrf.mxu0
    %1258 = vmatprep.mubr.bf16.mxu0 0
    %1259 = vmatmul.mubr.bf16.gmra.mxu0 %v1087
    %v1260 = vpop.f32.mrf.mxu0
    %v1261 = vadd.f32 0.0, %v1260
    %v1262 = vpop.f32.mrf.mxu0
    %v1263 = vpop.f32.mrf.mxu0
    %v1264 = vadd.f32 0.0, %v1263
    %v1265 = vpop.f32.mrf.mxu0
    %1266 = vmatprep.mubr.bf16.mxu0 0
    %1267 = vmatmul.mubr.bf16.gmra.mxu0 %v1088
    %v1268 = vpop.f32.mrf.mxu0
    %v1269 = vadd.f32 0.0, %v1268
    %v1270 = vpop.f32.mrf.mxu0
    %v1271 = vpop.f32.mrf.mxu0
    %v1272 = vadd.f32 0.0, %v1271
    %v1273 = vpop.f32.mrf.mxu0
    %1274 = vmatprep.mubr.bf16.mxu0 0
    %1275 = vmatmul.mubr.bf16.gmra.mxu0 %v1089
    %v1276 = vpop.f32.mrf.mxu0
    %v1277 = vadd.f32 0.0, %v1276
    %v1278 = vpop.f32.mrf.mxu0
    %v1279 = vpop.f32.mrf.mxu0
    %v1280 = vadd.f32 0.0, %v1279
    %v1281 = vpop.f32.mrf.mxu0
    %1282 = vmatprep.mubr.bf16.mxu0 0
    %1283 = vmatmul.mubr.bf16.gmra.mxu0 %v1090
    %v1284 = vpop.f32.mrf.mxu0
    %v1285 = vadd.f32 0.0, %v1284
    %v1286 = vpop.f32.mrf.mxu0
    %v1287 = vpop.f32.mrf.mxu0
    %v1288 = vadd.f32 0.0, %v1287
    %v1289 = vpop.f32.mrf.mxu0
    %1290 = vmatprep.mubr.bf16.mxu0 0
    %1291 = vmatmul.mubr.bf16.gmra.mxu0 %v1091
    %v1292 = vpop.f32.mrf.mxu0
    %v1293 = vadd.f32 0.0, %v1292
    %v1294 = vpop.f32.mrf.mxu0
    %v1295 = vpop.f32.mrf.mxu0
    %v1296 = vadd.f32 0.0, %v1295
    %v1297 = vpop.f32.mrf.mxu0
    %1298 = vmatprep.mubr.bf16.mxu0 0
    %1299 = vmatmul.mubr.bf16.gmra.mxu0 %v1092
    %v1300 = vpop.f32.mrf.mxu0
    %v1301 = vadd.f32 0.0, %v1300
    %v1302 = vpop.f32.mrf.mxu0
    %v1303 = vpop.f32.mrf.mxu0
    %v1304 = vadd.f32 0.0, %v1303
    %v1305 = vpop.f32.mrf.mxu0
    %1306 = vmatprep.mubr.bf16.mxu0 0
    %1307 = vmatmul.mubr.bf16.gmra.mxu0 %v1093
    %v1308 = vpop.f32.mrf.mxu0
    %v1309 = vadd.f32 0.0, %v1308
    %v1310 = vpop.f32.mrf.mxu0
    %v1311 = vpop.f32.mrf.mxu0
    %v1312 = vadd.f32 0.0, %v1311
    %v1313 = vpop.f32.mrf.mxu0
    %1314 = vmatprep.mubr.bf16.mxu0 0
    %1315 = vmatmul.mubr.bf16.gmra.mxu0 %v1094
    %v1316 = vpop.f32.mrf.mxu0
    %v1317 = vadd.f32 0.0, %v1316
    %v1318 = vpop.f32.mrf.mxu0
    %v1319 = vpop.f32.mrf.mxu0
    %v1320 = vadd.f32 0.0, %v1319
    %v1321 = vpop.f32.mrf.mxu0
    %1322 = vmatprep.mubr.bf16.mxu0 0
    %1323 = vmatmul.mubr.bf16.gmra.mxu0 %v1095
    %v1324 = vpop.f32.mrf.mxu0
    %v1325 = vadd.f32 0.0, %v1324
    %v1326 = vpop.f32.mrf.mxu0
    %v1327 = vpop.f32.mrf.mxu0
    %v1328 = vadd.f32 0.0, %v1327
    %v1329 = vpop.f32.mrf.mxu0
    %1330 = vmatprep.mubr.bf16.mxu0 0
    %1331 = vmatmul.mubr.bf16.gmra.mxu0 %v1096
    %v1332 = vpop.f32.mrf.mxu0
    %v1333 = vadd.f32 0.0, %v1332
    %v1334 = vpop.f32.mrf.mxu0
    %v1335 = vpop.f32.mrf.mxu0
    %v1336 = vadd.f32 0.0, %v1335
    %v1337 = vpop.f32.mrf.mxu0
    %1338 = vmatprep.mubr.bf16.mxu0 0
    %1339 = vmatmul.mubr.bf16.gmra.mxu0 %v1097
    %v1340 = vpop.f32.mrf.mxu0
    %v1341 = vadd.f32 0.0, %v1340
    %v1342 = vpop.f32.mrf.mxu0
    %v1343 = vpop.f32.mrf.mxu0
    %v1344 = vadd.f32 0.0, %v1343
    %v1345 = vpop.f32.mrf.mxu0
    %1346 = vmatprep.mubr.bf16.mxu0 0
    %1347 = vmatmul.mubr.bf16.gmra.mxu0 %v1098
    %v1348 = vpop.f32.mrf.mxu0
    %v1349 = vadd.f32 0.0, %v1348
    %v1350 = vpop.f32.mrf.mxu0
    %v1351 = vpop.f32.mrf.mxu0
    %v1352 = vadd.f32 0.0, %v1351
    %v1353 = vpop.f32.mrf.mxu0
    %1354 = vmatprep.mubr.bf16.mxu0 0
    %1355 = vmatmul.mubr.bf16.gmra.mxu0 %v1099
    %v1356 = vpop.f32.mrf.mxu0
    %v1357 = vadd.f32 0.0, %v1356
    %v1358 = vpop.f32.mrf.mxu0
    %v1359 = vpop.f32.mrf.mxu0
    %v1360 = vadd.f32 0.0, %v1359
    %v1361 = vpop.f32.mrf.mxu0
    %1362 = vmatprep.mubr.bf16.mxu0 0
    %1363 = vmatmul.mubr.bf16.gmra.mxu0 %v1100
    %v1364 = vpop.f32.mrf.mxu0
    %v1365 = vadd.f32 0.0, %v1364
    %v1366 = vpop.f32.mrf.mxu0
    %v1367 = vpop.f32.mrf.mxu0
    %v1368 = vadd.f32 0.0, %v1367
    %v1369 = vpop.f32.mrf.mxu0
    %1370 = vmatprep.mubr.bf16.mxu0 0
    %1371 = vmatmul.mubr.bf16.gmra.mxu0 %v1101
    %v1372 = vpop.f32.mrf.mxu0
    %v1373 = vadd.f32 0.0, %v1372
    %v1374 = vpop.f32.mrf.mxu0
    %v1375 = vpop.f32.mrf.mxu0
    %v1376 = vadd.f32 0.0, %v1375
    %v1377 = vpop.f32.mrf.mxu0
    %1378 = vmatprep.mubr.bf16.mxu0 0
    %1379 = vmatmul.mubr.bf16.gmra.mxu0 %v1102
    %v1380 = vpop.f32.mrf.mxu0
    %v1381 = vadd.f32 0.0, %v1380
    %v1382 = vpop.f32.mrf.mxu0
    %v1383 = vpop.f32.mrf.mxu0
    %v1384 = vadd.f32 0.0, %v1383
    %v1385 = vpop.f32.mrf.mxu0
    %1386 = vmatprep.mubr.bf16.mxu0 0
    %1387 = vmatmul.mubr.bf16.gmra.mxu0 %v1103
    %v1388 = vpop.f32.mrf.mxu0
    %v1389 = vadd.f32 0.0, %v1388
    %v1390 = vpop.f32.mrf.mxu0
    %v1391 = vpop.f32.mrf.mxu0
    %v1392 = vadd.f32 0.0, %v1391
    %v1393 = vpop.f32.mrf.mxu0
    %1394 = vmatprep.mubr.bf16.mxu0 0
    %1395 = vmatmul.mubr.bf16.gmra.mxu0 %v1104
    %v1396 = vpop.f32.mrf.mxu0
    %v1397 = vadd.f32 0.0, %v1396
    %v1398 = vpop.f32.mrf.mxu0
    %v1399 = vpop.f32.mrf.mxu0
    %v1400 = vadd.f32 0.0, %v1399
    %v1401 = vpop.f32.mrf.mxu0
    %1402 = vmatprep.mubr.bf16.mxu0 0
    %1403 = vmatmul.mubr.bf16.gmra.mxu0 %v1105
    %v1404 = vpop.f32.mrf.mxu0
    %v1405 = vadd.f32 0.0, %v1404
    %v1406 = vpop.f32.mrf.mxu0
    %v1407 = vpop.f32.mrf.mxu0
    %v1408 = vadd.f32 0.0, %v1407
    %v1409 = vpop.f32.mrf.mxu0
    %1410 = vmatprep.mubr.bf16.mxu0 0
    %1411 = vmatmul.mubr.bf16.gmra.mxu0 %v1106
    %v1412 = vpop.f32.mrf.mxu0
    %v1413 = vadd.f32 0.0, %v1412
    %v1414 = vpop.f32.mrf.mxu0
    %v1415 = vpop.f32.mrf.mxu0
    %v1416 = vadd.f32 0.0, %v1415
    %v1417 = vpop.f32.mrf.mxu0
    %1418 = vmatprep.mubr.bf16.mxu0 0
    %1419 = vmatmul.mubr.bf16.gmra.mxu0 %v1107
    %v1420 = vpop.f32.mrf.mxu0
    %v1421 = vadd.f32 0.0, %v1420
    %v1422 = vpop.f32.mrf.mxu0
    %v1423 = vpop.f32.mrf.mxu0
    %v1424 = vadd.f32 0.0, %v1423
    %v1425 = vpop.f32.mrf.mxu0
    %1426 = vmatprep.mubr.bf16.mxu0 0
    %1427 = vmatmul.mubr.bf16.gmra.mxu0 %v1108
    %v1428 = vpop.f32.mrf.mxu0
    %v1429 = vadd.f32 0.0, %v1428
    %v1430 = vpop.f32.mrf.mxu0
    %v1431 = vpop.f32.mrf.mxu0
    %v1432 = vadd.f32 0.0, %v1431
    %v1433 = vpop.f32.mrf.mxu0
    %1434 = vmatprep.mubr.bf16.mxu0 0
    %1435 = vmatmul.mubr.bf16.gmra.mxu0 %v1109
    %v1436 = vpop.f32.mrf.mxu0
    %v1437 = vadd.f32 0.0, %v1436
    %v1438 = vpop.f32.mrf.mxu0
    %v1439 = vpop.f32.mrf.mxu0
    %v1440 = vadd.f32 0.0, %v1439
    %v1441 = vpop.f32.mrf.mxu0
    %1442 = vmatprep.mubr.bf16.mxu0 0
    %1443 = vmatmul.mubr.bf16.gmra.mxu0 %v1110
    %v1444 = vpop.f32.mrf.mxu0
    %v1445 = vadd.f32 0.0, %v1444
    %v1446 = vpop.f32.mrf.mxu0
    %v1447 = vpop.f32.mrf.mxu0
    %v1448 = vadd.f32 0.0, %v1447
    %v1449 = vpop.f32.mrf.mxu0
    %1450 = vmatprep.mubr.bf16.mxu0 0
    %1451 = vmatmul.mubr.bf16.gmra.mxu0 %v1111
    %v1452 = vpop.f32.mrf.mxu0
    %v1453 = vadd.f32 0.0, %v1452
    %v1454 = vpop.f32.mrf.mxu0
    %v1455 = vpop.f32.mrf.mxu0
    %v1456 = vadd.f32 0.0, %v1455
    %v1457 = vpop.f32.mrf.mxu0
    %1458 = vmatprep.mubr.bf16.mxu0 0
    %1459 = vmatmul.mubr.bf16.gmra.mxu0 %v1112
    %v1460 = vpop.f32.mrf.mxu0
    %v1461 = vadd.f32 0.0, %v1460
    %v1462 = vpop.f32.mrf.mxu0
    %v1463 = vpop.f32.mrf.mxu0
    %v1464 = vadd.f32 0.0, %v1463
    %v1465 = vpop.f32.mrf.mxu0
    %1466 = vdwg.mxu0
    %v1467 = vadd.f32 %v762, %v1213
    %v1468 = vadd.f32 %v765, %v1216
    %v1469 = vadd.f32 %v770, %v1221
    %v1470 = vadd.f32 %v773, %v1224
    %v1471 = vadd.f32 %v778, %v1229
    %v1472 = vadd.f32 %v781, %v1232
    %v1473 = vadd.f32 %v786, %v1237
    %v1474 = vadd.f32 %v789, %v1240
    %v1475 = vadd.f32 %v794, %v1245
    %v1476 = vadd.f32 %v797, %v1248
    %v1477 = vadd.f32 %v802, %v1253
    %v1478 = vadd.f32 %v805, %v1256
    %v1479 = vadd.f32 %v810, %v1261
    %v1480 = vadd.f32 %v813, %v1264
    %v1481 = vadd.f32 %v818, %v1269
    %v1482 = vadd.f32 %v821, %v1272
    %v1483 = vadd.f32 %v826, %v1277
    %v1484 = vadd.f32 %v829, %v1280
    %v1485 = vadd.f32 %v834, %v1285
    %v1486 = vadd.f32 %v837, %v1288
    %v1487 = vadd.f32 %v842, %v1293
    %v1488 = vadd.f32 %v845, %v1296
    %v1489 = vadd.f32 %v850, %v1301
    %v1490 = vadd.f32 %v853, %v1304
    %v1491 = vadd.f32 %v858, %v1309
    %v1492 = vadd.f32 %v861, %v1312
    %v1493 = vadd.f32 %v866, %v1317
    %v1494 = vadd.f32 %v869, %v1320
    %v1495 = vadd.f32 %v874, %v1325
    %v1496 = vadd.f32 %v877, %v1328
    %v1497 = vadd.f32 %v882, %v1333
    %v1498 = vadd.f32 %v885, %v1336
    %v1499 = vadd.f32 %v890, %v1341
    %v1500 = vadd.f32 %v893, %v1344
    %v1501 = vadd.f32 %v898, %v1349
    %v1502 = vadd.f32 %v901, %v1352
    %v1503 = vadd.f32 %v906, %v1357
    %v1504 = vadd.f32 %v909, %v1360
    %v1505 = vadd.f32 %v914, %v1365
    %v1506 = vadd.f32 %v917, %v1368
    %v1507 = vadd.f32 %v922, %v1373
    %v1508 = vadd.f32 %v925, %v1376
    %v1509 = vadd.f32 %v930, %v1381
    %v1510 = vadd.f32 %v933, %v1384
    %v1511 = vadd.f32 %v938, %v1389
    %v1512 = vadd.f32 %v941, %v1392
    %v1513 = vadd.f32 %v946, %v1397
    %v1514 = vadd.f32 %v949, %v1400
    %v1515 = vadd.f32 %v954, %v1405
    %v1516 = vadd.f32 %v957, %v1408
    %v1517 = vadd.f32 %v962, %v1413
    %v1518 = vadd.f32 %v965, %v1416
    %v1519 = vadd.f32 %v970, %v1421
    %v1520 = vadd.f32 %v973, %v1424
    %v1521 = vadd.f32 %v978, %v1429
    %v1522 = vadd.f32 %v981, %v1432
    %v1523 = vadd.f32 %v986, %v1437
    %v1524 = vadd.f32 %v989, %v1440
    %v1525 = vadd.f32 %v994, %v1445
    %v1526 = vadd.f32 %v997, %v1448
    %v1527 = vadd.f32 %v1002, %v1453
    %v1528 = vadd.f32 %v1005, %v1456
    %v1529 = vadd.f32 %v1010, %v1461
    %v1530 = vadd.f32 %v1013, %v1464
    %s1531 = scalar_lea.vmem [#allocation3], 296
    %v1532 = vld [vmem:[%s1531] sm:$0xff]
    %v1533 = vld [vmem:[%s1531 + $0x10] sm:$0xff]
    %v1534 = vld [vmem:[%s1531 + $0x20] sm:$0xff]
    %v1535 = vld [vmem:[%s1531 + $0x30] sm:$0xff]
    %v1536 = vld [vmem:[%s1531 + $0x40] sm:$0xff]
    %v1537 = vld [vmem:[%s1531 + $0x50] sm:$0xff]
    %v1538 = vld [vmem:[%s1531 + $0x60] sm:$0xff]
    %v1539 = vld [vmem:[%s1531 + $0x70] sm:$0xff]
    %v1540 = vld [vmem:[%s1531 + $0x120] sm:$0xff]
    %v1541 = vld [vmem:[%s1531 + $0x130] sm:$0xff]
    %v1542 = vld [vmem:[%s1531 + $0x140] sm:$0xff]
    %v1543 = vld [vmem:[%s1531 + $0x150] sm:$0xff]
    %v1544 = vld [vmem:[%s1531 + $0x160] sm:$0xff]
    %v1545 = vld [vmem:[%s1531 + $0x170] sm:$0xff]
    %v1546 = vld [vmem:[%s1531 + $0x180] sm:$0xff]
    %v1547 = vld [vmem:[%s1531 + $0x190] sm:$0xff]
    %v1548 = vld [vmem:[%s1531 + $0x240] sm:$0xff]
    %v1549 = vld [vmem:[%s1531 + $0x250] sm:$0xff]
    %v1550 = vld [vmem:[%s1531 + $0x260] sm:$0xff]
    %v1551 = vld [vmem:[%s1531 + $0x270] sm:$0xff]
    %v1552 = vld [vmem:[%s1531 + $0x280] sm:$0xff]
    %v1553 = vld [vmem:[%s1531 + $0x290] sm:$0xff]
    %v1554 = vld [vmem:[%s1531 + $0x2a0] sm:$0xff]
    %v1555 = vld [vmem:[%s1531 + $0x2b0] sm:$0xff]
    %v1556 = vld [vmem:[%s1531 + $0x360] sm:$0xff]
    %v1557 = vld [vmem:[%s1531 + $0x370] sm:$0xff]
    %v1558 = vld [vmem:[%s1531 + $0x380] sm:$0xff]
    %v1559 = vld [vmem:[%s1531 + $0x390] sm:$0xff]
    %v1560 = vld [vmem:[%s1531 + $0x3a0] sm:$0xff]
    %v1561 = vld [vmem:[%s1531 + $0x3b0] sm:$0xff]
    %v1562 = vld [vmem:[%s1531 + $0x3c0] sm:$0xff]
    %v1563 = vld [vmem:[%s1531 + $0x3d0] sm:$0xff]
    %v1564 = vld [vmem:[%s1531 + $0x480] sm:$0xff]
    %v1565 = vld [vmem:[%s1531 + $0x490] sm:$0xff]
    %v1566 = vld [vmem:[%s1531 + $0x4a0] sm:$0xff]
    %v1567 = vld [vmem:[%s1531 + $0x4b0] sm:$0xff]
    %v1568 = vld [vmem:[%s1531 + $0x4c0] sm:$0xff]
    %v1569 = vld [vmem:[%s1531 + $0x4d0] sm:$0xff]
    %v1570 = vld [vmem:[%s1531 + $0x4e0] sm:$0xff]
    %v1571 = vld [vmem:[%s1531 + $0x4f0] sm:$0xff]
    %v1572 = vld [vmem:[%s1531 + $0x5a0] sm:$0xff]
    %v1573 = vld [vmem:[%s1531 + $0x5b0] sm:$0xff]
    %v1574 = vld [vmem:[%s1531 + $0x5c0] sm:$0xff]
    %v1575 = vld [vmem:[%s1531 + $0x5d0] sm:$0xff]
    %v1576 = vld [vmem:[%s1531 + $0x5e0] sm:$0xff]
    %v1577 = vld [vmem:[%s1531 + $0x5f0] sm:$0xff]
    %v1578 = vld [vmem:[%s1531 + $0x600] sm:$0xff]
    %v1579 = vld [vmem:[%s1531 + $0x610] sm:$0xff]
    %v1580 = vld [vmem:[%s1531 + $0x6c0] sm:$0xff]
    %v1581 = vld [vmem:[%s1531 + $0x6d0] sm:$0xff]
    %v1582 = vld [vmem:[%s1531 + $0x6e0] sm:$0xff]
    %v1583 = vld [vmem:[%s1531 + $0x6f0] sm:$0xff]
    %v1584 = vld [vmem:[%s1531 + $0x700] sm:$0xff]
    %v1585 = vld [vmem:[%s1531 + $0x710] sm:$0xff]
    %v1586 = vld [vmem:[%s1531 + $0x720] sm:$0xff]
    %v1587 = vld [vmem:[%s1531 + $0x730] sm:$0xff]
    %v1588 = vld [vmem:[%s1531 + $0x7e0] sm:$0xff]
    %v1589 = vld [vmem:[%s1531 + $0x7f0] sm:$0xff]
    %v1590 = vld [vmem:[%s1531 + $0x800] sm:$0xff]
    %v1591 = vld [vmem:[%s1531 + $0x810] sm:$0xff]
    %v1592 = vld [vmem:[%s1531 + $0x820] sm:$0xff]
    %v1593 = vld [vmem:[%s1531 + $0x830] sm:$0xff]
    %v1594 = vld [vmem:[%s1531 + $0x840] sm:$0xff]
    %v1595 = vld [vmem:[%s1531 + $0x850] sm:$0xff]
    %v1596 = vpack.c.bf16 %v1533, %v1532
    %v1597 = vpack.c.bf16 %v1535, %v1534
    %v1598 = vpack.c.bf16 %v1537, %v1536
    %v1599 = vpack.c.bf16 %v1539, %v1538
    %v1600 = vpack.c.bf16 %v1541, %v1540
    %v1601 = vpack.c.bf16 %v1543, %v1542
    %v1602 = vpack.c.bf16 %v1545, %v1544
    %v1603 = vpack.c.bf16 %v1547, %v1546
    %v1604 = vpack.c.bf16 %v1549, %v1548
    %v1605 = vpack.c.bf16 %v1551, %v1550
    %v1606 = vpack.c.bf16 %v1553, %v1552
    %v1607 = vpack.c.bf16 %v1555, %v1554
    %v1608 = vpack.c.bf16 %v1557, %v1556
    %v1609 = vpack.c.bf16 %v1559, %v1558
    %v1610 = vpack.c.bf16 %v1561, %v1560
    %v1611 = vpack.c.bf16 %v1563, %v1562
    %v1612 = vpack.c.bf16 %v1565, %v1564
    %v1613 = vpack.c.bf16 %v1567, %v1566
    %v1614 = vpack.c.bf16 %v1569, %v1568
    %v1615 = vpack.c.bf16 %v1571, %v1570
    %v1616 = vpack.c.bf16 %v1573, %v1572
    %v1617 = vpack.c.bf16 %v1575, %v1574
    %v1618 = vpack.c.bf16 %v1577, %v1576
    %v1619 = vpack.c.bf16 %v1579, %v1578
    %v1620 = vpack.c.bf16 %v1581, %v1580
    %v1621 = vpack.c.bf16 %v1583, %v1582
    %v1622 = vpack.c.bf16 %v1585, %v1584
    %v1623 = vpack.c.bf16 %v1587, %v1586
    %v1624 = vpack.c.bf16 %v1589, %v1588
    %v1625 = vpack.c.bf16 %v1591, %v1590
    %v1626 = vpack.c.bf16 %v1593, %v1592
    %v1627 = vpack.c.bf16 %v1595, %v1594
    %s1628 = scalar_lea.vmem [#allocation6], 192
    %v1629 = vld [vmem:[%s1628] sm:$0xf]
    %v1630 = vld [vmem:[%s1628 + $0x4] sm:$0xf]
    %v1631 = vld [vmem:[%s1628 + $0x8] sm:$0xf]
    %v1632 = vld [vmem:[%s1628 + $0xc] sm:$0xf]
    %v1633 = vld [vmem:[%s1628 + $0x10] sm:$0xf]
    %v1634 = vld [vmem:[%s1628 + $0x14] sm:$0xf]
    %v1635 = vld [vmem:[%s1628 + $0x18] sm:$0xf]
    %v1636 = vld [vmem:[%s1628 + $0x1c] sm:$0xf]
    %v1637 = vld [vmem:[%s1628 + $0x20] sm:$0xf]
    %v1638 = vld [vmem:[%s1628 + $0x24] sm:$0xf]
    %v1639 = vld [vmem:[%s1628 + $0x28] sm:$0xf]
    %v1640 = vld [vmem:[%s1628 + $0x2c] sm:$0xf]
    %v1641 = vld [vmem:[%s1628 + $0x30] sm:$0xf]
    %v1642 = vld [vmem:[%s1628 + $0x34] sm:$0xf]
    %v1643 = vld [vmem:[%s1628 + $0x38] sm:$0xf]
    %v1644 = vld [vmem:[%s1628 + $0x3c] sm:$0xf]
    %v1661 = vunpack.c.l.b16 %v1629
    %v1662 = vunpack.c.l.b16 %v1630
    %v1663 = vunpack.c.l.b16 %v1631
    %v1664 = vunpack.c.l.b16 %v1632
    %v1665 = vunpack.c.l.b16 %v1633
    %v1666 = vunpack.c.l.b16 %v1634
    %v1667 = vunpack.c.l.b16 %v1635
    %v1668 = vunpack.c.l.b16 %v1636
    %v1669 = vunpack.c.l.b16 %v1637
    %v1670 = vunpack.c.l.b16 %v1638
    %v1671 = vunpack.c.l.b16 %v1639
    %v1672 = vunpack.c.l.b16 %v1640
    %v1673 = vunpack.c.l.b16 %v1641
    %v1674 = vunpack.c.l.b16 %v1642
    %v1675 = vunpack.c.l.b16 %v1643
    %v1676 = vunpack.c.l.b16 %v1644
    %v1677 = vpack.c.b16 %v1662, %v1661
    %v1678 = vpack.c.b16 %v1664, %v1663
    %v1679 = vpack.c.b16 %v1666, %v1665
    %v1680 = vpack.c.b16 %v1668, %v1667
    %v1681 = vpack.c.b16 %v1670, %v1669
    %v1682 = vpack.c.b16 %v1672, %v1671
    %v1683 = vpack.c.b16 %v1674, %v1673
    %v1684 = vpack.c.b16 %v1676, %v1675
    %1693 = vmatprep.subr.bf16.mxu0 0
    %1694 = vmatpush1.bf16.msra.mxu0 %v1684
    %1695 = vmatprep.subr.bf16.mxu0 0
    %1696 = vmatpush1.bf16.msra.mxu0 %v1683
    %1697 = vmatprep.subr.bf16.mxu0 0
    %1698 = vmatpush1.bf16.msra.mxu0 %v1682
    %1699 = vmatprep.subr.bf16.mxu0 0
    %1700 = vmatpush1.bf16.msra.mxu0 %v1681
    %1701 = vmatprep.subr.bf16.mxu0 0
    %1702 = vmatpush1.bf16.msra.mxu0 %v1680
    %1703 = vmatprep.subr.bf16.mxu0 0
    %1704 = vmatpush1.bf16.msra.mxu0 %v1679
    %1705 = vmatprep.subr.bf16.mxu0 0
    %1706 = vmatpush1.bf16.msra.mxu0 %v1678
    %1707 = vmatprep.subr.bf16.mxu0 0
    %1708 = vmatpush1.bf16.msra.mxu0 %v1677
    %1709 = vmatprep.subr.bf16.mxu0 0
    %1710 = vmatpush2.bf16.msra.mxu0 0
    %1711 = vmatprep.subr.bf16.mxu0 0
    %1712 = vmatpush2.bf16.msra.mxu0 0
    %1713 = vmatprep.subr.bf16.mxu0 0
    %1714 = vmatpush2.bf16.msra.mxu0 0
    %1715 = vmatprep.subr.bf16.mxu0 0
    %1716 = vmatpush2.bf16.msra.mxu0 0
    %1717 = vmatprep.subr.bf16.mxu0 0
    %1718 = vmatpush2.bf16.msra.mxu0 0
    %1719 = vmatprep.subr.bf16.mxu0 0
    %1720 = vmatpush2.bf16.msra.mxu0 0
    %1721 = vmatprep.subr.bf16.mxu0 0
    %1722 = vmatpush2.bf16.msra.mxu0 0
    %1723 = vmatprep.subr.bf16.mxu0 0
    %1724 = vmatpush2.bf16.msra.mxu0 0
    %1725 = vmatprep.mubr.bf16.mxu0 0
    %1726 = vmatmul.mubr.bf16.gmra.mxu0 %v1596
    %v1727 = vpop.f32.mrf.mxu0
    %v1728 = vadd.f32 0.0, %v1727
    %v1729 = vpop.f32.mrf.mxu0
    %v1730 = vpop.f32.mrf.mxu0
    %v1731 = vadd.f32 0.0, %v1730
    %v1732 = vpop.f32.mrf.mxu0
    %1733 = vmatprep.mubr.bf16.mxu0 0
    %1734 = vmatmul.mubr.bf16.gmra.mxu0 %v1597
    %v1735 = vpop.f32.mrf.mxu0
    %v1736 = vadd.f32 0.0, %v1735
    %v1737 = vpop.f32.mrf.mxu0
    %v1738 = vpop.f32.mrf.mxu0
    %v1739 = vadd.f32 0.0, %v1738
    %v1740 = vpop.f32.mrf.mxu0
    %1741 = vmatprep.mubr.bf16.mxu0 0
    %1742 = vmatmul.mubr.bf16.gmra.mxu0 %v1598
    %v1743 = vpop.f32.mrf.mxu0
    %v1744 = vadd.f32 0.0, %v1743
    %v1745 = vpop.f32.mrf.mxu0
    %v1746 = vpop.f32.mrf.mxu0
    %v1747 = vadd.f32 0.0, %v1746
    %v1748 = vpop.f32.mrf.mxu0
    %1749 = vmatprep.mubr.bf16.mxu0 0
    %1750 = vmatmul.mubr.bf16.gmra.mxu0 %v1599
    %v1751 = vpop.f32.mrf.mxu0
    %v1752 = vadd.f32 0.0, %v1751
    %v1753 = vpop.f32.mrf.mxu0
    %v1754 = vpop.f32.mrf.mxu0
    %v1755 = vadd.f32 0.0, %v1754
    %v1756 = vpop.f32.mrf.mxu0
    %1757 = vmatprep.mubr.bf16.mxu0 0
    %1758 = vmatmul.mubr.bf16.gmra.mxu0 %v1600
    %v1759 = vpop.f32.mrf.mxu0
    %v1760 = vadd.f32 0.0, %v1759
    %v1761 = vpop.f32.mrf.mxu0
    %v1762 = vpop.f32.mrf.mxu0
    %v1763 = vadd.f32 0.0, %v1762
    %v1764 = vpop.f32.mrf.mxu0
    %1765 = vmatprep.mubr.bf16.mxu0 0
    %1766 = vmatmul.mubr.bf16.gmra.mxu0 %v1601
    %v1767 = vpop.f32.mrf.mxu0
    %v1768 = vadd.f32 0.0, %v1767
    %v1769 = vpop.f32.mrf.mxu0
    %v1770 = vpop.f32.mrf.mxu0
    %v1771 = vadd.f32 0.0, %v1770
    %v1772 = vpop.f32.mrf.mxu0
    %1773 = vmatprep.mubr.bf16.mxu0 0
    %1774 = vmatmul.mubr.bf16.gmra.mxu0 %v1602
    %v1775 = vpop.f32.mrf.mxu0
    %v1776 = vadd.f32 0.0, %v1775
    %v1777 = vpop.f32.mrf.mxu0
    %v1778 = vpop.f32.mrf.mxu0
    %v1779 = vadd.f32 0.0, %v1778
    %v1780 = vpop.f32.mrf.mxu0
    %1781 = vmatprep.mubr.bf16.mxu0 0
    %1782 = vmatmul.mubr.bf16.gmra.mxu0 %v1603
    %v1783 = vpop.f32.mrf.mxu0
    %v1784 = vadd.f32 0.0, %v1783
    %v1785 = vpop.f32.mrf.mxu0
    %v1786 = vpop.f32.mrf.mxu0
    %v1787 = vadd.f32 0.0, %v1786
    %v1788 = vpop.f32.mrf.mxu0
    %1789 = vmatprep.mubr.bf16.mxu0 0
    %1790 = vmatmul.mubr.bf16.gmra.mxu0 %v1604
    %v1791 = vpop.f32.mrf.mxu0
    %v1792 = vadd.f32 0.0, %v1791
    %v1793 = vpop.f32.mrf.mxu0
    %v1794 = vpop.f32.mrf.mxu0
    %v1795 = vadd.f32 0.0, %v1794
    %v1796 = vpop.f32.mrf.mxu0
    %1797 = vmatprep.mubr.bf16.mxu0 0
    %1798 = vmatmul.mubr.bf16.gmra.mxu0 %v1605
    %v1799 = vpop.f32.mrf.mxu0
    %v1800 = vadd.f32 0.0, %v1799
    %v1801 = vpop.f32.mrf.mxu0
    %v1802 = vpop.f32.mrf.mxu0
    %v1803 = vadd.f32 0.0, %v1802
    %v1804 = vpop.f32.mrf.mxu0
    %1805 = vmatprep.mubr.bf16.mxu0 0
    %1806 = vmatmul.mubr.bf16.gmra.mxu0 %v1606
    %v1807 = vpop.f32.mrf.mxu0
    %v1808 = vadd.f32 0.0, %v1807
    %v1809 = vpop.f32.mrf.mxu0
    %v1810 = vpop.f32.mrf.mxu0
    %v1811 = vadd.f32 0.0, %v1810
    %v1812 = vpop.f32.mrf.mxu0
    %1813 = vmatprep.mubr.bf16.mxu0 0
    %1814 = vmatmul.mubr.bf16.gmra.mxu0 %v1607
    %v1815 = vpop.f32.mrf.mxu0
    %v1816 = vadd.f32 0.0, %v1815
    %v1817 = vpop.f32.mrf.mxu0
    %v1818 = vpop.f32.mrf.mxu0
    %v1819 = vadd.f32 0.0, %v1818
    %v1820 = vpop.f32.mrf.mxu0
    %1821 = vmatprep.mubr.bf16.mxu0 0
    %1822 = vmatmul.mubr.bf16.gmra.mxu0 %v1608
    %v1823 = vpop.f32.mrf.mxu0
    %v1824 = vadd.f32 0.0, %v1823
    %v1825 = vpop.f32.mrf.mxu0
    %v1826 = vpop.f32.mrf.mxu0
    %v1827 = vadd.f32 0.0, %v1826
    %v1828 = vpop.f32.mrf.mxu0
    %1829 = vmatprep.mubr.bf16.mxu0 0
    %1830 = vmatmul.mubr.bf16.gmra.mxu0 %v1609
    %v1831 = vpop.f32.mrf.mxu0
    %v1832 = vadd.f32 0.0, %v1831
    %v1833 = vpop.f32.mrf.mxu0
    %v1834 = vpop.f32.mrf.mxu0
    %v1835 = vadd.f32 0.0, %v1834
    %v1836 = vpop.f32.mrf.mxu0
    %1837 = vmatprep.mubr.bf16.mxu0 0
    %1838 = vmatmul.mubr.bf16.gmra.mxu0 %v1610
    %v1839 = vpop.f32.mrf.mxu0
    %v1840 = vadd.f32 0.0, %v1839
    %v1841 = vpop.f32.mrf.mxu0
    %v1842 = vpop.f32.mrf.mxu0
    %v1843 = vadd.f32 0.0, %v1842
    %v1844 = vpop.f32.mrf.mxu0
    %1845 = vmatprep.mubr.bf16.mxu0 0
    %1846 = vmatmul.mubr.bf16.gmra.mxu0 %v1611
    %v1847 = vpop.f32.mrf.mxu0
    %v1848 = vadd.f32 0.0, %v1847
    %v1849 = vpop.f32.mrf.mxu0
    %v1850 = vpop.f32.mrf.mxu0
    %v1851 = vadd.f32 0.0, %v1850
    %v1852 = vpop.f32.mrf.mxu0
    %1853 = vmatprep.mubr.bf16.mxu0 0
    %1854 = vmatmul.mubr.bf16.gmra.mxu0 %v1612
    %v1855 = vpop.f32.mrf.mxu0
    %v1856 = vadd.f32 0.0, %v1855
    %v1857 = vpop.f32.mrf.mxu0
    %v1858 = vpop.f32.mrf.mxu0
    %v1859 = vadd.f32 0.0, %v1858
    %v1860 = vpop.f32.mrf.mxu0
    %1861 = vmatprep.mubr.bf16.mxu0 0
    %1862 = vmatmul.mubr.bf16.gmra.mxu0 %v1613
    %v1863 = vpop.f32.mrf.mxu0
    %v1864 = vadd.f32 0.0, %v1863
    %v1865 = vpop.f32.mrf.mxu0
    %v1866 = vpop.f32.mrf.mxu0
    %v1867 = vadd.f32 0.0, %v1866
    %v1868 = vpop.f32.mrf.mxu0
    %1869 = vmatprep.mubr.bf16.mxu0 0
    %1870 = vmatmul.mubr.bf16.gmra.mxu0 %v1614
    %v1871 = vpop.f32.mrf.mxu0
    %v1872 = vadd.f32 0.0, %v1871
    %v1873 = vpop.f32.mrf.mxu0
    %v1874 = vpop.f32.mrf.mxu0
    %v1875 = vadd.f32 0.0, %v1874
    %v1876 = vpop.f32.mrf.mxu0
    %1877 = vmatprep.mubr.bf16.mxu0 0
    %1878 = vmatmul.mubr.bf16.gmra.mxu0 %v1615
    %v1879 = vpop.f32.mrf.mxu0
    %v1880 = vadd.f32 0.0, %v1879
    %v1881 = vpop.f32.mrf.mxu0
    %v1882 = vpop.f32.mrf.mxu0
    %v1883 = vadd.f32 0.0, %v1882
    %v1884 = vpop.f32.mrf.mxu0
    %1885 = vmatprep.mubr.bf16.mxu0 0
    %1886 = vmatmul.mubr.bf16.gmra.mxu0 %v1616
    %v1887 = vpop.f32.mrf.mxu0
    %v1888 = vadd.f32 0.0, %v1887
    %v1889 = vpop.f32.mrf.mxu0
    %v1890 = vpop.f32.mrf.mxu0
    %v1891 = vadd.f32 0.0, %v1890
    %v1892 = vpop.f32.mrf.mxu0
    %1893 = vmatprep.mubr.bf16.mxu0 0
    %1894 = vmatmul.mubr.bf16.gmra.mxu0 %v1617
    %v1895 = vpop.f32.mrf.mxu0
    %v1896 = vadd.f32 0.0, %v1895
    %v1897 = vpop.f32.mrf.mxu0
    %v1898 = vpop.f32.mrf.mxu0
    %v1899 = vadd.f32 0.0, %v1898
    %v1900 = vpop.f32.mrf.mxu0
    %1901 = vmatprep.mubr.bf16.mxu0 0
    %1902 = vmatmul.mubr.bf16.gmra.mxu0 %v1618
    %v1903 = vpop.f32.mrf.mxu0
    %v1904 = vadd.f32 0.0, %v1903
    %v1905 = vpop.f32.mrf.mxu0
    %v1906 = vpop.f32.mrf.mxu0
    %v1907 = vadd.f32 0.0, %v1906
    %v1908 = vpop.f32.mrf.mxu0
    %1909 = vmatprep.mubr.bf16.mxu0 0
    %1910 = vmatmul.mubr.bf16.gmra.mxu0 %v1619
    %v1911 = vpop.f32.mrf.mxu0
    %v1912 = vadd.f32 0.0, %v1911
    %v1913 = vpop.f32.mrf.mxu0
    %v1914 = vpop.f32.mrf.mxu0
    %v1915 = vadd.f32 0.0, %v1914
    %v1916 = vpop.f32.mrf.mxu0
    %1917 = vmatprep.mubr.bf16.mxu0 0
    %1918 = vmatmul.mubr.bf16.gmra.mxu0 %v1620
    %v1919 = vpop.f32.mrf.mxu0
    %v1920 = vadd.f32 0.0, %v1919
    %v1921 = vpop.f32.mrf.mxu0
    %v1922 = vpop.f32.mrf.mxu0
    %v1923 = vadd.f32 0.0, %v1922
    %v1924 = vpop.f32.mrf.mxu0
    %1925 = vmatprep.mubr.bf16.mxu0 0
    %1926 = vmatmul.mubr.bf16.gmra.mxu0 %v1621
    %v1927 = vpop.f32.mrf.mxu0
    %v1928 = vadd.f32 0.0, %v1927
    %v1929 = vpop.f32.mrf.mxu0
    %v1930 = vpop.f32.mrf.mxu0
    %v1931 = vadd.f32 0.0, %v1930
    %v1932 = vpop.f32.mrf.mxu0
    %1933 = vmatprep.mubr.bf16.mxu0 0
    %1934 = vmatmul.mubr.bf16.gmra.mxu0 %v1622
    %v1935 = vpop.f32.mrf.mxu0
    %v1936 = vadd.f32 0.0, %v1935
    %v1937 = vpop.f32.mrf.mxu0
    %v1938 = vpop.f32.mrf.mxu0
    %v1939 = vadd.f32 0.0, %v1938
    %v1940 = vpop.f32.mrf.mxu0
    %1941 = vmatprep.mubr.bf16.mxu0 0
    %1942 = vmatmul.mubr.bf16.gmra.mxu0 %v1623
    %v1943 = vpop.f32.mrf.mxu0
    %v1944 = vadd.f32 0.0, %v1943
    %v1945 = vpop.f32.mrf.mxu0
    %v1946 = vpop.f32.mrf.mxu0
    %v1947 = vadd.f32 0.0, %v1946
    %v1948 = vpop.f32.mrf.mxu0
    %1949 = vmatprep.mubr.bf16.mxu0 0
    %1950 = vmatmul.mubr.bf16.gmra.mxu0 %v1624
    %v1951 = vpop.f32.mrf.mxu0
    %v1952 = vadd.f32 0.0, %v1951
    %v1953 = vpop.f32.mrf.mxu0
    %v1954 = vpop.f32.mrf.mxu0
    %v1955 = vadd.f32 0.0, %v1954
    %v1956 = vpop.f32.mrf.mxu0
    %1957 = vmatprep.mubr.bf16.mxu0 0
    %1958 = vmatmul.mubr.bf16.gmra.mxu0 %v1625
    %v1959 = vpop.f32.mrf.mxu0
    %v1960 = vadd.f32 0.0, %v1959
    %v1961 = vpop.f32.mrf.mxu0
    %v1962 = vpop.f32.mrf.mxu0
    %v1963 = vadd.f32 0.0, %v1962
    %v1964 = vpop.f32.mrf.mxu0
    %1965 = vmatprep.mubr.bf16.mxu0 0
    %1966 = vmatmul.mubr.bf16.gmra.mxu0 %v1626
    %v1967 = vpop.f32.mrf.mxu0
    %v1968 = vadd.f32 0.0, %v1967
    %v1969 = vpop.f32.mrf.mxu0
    %v1970 = vpop.f32.mrf.mxu0
    %v1971 = vadd.f32 0.0, %v1970
    %v1972 = vpop.f32.mrf.mxu0
    %1973 = vmatprep.mubr.bf16.mxu0 0
    %1974 = vmatmul.mubr.bf16.gmra.mxu0 %v1627
    %v1975 = vpop.f32.mrf.mxu0
    %v1976 = vadd.f32 0.0, %v1975
    %v1977 = vpop.f32.mrf.mxu0
    %v1978 = vpop.f32.mrf.mxu0
    %v1979 = vadd.f32 0.0, %v1978
    %v1980 = vpop.f32.mrf.mxu0
    %1981 = vdwg.mxu0
    %v1982 = vadd.f32 %v1467, %v1728
    %v1983 = vadd.f32 %v1468, %v1731
    %v1984 = vadd.f32 %v1469, %v1736
    %v1985 = vadd.f32 %v1470, %v1739
    %v1986 = vadd.f32 %v1471, %v1744
    %v1987 = vadd.f32 %v1472, %v1747
    %v1988 = vadd.f32 %v1473, %v1752
    %v1989 = vadd.f32 %v1474, %v1755
    %v1990 = vadd.f32 %v1475, %v1760
    %v1991 = vadd.f32 %v1476, %v1763
    %v1992 = vadd.f32 %v1477, %v1768
    %v1993 = vadd.f32 %v1478, %v1771
    %v1994 = vadd.f32 %v1479, %v1776
    %v1995 = vadd.f32 %v1480, %v1779
    %v1996 = vadd.f32 %v1481, %v1784
    %v1997 = vadd.f32 %v1482, %v1787
    %v1998 = vadd.f32 %v1483, %v1792
    %v1999 = vadd.f32 %v1484, %v1795
    %v2000 = vadd.f32 %v1485, %v1800
    %v2001 = vadd.f32 %v1486, %v1803
    %v2002 = vadd.f32 %v1487, %v1808
    %v2003 = vadd.f32 %v1488, %v1811
    %v2004 = vadd.f32 %v1489, %v1816
    %v2005 = vadd.f32 %v1490, %v1819
    %v2006 = vadd.f32 %v1491, %v1824
    %v2007 = vadd.f32 %v1492, %v1827
    %v2008 = vadd.f32 %v1493, %v1832
    %v2009 = vadd.f32 %v1494, %v1835
    %v2010 = vadd.f32 %v1495, %v1840
    %v2011 = vadd.f32 %v1496, %v1843
    %v2012 = vadd.f32 %v1497, %v1848
    %v2013 = vadd.f32 %v1498, %v1851
    %v2014 = vadd.f32 %v1499, %v1856
    %v2015 = vadd.f32 %v1500, %v1859
    %v2016 = vadd.f32 %v1501, %v1864
    %v2017 = vadd.f32 %v1502, %v1867
    %v2018 = vadd.f32 %v1503, %v1872
    %v2019 = vadd.f32 %v1504, %v1875
    %v2020 = vadd.f32 %v1505, %v1880
    %v2021 = vadd.f32 %v1506, %v1883
    %v2022 = vadd.f32 %v1507, %v1888
    %v2023 = vadd.f32 %v1508, %v1891
    %v2024 = vadd.f32 %v1509, %v1896
    %v2025 = vadd.f32 %v1510, %v1899
    %v2026 = vadd.f32 %v1511, %v1904
    %v2027 = vadd.f32 %v1512, %v1907
    %v2028 = vadd.f32 %v1513, %v1912
    %v2029 = vadd.f32 %v1514, %v1915
    %v2030 = vadd.f32 %v1515, %v1920
    %v2031 = vadd.f32 %v1516, %v1923
    %v2032 = vadd.f32 %v1517, %v1928
    %v2033 = vadd.f32 %v1518, %v1931
    %v2034 = vadd.f32 %v1519, %v1936
    %v2035 = vadd.f32 %v1520, %v1939
    %v2036 = vadd.f32 %v1521, %v1944
    %v2037 = vadd.f32 %v1522, %v1947
    %v2038 = vadd.f32 %v1523, %v1952
    %v2039 = vadd.f32 %v1524, %v1955
    %v2040 = vadd.f32 %v1525, %v1960
    %v2041 = vadd.f32 %v1526, %v1963
    %v2042 = vadd.f32 %v1527, %v1968
    %v2043 = vadd.f32 %v1528, %v1971
    %v2044 = vadd.f32 %v1529, %v1976
    %v2045 = vadd.f32 %v1530, %v1979
    %s2046 = scalar_lea.vmem [#allocation3], 304
    %v2047 = vld [vmem:[%s2046] sm:$0xff]
    %v2048 = vld [vmem:[%s2046 + $0x10] sm:$0xff]
    %v2049 = vld [vmem:[%s2046 + $0x20] sm:$0xff]
    %v2050 = vld [vmem:[%s2046 + $0x30] sm:$0xff]
    %v2051 = vld [vmem:[%s2046 + $0x40] sm:$0xff]
    %v2052 = vld [vmem:[%s2046 + $0x50] sm:$0xff]
    %v2053 = vld [vmem:[%s2046 + $0x60] sm:$0xff]
    %v2054 = vld [vmem:[%s2046 + $0x70] sm:$0xff]
    %v2055 = vld [vmem:[%s2046 + $0x120] sm:$0xff]
    %v2056 = vld [vmem:[%s2046 + $0x130] sm:$0xff]
    %v2057 = vld [vmem:[%s2046 + $0x140] sm:$0xff]
    %v2058 = vld [vmem:[%s2046 + $0x150] sm:$0xff]
    %v2059 = vld [vmem:[%s2046 + $0x160] sm:$0xff]
    %v2060 = vld [vmem:[%s2046 + $0x170] sm:$0xff]
    %v2061 = vld [vmem:[%s2046 + $0x180] sm:$0xff]
    %v2062 = vld [vmem:[%s2046 + $0x190] sm:$0xff]
    %v2063 = vld [vmem:[%s2046 + $0x240] sm:$0xff]
    %v2064 = vld [vmem:[%s2046 + $0x250] sm:$0xff]
    %v2065 = vld [vmem:[%s2046 + $0x260] sm:$0xff]
    %v2066 = vld [vmem:[%s2046 + $0x270] sm:$0xff]
    %v2067 = vld [vmem:[%s2046 + $0x280] sm:$0xff]
    %v2068 = vld [vmem:[%s2046 + $0x290] sm:$0xff]
    %v2069 = vld [vmem:[%s2046 + $0x2a0] sm:$0xff]
    %v2070 = vld [vmem:[%s2046 + $0x2b0] sm:$0xff]
    %v2071 = vld [vmem:[%s2046 + $0x360] sm:$0xff]
    %v2072 = vld [vmem:[%s2046 + $0x370] sm:$0xff]
    %v2073 = vld [vmem:[%s2046 + $0x380] sm:$0xff]
    %v2074 = vld [vmem:[%s2046 + $0x390] sm:$0xff]
    %v2075 = vld [vmem:[%s2046 + $0x3a0] sm:$0xff]
    %v2076 = vld [vmem:[%s2046 + $0x3b0] sm:$0xff]
    %v2077 = vld [vmem:[%s2046 + $0x3c0] sm:$0xff]
    %v2078 = vld [vmem:[%s2046 + $0x3d0] sm:$0xff]
    %v2079 = vld [vmem:[%s2046 + $0x480] sm:$0xff]
    %v2080 = vld [vmem:[%s2046 + $0x490] sm:$0xff]
    %v2081 = vld [vmem:[%s2046 + $0x4a0] sm:$0xff]
    %v2082 = vld [vmem:[%s2046 + $0x4b0] sm:$0xff]
    %v2083 = vld [vmem:[%s2046 + $0x4c0] sm:$0xff]
    %v2084 = vld [vmem:[%s2046 + $0x4d0] sm:$0xff]
    %v2085 = vld [vmem:[%s2046 + $0x4e0] sm:$0xff]
    %v2086 = vld [vmem:[%s2046 + $0x4f0] sm:$0xff]
    %v2087 = vld [vmem:[%s2046 + $0x5a0] sm:$0xff]
    %v2088 = vld [vmem:[%s2046 + $0x5b0] sm:$0xff]
    %v2089 = vld [vmem:[%s2046 + $0x5c0] sm:$0xff]
    %v2090 = vld [vmem:[%s2046 + $0x5d0] sm:$0xff]
    %v2091 = vld [vmem:[%s2046 + $0x5e0] sm:$0xff]
    %v2092 = vld [vmem:[%s2046 + $0x5f0] sm:$0xff]
    %v2093 = vld [vmem:[%s2046 + $0x600] sm:$0xff]
    %v2094 = vld [vmem:[%s2046 + $0x610] sm:$0xff]
    %v2095 = vld [vmem:[%s2046 + $0x6c0] sm:$0xff]
    %v2096 = vld [vmem:[%s2046 + $0x6d0] sm:$0xff]
    %v2097 = vld [vmem:[%s2046 + $0x6e0] sm:$0xff]
    %v2098 = vld [vmem:[%s2046 + $0x6f0] sm:$0xff]
    %v2099 = vld [vmem:[%s2046 + $0x700] sm:$0xff]
    %v2100 = vld [vmem:[%s2046 + $0x710] sm:$0xff]
    %v2101 = vld [vmem:[%s2046 + $0x720] sm:$0xff]
    %v2102 = vld [vmem:[%s2046 + $0x730] sm:$0xff]
    %v2103 = vld [vmem:[%s2046 + $0x7e0] sm:$0xff]
    %v2104 = vld [vmem:[%s2046 + $0x7f0] sm:$0xff]
    %v2105 = vld [vmem:[%s2046 + $0x800] sm:$0xff]
    %v2106 = vld [vmem:[%s2046 + $0x810] sm:$0xff]
    %v2107 = vld [vmem:[%s2046 + $0x820] sm:$0xff]
    %v2108 = vld [vmem:[%s2046 + $0x830] sm:$0xff]
    %v2109 = vld [vmem:[%s2046 + $0x840] sm:$0xff]
    %v2110 = vld [vmem:[%s2046 + $0x850] sm:$0xff]
    %v2111 = vpack.c.bf16 %v2048, %v2047
    %v2112 = vpack.c.bf16 %v2050, %v2049
    %v2113 = vpack.c.bf16 %v2052, %v2051
    %v2114 = vpack.c.bf16 %v2054, %v2053
    %v2115 = vpack.c.bf16 %v2056, %v2055
    %v2116 = vpack.c.bf16 %v2058, %v2057
    %v2117 = vpack.c.bf16 %v2060, %v2059
    %v2118 = vpack.c.bf16 %v2062, %v2061
    %v2119 = vpack.c.bf16 %v2064, %v2063
    %v2120 = vpack.c.bf16 %v2066, %v2065
    %v2121 = vpack.c.bf16 %v2068, %v2067
    %v2122 = vpack.c.bf16 %v2070, %v2069
    %v2123 = vpack.c.bf16 %v2072, %v2071
    %v2124 = vpack.c.bf16 %v2074, %v2073
    %v2125 = vpack.c.bf16 %v2076, %v2075
    %v2126 = vpack.c.bf16 %v2078, %v2077
    %v2127 = vpack.c.bf16 %v2080, %v2079
    %v2128 = vpack.c.bf16 %v2082, %v2081
    %v2129 = vpack.c.bf16 %v2084, %v2083
    %v2130 = vpack.c.bf16 %v2086, %v2085
    %v2131 = vpack.c.bf16 %v2088, %v2087
    %v2132 = vpack.c.bf16 %v2090, %v2089
    %v2133 = vpack.c.bf16 %v2092, %v2091
    %v2134 = vpack.c.bf16 %v2094, %v2093
    %v2135 = vpack.c.bf16 %v2096, %v2095
    %v2136 = vpack.c.bf16 %v2098, %v2097
    %v2137 = vpack.c.bf16 %v2100, %v2099
    %v2138 = vpack.c.bf16 %v2102, %v2101
    %v2139 = vpack.c.bf16 %v2104, %v2103
    %v2140 = vpack.c.bf16 %v2106, %v2105
    %v2141 = vpack.c.bf16 %v2108, %v2107
    %v2142 = vpack.c.bf16 %v2110, %v2109
    %s2143 = scalar_lea.vmem [#allocation6], 256
    %v2144 = vld [vmem:[%s2143] sm:$0xf]
    %v2145 = vld [vmem:[%s2143 + $0x4] sm:$0xf]
    %v2146 = vld [vmem:[%s2143 + $0x8] sm:$0xf]
    %v2147 = vld [vmem:[%s2143 + $0xc] sm:$0xf]
    %v2148 = vld [vmem:[%s2143 + $0x10] sm:$0xf]
    %v2149 = vld [vmem:[%s2143 + $0x14] sm:$0xf]
    %v2150 = vld [vmem:[%s2143 + $0x18] sm:$0xf]
    %v2151 = vld [vmem:[%s2143 + $0x1c] sm:$0xf]
    %v2152 = vld [vmem:[%s2143 + $0x20] sm:$0xf]
    %v2153 = vld [vmem:[%s2143 + $0x24] sm:$0xf]
    %v2154 = vld [vmem:[%s2143 + $0x28] sm:$0xf]
    %v2155 = vld [vmem:[%s2143 + $0x2c] sm:$0xf]
    %v2156 = vld [vmem:[%s2143 + $0x30] sm:$0xf]
    %v2157 = vld [vmem:[%s2143 + $0x34] sm:$0xf]
    %v2158 = vld [vmem:[%s2143 + $0x38] sm:$0xf]
    %v2159 = vld [vmem:[%s2143 + $0x3c] sm:$0xf]
    %v2176 = vunpack.c.l.b16 %v2144
    %v2177 = vunpack.c.l.b16 %v2145
    %v2178 = vunpack.c.l.b16 %v2146
    %v2179 = vunpack.c.l.b16 %v2147
    %v2180 = vunpack.c.l.b16 %v2148
    %v2181 = vunpack.c.l.b16 %v2149
    %v2182 = vunpack.c.l.b16 %v2150
    %v2183 = vunpack.c.l.b16 %v2151
    %v2184 = vunpack.c.l.b16 %v2152
    %v2185 = vunpack.c.l.b16 %v2153
    %v2186 = vunpack.c.l.b16 %v2154
    %v2187 = vunpack.c.l.b16 %v2155
    %v2188 = vunpack.c.l.b16 %v2156
    %v2189 = vunpack.c.l.b16 %v2157
    %v2190 = vunpack.c.l.b16 %v2158
    %v2191 = vunpack.c.l.b16 %v2159
    %v2192 = vpack.c.b16 %v2177, %v2176
    %v2193 = vpack.c.b16 %v2179, %v2178
    %v2194 = vpack.c.b16 %v2181, %v2180
    %v2195 = vpack.c.b16 %v2183, %v2182
    %v2196 = vpack.c.b16 %v2185, %v2184
    %v2197 = vpack.c.b16 %v2187, %v2186
    %v2198 = vpack.c.b16 %v2189, %v2188
    %v2199 = vpack.c.b16 %v2191, %v2190
    %2208 = vmatprep.subr.bf16.mxu0 0
    %2209 = vmatpush1.bf16.msra.mxu0 %v2199
    %2210 = vmatprep.subr.bf16.mxu0 0
    %2211 = vmatpush1.bf16.msra.mxu0 %v2198
    %2212 = vmatprep.subr.bf16.mxu0 0
    %2213 = vmatpush1.bf16.msra.mxu0 %v2197
    %2214 = vmatprep.subr.bf16.mxu0 0
    %2215 = vmatpush1.bf16.msra.mxu0 %v2196
    %2216 = vmatprep.subr.bf16.mxu0 0
    %2217 = vmatpush1.bf16.msra.mxu0 %v2195
    %2218 = vmatprep.subr.bf16.mxu0 0
    %2219 = vmatpush1.bf16.msra.mxu0 %v2194
    %2220 = vmatprep.subr.bf16.mxu0 0
    %2221 = vmatpush1.bf16.msra.mxu0 %v2193
    %2222 = vmatprep.subr.bf16.mxu0 0
    %2223 = vmatpush1.bf16.msra.mxu0 %v2192
    %2224 = vmatprep.subr.bf16.mxu0 0
    %2225 = vmatpush2.bf16.msra.mxu0 0
    %2226 = vmatprep.subr.bf16.mxu0 0
    %2227 = vmatpush2.bf16.msra.mxu0 0
    %2228 = vmatprep.subr.bf16.mxu0 0
    %2229 = vmatpush2.bf16.msra.mxu0 0
    %2230 = vmatprep.subr.bf16.mxu0 0
    %2231 = vmatpush2.bf16.msra.mxu0 0
    %2232 = vmatprep.subr.bf16.mxu0 0
    %2233 = vmatpush2.bf16.msra.mxu0 0
    %2234 = vmatprep.subr.bf16.mxu0 0
    %2235 = vmatpush2.bf16.msra.mxu0 0
    %2236 = vmatprep.subr.bf16.mxu0 0
    %2237 = vmatpush2.bf16.msra.mxu0 0
    %2238 = vmatprep.subr.bf16.mxu0 0
    %2239 = vmatpush2.bf16.msra.mxu0 0
    %2240 = vmatprep.mubr.bf16.mxu0 0
    %2241 = vmatmul.mubr.bf16.gmra.mxu0 %v2111
    %v2242 = vpop.f32.mrf.mxu0
    %v2243 = vadd.f32 0.0, %v2242
    %v2244 = vpop.f32.mrf.mxu0
    %v2245 = vpop.f32.mrf.mxu0
    %v2246 = vadd.f32 0.0, %v2245
    %v2247 = vpop.f32.mrf.mxu0
    %2248 = vmatprep.mubr.bf16.mxu0 0
    %2249 = vmatmul.mubr.bf16.gmra.mxu0 %v2112
    %v2250 = vpop.f32.mrf.mxu0
    %v2251 = vadd.f32 0.0, %v2250
    %v2252 = vpop.f32.mrf.mxu0
    %v2253 = vpop.f32.mrf.mxu0
    %v2254 = vadd.f32 0.0, %v2253
    %v2255 = vpop.f32.mrf.mxu0
    %2256 = vmatprep.mubr.bf16.mxu0 0
    %2257 = vmatmul.mubr.bf16.gmra.mxu0 %v2113
    %v2258 = vpop.f32.mrf.mxu0
    %v2259 = vadd.f32 0.0, %v2258
    %v2260 = vpop.f32.mrf.mxu0
    %v2261 = vpop.f32.mrf.mxu0
    %v2262 = vadd.f32 0.0, %v2261
    %v2263 = vpop.f32.mrf.mxu0
    %2264 = vmatprep.mubr.bf16.mxu0 0
    %2265 = vmatmul.mubr.bf16.gmra.mxu0 %v2114
    %v2266 = vpop.f32.mrf.mxu0
    %v2267 = vadd.f32 0.0, %v2266
    %v2268 = vpop.f32.mrf.mxu0
    %v2269 = vpop.f32.mrf.mxu0
    %v2270 = vadd.f32 0.0, %v2269
    %v2271 = vpop.f32.mrf.mxu0
    %2272 = vmatprep.mubr.bf16.mxu0 0
    %2273 = vmatmul.mubr.bf16.gmra.mxu0 %v2115
    %v2274 = vpop.f32.mrf.mxu0
    %v2275 = vadd.f32 0.0, %v2274
    %v2276 = vpop.f32.mrf.mxu0
    %v2277 = vpop.f32.mrf.mxu0
    %v2278 = vadd.f32 0.0, %v2277
    %v2279 = vpop.f32.mrf.mxu0
    %2280 = vmatprep.mubr.bf16.mxu0 0
    %2281 = vmatmul.mubr.bf16.gmra.mxu0 %v2116
    %v2282 = vpop.f32.mrf.mxu0
    %v2283 = vadd.f32 0.0, %v2282
    %v2284 = vpop.f32.mrf.mxu0
    %v2285 = vpop.f32.mrf.mxu0
    %v2286 = vadd.f32 0.0, %v2285
    %v2287 = vpop.f32.mrf.mxu0
    %2288 = vmatprep.mubr.bf16.mxu0 0
    %2289 = vmatmul.mubr.bf16.gmra.mxu0 %v2117
    %v2290 = vpop.f32.mrf.mxu0
    %v2291 = vadd.f32 0.0, %v2290
    %v2292 = vpop.f32.mrf.mxu0
    %v2293 = vpop.f32.mrf.mxu0
    %v2294 = vadd.f32 0.0, %v2293
    %v2295 = vpop.f32.mrf.mxu0
    %2296 = vmatprep.mubr.bf16.mxu0 0
    %2297 = vmatmul.mubr.bf16.gmra.mxu0 %v2118
    %v2298 = vpop.f32.mrf.mxu0
    %v2299 = vadd.f32 0.0, %v2298
    %v2300 = vpop.f32.mrf.mxu0
    %v2301 = vpop.f32.mrf.mxu0
    %v2302 = vadd.f32 0.0, %v2301
    %v2303 = vpop.f32.mrf.mxu0
    %2304 = vmatprep.mubr.bf16.mxu0 0
    %2305 = vmatmul.mubr.bf16.gmra.mxu0 %v2119
    %v2306 = vpop.f32.mrf.mxu0
    %v2307 = vadd.f32 0.0, %v2306
    %v2308 = vpop.f32.mrf.mxu0
    %v2309 = vpop.f32.mrf.mxu0
    %v2310 = vadd.f32 0.0, %v2309
    %v2311 = vpop.f32.mrf.mxu0
    %2312 = vmatprep.mubr.bf16.mxu0 0
    %2313 = vmatmul.mubr.bf16.gmra.mxu0 %v2120
    %v2314 = vpop.f32.mrf.mxu0
    %v2315 = vadd.f32 0.0, %v2314
    %v2316 = vpop.f32.mrf.mxu0
    %v2317 = vpop.f32.mrf.mxu0
    %v2318 = vadd.f32 0.0, %v2317
    %v2319 = vpop.f32.mrf.mxu0
    %2320 = vmatprep.mubr.bf16.mxu0 0
    %2321 = vmatmul.mubr.bf16.gmra.mxu0 %v2121
    %v2322 = vpop.f32.mrf.mxu0
    %v2323 = vadd.f32 0.0, %v2322
    %v2324 = vpop.f32.mrf.mxu0
    %v2325 = vpop.f32.mrf.mxu0
    %v2326 = vadd.f32 0.0, %v2325
    %v2327 = vpop.f32.mrf.mxu0
    %2328 = vmatprep.mubr.bf16.mxu0 0
    %2329 = vmatmul.mubr.bf16.gmra.mxu0 %v2122
    %v2330 = vpop.f32.mrf.mxu0
    %v2331 = vadd.f32 0.0, %v2330
    %v2332 = vpop.f32.mrf.mxu0
    %v2333 = vpop.f32.mrf.mxu0
    %v2334 = vadd.f32 0.0, %v2333
    %v2335 = vpop.f32.mrf.mxu0
    %2336 = vmatprep.mubr.bf16.mxu0 0
    %2337 = vmatmul.mubr.bf16.gmra.mxu0 %v2123
    %v2338 = vpop.f32.mrf.mxu0
    %v2339 = vadd.f32 0.0, %v2338
    %v2340 = vpop.f32.mrf.mxu0
    %v2341 = vpop.f32.mrf.mxu0
    %v2342 = vadd.f32 0.0, %v2341
    %v2343 = vpop.f32.mrf.mxu0
    %2344 = vmatprep.mubr.bf16.mxu0 0
    %2345 = vmatmul.mubr.bf16.gmra.mxu0 %v2124
    %v2346 = vpop.f32.mrf.mxu0
    %v2347 = vadd.f32 0.0, %v2346
    %v2348 = vpop.f32.mrf.mxu0
    %v2349 = vpop.f32.mrf.mxu0
    %v2350 = vadd.f32 0.0, %v2349
    %v2351 = vpop.f32.mrf.mxu0
    %2352 = vmatprep.mubr.bf16.mxu0 0
    %2353 = vmatmul.mubr.bf16.gmra.mxu0 %v2125
    %v2354 = vpop.f32.mrf.mxu0
    %v2355 = vadd.f32 0.0, %v2354
    %v2356 = vpop.f32.mrf.mxu0
    %v2357 = vpop.f32.mrf.mxu0
    %v2358 = vadd.f32 0.0, %v2357
    %v2359 = vpop.f32.mrf.mxu0
    %2360 = vmatprep.mubr.bf16.mxu0 0
    %2361 = vmatmul.mubr.bf16.gmra.mxu0 %v2126
    %v2362 = vpop.f32.mrf.mxu0
    %v2363 = vadd.f32 0.0, %v2362
    %v2364 = vpop.f32.mrf.mxu0
    %v2365 = vpop.f32.mrf.mxu0
    %v2366 = vadd.f32 0.0, %v2365
    %v2367 = vpop.f32.mrf.mxu0
    %2368 = vmatprep.mubr.bf16.mxu0 0
    %2369 = vmatmul.mubr.bf16.gmra.mxu0 %v2127
    %v2370 = vpop.f32.mrf.mxu0
    %v2371 = vadd.f32 0.0, %v2370
    %v2372 = vpop.f32.mrf.mxu0
    %v2373 = vpop.f32.mrf.mxu0
    %v2374 = vadd.f32 0.0, %v2373
    %v2375 = vpop.f32.mrf.mxu0
    %2376 = vmatprep.mubr.bf16.mxu0 0
    %2377 = vmatmul.mubr.bf16.gmra.mxu0 %v2128
    %v2378 = vpop.f32.mrf.mxu0
    %v2379 = vadd.f32 0.0, %v2378
    %v2380 = vpop.f32.mrf.mxu0
    %v2381 = vpop.f32.mrf.mxu0
    %v2382 = vadd.f32 0.0, %v2381
    %v2383 = vpop.f32.mrf.mxu0
    %2384 = vmatprep.mubr.bf16.mxu0 0
    %2385 = vmatmul.mubr.bf16.gmra.mxu0 %v2129
    %v2386 = vpop.f32.mrf.mxu0
    %v2387 = vadd.f32 0.0, %v2386
    %v2388 = vpop.f32.mrf.mxu0
    %v2389 = vpop.f32.mrf.mxu0
    %v2390 = vadd.f32 0.0, %v2389
    %v2391 = vpop.f32.mrf.mxu0
    %2392 = vmatprep.mubr.bf16.mxu0 0
    %2393 = vmatmul.mubr.bf16.gmra.mxu0 %v2130
    %v2394 = vpop.f32.mrf.mxu0
    %v2395 = vadd.f32 0.0, %v2394
    %v2396 = vpop.f32.mrf.mxu0
    %v2397 = vpop.f32.mrf.mxu0
    %v2398 = vadd.f32 0.0, %v2397
    %v2399 = vpop.f32.mrf.mxu0
    %2400 = vmatprep.mubr.bf16.mxu0 0
    %2401 = vmatmul.mubr.bf16.gmra.mxu0 %v2131
    %v2402 = vpop.f32.mrf.mxu0
    %v2403 = vadd.f32 0.0, %v2402
    %v2404 = vpop.f32.mrf.mxu0
    %v2405 = vpop.f32.mrf.mxu0
    %v2406 = vadd.f32 0.0, %v2405
    %v2407 = vpop.f32.mrf.mxu0
    %2408 = vmatprep.mubr.bf16.mxu0 0
    %2409 = vmatmul.mubr.bf16.gmra.mxu0 %v2132
    %v2410 = vpop.f32.mrf.mxu0
    %v2411 = vadd.f32 0.0, %v2410
    %v2412 = vpop.f32.mrf.mxu0
    %v2413 = vpop.f32.mrf.mxu0
    %v2414 = vadd.f32 0.0, %v2413
    %v2415 = vpop.f32.mrf.mxu0
    %2416 = vmatprep.mubr.bf16.mxu0 0
    %2417 = vmatmul.mubr.bf16.gmra.mxu0 %v2133
    %v2418 = vpop.f32.mrf.mxu0
    %v2419 = vadd.f32 0.0, %v2418
    %v2420 = vpop.f32.mrf.mxu0
    %v2421 = vpop.f32.mrf.mxu0
    %v2422 = vadd.f32 0.0, %v2421
    %v2423 = vpop.f32.mrf.mxu0
    %2424 = vmatprep.mubr.bf16.mxu0 0
    %2425 = vmatmul.mubr.bf16.gmra.mxu0 %v2134
    %v2426 = vpop.f32.mrf.mxu0
    %v2427 = vadd.f32 0.0, %v2426
    %v2428 = vpop.f32.mrf.mxu0
    %v2429 = vpop.f32.mrf.mxu0
    %v2430 = vadd.f32 0.0, %v2429
    %v2431 = vpop.f32.mrf.mxu0
    %2432 = vmatprep.mubr.bf16.mxu0 0
    %2433 = vmatmul.mubr.bf16.gmra.mxu0 %v2135
    %v2434 = vpop.f32.mrf.mxu0
    %v2435 = vadd.f32 0.0, %v2434
    %v2436 = vpop.f32.mrf.mxu0
    %v2437 = vpop.f32.mrf.mxu0
    %v2438 = vadd.f32 0.0, %v2437
    %v2439 = vpop.f32.mrf.mxu0
    %2440 = vmatprep.mubr.bf16.mxu0 0
    %2441 = vmatmul.mubr.bf16.gmra.mxu0 %v2136
    %v2442 = vpop.f32.mrf.mxu0
    %v2443 = vadd.f32 0.0, %v2442
    %v2444 = vpop.f32.mrf.mxu0
    %v2445 = vpop.f32.mrf.mxu0
    %v2446 = vadd.f32 0.0, %v2445
    %v2447 = vpop.f32.mrf.mxu0
    %2448 = vmatprep.mubr.bf16.mxu0 0
    %2449 = vmatmul.mubr.bf16.gmra.mxu0 %v2137
    %v2450 = vpop.f32.mrf.mxu0
    %v2451 = vadd.f32 0.0, %v2450
    %v2452 = vpop.f32.mrf.mxu0
    %v2453 = vpop.f32.mrf.mxu0
    %v2454 = vadd.f32 0.0, %v2453
    %v2455 = vpop.f32.mrf.mxu0
    %2456 = vmatprep.mubr.bf16.mxu0 0
    %2457 = vmatmul.mubr.bf16.gmra.mxu0 %v2138
    %v2458 = vpop.f32.mrf.mxu0
    %v2459 = vadd.f32 0.0, %v2458
    %v2460 = vpop.f32.mrf.mxu0
    %v2461 = vpop.f32.mrf.mxu0
    %v2462 = vadd.f32 0.0, %v2461
    %v2463 = vpop.f32.mrf.mxu0
    %2464 = vmatprep.mubr.bf16.mxu0 0
    %2465 = vmatmul.mubr.bf16.gmra.mxu0 %v2139
    %v2466 = vpop.f32.mrf.mxu0
    %v2467 = vadd.f32 0.0, %v2466
    %v2468 = vpop.f32.mrf.mxu0
    %v2469 = vpop.f32.mrf.mxu0
    %v2470 = vadd.f32 0.0, %v2469
    %v2471 = vpop.f32.mrf.mxu0
    %2472 = vmatprep.mubr.bf16.mxu0 0
    %2473 = vmatmul.mubr.bf16.gmra.mxu0 %v2140
    %v2474 = vpop.f32.mrf.mxu0
    %v2475 = vadd.f32 0.0, %v2474
    %v2476 = vpop.f32.mrf.mxu0
    %v2477 = vpop.f32.mrf.mxu0
    %v2478 = vadd.f32 0.0, %v2477
    %v2479 = vpop.f32.mrf.mxu0
    %2480 = vmatprep.mubr.bf16.mxu0 0
    %2481 = vmatmul.mubr.bf16.gmra.mxu0 %v2141
    %v2482 = vpop.f32.mrf.mxu0
    %v2483 = vadd.f32 0.0, %v2482
    %v2484 = vpop.f32.mrf.mxu0
    %v2485 = vpop.f32.mrf.mxu0
    %v2486 = vadd.f32 0.0, %v2485
    %v2487 = vpop.f32.mrf.mxu0
    %2488 = vmatprep.mubr.bf16.mxu0 0
    %2489 = vmatmul.mubr.bf16.gmra.mxu0 %v2142
    %v2490 = vpop.f32.mrf.mxu0
    %v2491 = vadd.f32 0.0, %v2490
    %v2492 = vpop.f32.mrf.mxu0
    %v2493 = vpop.f32.mrf.mxu0
    %v2494 = vadd.f32 0.0, %v2493
    %v2495 = vpop.f32.mrf.mxu0
    %2496 = vdwg.mxu0
    %v2497 = vadd.f32 %v1982, %v2243
    %v2498 = vadd.f32 %v1983, %v2246
    %v2499 = vadd.f32 %v1984, %v2251
    %v2500 = vadd.f32 %v1985, %v2254
    %v2501 = vadd.f32 %v1986, %v2259
    %v2502 = vadd.f32 %v1987, %v2262
    %v2503 = vadd.f32 %v1988, %v2267
    %v2504 = vadd.f32 %v1989, %v2270
    %v2505 = vadd.f32 %v1990, %v2275
    %v2506 = vadd.f32 %v1991, %v2278
    %v2507 = vadd.f32 %v1992, %v2283
    %v2508 = vadd.f32 %v1993, %v2286
    %v2509 = vadd.f32 %v1994, %v2291
    %v2510 = vadd.f32 %v1995, %v2294
    %v2511 = vadd.f32 %v1996, %v2299
    %v2512 = vadd.f32 %v1997, %v2302
    %v2513 = vadd.f32 %v1998, %v2307
    %v2514 = vadd.f32 %v1999, %v2310
    %v2515 = vadd.f32 %v2000, %v2315
    %v2516 = vadd.f32 %v2001, %v2318
    %v2517 = vadd.f32 %v2002, %v2323
    %v2518 = vadd.f32 %v2003, %v2326
    %v2519 = vadd.f32 %v2004, %v2331
    %v2520 = vadd.f32 %v2005, %v2334
    %v2521 = vadd.f32 %v2006, %v2339
    %v2522 = vadd.f32 %v2007, %v2342
    %v2523 = vadd.f32 %v2008, %v2347
    %v2524 = vadd.f32 %v2009, %v2350
    %v2525 = vadd.f32 %v2010, %v2355
    %v2526 = vadd.f32 %v2011, %v2358
    %v2527 = vadd.f32 %v2012, %v2363
    %v2528 = vadd.f32 %v2013, %v2366
    %v2529 = vadd.f32 %v2014, %v2371
    %v2530 = vadd.f32 %v2015, %v2374
    %v2531 = vadd.f32 %v2016, %v2379
    %v2532 = vadd.f32 %v2017, %v2382
    %v2533 = vadd.f32 %v2018, %v2387
    %v2534 = vadd.f32 %v2019, %v2390
    %v2535 = vadd.f32 %v2020, %v2395
    %v2536 = vadd.f32 %v2021, %v2398
    %v2537 = vadd.f32 %v2022, %v2403
    %v2538 = vadd.f32 %v2023, %v2406
    %v2539 = vadd.f32 %v2024, %v2411
    %v2540 = vadd.f32 %v2025, %v2414
    %v2541 = vadd.f32 %v2026, %v2419
    %v2542 = vadd.f32 %v2027, %v2422
    %v2543 = vadd.f32 %v2028, %v2427
    %v2544 = vadd.f32 %v2029, %v2430
    %v2545 = vadd.f32 %v2030, %v2435
    %v2546 = vadd.f32 %v2031, %v2438
    %v2547 = vadd.f32 %v2032, %v2443
    %v2548 = vadd.f32 %v2033, %v2446
    %v2549 = vadd.f32 %v2034, %v2451
    %v2550 = vadd.f32 %v2035, %v2454
    %v2551 = vadd.f32 %v2036, %v2459
    %v2552 = vadd.f32 %v2037, %v2462
    %v2553 = vadd.f32 %v2038, %v2467
    %v2554 = vadd.f32 %v2039, %v2470
    %v2555 = vadd.f32 %v2040, %v2475
    %v2556 = vadd.f32 %v2041, %v2478
    %v2557 = vadd.f32 %v2042, %v2483
    %v2558 = vadd.f32 %v2043, %v2486
    %v2559 = vadd.f32 %v2044, %v2491
    %v2560 = vadd.f32 %v2045, %v2494
    %s2561 = scalar_lea.vmem [#allocation3], 312
    %v2562 = vld [vmem:[%s2561] sm:$0xff]
    %v2563 = vld [vmem:[%s2561 + $0x10] sm:$0xff]
    %v2564 = vld [vmem:[%s2561 + $0x20] sm:$0xff]
    %v2565 = vld [vmem:[%s2561 + $0x30] sm:$0xff]
    %v2566 = vld [vmem:[%s2561 + $0x40] sm:$0xff]
    %v2567 = vld [vmem:[%s2561 + $0x50] sm:$0xff]
    %v2568 = vld [vmem:[%s2561 + $0x60] sm:$0xff]
    %v2569 = vld [vmem:[%s2561 + $0x70] sm:$0xff]
    %v2570 = vld [vmem:[%s2561 + $0x120] sm:$0xff]
    %v2571 = vld [vmem:[%s2561 + $0x130] sm:$0xff]
    %v2572 = vld [vmem:[%s2561 + $0x140] sm:$0xff]
    %v2573 = vld [vmem:[%s2561 + $0x150] sm:$0xff]
    %v2574 = vld [vmem:[%s2561 + $0x160] sm:$0xff]
    %v2575 = vld [vmem:[%s2561 + $0x170] sm:$0xff]
    %v2576 = vld [vmem:[%s2561 + $0x180] sm:$0xff]
    %v2577 = vld [vmem:[%s2561 + $0x190] sm:$0xff]
    %v2578 = vld [vmem:[%s2561 + $0x240] sm:$0xff]
    %v2579 = vld [vmem:[%s2561 + $0x250] sm:$0xff]
    %v2580 = vld [vmem:[%s2561 + $0x260] sm:$0xff]
    %v2581 = vld [vmem:[%s2561 + $0x270] sm:$0xff]
    %v2582 = vld [vmem:[%s2561 + $0x280] sm:$0xff]
    %v2583 = vld [vmem:[%s2561 + $0x290] sm:$0xff]
    %v2584 = vld [vmem:[%s2561 + $0x2a0] sm:$0xff]
    %v2585 = vld [vmem:[%s2561 + $0x2b0] sm:$0xff]
    %v2586 = vld [vmem:[%s2561 + $0x360] sm:$0xff]
    %v2587 = vld [vmem:[%s2561 + $0x370] sm:$0xff]
    %v2588 = vld [vmem:[%s2561 + $0x380] sm:$0xff]
    %v2589 = vld [vmem:[%s2561 + $0x390] sm:$0xff]
    %v2590 = vld [vmem:[%s2561 + $0x3a0] sm:$0xff]
    %v2591 = vld [vmem:[%s2561 + $0x3b0] sm:$0xff]
    %v2592 = vld [vmem:[%s2561 + $0x3c0] sm:$0xff]
    %v2593 = vld [vmem:[%s2561 + $0x3d0] sm:$0xff]
    %v2594 = vld [vmem:[%s2561 + $0x480] sm:$0xff]
    %v2595 = vld [vmem:[%s2561 + $0x490] sm:$0xff]
    %v2596 = vld [vmem:[%s2561 + $0x4a0] sm:$0xff]
    %v2597 = vld [vmem:[%s2561 + $0x4b0] sm:$0xff]
    %v2598 = vld [vmem:[%s2561 + $0x4c0] sm:$0xff]
    %v2599 = vld [vmem:[%s2561 + $0x4d0] sm:$0xff]
    %v2600 = vld [vmem:[%s2561 + $0x4e0] sm:$0xff]
    %v2601 = vld [vmem:[%s2561 + $0x4f0] sm:$0xff]
    %v2602 = vld [vmem:[%s2561 + $0x5a0] sm:$0xff]
    %v2603 = vld [vmem:[%s2561 + $0x5b0] sm:$0xff]
    %v2604 = vld [vmem:[%s2561 + $0x5c0] sm:$0xff]
    %v2605 = vld [vmem:[%s2561 + $0x5d0] sm:$0xff]
    %v2606 = vld [vmem:[%s2561 + $0x5e0] sm:$0xff]
    %v2607 = vld [vmem:[%s2561 + $0x5f0] sm:$0xff]
    %v2608 = vld [vmem:[%s2561 + $0x600] sm:$0xff]
    %v2609 = vld [vmem:[%s2561 + $0x610] sm:$0xff]
    %v2610 = vld [vmem:[%s2561 + $0x6c0] sm:$0xff]
    %v2611 = vld [vmem:[%s2561 + $0x6d0] sm:$0xff]
    %v2612 = vld [vmem:[%s2561 + $0x6e0] sm:$0xff]
    %v2613 = vld [vmem:[%s2561 + $0x6f0] sm:$0xff]
    %v2614 = vld [vmem:[%s2561 + $0x700] sm:$0xff]
    %v2615 = vld [vmem:[%s2561 + $0x710] sm:$0xff]
    %v2616 = vld [vmem:[%s2561 + $0x720] sm:$0xff]
    %v2617 = vld [vmem:[%s2561 + $0x730] sm:$0xff]
    %v2618 = vld [vmem:[%s2561 + $0x7e0] sm:$0xff]
    %v2619 = vld [vmem:[%s2561 + $0x7f0] sm:$0xff]
    %v2620 = vld [vmem:[%s2561 + $0x800] sm:$0xff]
    %v2621 = vld [vmem:[%s2561 + $0x810] sm:$0xff]
    %v2622 = vld [vmem:[%s2561 + $0x820] sm:$0xff]
    %v2623 = vld [vmem:[%s2561 + $0x830] sm:$0xff]
    %v2624 = vld [vmem:[%s2561 + $0x840] sm:$0xff]
    %v2625 = vld [vmem:[%s2561 + $0x850] sm:$0xff]
    %v2626 = vpack.c.bf16 %v2563, %v2562
    %v2627 = vpack.c.bf16 %v2565, %v2564
    %v2628 = vpack.c.bf16 %v2567, %v2566
    %v2629 = vpack.c.bf16 %v2569, %v2568
    %v2630 = vpack.c.bf16 %v2571, %v2570
    %v2631 = vpack.c.bf16 %v2573, %v2572
    %v2632 = vpack.c.bf16 %v2575, %v2574
    %v2633 = vpack.c.bf16 %v2577, %v2576
    %v2634 = vpack.c.bf16 %v2579, %v2578
    %v2635 = vpack.c.bf16 %v2581, %v2580
    %v2636 = vpack.c.bf16 %v2583, %v2582
    %v2637 = vpack.c.bf16 %v2585, %v2584
    %v2638 = vpack.c.bf16 %v2587, %v2586
    %v2639 = vpack.c.bf16 %v2589, %v2588
    %v2640 = vpack.c.bf16 %v2591, %v2590
    %v2641 = vpack.c.bf16 %v2593, %v2592
    %v2642 = vpack.c.bf16 %v2595, %v2594
    %v2643 = vpack.c.bf16 %v2597, %v2596
    %v2644 = vpack.c.bf16 %v2599, %v2598
    %v2645 = vpack.c.bf16 %v2601, %v2600
    %v2646 = vpack.c.bf16 %v2603, %v2602
    %v2647 = vpack.c.bf16 %v2605, %v2604
    %v2648 = vpack.c.bf16 %v2607, %v2606
    %v2649 = vpack.c.bf16 %v2609, %v2608
    %v2650 = vpack.c.bf16 %v2611, %v2610
    %v2651 = vpack.c.bf16 %v2613, %v2612
    %v2652 = vpack.c.bf16 %v2615, %v2614
    %v2653 = vpack.c.bf16 %v2617, %v2616
    %v2654 = vpack.c.bf16 %v2619, %v2618
    %v2655 = vpack.c.bf16 %v2621, %v2620
    %v2656 = vpack.c.bf16 %v2623, %v2622
    %v2657 = vpack.c.bf16 %v2625, %v2624
    %s2658 = scalar_lea.vmem [#allocation6], 320
    %v2659 = vld [vmem:[%s2658] sm:$0xf]
    %v2660 = vld [vmem:[%s2658 + $0x4] sm:$0xf]
    %v2661 = vld [vmem:[%s2658 + $0x8] sm:$0xf]
    %v2662 = vld [vmem:[%s2658 + $0xc] sm:$0xf]
    %v2663 = vld [vmem:[%s2658 + $0x10] sm:$0xf]
    %v2664 = vld [vmem:[%s2658 + $0x14] sm:$0xf]
    %v2665 = vld [vmem:[%s2658 + $0x18] sm:$0xf]
    %v2666 = vld [vmem:[%s2658 + $0x1c] sm:$0xf]
    %v2667 = vld [vmem:[%s2658 + $0x20] sm:$0xf]
    %v2668 = vld [vmem:[%s2658 + $0x24] sm:$0xf]
    %v2669 = vld [vmem:[%s2658 + $0x28] sm:$0xf]
    %v2670 = vld [vmem:[%s2658 + $0x2c] sm:$0xf]
    %v2671 = vld [vmem:[%s2658 + $0x30] sm:$0xf]
    %v2672 = vld [vmem:[%s2658 + $0x34] sm:$0xf]
    %v2673 = vld [vmem:[%s2658 + $0x38] sm:$0xf]
    %v2674 = vld [vmem:[%s2658 + $0x3c] sm:$0xf]
    %v2691 = vunpack.c.l.b16 %v2659
    %v2692 = vunpack.c.l.b16 %v2660
    %v2693 = vunpack.c.l.b16 %v2661
    %v2694 = vunpack.c.l.b16 %v2662
    %v2695 = vunpack.c.l.b16 %v2663
    %v2696 = vunpack.c.l.b16 %v2664
    %v2697 = vunpack.c.l.b16 %v2665
    %v2698 = vunpack.c.l.b16 %v2666
    %v2699 = vunpack.c.l.b16 %v2667
    %v2700 = vunpack.c.l.b16 %v2668
    %v2701 = vunpack.c.l.b16 %v2669
    %v2702 = vunpack.c.l.b16 %v2670
    %v2703 = vunpack.c.l.b16 %v2671
    %v2704 = vunpack.c.l.b16 %v2672
    %v2705 = vunpack.c.l.b16 %v2673
    %v2706 = vunpack.c.l.b16 %v2674
    %v2707 = vpack.c.b16 %v2692, %v2691
    %v2708 = vpack.c.b16 %v2694, %v2693
    %v2709 = vpack.c.b16 %v2696, %v2695
    %v2710 = vpack.c.b16 %v2698, %v2697
    %v2711 = vpack.c.b16 %v2700, %v2699
    %v2712 = vpack.c.b16 %v2702, %v2701
    %v2713 = vpack.c.b16 %v2704, %v2703
    %v2714 = vpack.c.b16 %v2706, %v2705
    %2723 = vmatprep.subr.bf16.mxu0 0
    %2724 = vmatpush1.bf16.msra.mxu0 %v2714
    %2725 = vmatprep.subr.bf16.mxu0 0
    %2726 = vmatpush1.bf16.msra.mxu0 %v2713
    %2727 = vmatprep.subr.bf16.mxu0 0
    %2728 = vmatpush1.bf16.msra.mxu0 %v2712
    %2729 = vmatprep.subr.bf16.mxu0 0
    %2730 = vmatpush1.bf16.msra.mxu0 %v2711
    %2731 = vmatprep.subr.bf16.mxu0 0
    %2732 = vmatpush1.bf16.msra.mxu0 %v2710
    %2733 = vmatprep.subr.bf16.mxu0 0
    %2734 = vmatpush1.bf16.msra.mxu0 %v2709
    %2735 = vmatprep.subr.bf16.mxu0 0
    %2736 = vmatpush1.bf16.msra.mxu0 %v2708
    %2737 = vmatprep.subr.bf16.mxu0 0
    %2738 = vmatpush1.bf16.msra.mxu0 %v2707
    %2739 = vmatprep.subr.bf16.mxu0 0
    %2740 = vmatpush2.bf16.msra.mxu0 0
    %2741 = vmatprep.subr.bf16.mxu0 0
    %2742 = vmatpush2.bf16.msra.mxu0 0
    %2743 = vmatprep.subr.bf16.mxu0 0
    %2744 = vmatpush2.bf16.msra.mxu0 0
    %2745 = vmatprep.subr.bf16.mxu0 0
    %2746 = vmatpush2.bf16.msra.mxu0 0
    %2747 = vmatprep.subr.bf16.mxu0 0
    %2748 = vmatpush2.bf16.msra.mxu0 0
    %2749 = vmatprep.subr.bf16.mxu0 0
    %2750 = vmatpush2.bf16.msra.mxu0 0
    %2751 = vmatprep.subr.bf16.mxu0 0
    %2752 = vmatpush2.bf16.msra.mxu0 0
    %2753 = vmatprep.subr.bf16.mxu0 0
    %2754 = vmatpush2.bf16.msra.mxu0 0
    %2755 = vmatprep.mubr.bf16.mxu0 0
    %2756 = vmatmul.mubr.bf16.gmra.mxu0 %v2626
    %v2757 = vpop.f32.mrf.mxu0
    %v2758 = vadd.f32 0.0, %v2757
    %v2759 = vpop.f32.mrf.mxu0
    %v2760 = vpop.f32.mrf.mxu0
    %v2761 = vadd.f32 0.0, %v2760
    %v2762 = vpop.f32.mrf.mxu0
    %2763 = vmatprep.mubr.bf16.mxu0 0
    %2764 = vmatmul.mubr.bf16.gmra.mxu0 %v2627
    %v2765 = vpop.f32.mrf.mxu0
    %v2766 = vadd.f32 0.0, %v2765
    %v2767 = vpop.f32.mrf.mxu0
    %v2768 = vpop.f32.mrf.mxu0
    %v2769 = vadd.f32 0.0, %v2768
    %v2770 = vpop.f32.mrf.mxu0
    %2771 = vmatprep.mubr.bf16.mxu0 0
    %2772 = vmatmul.mubr.bf16.gmra.mxu0 %v2628
    %v2773 = vpop.f32.mrf.mxu0
    %v2774 = vadd.f32 0.0, %v2773
    %v2775 = vpop.f32.mrf.mxu0
    %v2776 = vpop.f32.mrf.mxu0
    %v2777 = vadd.f32 0.0, %v2776
    %v2778 = vpop.f32.mrf.mxu0
    %2779 = vmatprep.mubr.bf16.mxu0 0
    %2780 = vmatmul.mubr.bf16.gmra.mxu0 %v2629
    %v2781 = vpop.f32.mrf.mxu0
    %v2782 = vadd.f32 0.0, %v2781
    %v2783 = vpop.f32.mrf.mxu0
    %v2784 = vpop.f32.mrf.mxu0
    %v2785 = vadd.f32 0.0, %v2784
    %v2786 = vpop.f32.mrf.mxu0
    %2787 = vmatprep.mubr.bf16.mxu0 0
    %2788 = vmatmul.mubr.bf16.gmra.mxu0 %v2630
    %v2789 = vpop.f32.mrf.mxu0
    %v2790 = vadd.f32 0.0, %v2789
    %v2791 = vpop.f32.mrf.mxu0
    %v2792 = vpop.f32.mrf.mxu0
    %v2793 = vadd.f32 0.0, %v2792
    %v2794 = vpop.f32.mrf.mxu0
    %2795 = vmatprep.mubr.bf16.mxu0 0
    %2796 = vmatmul.mubr.bf16.gmra.mxu0 %v2631
    %v2797 = vpop.f32.mrf.mxu0
    %v2798 = vadd.f32 0.0, %v2797
    %v2799 = vpop.f32.mrf.mxu0
    %v2800 = vpop.f32.mrf.mxu0
    %v2801 = vadd.f32 0.0, %v2800
    %v2802 = vpop.f32.mrf.mxu0
    %2803 = vmatprep.mubr.bf16.mxu0 0
    %2804 = vmatmul.mubr.bf16.gmra.mxu0 %v2632
    %v2805 = vpop.f32.mrf.mxu0
    %v2806 = vadd.f32 0.0, %v2805
    %v2807 = vpop.f32.mrf.mxu0
    %v2808 = vpop.f32.mrf.mxu0
    %v2809 = vadd.f32 0.0, %v2808
    %v2810 = vpop.f32.mrf.mxu0
    %2811 = vmatprep.mubr.bf16.mxu0 0
    %2812 = vmatmul.mubr.bf16.gmra.mxu0 %v2633
    %v2813 = vpop.f32.mrf.mxu0
    %v2814 = vadd.f32 0.0, %v2813
    %v2815 = vpop.f32.mrf.mxu0
    %v2816 = vpop.f32.mrf.mxu0
    %v2817 = vadd.f32 0.0, %v2816
    %v2818 = vpop.f32.mrf.mxu0
    %2819 = vmatprep.mubr.bf16.mxu0 0
    %2820 = vmatmul.mubr.bf16.gmra.mxu0 %v2634
    %v2821 = vpop.f32.mrf.mxu0
    %v2822 = vadd.f32 0.0, %v2821
    %v2823 = vpop.f32.mrf.mxu0
    %v2824 = vpop.f32.mrf.mxu0
    %v2825 = vadd.f32 0.0, %v2824
    %v2826 = vpop.f32.mrf.mxu0
    %2827 = vmatprep.mubr.bf16.mxu0 0
    %2828 = vmatmul.mubr.bf16.gmra.mxu0 %v2635
    %v2829 = vpop.f32.mrf.mxu0
    %v2830 = vadd.f32 0.0, %v2829
    %v2831 = vpop.f32.mrf.mxu0
    %v2832 = vpop.f32.mrf.mxu0
    %v2833 = vadd.f32 0.0, %v2832
    %v2834 = vpop.f32.mrf.mxu0
    %2835 = vmatprep.mubr.bf16.mxu0 0
    %2836 = vmatmul.mubr.bf16.gmra.mxu0 %v2636
    %v2837 = vpop.f32.mrf.mxu0
    %v2838 = vadd.f32 0.0, %v2837
    %v2839 = vpop.f32.mrf.mxu0
    %v2840 = vpop.f32.mrf.mxu0
    %v2841 = vadd.f32 0.0, %v2840
    %v2842 = vpop.f32.mrf.mxu0
    %2843 = vmatprep.mubr.bf16.mxu0 0
    %2844 = vmatmul.mubr.bf16.gmra.mxu0 %v2637
    %v2845 = vpop.f32.mrf.mxu0
    %v2846 = vadd.f32 0.0, %v2845
    %v2847 = vpop.f32.mrf.mxu0
    %v2848 = vpop.f32.mrf.mxu0
    %v2849 = vadd.f32 0.0, %v2848
    %v2850 = vpop.f32.mrf.mxu0
    %2851 = vmatprep.mubr.bf16.mxu0 0
    %2852 = vmatmul.mubr.bf16.gmra.mxu0 %v2638
    %v2853 = vpop.f32.mrf.mxu0
    %v2854 = vadd.f32 0.0, %v2853
    %v2855 = vpop.f32.mrf.mxu0
    %v2856 = vpop.f32.mrf.mxu0
    %v2857 = vadd.f32 0.0, %v2856
    %v2858 = vpop.f32.mrf.mxu0
    %2859 = vmatprep.mubr.bf16.mxu0 0
    %2860 = vmatmul.mubr.bf16.gmra.mxu0 %v2639
    %v2861 = vpop.f32.mrf.mxu0
    %v2862 = vadd.f32 0.0, %v2861
    %v2863 = vpop.f32.mrf.mxu0
    %v2864 = vpop.f32.mrf.mxu0
    %v2865 = vadd.f32 0.0, %v2864
    %v2866 = vpop.f32.mrf.mxu0
    %2867 = vmatprep.mubr.bf16.mxu0 0
    %2868 = vmatmul.mubr.bf16.gmra.mxu0 %v2640
    %v2869 = vpop.f32.mrf.mxu0
    %v2870 = vadd.f32 0.0, %v2869
    %v2871 = vpop.f32.mrf.mxu0
    %v2872 = vpop.f32.mrf.mxu0
    %v2873 = vadd.f32 0.0, %v2872
    %v2874 = vpop.f32.mrf.mxu0
    %2875 = vmatprep.mubr.bf16.mxu0 0
    %2876 = vmatmul.mubr.bf16.gmra.mxu0 %v2641
    %v2877 = vpop.f32.mrf.mxu0
    %v2878 = vadd.f32 0.0, %v2877
    %v2879 = vpop.f32.mrf.mxu0
    %v2880 = vpop.f32.mrf.mxu0
    %v2881 = vadd.f32 0.0, %v2880
    %v2882 = vpop.f32.mrf.mxu0
    %2883 = vmatprep.mubr.bf16.mxu0 0
    %2884 = vmatmul.mubr.bf16.gmra.mxu0 %v2642
    %v2885 = vpop.f32.mrf.mxu0
    %v2886 = vadd.f32 0.0, %v2885
    %v2887 = vpop.f32.mrf.mxu0
    %v2888 = vpop.f32.mrf.mxu0
    %v2889 = vadd.f32 0.0, %v2888
    %v2890 = vpop.f32.mrf.mxu0
    %2891 = vmatprep.mubr.bf16.mxu0 0
    %2892 = vmatmul.mubr.bf16.gmra.mxu0 %v2643
    %v2893 = vpop.f32.mrf.mxu0
    %v2894 = vadd.f32 0.0, %v2893
    %v2895 = vpop.f32.mrf.mxu0
    %v2896 = vpop.f32.mrf.mxu0
    %v2897 = vadd.f32 0.0, %v2896
    %v2898 = vpop.f32.mrf.mxu0
    %2899 = vmatprep.mubr.bf16.mxu0 0
    %2900 = vmatmul.mubr.bf16.gmra.mxu0 %v2644
    %v2901 = vpop.f32.mrf.mxu0
    %v2902 = vadd.f32 0.0, %v2901
    %v2903 = vpop.f32.mrf.mxu0
    %v2904 = vpop.f32.mrf.mxu0
    %v2905 = vadd.f32 0.0, %v2904
    %v2906 = vpop.f32.mrf.mxu0
    %2907 = vmatprep.mubr.bf16.mxu0 0
    %2908 = vmatmul.mubr.bf16.gmra.mxu0 %v2645
    %v2909 = vpop.f32.mrf.mxu0
    %v2910 = vadd.f32 0.0, %v2909
    %v2911 = vpop.f32.mrf.mxu0
    %v2912 = vpop.f32.mrf.mxu0
    %v2913 = vadd.f32 0.0, %v2912
    %v2914 = vpop.f32.mrf.mxu0
    %2915 = vmatprep.mubr.bf16.mxu0 0
    %2916 = vmatmul.mubr.bf16.gmra.mxu0 %v2646
    %v2917 = vpop.f32.mrf.mxu0
    %v2918 = vadd.f32 0.0, %v2917
    %v2919 = vpop.f32.mrf.mxu0
    %v2920 = vpop.f32.mrf.mxu0
    %v2921 = vadd.f32 0.0, %v2920
    %v2922 = vpop.f32.mrf.mxu0
    %2923 = vmatprep.mubr.bf16.mxu0 0
    %2924 = vmatmul.mubr.bf16.gmra.mxu0 %v2647
    %v2925 = vpop.f32.mrf.mxu0
    %v2926 = vadd.f32 0.0, %v2925
    %v2927 = vpop.f32.mrf.mxu0
    %v2928 = vpop.f32.mrf.mxu0
    %v2929 = vadd.f32 0.0, %v2928
    %v2930 = vpop.f32.mrf.mxu0
    %2931 = vmatprep.mubr.bf16.mxu0 0
    %2932 = vmatmul.mubr.bf16.gmra.mxu0 %v2648
    %v2933 = vpop.f32.mrf.mxu0
    %v2934 = vadd.f32 0.0, %v2933
    %v2935 = vpop.f32.mrf.mxu0
    %v2936 = vpop.f32.mrf.mxu0
    %v2937 = vadd.f32 0.0, %v2936
    %v2938 = vpop.f32.mrf.mxu0
    %2939 = vmatprep.mubr.bf16.mxu0 0
    %2940 = vmatmul.mubr.bf16.gmra.mxu0 %v2649
    %v2941 = vpop.f32.mrf.mxu0
    %v2942 = vadd.f32 0.0, %v2941
    %v2943 = vpop.f32.mrf.mxu0
    %v2944 = vpop.f32.mrf.mxu0
    %v2945 = vadd.f32 0.0, %v2944
    %v2946 = vpop.f32.mrf.mxu0
    %2947 = vmatprep.mubr.bf16.mxu0 0
    %2948 = vmatmul.mubr.bf16.gmra.mxu0 %v2650
    %v2949 = vpop.f32.mrf.mxu0
    %v2950 = vadd.f32 0.0, %v2949
    %v2951 = vpop.f32.mrf.mxu0
    %v2952 = vpop.f32.mrf.mxu0
    %v2953 = vadd.f32 0.0, %v2952
    %v2954 = vpop.f32.mrf.mxu0
    %2955 = vmatprep.mubr.bf16.mxu0 0
    %2956 = vmatmul.mubr.bf16.gmra.mxu0 %v2651
    %v2957 = vpop.f32.mrf.mxu0
    %v2958 = vadd.f32 0.0, %v2957
    %v2959 = vpop.f32.mrf.mxu0
    %v2960 = vpop.f32.mrf.mxu0
    %v2961 = vadd.f32 0.0, %v2960
    %v2962 = vpop.f32.mrf.mxu0
    %2963 = vmatprep.mubr.bf16.mxu0 0
    %2964 = vmatmul.mubr.bf16.gmra.mxu0 %v2652
    %v2965 = vpop.f32.mrf.mxu0
    %v2966 = vadd.f32 0.0, %v2965
    %v2967 = vpop.f32.mrf.mxu0
    %v2968 = vpop.f32.mrf.mxu0
    %v2969 = vadd.f32 0.0, %v2968
    %v2970 = vpop.f32.mrf.mxu0
    %2971 = vmatprep.mubr.bf16.mxu0 0
    %2972 = vmatmul.mubr.bf16.gmra.mxu0 %v2653
    %v2973 = vpop.f32.mrf.mxu0
    %v2974 = vadd.f32 0.0, %v2973
    %v2975 = vpop.f32.mrf.mxu0
    %v2976 = vpop.f32.mrf.mxu0
    %v2977 = vadd.f32 0.0, %v2976
    %v2978 = vpop.f32.mrf.mxu0
    %2979 = vmatprep.mubr.bf16.mxu0 0
    %2980 = vmatmul.mubr.bf16.gmra.mxu0 %v2654
    %v2981 = vpop.f32.mrf.mxu0
    %v2982 = vadd.f32 0.0, %v2981
    %v2983 = vpop.f32.mrf.mxu0
    %v2984 = vpop.f32.mrf.mxu0
    %v2985 = vadd.f32 0.0, %v2984
    %v2986 = vpop.f32.mrf.mxu0
    %2987 = vmatprep.mubr.bf16.mxu0 0
    %2988 = vmatmul.mubr.bf16.gmra.mxu0 %v2655
    %v2989 = vpop.f32.mrf.mxu0
    %v2990 = vadd.f32 0.0, %v2989
    %v2991 = vpop.f32.mrf.mxu0
    %v2992 = vpop.f32.mrf.mxu0
    %v2993 = vadd.f32 0.0, %v2992
    %v2994 = vpop.f32.mrf.mxu0
    %2995 = vmatprep.mubr.bf16.mxu0 0
    %2996 = vmatmul.mubr.bf16.gmra.mxu0 %v2656
    %v2997 = vpop.f32.mrf.mxu0
    %v2998 = vadd.f32 0.0, %v2997
    %v2999 = vpop.f32.mrf.mxu0
    %v3000 = vpop.f32.mrf.mxu0
    %v3001 = vadd.f32 0.0, %v3000
    %v3002 = vpop.f32.mrf.mxu0
    %3003 = vmatprep.mubr.bf16.mxu0 0
    %3004 = vmatmul.mubr.bf16.gmra.mxu0 %v2657
    %v3005 = vpop.f32.mrf.mxu0
    %v3006 = vadd.f32 0.0, %v3005
    %v3007 = vpop.f32.mrf.mxu0
    %v3008 = vpop.f32.mrf.mxu0
    %v3009 = vadd.f32 0.0, %v3008
    %v3010 = vpop.f32.mrf.mxu0
    %3011 = vdwg.mxu0
    %v3012 = vadd.f32 %v2497, %v2758
    %v3013 = vadd.f32 %v2498, %v2761
    %v3014 = vadd.f32 %v2499, %v2766
    %v3015 = vadd.f32 %v2500, %v2769
    %v3016 = vadd.f32 %v2501, %v2774
    %v3017 = vadd.f32 %v2502, %v2777
    %v3018 = vadd.f32 %v2503, %v2782
    %v3019 = vadd.f32 %v2504, %v2785
    %v3020 = vadd.f32 %v2505, %v2790
    %v3021 = vadd.f32 %v2506, %v2793
    %v3022 = vadd.f32 %v2507, %v2798
    %v3023 = vadd.f32 %v2508, %v2801
    %v3024 = vadd.f32 %v2509, %v2806
    %v3025 = vadd.f32 %v2510, %v2809
    %v3026 = vadd.f32 %v2511, %v2814
    %v3027 = vadd.f32 %v2512, %v2817
    %v3028 = vadd.f32 %v2513, %v2822
    %v3029 = vadd.f32 %v2514, %v2825
    %v3030 = vadd.f32 %v2515, %v2830
    %v3031 = vadd.f32 %v2516, %v2833
    %v3032 = vadd.f32 %v2517, %v2838
    %v3033 = vadd.f32 %v2518, %v2841
    %v3034 = vadd.f32 %v2519, %v2846
    %v3035 = vadd.f32 %v2520, %v2849
    %v3036 = vadd.f32 %v2521, %v2854
    %v3037 = vadd.f32 %v2522, %v2857
    %v3038 = vadd.f32 %v2523, %v2862
    %v3039 = vadd.f32 %v2524, %v2865
    %v3040 = vadd.f32 %v2525, %v2870
    %v3041 = vadd.f32 %v2526, %v2873
    %v3042 = vadd.f32 %v2527, %v2878
    %v3043 = vadd.f32 %v2528, %v2881
    %v3044 = vadd.f32 %v2529, %v2886
    %v3045 = vadd.f32 %v2530, %v2889
    %v3046 = vadd.f32 %v2531, %v2894
    %v3047 = vadd.f32 %v2532, %v2897
    %v3048 = vadd.f32 %v2533, %v2902
    %v3049 = vadd.f32 %v2534, %v2905
    %v3050 = vadd.f32 %v2535, %v2910
    %v3051 = vadd.f32 %v2536, %v2913
    %v3052 = vadd.f32 %v2537, %v2918
    %v3053 = vadd.f32 %v2538, %v2921
    %v3054 = vadd.f32 %v2539, %v2926
    %v3055 = vadd.f32 %v2540, %v2929
    %v3056 = vadd.f32 %v2541, %v2934
    %v3057 = vadd.f32 %v2542, %v2937
    %v3058 = vadd.f32 %v2543, %v2942
    %v3059 = vadd.f32 %v2544, %v2945
    %v3060 = vadd.f32 %v2545, %v2950
    %v3061 = vadd.f32 %v2546, %v2953
    %v3062 = vadd.f32 %v2547, %v2958
    %v3063 = vadd.f32 %v2548, %v2961
    %v3064 = vadd.f32 %v2549, %v2966
    %v3065 = vadd.f32 %v2550, %v2969
    %v3066 = vadd.f32 %v2551, %v2974
    %v3067 = vadd.f32 %v2552, %v2977
    %v3068 = vadd.f32 %v2553, %v2982
    %v3069 = vadd.f32 %v2554, %v2985
    %v3070 = vadd.f32 %v2555, %v2990
    %v3071 = vadd.f32 %v2556, %v2993
    %v3072 = vadd.f32 %v2557, %v2998
    %v3073 = vadd.f32 %v2558, %v3001
    %v3074 = vadd.f32 %v2559, %v3006
    %v3075 = vadd.f32 %v2560, %v3009
    %s3076 = scalar_lea.vmem [#allocation3], 440
    %v3077 = vld [vmem:[%s3076] sm:$0xff]
    %v3078 = vld [vmem:[%s3076 + $0x10] sm:$0xff]
    %v3079 = vld [vmem:[%s3076 + $0x20] sm:$0xff]
    %v3080 = vld [vmem:[%s3076 + $0x30] sm:$0xff]
    %v3081 = vld [vmem:[%s3076 + $0x40] sm:$0xff]
    %v3082 = vld [vmem:[%s3076 + $0x50] sm:$0xff]
    %v3083 = vld [vmem:[%s3076 + $0x60] sm:$0xff]
    %v3084 = vld [vmem:[%s3076 + $0x70] sm:$0xff]
    %v3085 = vld [vmem:[%s3076 + $0x120] sm:$0xff]
    %v3086 = vld [vmem:[%s3076 + $0x130] sm:$0xff]
    %v3087 = vld [vmem:[%s3076 + $0x140] sm:$0xff]
    %v3088 = vld [vmem:[%s3076 + $0x150] sm:$0xff]
    %v3089 = vld [vmem:[%s3076 + $0x160] sm:$0xff]
    %v3090 = vld [vmem:[%s3076 + $0x170] sm:$0xff]
    %v3091 = vld [vmem:[%s3076 + $0x180] sm:$0xff]
    %v3092 = vld [vmem:[%s3076 + $0x190] sm:$0xff]
    %v3093 = vld [vmem:[%s3076 + $0x240] sm:$0xff]
    %v3094 = vld [vmem:[%s3076 + $0x250] sm:$0xff]
    %v3095 = vld [vmem:[%s3076 + $0x260] sm:$0xff]
    %v3096 = vld [vmem:[%s3076 + $0x270] sm:$0xff]
    %v3097 = vld [vmem:[%s3076 + $0x280] sm:$0xff]
    %v3098 = vld [vmem:[%s3076 + $0x290] sm:$0xff]
    %v3099 = vld [vmem:[%s3076 + $0x2a0] sm:$0xff]
    %v3100 = vld [vmem:[%s3076 + $0x2b0] sm:$0xff]
    %v3101 = vld [vmem:[%s3076 + $0x360] sm:$0xff]
    %v3102 = vld [vmem:[%s3076 + $0x370] sm:$0xff]
    %v3103 = vld [vmem:[%s3076 + $0x380] sm:$0xff]
    %v3104 = vld [vmem:[%s3076 + $0x390] sm:$0xff]
    %v3105 = vld [vmem:[%s3076 + $0x3a0] sm:$0xff]
    %v3106 = vld [vmem:[%s3076 + $0x3b0] sm:$0xff]
    %v3107 = vld [vmem:[%s3076 + $0x3c0] sm:$0xff]
    %v3108 = vld [vmem:[%s3076 + $0x3d0] sm:$0xff]
    %v3109 = vld [vmem:[%s3076 + $0x480] sm:$0xff]
    %v3110 = vld [vmem:[%s3076 + $0x490] sm:$0xff]
    %v3111 = vld [vmem:[%s3076 + $0x4a0] sm:$0xff]
    %v3112 = vld [vmem:[%s3076 + $0x4b0] sm:$0xff]
    %v3113 = vld [vmem:[%s3076 + $0x4c0] sm:$0xff]
    %v3114 = vld [vmem:[%s3076 + $0x4d0] sm:$0xff]
    %v3115 = vld [vmem:[%s3076 + $0x4e0] sm:$0xff]
    %v3116 = vld [vmem:[%s3076 + $0x4f0] sm:$0xff]
    %v3117 = vld [vmem:[%s3076 + $0x5a0] sm:$0xff]
    %v3118 = vld [vmem:[%s3076 + $0x5b0] sm:$0xff]
    %v3119 = vld [vmem:[%s3076 + $0x5c0] sm:$0xff]
    %v3120 = vld [vmem:[%s3076 + $0x5d0] sm:$0xff]
    %v3121 = vld [vmem:[%s3076 + $0x5e0] sm:$0xff]
    %v3122 = vld [vmem:[%s3076 + $0x5f0] sm:$0xff]
    %v3123 = vld [vmem:[%s3076 + $0x600] sm:$0xff]
    %v3124 = vld [vmem:[%s3076 + $0x610] sm:$0xff]
    %v3125 = vld [vmem:[%s3076 + $0x6c0] sm:$0xff]
    %v3126 = vld [vmem:[%s3076 + $0x6d0] sm:$0xff]
    %v3127 = vld [vmem:[%s3076 + $0x6e0] sm:$0xff]
    %v3128 = vld [vmem:[%s3076 + $0x6f0] sm:$0xff]
    %v3129 = vld [vmem:[%s3076 + $0x700] sm:$0xff]
    %v3130 = vld [vmem:[%s3076 + $0x710] sm:$0xff]
    %v3131 = vld [vmem:[%s3076 + $0x720] sm:$0xff]
    %v3132 = vld [vmem:[%s3076 + $0x730] sm:$0xff]
    %v3133 = vld [vmem:[%s3076 + $0x7e0] sm:$0xff]
    %v3134 = vld [vmem:[%s3076 + $0x7f0] sm:$0xff]
    %v3135 = vld [vmem:[%s3076 + $0x800] sm:$0xff]
    %v3136 = vld [vmem:[%s3076 + $0x810] sm:$0xff]
    %v3137 = vld [vmem:[%s3076 + $0x820] sm:$0xff]
    %v3138 = vld [vmem:[%s3076 + $0x830] sm:$0xff]
    %v3139 = vld [vmem:[%s3076 + $0x840] sm:$0xff]
    %v3140 = vld [vmem:[%s3076 + $0x850] sm:$0xff]
    %v3141 = vpack.c.bf16 %v3078, %v3077
    %v3142 = vpack.c.bf16 %v3080, %v3079
    %v3143 = vpack.c.bf16 %v3082, %v3081
    %v3144 = vpack.c.bf16 %v3084, %v3083
    %v3145 = vpack.c.bf16 %v3086, %v3085
    %v3146 = vpack.c.bf16 %v3088, %v3087
    %v3147 = vpack.c.bf16 %v3090, %v3089
    %v3148 = vpack.c.bf16 %v3092, %v3091
    %v3149 = vpack.c.bf16 %v3094, %v3093
    %v3150 = vpack.c.bf16 %v3096, %v3095
    %v3151 = vpack.c.bf16 %v3098, %v3097
    %v3152 = vpack.c.bf16 %v3100, %v3099
    %v3153 = vpack.c.bf16 %v3102, %v3101
    %v3154 = vpack.c.bf16 %v3104, %v3103
    %v3155 = vpack.c.bf16 %v3106, %v3105
    %v3156 = vpack.c.bf16 %v3108, %v3107
    %v3157 = vpack.c.bf16 %v3110, %v3109
    %v3158 = vpack.c.bf16 %v3112, %v3111
    %v3159 = vpack.c.bf16 %v3114, %v3113
    %v3160 = vpack.c.bf16 %v3116, %v3115
    %v3161 = vpack.c.bf16 %v3118, %v3117
    %v3162 = vpack.c.bf16 %v3120, %v3119
    %v3163 = vpack.c.bf16 %v3122, %v3121
    %v3164 = vpack.c.bf16 %v3124, %v3123
    %v3165 = vpack.c.bf16 %v3126, %v3125
    %v3166 = vpack.c.bf16 %v3128, %v3127
    %v3167 = vpack.c.bf16 %v3130, %v3129
    %v3168 = vpack.c.bf16 %v3132, %v3131
    %v3169 = vpack.c.bf16 %v3134, %v3133
    %v3170 = vpack.c.bf16 %v3136, %v3135
    %v3171 = vpack.c.bf16 %v3138, %v3137
    %v3172 = vpack.c.bf16 %v3140, %v3139
    %s3173 = scalar_lea.vmem [#allocation6], 384
    %v3174 = vld [vmem:[%s3173] sm:$0xf]
    %v3175 = vld [vmem:[%s3173 + $0x4] sm:$0xf]
    %v3176 = vld [vmem:[%s3173 + $0x8] sm:$0xf]
    %v3177 = vld [vmem:[%s3173 + $0xc] sm:$0xf]
    %v3178 = vld [vmem:[%s3173 + $0x10] sm:$0xf]
    %v3179 = vld [vmem:[%s3173 + $0x14] sm:$0xf]
    %v3180 = vld [vmem:[%s3173 + $0x18] sm:$0xf]
    %v3181 = vld [vmem:[%s3173 + $0x1c] sm:$0xf]
    %v3182 = vld [vmem:[%s3173 + $0x20] sm:$0xf]
    %v3183 = vld [vmem:[%s3173 + $0x24] sm:$0xf]
    %v3184 = vld [vmem:[%s3173 + $0x28] sm:$0xf]
    %v3185 = vld [vmem:[%s3173 + $0x2c] sm:$0xf]
    %v3186 = vld [vmem:[%s3173 + $0x30] sm:$0xf]
    %v3187 = vld [vmem:[%s3173 + $0x34] sm:$0xf]
    %v3188 = vld [vmem:[%s3173 + $0x38] sm:$0xf]
    %v3189 = vld [vmem:[%s3173 + $0x3c] sm:$0xf]
    %v3206 = vunpack.c.l.b16 %v3174
    %v3207 = vunpack.c.l.b16 %v3175
    %v3208 = vunpack.c.l.b16 %v3176
    %v3209 = vunpack.c.l.b16 %v3177
    %v3210 = vunpack.c.l.b16 %v3178
    %v3211 = vunpack.c.l.b16 %v3179
    %v3212 = vunpack.c.l.b16 %v3180
    %v3213 = vunpack.c.l.b16 %v3181
    %v3214 = vunpack.c.l.b16 %v3182
    %v3215 = vunpack.c.l.b16 %v3183
    %v3216 = vunpack.c.l.b16 %v3184
    %v3217 = vunpack.c.l.b16 %v3185
    %v3218 = vunpack.c.l.b16 %v3186
    %v3219 = vunpack.c.l.b16 %v3187
    %v3220 = vunpack.c.l.b16 %v3188
    %v3221 = vunpack.c.l.b16 %v3189
    %v3222 = vpack.c.b16 %v3207, %v3206
    %v3223 = vpack.c.b16 %v3209, %v3208
    %v3224 = vpack.c.b16 %v3211, %v3210
    %v3225 = vpack.c.b16 %v3213, %v3212
    %v3226 = vpack.c.b16 %v3215, %v3214
    %v3227 = vpack.c.b16 %v3217, %v3216
    %v3228 = vpack.c.b16 %v3219, %v3218
    %v3229 = vpack.c.b16 %v3221, %v3220
    %3238 = vmatprep.subr.bf16.mxu0 0
    %3239 = vmatpush1.bf16.msra.mxu0 %v3229
    %3240 = vmatprep.subr.bf16.mxu0 0
    %3241 = vmatpush1.bf16.msra.mxu0 %v3228
    %3242 = vmatprep.subr.bf16.mxu0 0
    %3243 = vmatpush1.bf16.msra.mxu0 %v3227
    %3244 = vmatprep.subr.bf16.mxu0 0
    %3245 = vmatpush1.bf16.msra.mxu0 %v3226
    %3246 = vmatprep.subr.bf16.mxu0 0
    %3247 = vmatpush1.bf16.msra.mxu0 %v3225
    %3248 = vmatprep.subr.bf16.mxu0 0
    %3249 = vmatpush1.bf16.msra.mxu0 %v3224
    %3250 = vmatprep.subr.bf16.mxu0 0
    %3251 = vmatpush1.bf16.msra.mxu0 %v3223
    %3252 = vmatprep.subr.bf16.mxu0 0
    %3253 = vmatpush1.bf16.msra.mxu0 %v3222
    %3254 = vmatprep.subr.bf16.mxu0 0
    %3255 = vmatpush2.bf16.msra.mxu0 0
    %3256 = vmatprep.subr.bf16.mxu0 0
    %3257 = vmatpush2.bf16.msra.mxu0 0
    %3258 = vmatprep.subr.bf16.mxu0 0
    %3259 = vmatpush2.bf16.msra.mxu0 0
    %3260 = vmatprep.subr.bf16.mxu0 0
    %3261 = vmatpush2.bf16.msra.mxu0 0
    %3262 = vmatprep.subr.bf16.mxu0 0
    %3263 = vmatpush2.bf16.msra.mxu0 0
    %3264 = vmatprep.subr.bf16.mxu0 0
    %3265 = vmatpush2.bf16.msra.mxu0 0
    %3266 = vmatprep.subr.bf16.mxu0 0
    %3267 = vmatpush2.bf16.msra.mxu0 0
    %3268 = vmatprep.subr.bf16.mxu0 0
    %3269 = vmatpush2.bf16.msra.mxu0 0
    %3270 = vmatprep.mubr.bf16.mxu0 0
    %3271 = vmatmul.mubr.bf16.gmra.mxu0 %v3141
    %v3272 = vpop.f32.mrf.mxu0
    %v3273 = vadd.f32 0.0, %v3272
    %v3274 = vpop.f32.mrf.mxu0
    %v3275 = vpop.f32.mrf.mxu0
    %v3276 = vadd.f32 0.0, %v3275
    %v3277 = vpop.f32.mrf.mxu0
    %3278 = vmatprep.mubr.bf16.mxu0 0
    %3279 = vmatmul.mubr.bf16.gmra.mxu0 %v3142
    %v3280 = vpop.f32.mrf.mxu0
    %v3281 = vadd.f32 0.0, %v3280
    %v3282 = vpop.f32.mrf.mxu0
    %v3283 = vpop.f32.mrf.mxu0
    %v3284 = vadd.f32 0.0, %v3283
    %v3285 = vpop.f32.mrf.mxu0
    %3286 = vmatprep.mubr.bf16.mxu0 0
    %3287 = vmatmul.mubr.bf16.gmra.mxu0 %v3143
    %v3288 = vpop.f32.mrf.mxu0
    %v3289 = vadd.f32 0.0, %v3288
    %v3290 = vpop.f32.mrf.mxu0
    %v3291 = vpop.f32.mrf.mxu0
    %v3292 = vadd.f32 0.0, %v3291
    %v3293 = vpop.f32.mrf.mxu0
    %3294 = vmatprep.mubr.bf16.mxu0 0
    %3295 = vmatmul.mubr.bf16.gmra.mxu0 %v3144
    %v3296 = vpop.f32.mrf.mxu0
    %v3297 = vadd.f32 0.0, %v3296
    %v3298 = vpop.f32.mrf.mxu0
    %v3299 = vpop.f32.mrf.mxu0
    %v3300 = vadd.f32 0.0, %v3299
    %v3301 = vpop.f32.mrf.mxu0
    %3302 = vmatprep.mubr.bf16.mxu0 0
    %3303 = vmatmul.mubr.bf16.gmra.mxu0 %v3145
    %v3304 = vpop.f32.mrf.mxu0
    %v3305 = vadd.f32 0.0, %v3304
    %v3306 = vpop.f32.mrf.mxu0
    %v3307 = vpop.f32.mrf.mxu0
    %v3308 = vadd.f32 0.0, %v3307
    %v3309 = vpop.f32.mrf.mxu0
    %3310 = vmatprep.mubr.bf16.mxu0 0
    %3311 = vmatmul.mubr.bf16.gmra.mxu0 %v3146
    %v3312 = vpop.f32.mrf.mxu0
    %v3313 = vadd.f32 0.0, %v3312
    %v3314 = vpop.f32.mrf.mxu0
    %v3315 = vpop.f32.mrf.mxu0
    %v3316 = vadd.f32 0.0, %v3315
    %v3317 = vpop.f32.mrf.mxu0
    %3318 = vmatprep.mubr.bf16.mxu0 0
    %3319 = vmatmul.mubr.bf16.gmra.mxu0 %v3147
    %v3320 = vpop.f32.mrf.mxu0
    %v3321 = vadd.f32 0.0, %v3320
    %v3322 = vpop.f32.mrf.mxu0
    %v3323 = vpop.f32.mrf.mxu0
    %v3324 = vadd.f32 0.0, %v3323
    %v3325 = vpop.f32.mrf.mxu0
    %3326 = vmatprep.mubr.bf16.mxu0 0
    %3327 = vmatmul.mubr.bf16.gmra.mxu0 %v3148
    %v3328 = vpop.f32.mrf.mxu0
    %v3329 = vadd.f32 0.0, %v3328
    %v3330 = vpop.f32.mrf.mxu0
    %v3331 = vpop.f32.mrf.mxu0
    %v3332 = vadd.f32 0.0, %v3331
    %v3333 = vpop.f32.mrf.mxu0
    %3334 = vmatprep.mubr.bf16.mxu0 0
    %3335 = vmatmul.mubr.bf16.gmra.mxu0 %v3149
    %v3336 = vpop.f32.mrf.mxu0
    %v3337 = vadd.f32 0.0, %v3336
    %v3338 = vpop.f32.mrf.mxu0
    %v3339 = vpop.f32.mrf.mxu0
    %v3340 = vadd.f32 0.0, %v3339
    %v3341 = vpop.f32.mrf.mxu0
    %3342 = vmatprep.mubr.bf16.mxu0 0
    %3343 = vmatmul.mubr.bf16.gmra.mxu0 %v3150
    %v3344 = vpop.f32.mrf.mxu0
    %v3345 = vadd.f32 0.0, %v3344
    %v3346 = vpop.f32.mrf.mxu0
    %v3347 = vpop.f32.mrf.mxu0
    %v3348 = vadd.f32 0.0, %v3347
    %v3349 = vpop.f32.mrf.mxu0
    %3350 = vmatprep.mubr.bf16.mxu0 0
    %3351 = vmatmul.mubr.bf16.gmra.mxu0 %v3151
    %v3352 = vpop.f32.mrf.mxu0
    %v3353 = vadd.f32 0.0, %v3352
    %v3354 = vpop.f32.mrf.mxu0
    %v3355 = vpop.f32.mrf.mxu0
    %v3356 = vadd.f32 0.0, %v3355
    %v3357 = vpop.f32.mrf.mxu0
    %3358 = vmatprep.mubr.bf16.mxu0 0
    %3359 = vmatmul.mubr.bf16.gmra.mxu0 %v3152
    %v3360 = vpop.f32.mrf.mxu0
    %v3361 = vadd.f32 0.0, %v3360
    %v3362 = vpop.f32.mrf.mxu0
    %v3363 = vpop.f32.mrf.mxu0
    %v3364 = vadd.f32 0.0, %v3363
    %v3365 = vpop.f32.mrf.mxu0
    %3366 = vmatprep.mubr.bf16.mxu0 0
    %3367 = vmatmul.mubr.bf16.gmra.mxu0 %v3153
    %v3368 = vpop.f32.mrf.mxu0
    %v3369 = vadd.f32 0.0, %v3368
    %v3370 = vpop.f32.mrf.mxu0
    %v3371 = vpop.f32.mrf.mxu0
    %v3372 = vadd.f32 0.0, %v3371
    %v3373 = vpop.f32.mrf.mxu0
    %3374 = vmatprep.mubr.bf16.mxu0 0
    %3375 = vmatmul.mubr.bf16.gmra.mxu0 %v3154
    %v3376 = vpop.f32.mrf.mxu0
    %v3377 = vadd.f32 0.0, %v3376
    %v3378 = vpop.f32.mrf.mxu0
    %v3379 = vpop.f32.mrf.mxu0
    %v3380 = vadd.f32 0.0, %v3379
    %v3381 = vpop.f32.mrf.mxu0
    %3382 = vmatprep.mubr.bf16.mxu0 0
    %3383 = vmatmul.mubr.bf16.gmra.mxu0 %v3155
    %v3384 = vpop.f32.mrf.mxu0
    %v3385 = vadd.f32 0.0, %v3384
    %v3386 = vpop.f32.mrf.mxu0
    %v3387 = vpop.f32.mrf.mxu0
    %v3388 = vadd.f32 0.0, %v3387
    %v3389 = vpop.f32.mrf.mxu0
    %3390 = vmatprep.mubr.bf16.mxu0 0
    %3391 = vmatmul.mubr.bf16.gmra.mxu0 %v3156
    %v3392 = vpop.f32.mrf.mxu0
    %v3393 = vadd.f32 0.0, %v3392
    %v3394 = vpop.f32.mrf.mxu0
    %v3395 = vpop.f32.mrf.mxu0
    %v3396 = vadd.f32 0.0, %v3395
    %v3397 = vpop.f32.mrf.mxu0
    %3398 = vmatprep.mubr.bf16.mxu0 0
    %3399 = vmatmul.mubr.bf16.gmra.mxu0 %v3157
    %v3400 = vpop.f32.mrf.mxu0
    %v3401 = vadd.f32 0.0, %v3400
    %v3402 = vpop.f32.mrf.mxu0
    %v3403 = vpop.f32.mrf.mxu0
    %v3404 = vadd.f32 0.0, %v3403
    %v3405 = vpop.f32.mrf.mxu0
    %3406 = vmatprep.mubr.bf16.mxu0 0
    %3407 = vmatmul.mubr.bf16.gmra.mxu0 %v3158
    %v3408 = vpop.f32.mrf.mxu0
    %v3409 = vadd.f32 0.0, %v3408
    %v3410 = vpop.f32.mrf.mxu0
    %v3411 = vpop.f32.mrf.mxu0
    %v3412 = vadd.f32 0.0, %v3411
    %v3413 = vpop.f32.mrf.mxu0
    %3414 = vmatprep.mubr.bf16.mxu0 0
    %3415 = vmatmul.mubr.bf16.gmra.mxu0 %v3159
    %v3416 = vpop.f32.mrf.mxu0
    %v3417 = vadd.f32 0.0, %v3416
    %v3418 = vpop.f32.mrf.mxu0
    %v3419 = vpop.f32.mrf.mxu0
    %v3420 = vadd.f32 0.0, %v3419
    %v3421 = vpop.f32.mrf.mxu0
    %3422 = vmatprep.mubr.bf16.mxu0 0
    %3423 = vmatmul.mubr.bf16.gmra.mxu0 %v3160
    %v3424 = vpop.f32.mrf.mxu0
    %v3425 = vadd.f32 0.0, %v3424
    %v3426 = vpop.f32.mrf.mxu0
    %v3427 = vpop.f32.mrf.mxu0
    %v3428 = vadd.f32 0.0, %v3427
    %v3429 = vpop.f32.mrf.mxu0
    %3430 = vmatprep.mubr.bf16.mxu0 0
    %3431 = vmatmul.mubr.bf16.gmra.mxu0 %v3161
    %v3432 = vpop.f32.mrf.mxu0
    %v3433 = vadd.f32 0.0, %v3432
    %v3434 = vpop.f32.mrf.mxu0
    %v3435 = vpop.f32.mrf.mxu0
    %v3436 = vadd.f32 0.0, %v3435
    %v3437 = vpop.f32.mrf.mxu0
    %3438 = vmatprep.mubr.bf16.mxu0 0
    %3439 = vmatmul.mubr.bf16.gmra.mxu0 %v3162
    %v3440 = vpop.f32.mrf.mxu0
    %v3441 = vadd.f32 0.0, %v3440
    %v3442 = vpop.f32.mrf.mxu0
    %v3443 = vpop.f32.mrf.mxu0
    %v3444 = vadd.f32 0.0, %v3443
    %v3445 = vpop.f32.mrf.mxu0
    %3446 = vmatprep.mubr.bf16.mxu0 0
    %3447 = vmatmul.mubr.bf16.gmra.mxu0 %v3163
    %v3448 = vpop.f32.mrf.mxu0
    %v3449 = vadd.f32 0.0, %v3448
    %v3450 = vpop.f32.mrf.mxu0
    %v3451 = vpop.f32.mrf.mxu0
    %v3452 = vadd.f32 0.0, %v3451
    %v3453 = vpop.f32.mrf.mxu0
    %3454 = vmatprep.mubr.bf16.mxu0 0
    %3455 = vmatmul.mubr.bf16.gmra.mxu0 %v3164
    %v3456 = vpop.f32.mrf.mxu0
    %v3457 = vadd.f32 0.0, %v3456
    %v3458 = vpop.f32.mrf.mxu0
    %v3459 = vpop.f32.mrf.mxu0
    %v3460 = vadd.f32 0.0, %v3459
    %v3461 = vpop.f32.mrf.mxu0
    %3462 = vmatprep.mubr.bf16.mxu0 0
    %3463 = vmatmul.mubr.bf16.gmra.mxu0 %v3165
    %v3464 = vpop.f32.mrf.mxu0
    %v3465 = vadd.f32 0.0, %v3464
    %v3466 = vpop.f32.mrf.mxu0
    %v3467 = vpop.f32.mrf.mxu0
    %v3468 = vadd.f32 0.0, %v3467
    %v3469 = vpop.f32.mrf.mxu0
    %3470 = vmatprep.mubr.bf16.mxu0 0
    %3471 = vmatmul.mubr.bf16.gmra.mxu0 %v3166
    %v3472 = vpop.f32.mrf.mxu0
    %v3473 = vadd.f32 0.0, %v3472
    %v3474 = vpop.f32.mrf.mxu0
    %v3475 = vpop.f32.mrf.mxu0
    %v3476 = vadd.f32 0.0, %v3475
    %v3477 = vpop.f32.mrf.mxu0
    %3478 = vmatprep.mubr.bf16.mxu0 0
    %3479 = vmatmul.mubr.bf16.gmra.mxu0 %v3167
    %v3480 = vpop.f32.mrf.mxu0
    %v3481 = vadd.f32 0.0, %v3480
    %v3482 = vpop.f32.mrf.mxu0
    %v3483 = vpop.f32.mrf.mxu0
    %v3484 = vadd.f32 0.0, %v3483
    %v3485 = vpop.f32.mrf.mxu0
    %3486 = vmatprep.mubr.bf16.mxu0 0
    %3487 = vmatmul.mubr.bf16.gmra.mxu0 %v3168
    %v3488 = vpop.f32.mrf.mxu0
    %v3489 = vadd.f32 0.0, %v3488
    %v3490 = vpop.f32.mrf.mxu0
    %v3491 = vpop.f32.mrf.mxu0
    %v3492 = vadd.f32 0.0, %v3491
    %v3493 = vpop.f32.mrf.mxu0
    %3494 = vmatprep.mubr.bf16.mxu0 0
    %3495 = vmatmul.mubr.bf16.gmra.mxu0 %v3169
    %v3496 = vpop.f32.mrf.mxu0
    %v3497 = vadd.f32 0.0, %v3496
    %v3498 = vpop.f32.mrf.mxu0
    %v3499 = vpop.f32.mrf.mxu0
    %v3500 = vadd.f32 0.0, %v3499
    %v3501 = vpop.f32.mrf.mxu0
    %3502 = vmatprep.mubr.bf16.mxu0 0
    %3503 = vmatmul.mubr.bf16.gmra.mxu0 %v3170
    %v3504 = vpop.f32.mrf.mxu0
    %v3505 = vadd.f32 0.0, %v3504
    %v3506 = vpop.f32.mrf.mxu0
    %v3507 = vpop.f32.mrf.mxu0
    %v3508 = vadd.f32 0.0, %v3507
    %v3509 = vpop.f32.mrf.mxu0
    %3510 = vmatprep.mubr.bf16.mxu0 0
    %3511 = vmatmul.mubr.bf16.gmra.mxu0 %v3171
    %v3512 = vpop.f32.mrf.mxu0
    %v3513 = vadd.f32 0.0, %v3512
    %v3514 = vpop.f32.mrf.mxu0
    %v3515 = vpop.f32.mrf.mxu0
    %v3516 = vadd.f32 0.0, %v3515
    %v3517 = vpop.f32.mrf.mxu0
    %3518 = vmatprep.mubr.bf16.mxu0 0
    %3519 = vmatmul.mubr.bf16.gmra.mxu0 %v3172
    %v3520 = vpop.f32.mrf.mxu0
    %v3521 = vadd.f32 0.0, %v3520
    %v3522 = vpop.f32.mrf.mxu0
    %v3523 = vpop.f32.mrf.mxu0
    %v3524 = vadd.f32 0.0, %v3523
    %v3525 = vpop.f32.mrf.mxu0
    %3526 = vdwg.mxu0
    %v3527 = vadd.f32 %v3012, %v3273
    %v3528 = vadd.f32 %v3013, %v3276
    %v3529 = vadd.f32 %v3014, %v3281
    %v3530 = vadd.f32 %v3015, %v3284
    %v3531 = vadd.f32 %v3016, %v3289
    %v3532 = vadd.f32 %v3017, %v3292
    %v3533 = vadd.f32 %v3018, %v3297
    %v3534 = vadd.f32 %v3019, %v3300
    %v3535 = vadd.f32 %v3020, %v3305
    %v3536 = vadd.f32 %v3021, %v3308
    %v3537 = vadd.f32 %v3022, %v3313
    %v3538 = vadd.f32 %v3023, %v3316
    %v3539 = vadd.f32 %v3024, %v3321
    %v3540 = vadd.f32 %v3025, %v3324
    %v3541 = vadd.f32 %v3026, %v3329
    %v3542 = vadd.f32 %v3027, %v3332
    %v3543 = vadd.f32 %v3028, %v3337
    %v3544 = vadd.f32 %v3029, %v3340
    %v3545 = vadd.f32 %v3030, %v3345
    %v3546 = vadd.f32 %v3031, %v3348
    %v3547 = vadd.f32 %v3032, %v3353
    %v3548 = vadd.f32 %v3033, %v3356
    %v3549 = vadd.f32 %v3034, %v3361
    %v3550 = vadd.f32 %v3035, %v3364
    %v3551 = vadd.f32 %v3036, %v3369
    %v3552 = vadd.f32 %v3037, %v3372
    %v3553 = vadd.f32 %v3038, %v3377
    %v3554 = vadd.f32 %v3039, %v3380
    %v3555 = vadd.f32 %v3040, %v3385
    %v3556 = vadd.f32 %v3041, %v3388
    %v3557 = vadd.f32 %v3042, %v3393
    %v3558 = vadd.f32 %v3043, %v3396
    %v3559 = vadd.f32 %v3044, %v3401
    %v3560 = vadd.f32 %v3045, %v3404
    %v3561 = vadd.f32 %v3046, %v3409
    %v3562 = vadd.f32 %v3047, %v3412
    %v3563 = vadd.f32 %v3048, %v3417
    %v3564 = vadd.f32 %v3049, %v3420
    %v3565 = vadd.f32 %v3050, %v3425
    %v3566 = vadd.f32 %v3051, %v3428
    %v3567 = vadd.f32 %v3052, %v3433
    %v3568 = vadd.f32 %v3053, %v3436
    %v3569 = vadd.f32 %v3054, %v3441
    %v3570 = vadd.f32 %v3055, %v3444
    %v3571 = vadd.f32 %v3056, %v3449
    %v3572 = vadd.f32 %v3057, %v3452
    %v3573 = vadd.f32 %v3058, %v3457
    %v3574 = vadd.f32 %v3059, %v3460
    %v3575 = vadd.f32 %v3060, %v3465
    %v3576 = vadd.f32 %v3061, %v3468
    %v3577 = vadd.f32 %v3062, %v3473
    %v3578 = vadd.f32 %v3063, %v3476
    %v3579 = vadd.f32 %v3064, %v3481
    %v3580 = vadd.f32 %v3065, %v3484
    %v3581 = vadd.f32 %v3066, %v3489
    %v3582 = vadd.f32 %v3067, %v3492
    %v3583 = vadd.f32 %v3068, %v3497
    %v3584 = vadd.f32 %v3069, %v3500
    %v3585 = vadd.f32 %v3070, %v3505
    %v3586 = vadd.f32 %v3071, %v3508
    %v3587 = vadd.f32 %v3072, %v3513
    %v3588 = vadd.f32 %v3073, %v3516
    %v3589 = vadd.f32 %v3074, %v3521
    %v3590 = vadd.f32 %v3075, %v3524
    %s3591 = scalar_lea.vmem [#allocation3], 448
    %v3592 = vld [vmem:[%s3591] sm:$0xff]
    %v3593 = vld [vmem:[%s3591 + $0x10] sm:$0xff]
    %v3594 = vld [vmem:[%s3591 + $0x20] sm:$0xff]
    %v3595 = vld [vmem:[%s3591 + $0x30] sm:$0xff]
    %v3596 = vld [vmem:[%s3591 + $0x40] sm:$0xff]
    %v3597 = vld [vmem:[%s3591 + $0x50] sm:$0xff]
    %v3598 = vld [vmem:[%s3591 + $0x60] sm:$0xff]
    %v3599 = vld [vmem:[%s3591 + $0x70] sm:$0xff]
    %v3600 = vld [vmem:[%s3591 + $0x120] sm:$0xff]
    %v3601 = vld [vmem:[%s3591 + $0x130] sm:$0xff]
    %v3602 = vld [vmem:[%s3591 + $0x140] sm:$0xff]
    %v3603 = vld [vmem:[%s3591 + $0x150] sm:$0xff]
    %v3604 = vld [vmem:[%s3591 + $0x160] sm:$0xff]
    %v3605 = vld [vmem:[%s3591 + $0x170] sm:$0xff]
    %v3606 = vld [vmem:[%s3591 + $0x180] sm:$0xff]
    %v3607 = vld [vmem:[%s3591 + $0x190] sm:$0xff]
    %v3608 = vld [vmem:[%s3591 + $0x240] sm:$0xff]
    %v3609 = vld [vmem:[%s3591 + $0x250] sm:$0xff]
    %v3610 = vld [vmem:[%s3591 + $0x260] sm:$0xff]
    %v3611 = vld [vmem:[%s3591 + $0x270] sm:$0xff]
    %v3612 = vld [vmem:[%s3591 + $0x280] sm:$0xff]
    %v3613 = vld [vmem:[%s3591 + $0x290] sm:$0xff]
    %v3614 = vld [vmem:[%s3591 + $0x2a0] sm:$0xff]
    %v3615 = vld [vmem:[%s3591 + $0x2b0] sm:$0xff]
    %v3616 = vld [vmem:[%s3591 + $0x360] sm:$0xff]
    %v3617 = vld [vmem:[%s3591 + $0x370] sm:$0xff]
    %v3618 = vld [vmem:[%s3591 + $0x380] sm:$0xff]
    %v3619 = vld [vmem:[%s3591 + $0x390] sm:$0xff]
    %v3620 = vld [vmem:[%s3591 + $0x3a0] sm:$0xff]
    %v3621 = vld [vmem:[%s3591 + $0x3b0] sm:$0xff]
    %v3622 = vld [vmem:[%s3591 + $0x3c0] sm:$0xff]
    %v3623 = vld [vmem:[%s3591 + $0x3d0] sm:$0xff]
    %v3624 = vld [vmem:[%s3591 + $0x480] sm:$0xff]
    %v3625 = vld [vmem:[%s3591 + $0x490] sm:$0xff]
    %v3626 = vld [vmem:[%s3591 + $0x4a0] sm:$0xff]
    %v3627 = vld [vmem:[%s3591 + $0x4b0] sm:$0xff]
    %v3628 = vld [vmem:[%s3591 + $0x4c0] sm:$0xff]
    %v3629 = vld [vmem:[%s3591 + $0x4d0] sm:$0xff]
    %v3630 = vld [vmem:[%s3591 + $0x4e0] sm:$0xff]
    %v3631 = vld [vmem:[%s3591 + $0x4f0] sm:$0xff]
    %v3632 = vld [vmem:[%s3591 + $0x5a0] sm:$0xff]
    %v3633 = vld [vmem:[%s3591 + $0x5b0] sm:$0xff]
    %v3634 = vld [vmem:[%s3591 + $0x5c0] sm:$0xff]
    %v3635 = vld [vmem:[%s3591 + $0x5d0] sm:$0xff]
    %v3636 = vld [vmem:[%s3591 + $0x5e0] sm:$0xff]
    %v3637 = vld [vmem:[%s3591 + $0x5f0] sm:$0xff]
    %v3638 = vld [vmem:[%s3591 + $0x600] sm:$0xff]
    %v3639 = vld [vmem:[%s3591 + $0x610] sm:$0xff]
    %v3640 = vld [vmem:[%s3591 + $0x6c0] sm:$0xff]
    %v3641 = vld [vmem:[%s3591 + $0x6d0] sm:$0xff]
    %v3642 = vld [vmem:[%s3591 + $0x6e0] sm:$0xff]
    %v3643 = vld [vmem:[%s3591 + $0x6f0] sm:$0xff]
    %v3644 = vld [vmem:[%s3591 + $0x700] sm:$0xff]
    %v3645 = vld [vmem:[%s3591 + $0x710] sm:$0xff]
    %v3646 = vld [vmem:[%s3591 + $0x720] sm:$0xff]
    %v3647 = vld [vmem:[%s3591 + $0x730] sm:$0xff]
    %v3648 = vld [vmem:[%s3591 + $0x7e0] sm:$0xff]
    %v3649 = vld [vmem:[%s3591 + $0x7f0] sm:$0xff]
    %v3650 = vld [vmem:[%s3591 + $0x800] sm:$0xff]
    %v3651 = vld [vmem:[%s3591 + $0x810] sm:$0xff]
    %v3652 = vld [vmem:[%s3591 + $0x820] sm:$0xff]
    %v3653 = vld [vmem:[%s3591 + $0x830] sm:$0xff]
    %v3654 = vld [vmem:[%s3591 + $0x840] sm:$0xff]
    %v3655 = vld [vmem:[%s3591 + $0x850] sm:$0xff]
    %v3656 = vpack.c.bf16 %v3593, %v3592
    %v3657 = vpack.c.bf16 %v3595, %v3594
    %v3658 = vpack.c.bf16 %v3597, %v3596
    %v3659 = vpack.c.bf16 %v3599, %v3598
    %v3660 = vpack.c.bf16 %v3601, %v3600
    %v3661 = vpack.c.bf16 %v3603, %v3602
    %v3662 = vpack.c.bf16 %v3605, %v3604
    %v3663 = vpack.c.bf16 %v3607, %v3606
    %v3664 = vpack.c.bf16 %v3609, %v3608
    %v3665 = vpack.c.bf16 %v3611, %v3610
    %v3666 = vpack.c.bf16 %v3613, %v3612
    %v3667 = vpack.c.bf16 %v3615, %v3614
    %v3668 = vpack.c.bf16 %v3617, %v3616
    %v3669 = vpack.c.bf16 %v3619, %v3618
    %v3670 = vpack.c.bf16 %v3621, %v3620
    %v3671 = vpack.c.bf16 %v3623, %v3622
    %v3672 = vpack.c.bf16 %v3625, %v3624
    %v3673 = vpack.c.bf16 %v3627, %v3626
    %v3674 = vpack.c.bf16 %v3629, %v3628
    %v3675 = vpack.c.bf16 %v3631, %v3630
    %v3676 = vpack.c.bf16 %v3633, %v3632
    %v3677 = vpack.c.bf16 %v3635, %v3634
    %v3678 = vpack.c.bf16 %v3637, %v3636
    %v3679 = vpack.c.bf16 %v3639, %v3638
    %v3680 = vpack.c.bf16 %v3641, %v3640
    %v3681 = vpack.c.bf16 %v3643, %v3642
    %v3682 = vpack.c.bf16 %v3645, %v3644
    %v3683 = vpack.c.bf16 %v3647, %v3646
    %v3684 = vpack.c.bf16 %v3649, %v3648
    %v3685 = vpack.c.bf16 %v3651, %v3650
    %v3686 = vpack.c.bf16 %v3653, %v3652
    %v3687 = vpack.c.bf16 %v3655, %v3654
    %s3688 = scalar_lea.vmem [#allocation6], 448
    %v3689 = vld [vmem:[%s3688] sm:$0xf]
    %v3690 = vld [vmem:[%s3688 + $0x4] sm:$0xf]
    %v3691 = vld [vmem:[%s3688 + $0x8] sm:$0xf]
    %v3692 = vld [vmem:[%s3688 + $0xc] sm:$0xf]
    %v3693 = vld [vmem:[%s3688 + $0x10] sm:$0xf]
    %v3694 = vld [vmem:[%s3688 + $0x14] sm:$0xf]
    %v3695 = vld [vmem:[%s3688 + $0x18] sm:$0xf]
    %v3696 = vld [vmem:[%s3688 + $0x1c] sm:$0xf]
    %v3697 = vld [vmem:[%s3688 + $0x20] sm:$0xf]
    %v3698 = vld [vmem:[%s3688 + $0x24] sm:$0xf]
    %v3699 = vld [vmem:[%s3688 + $0x28] sm:$0xf]
    %v3700 = vld [vmem:[%s3688 + $0x2c] sm:$0xf]
    %v3701 = vld [vmem:[%s3688 + $0x30] sm:$0xf]
    %v3702 = vld [vmem:[%s3688 + $0x34] sm:$0xf]
    %v3703 = vld [vmem:[%s3688 + $0x38] sm:$0xf]
    %v3704 = vld [vmem:[%s3688 + $0x3c] sm:$0xf]
    %v3721 = vunpack.c.l.b16 %v3689
    %v3722 = vunpack.c.l.b16 %v3690
    %v3723 = vunpack.c.l.b16 %v3691
    %v3724 = vunpack.c.l.b16 %v3692
    %v3725 = vunpack.c.l.b16 %v3693
    %v3726 = vunpack.c.l.b16 %v3694
    %v3727 = vunpack.c.l.b16 %v3695
    %v3728 = vunpack.c.l.b16 %v3696
    %v3729 = vunpack.c.l.b16 %v3697
    %v3730 = vunpack.c.l.b16 %v3698
    %v3731 = vunpack.c.l.b16 %v3699
    %v3732 = vunpack.c.l.b16 %v3700
    %v3733 = vunpack.c.l.b16 %v3701
    %v3734 = vunpack.c.l.b16 %v3702
    %v3735 = vunpack.c.l.b16 %v3703
    %v3736 = vunpack.c.l.b16 %v3704
    %v3737 = vpack.c.b16 %v3722, %v3721
    %v3738 = vpack.c.b16 %v3724, %v3723
    %v3739 = vpack.c.b16 %v3726, %v3725
    %v3740 = vpack.c.b16 %v3728, %v3727
    %v3741 = vpack.c.b16 %v3730, %v3729
    %v3742 = vpack.c.b16 %v3732, %v3731
    %v3743 = vpack.c.b16 %v3734, %v3733
    %v3744 = vpack.c.b16 %v3736, %v3735
    %3753 = vmatprep.subr.bf16.mxu0 0
    %3754 = vmatpush1.bf16.msra.mxu0 %v3744
    %3755 = vmatprep.subr.bf16.mxu0 0
    %3756 = vmatpush1.bf16.msra.mxu0 %v3743
    %3757 = vmatprep.subr.bf16.mxu0 0
    %3758 = vmatpush1.bf16.msra.mxu0 %v3742
    %3759 = vmatprep.subr.bf16.mxu0 0
    %3760 = vmatpush1.bf16.msra.mxu0 %v3741
    %3761 = vmatprep.subr.bf16.mxu0 0
    %3762 = vmatpush1.bf16.msra.mxu0 %v3740
    %3763 = vmatprep.subr.bf16.mxu0 0
    %3764 = vmatpush1.bf16.msra.mxu0 %v3739
    %3765 = vmatprep.subr.bf16.mxu0 0
    %3766 = vmatpush1.bf16.msra.mxu0 %v3738
    %3767 = vmatprep.subr.bf16.mxu0 0
    %3768 = vmatpush1.bf16.msra.mxu0 %v3737
    %3769 = vmatprep.subr.bf16.mxu0 0
    %3770 = vmatpush2.bf16.msra.mxu0 0
    %3771 = vmatprep.subr.bf16.mxu0 0
    %3772 = vmatpush2.bf16.msra.mxu0 0
    %3773 = vmatprep.subr.bf16.mxu0 0
    %3774 = vmatpush2.bf16.msra.mxu0 0
    %3775 = vmatprep.subr.bf16.mxu0 0
    %3776 = vmatpush2.bf16.msra.mxu0 0
    %3777 = vmatprep.subr.bf16.mxu0 0
    %3778 = vmatpush2.bf16.msra.mxu0 0
    %3779 = vmatprep.subr.bf16.mxu0 0
    %3780 = vmatpush2.bf16.msra.mxu0 0
    %3781 = vmatprep.subr.bf16.mxu0 0
    %3782 = vmatpush2.bf16.msra.mxu0 0
    %3783 = vmatprep.subr.bf16.mxu0 0
    %3784 = vmatpush2.bf16.msra.mxu0 0
    %3785 = vmatprep.mubr.bf16.mxu0 0
    %3786 = vmatmul.mubr.bf16.gmra.mxu0 %v3656
    %v3787 = vpop.f32.mrf.mxu0
    %v3788 = vadd.f32 0.0, %v3787
    %v3789 = vpop.f32.mrf.mxu0
    %v3790 = vpop.f32.mrf.mxu0
    %v3791 = vadd.f32 0.0, %v3790
    %v3792 = vpop.f32.mrf.mxu0
    %3793 = vmatprep.mubr.bf16.mxu0 0
    %3794 = vmatmul.mubr.bf16.gmra.mxu0 %v3657
    %v3795 = vpop.f32.mrf.mxu0
    %v3796 = vadd.f32 0.0, %v3795
    %v3797 = vpop.f32.mrf.mxu0
    %v3798 = vpop.f32.mrf.mxu0
    %v3799 = vadd.f32 0.0, %v3798
    %v3800 = vpop.f32.mrf.mxu0
    %3801 = vmatprep.mubr.bf16.mxu0 0
    %3802 = vmatmul.mubr.bf16.gmra.mxu0 %v3658
    %v3803 = vpop.f32.mrf.mxu0
    %v3804 = vadd.f32 0.0, %v3803
    %v3805 = vpop.f32.mrf.mxu0
    %v3806 = vpop.f32.mrf.mxu0
    %v3807 = vadd.f32 0.0, %v3806
    %v3808 = vpop.f32.mrf.mxu0
    %3809 = vmatprep.mubr.bf16.mxu0 0
    %3810 = vmatmul.mubr.bf16.gmra.mxu0 %v3659
    %v3811 = vpop.f32.mrf.mxu0
    %v3812 = vadd.f32 0.0, %v3811
    %v3813 = vpop.f32.mrf.mxu0
    %v3814 = vpop.f32.mrf.mxu0
    %v3815 = vadd.f32 0.0, %v3814
    %v3816 = vpop.f32.mrf.mxu0
    %3817 = vmatprep.mubr.bf16.mxu0 0
    %3818 = vmatmul.mubr.bf16.gmra.mxu0 %v3660
    %v3819 = vpop.f32.mrf.mxu0
    %v3820 = vadd.f32 0.0, %v3819
    %v3821 = vpop.f32.mrf.mxu0
    %v3822 = vpop.f32.mrf.mxu0
    %v3823 = vadd.f32 0.0, %v3822
    %v3824 = vpop.f32.mrf.mxu0
    %3825 = vmatprep.mubr.bf16.mxu0 0
    %3826 = vmatmul.mubr.bf16.gmra.mxu0 %v3661
    %v3827 = vpop.f32.mrf.mxu0
    %v3828 = vadd.f32 0.0, %v3827
    %v3829 = vpop.f32.mrf.mxu0
    %v3830 = vpop.f32.mrf.mxu0
    %v3831 = vadd.f32 0.0, %v3830
    %v3832 = vpop.f32.mrf.mxu0
    %3833 = vmatprep.mubr.bf16.mxu0 0
    %3834 = vmatmul.mubr.bf16.gmra.mxu0 %v3662
    %v3835 = vpop.f32.mrf.mxu0
    %v3836 = vadd.f32 0.0, %v3835
    %v3837 = vpop.f32.mrf.mxu0
    %v3838 = vpop.f32.mrf.mxu0
    %v3839 = vadd.f32 0.0, %v3838
    %v3840 = vpop.f32.mrf.mxu0
    %3841 = vmatprep.mubr.bf16.mxu0 0
    %3842 = vmatmul.mubr.bf16.gmra.mxu0 %v3663
    %v3843 = vpop.f32.mrf.mxu0
    %v3844 = vadd.f32 0.0, %v3843
    %v3845 = vpop.f32.mrf.mxu0
    %v3846 = vpop.f32.mrf.mxu0
    %v3847 = vadd.f32 0.0, %v3846
    %v3848 = vpop.f32.mrf.mxu0
    %3849 = vmatprep.mubr.bf16.mxu0 0
    %3850 = vmatmul.mubr.bf16.gmra.mxu0 %v3664
    %v3851 = vpop.f32.mrf.mxu0
    %v3852 = vadd.f32 0.0, %v3851
    %v3853 = vpop.f32.mrf.mxu0
    %v3854 = vpop.f32.mrf.mxu0
    %v3855 = vadd.f32 0.0, %v3854
    %v3856 = vpop.f32.mrf.mxu0
    %3857 = vmatprep.mubr.bf16.mxu0 0
    %3858 = vmatmul.mubr.bf16.gmra.mxu0 %v3665
    %v3859 = vpop.f32.mrf.mxu0
    %v3860 = vadd.f32 0.0, %v3859
    %v3861 = vpop.f32.mrf.mxu0
    %v3862 = vpop.f32.mrf.mxu0
    %v3863 = vadd.f32 0.0, %v3862
    %v3864 = vpop.f32.mrf.mxu0
    %3865 = vmatprep.mubr.bf16.mxu0 0
    %3866 = vmatmul.mubr.bf16.gmra.mxu0 %v3666
    %v3867 = vpop.f32.mrf.mxu0
    %v3868 = vadd.f32 0.0, %v3867
    %v3869 = vpop.f32.mrf.mxu0
    %v3870 = vpop.f32.mrf.mxu0
    %v3871 = vadd.f32 0.0, %v3870
    %v3872 = vpop.f32.mrf.mxu0
    %3873 = vmatprep.mubr.bf16.mxu0 0
    %3874 = vmatmul.mubr.bf16.gmra.mxu0 %v3667
    %v3875 = vpop.f32.mrf.mxu0
    %v3876 = vadd.f32 0.0, %v3875
    %v3877 = vpop.f32.mrf.mxu0
    %v3878 = vpop.f32.mrf.mxu0
    %v3879 = vadd.f32 0.0, %v3878
    %v3880 = vpop.f32.mrf.mxu0
    %3881 = vmatprep.mubr.bf16.mxu0 0
    %3882 = vmatmul.mubr.bf16.gmra.mxu0 %v3668
    %v3883 = vpop.f32.mrf.mxu0
    %v3884 = vadd.f32 0.0, %v3883
    %v3885 = vpop.f32.mrf.mxu0
    %v3886 = vpop.f32.mrf.mxu0
    %v3887 = vadd.f32 0.0, %v3886
    %v3888 = vpop.f32.mrf.mxu0
    %3889 = vmatprep.mubr.bf16.mxu0 0
    %3890 = vmatmul.mubr.bf16.gmra.mxu0 %v3669
    %v3891 = vpop.f32.mrf.mxu0
    %v3892 = vadd.f32 0.0, %v3891
    %v3893 = vpop.f32.mrf.mxu0
    %v3894 = vpop.f32.mrf.mxu0
    %v3895 = vadd.f32 0.0, %v3894
    %v3896 = vpop.f32.mrf.mxu0
    %3897 = vmatprep.mubr.bf16.mxu0 0
    %3898 = vmatmul.mubr.bf16.gmra.mxu0 %v3670
    %v3899 = vpop.f32.mrf.mxu0
    %v3900 = vadd.f32 0.0, %v3899
    %v3901 = vpop.f32.mrf.mxu0
    %v3902 = vpop.f32.mrf.mxu0
    %v3903 = vadd.f32 0.0, %v3902
    %v3904 = vpop.f32.mrf.mxu0
    %3905 = vmatprep.mubr.bf16.mxu0 0
    %3906 = vmatmul.mubr.bf16.gmra.mxu0 %v3671
    %v3907 = vpop.f32.mrf.mxu0
    %v3908 = vadd.f32 0.0, %v3907
    %v3909 = vpop.f32.mrf.mxu0
    %v3910 = vpop.f32.mrf.mxu0
    %v3911 = vadd.f32 0.0, %v3910
    %v3912 = vpop.f32.mrf.mxu0
    %3913 = vmatprep.mubr.bf16.mxu0 0
    %3914 = vmatmul.mubr.bf16.gmra.mxu0 %v3672
    %v3915 = vpop.f32.mrf.mxu0
    %v3916 = vadd.f32 0.0, %v3915
    %v3917 = vpop.f32.mrf.mxu0
    %v3918 = vpop.f32.mrf.mxu0
    %v3919 = vadd.f32 0.0, %v3918
    %v3920 = vpop.f32.mrf.mxu0
    %3921 = vmatprep.mubr.bf16.mxu0 0
    %3922 = vmatmul.mubr.bf16.gmra.mxu0 %v3673
    %v3923 = vpop.f32.mrf.mxu0
    %v3924 = vadd.f32 0.0, %v3923
    %v3925 = vpop.f32.mrf.mxu0
    %v3926 = vpop.f32.mrf.mxu0
    %v3927 = vadd.f32 0.0, %v3926
    %v3928 = vpop.f32.mrf.mxu0
    %3929 = vmatprep.mubr.bf16.mxu0 0
    %3930 = vmatmul.mubr.bf16.gmra.mxu0 %v3674
    %v3931 = vpop.f32.mrf.mxu0
    %v3932 = vadd.f32 0.0, %v3931
    %v3933 = vpop.f32.mrf.mxu0
    %v3934 = vpop.f32.mrf.mxu0
    %v3935 = vadd.f32 0.0, %v3934
    %v3936 = vpop.f32.mrf.mxu0
    %3937 = vmatprep.mubr.bf16.mxu0 0
    %3938 = vmatmul.mubr.bf16.gmra.mxu0 %v3675
    %v3939 = vpop.f32.mrf.mxu0
    %v3940 = vadd.f32 0.0, %v3939
    %v3941 = vpop.f32.mrf.mxu0
    %v3942 = vpop.f32.mrf.mxu0
    %v3943 = vadd.f32 0.0, %v3942
    %v3944 = vpop.f32.mrf.mxu0
    %3945 = vmatprep.mubr.bf16.mxu0 0
    %3946 = vmatmul.mubr.bf16.gmra.mxu0 %v3676
    %v3947 = vpop.f32.mrf.mxu0
    %v3948 = vadd.f32 0.0, %v3947
    %v3949 = vpop.f32.mrf.mxu0
    %v3950 = vpop.f32.mrf.mxu0
    %v3951 = vadd.f32 0.0, %v3950
    %v3952 = vpop.f32.mrf.mxu0
    %3953 = vmatprep.mubr.bf16.mxu0 0
    %3954 = vmatmul.mubr.bf16.gmra.mxu0 %v3677
    %v3955 = vpop.f32.mrf.mxu0
    %v3956 = vadd.f32 0.0, %v3955
    %v3957 = vpop.f32.mrf.mxu0
    %v3958 = vpop.f32.mrf.mxu0
    %v3959 = vadd.f32 0.0, %v3958
    %v3960 = vpop.f32.mrf.mxu0
    %3961 = vmatprep.mubr.bf16.mxu0 0
    %3962 = vmatmul.mubr.bf16.gmra.mxu0 %v3678
    %v3963 = vpop.f32.mrf.mxu0
    %v3964 = vadd.f32 0.0, %v3963
    %v3965 = vpop.f32.mrf.mxu0
    %v3966 = vpop.f32.mrf.mxu0
    %v3967 = vadd.f32 0.0, %v3966
    %v3968 = vpop.f32.mrf.mxu0
    %3969 = vmatprep.mubr.bf16.mxu0 0
    %3970 = vmatmul.mubr.bf16.gmra.mxu0 %v3679
    %v3971 = vpop.f32.mrf.mxu0
    %v3972 = vadd.f32 0.0, %v3971
    %v3973 = vpop.f32.mrf.mxu0
    %v3974 = vpop.f32.mrf.mxu0
    %v3975 = vadd.f32 0.0, %v3974
    %v3976 = vpop.f32.mrf.mxu0
    %3977 = vmatprep.mubr.bf16.mxu0 0
    %3978 = vmatmul.mubr.bf16.gmra.mxu0 %v3680
    %v3979 = vpop.f32.mrf.mxu0
    %v3980 = vadd.f32 0.0, %v3979
    %v3981 = vpop.f32.mrf.mxu0
    %v3982 = vpop.f32.mrf.mxu0
    %v3983 = vadd.f32 0.0, %v3982
    %v3984 = vpop.f32.mrf.mxu0
    %3985 = vmatprep.mubr.bf16.mxu0 0
    %3986 = vmatmul.mubr.bf16.gmra.mxu0 %v3681
    %v3987 = vpop.f32.mrf.mxu0
    %v3988 = vadd.f32 0.0, %v3987
    %v3989 = vpop.f32.mrf.mxu0
    %v3990 = vpop.f32.mrf.mxu0
    %v3991 = vadd.f32 0.0, %v3990
    %v3992 = vpop.f32.mrf.mxu0
    %3993 = vmatprep.mubr.bf16.mxu0 0
    %3994 = vmatmul.mubr.bf16.gmra.mxu0 %v3682
    %v3995 = vpop.f32.mrf.mxu0
    %v3996 = vadd.f32 0.0, %v3995
    %v3997 = vpop.f32.mrf.mxu0
    %v3998 = vpop.f32.mrf.mxu0
    %v3999 = vadd.f32 0.0, %v3998
    %v4000 = vpop.f32.mrf.mxu0
    %4001 = vmatprep.mubr.bf16.mxu0 0
    %4002 = vmatmul.mubr.bf16.gmra.mxu0 %v3683
    %v4003 = vpop.f32.mrf.mxu0
    %v4004 = vadd.f32 0.0, %v4003
    %v4005 = vpop.f32.mrf.mxu0
    %v4006 = vpop.f32.mrf.mxu0
    %v4007 = vadd.f32 0.0, %v4006
    %v4008 = vpop.f32.mrf.mxu0
    %4009 = vmatprep.mubr.bf16.mxu0 0
    %4010 = vmatmul.mubr.bf16.gmra.mxu0 %v3684
    %v4011 = vpop.f32.mrf.mxu0
    %v4012 = vadd.f32 0.0, %v4011
    %v4013 = vpop.f32.mrf.mxu0
    %v4014 = vpop.f32.mrf.mxu0
    %v4015 = vadd.f32 0.0, %v4014
    %v4016 = vpop.f32.mrf.mxu0
    %4017 = vmatprep.mubr.bf16.mxu0 0
    %4018 = vmatmul.mubr.bf16.gmra.mxu0 %v3685
    %v4019 = vpop.f32.mrf.mxu0
    %v4020 = vadd.f32 0.0, %v4019
    %v4021 = vpop.f32.mrf.mxu0
    %v4022 = vpop.f32.mrf.mxu0
    %v4023 = vadd.f32 0.0, %v4022
    %v4024 = vpop.f32.mrf.mxu0
    %4025 = vmatprep.mubr.bf16.mxu0 0
    %4026 = vmatmul.mubr.bf16.gmra.mxu0 %v3686
    %v4027 = vpop.f32.mrf.mxu0
    %v4028 = vadd.f32 0.0, %v4027
    %v4029 = vpop.f32.mrf.mxu0
    %v4030 = vpop.f32.mrf.mxu0
    %v4031 = vadd.f32 0.0, %v4030
    %v4032 = vpop.f32.mrf.mxu0
    %4033 = vmatprep.mubr.bf16.mxu0 0
    %4034 = vmatmul.mubr.bf16.gmra.mxu0 %v3687
    %v4035 = vpop.f32.mrf.mxu0
    %v4036 = vadd.f32 0.0, %v4035
    %v4037 = vpop.f32.mrf.mxu0
    %v4038 = vpop.f32.mrf.mxu0
    %v4039 = vadd.f32 0.0, %v4038
    %v4040 = vpop.f32.mrf.mxu0
    %4041 = vdwg.mxu0
    %v4042 = vadd.f32 %v3527, %v3788
    %v4043 = vadd.f32 %v3528, %v3791
    %v4044 = vadd.f32 %v3529, %v3796
    %v4045 = vadd.f32 %v3530, %v3799
    %v4046 = vadd.f32 %v3531, %v3804
    %v4047 = vadd.f32 %v3532, %v3807
    %v4048 = vadd.f32 %v3533, %v3812
    %v4049 = vadd.f32 %v3534, %v3815
    %v4050 = vadd.f32 %v3535, %v3820
    %v4051 = vadd.f32 %v3536, %v3823
    %v4052 = vadd.f32 %v3537, %v3828
    %v4053 = vadd.f32 %v3538, %v3831
    %v4054 = vadd.f32 %v3539, %v3836
    %v4055 = vadd.f32 %v3540, %v3839
    %v4056 = vadd.f32 %v3541, %v3844
    %v4057 = vadd.f32 %v3542, %v3847
    %v4058 = vadd.f32 %v3543, %v3852
    %v4059 = vadd.f32 %v3544, %v3855
    %v4060 = vadd.f32 %v3545, %v3860
    %v4061 = vadd.f32 %v3546, %v3863
    %v4062 = vadd.f32 %v3547, %v3868
    %v4063 = vadd.f32 %v3548, %v3871
    %v4064 = vadd.f32 %v3549, %v3876
    %v4065 = vadd.f32 %v3550, %v3879
    %v4066 = vadd.f32 %v3551, %v3884
    %v4067 = vadd.f32 %v3552, %v3887
    %v4068 = vadd.f32 %v3553, %v3892
    %v4069 = vadd.f32 %v3554, %v3895
    %v4070 = vadd.f32 %v3555, %v3900
    %v4071 = vadd.f32 %v3556, %v3903
    %v4072 = vadd.f32 %v3557, %v3908
    %v4073 = vadd.f32 %v3558, %v3911
    %v4074 = vadd.f32 %v3559, %v3916
    %v4075 = vadd.f32 %v3560, %v3919
    %v4076 = vadd.f32 %v3561, %v3924
    %v4077 = vadd.f32 %v3562, %v3927
    %v4078 = vadd.f32 %v3563, %v3932
    %v4079 = vadd.f32 %v3564, %v3935
    %v4080 = vadd.f32 %v3565, %v3940
    %v4081 = vadd.f32 %v3566, %v3943
    %v4082 = vadd.f32 %v3567, %v3948
    %v4083 = vadd.f32 %v3568, %v3951
    %v4084 = vadd.f32 %v3569, %v3956
    %v4085 = vadd.f32 %v3570, %v3959
    %v4086 = vadd.f32 %v3571, %v3964
    %v4087 = vadd.f32 %v3572, %v3967
    %v4088 = vadd.f32 %v3573, %v3972
    %v4089 = vadd.f32 %v3574, %v3975
    %v4090 = vadd.f32 %v3575, %v3980
    %v4091 = vadd.f32 %v3576, %v3983
    %v4092 = vadd.f32 %v3577, %v3988
    %v4093 = vadd.f32 %v3578, %v3991
    %v4094 = vadd.f32 %v3579, %v3996
    %v4095 = vadd.f32 %v3580, %v3999
    %v4096 = vadd.f32 %v3581, %v4004
    %v4097 = vadd.f32 %v3582, %v4007
    %v4098 = vadd.f32 %v3583, %v4012
    %v4099 = vadd.f32 %v3584, %v4015
    %v4100 = vadd.f32 %v3585, %v4020
    %v4101 = vadd.f32 %v3586, %v4023
    %v4102 = vadd.f32 %v3587, %v4028
    %v4103 = vadd.f32 %v3588, %v4031
    %v4104 = vadd.f32 %v3589, %v4036
    %v4105 = vadd.f32 %v3590, %v4039
    %s4106 = scalar_lea.vmem [#allocation3], 456
    %v4107 = vld [vmem:[%s4106] sm:$0xff]
    %v4108 = vld [vmem:[%s4106 + $0x10] sm:$0xff]
    %v4109 = vld [vmem:[%s4106 + $0x20] sm:$0xff]
    %v4110 = vld [vmem:[%s4106 + $0x30] sm:$0xff]
    %v4111 = vld [vmem:[%s4106 + $0x40] sm:$0xff]
    %v4112 = vld [vmem:[%s4106 + $0x50] sm:$0xff]
    %v4113 = vld [vmem:[%s4106 + $0x60] sm:$0xff]
    %v4114 = vld [vmem:[%s4106 + $0x70] sm:$0xff]
    %v4115 = vld [vmem:[%s4106 + $0x120] sm:$0xff]
    %v4116 = vld [vmem:[%s4106 + $0x130] sm:$0xff]
    %v4117 = vld [vmem:[%s4106 + $0x140] sm:$0xff]
    %v4118 = vld [vmem:[%s4106 + $0x150] sm:$0xff]
    %v4119 = vld [vmem:[%s4106 + $0x160] sm:$0xff]
    %v4120 = vld [vmem:[%s4106 + $0x170] sm:$0xff]
    %v4121 = vld [vmem:[%s4106 + $0x180] sm:$0xff]
    %v4122 = vld [vmem:[%s4106 + $0x190] sm:$0xff]
    %v4123 = vld [vmem:[%s4106 + $0x240] sm:$0xff]
    %v4124 = vld [vmem:[%s4106 + $0x250] sm:$0xff]
    %v4125 = vld [vmem:[%s4106 + $0x260] sm:$0xff]
    %v4126 = vld [vmem:[%s4106 + $0x270] sm:$0xff]
    %v4127 = vld [vmem:[%s4106 + $0x280] sm:$0xff]
    %v4128 = vld [vmem:[%s4106 + $0x290] sm:$0xff]
    %v4129 = vld [vmem:[%s4106 + $0x2a0] sm:$0xff]
    %v4130 = vld [vmem:[%s4106 + $0x2b0] sm:$0xff]
    %v4131 = vld [vmem:[%s4106 + $0x360] sm:$0xff]
    %v4132 = vld [vmem:[%s4106 + $0x370] sm:$0xff]
    %v4133 = vld [vmem:[%s4106 + $0x380] sm:$0xff]
    %v4134 = vld [vmem:[%s4106 + $0x390] sm:$0xff]
    %v4135 = vld [vmem:[%s4106 + $0x3a0] sm:$0xff]
    %v4136 = vld [vmem:[%s4106 + $0x3b0] sm:$0xff]
    %v4137 = vld [vmem:[%s4106 + $0x3c0] sm:$0xff]
    %v4138 = vld [vmem:[%s4106 + $0x3d0] sm:$0xff]
    %v4139 = vld [vmem:[%s4106 + $0x480] sm:$0xff]
    %v4140 = vld [vmem:[%s4106 + $0x490] sm:$0xff]
    %v4141 = vld [vmem:[%s4106 + $0x4a0] sm:$0xff]
    %v4142 = vld [vmem:[%s4106 + $0x4b0] sm:$0xff]
    %v4143 = vld [vmem:[%s4106 + $0x4c0] sm:$0xff]
    %v4144 = vld [vmem:[%s4106 + $0x4d0] sm:$0xff]
    %v4145 = vld [vmem:[%s4106 + $0x4e0] sm:$0xff]
    %v4146 = vld [vmem:[%s4106 + $0x4f0] sm:$0xff]
    %v4147 = vld [vmem:[%s4106 + $0x5a0] sm:$0xff]
    %v4148 = vld [vmem:[%s4106 + $0x5b0] sm:$0xff]
    %v4149 = vld [vmem:[%s4106 + $0x5c0] sm:$0xff]
    %v4150 = vld [vmem:[%s4106 + $0x5d0] sm:$0xff]
    %v4151 = vld [vmem:[%s4106 + $0x5e0] sm:$0xff]
    %v4152 = vld [vmem:[%s4106 + $0x5f0] sm:$0xff]
    %v4153 = vld [vmem:[%s4106 + $0x600] sm:$0xff]
    %v4154 = vld [vmem:[%s4106 + $0x610] sm:$0xff]
    %v4155 = vld [vmem:[%s4106 + $0x6c0] sm:$0xff]
    %v4156 = vld [vmem:[%s4106 + $0x6d0] sm:$0xff]
    %v4157 = vld [vmem:[%s4106 + $0x6e0] sm:$0xff]
    %v4158 = vld [vmem:[%s4106 + $0x6f0] sm:$0xff]
    %v4159 = vld [vmem:[%s4106 + $0x700] sm:$0xff]
    %v4160 = vld [vmem:[%s4106 + $0x710] sm:$0xff]
    %v4161 = vld [vmem:[%s4106 + $0x720] sm:$0xff]
    %v4162 = vld [vmem:[%s4106 + $0x730] sm:$0xff]
    %v4163 = vld [vmem:[%s4106 + $0x7e0] sm:$0xff]
    %v4164 = vld [vmem:[%s4106 + $0x7f0] sm:$0xff]
    %v4165 = vld [vmem:[%s4106 + $0x800] sm:$0xff]
    %v4166 = vld [vmem:[%s4106 + $0x810] sm:$0xff]
    %v4167 = vld [vmem:[%s4106 + $0x820] sm:$0xff]
    %v4168 = vld [vmem:[%s4106 + $0x830] sm:$0xff]
    %v4169 = vld [vmem:[%s4106 + $0x840] sm:$0xff]
    %v4170 = vld [vmem:[%s4106 + $0x850] sm:$0xff]
    %v4171 = vpack.c.bf16 %v4108, %v4107
    %v4172 = vpack.c.bf16 %v4110, %v4109
    %v4173 = vpack.c.bf16 %v4112, %v4111
    %v4174 = vpack.c.bf16 %v4114, %v4113
    %v4175 = vpack.c.bf16 %v4116, %v4115
    %v4176 = vpack.c.bf16 %v4118, %v4117
    %v4177 = vpack.c.bf16 %v4120, %v4119
    %v4178 = vpack.c.bf16 %v4122, %v4121
    %v4179 = vpack.c.bf16 %v4124, %v4123
    %v4180 = vpack.c.bf16 %v4126, %v4125
    %v4181 = vpack.c.bf16 %v4128, %v4127
    %v4182 = vpack.c.bf16 %v4130, %v4129
    %v4183 = vpack.c.bf16 %v4132, %v4131
    %v4184 = vpack.c.bf16 %v4134, %v4133
    %v4185 = vpack.c.bf16 %v4136, %v4135
    %v4186 = vpack.c.bf16 %v4138, %v4137
    %v4187 = vpack.c.bf16 %v4140, %v4139
    %v4188 = vpack.c.bf16 %v4142, %v4141
    %v4189 = vpack.c.bf16 %v4144, %v4143
    %v4190 = vpack.c.bf16 %v4146, %v4145
    %v4191 = vpack.c.bf16 %v4148, %v4147
    %v4192 = vpack.c.bf16 %v4150, %v4149
    %v4193 = vpack.c.bf16 %v4152, %v4151
    %v4194 = vpack.c.bf16 %v4154, %v4153
    %v4195 = vpack.c.bf16 %v4156, %v4155
    %v4196 = vpack.c.bf16 %v4158, %v4157
    %v4197 = vpack.c.bf16 %v4160, %v4159
    %v4198 = vpack.c.bf16 %v4162, %v4161
    %v4199 = vpack.c.bf16 %v4164, %v4163
    %v4200 = vpack.c.bf16 %v4166, %v4165
    %v4201 = vpack.c.bf16 %v4168, %v4167
    %v4202 = vpack.c.bf16 %v4170, %v4169
    %s4203 = scalar_lea.vmem [#allocation6], 512
    %v4204 = vld [vmem:[%s4203] sm:$0xf]
    %v4205 = vld [vmem:[%s4203 + $0x4] sm:$0xf]
    %v4206 = vld [vmem:[%s4203 + $0x8] sm:$0xf]
    %v4207 = vld [vmem:[%s4203 + $0xc] sm:$0xf]
    %v4208 = vld [vmem:[%s4203 + $0x10] sm:$0xf]
    %v4209 = vld [vmem:[%s4203 + $0x14] sm:$0xf]
    %v4210 = vld [vmem:[%s4203 + $0x18] sm:$0xf]
    %v4211 = vld [vmem:[%s4203 + $0x1c] sm:$0xf]
    %v4212 = vld [vmem:[%s4203 + $0x20] sm:$0xf]
    %v4213 = vld [vmem:[%s4203 + $0x24] sm:$0xf]
    %v4214 = vld [vmem:[%s4203 + $0x28] sm:$0xf]
    %v4215 = vld [vmem:[%s4203 + $0x2c] sm:$0xf]
    %v4216 = vld [vmem:[%s4203 + $0x30] sm:$0xf]
    %v4217 = vld [vmem:[%s4203 + $0x34] sm:$0xf]
    %v4218 = vld [vmem:[%s4203 + $0x38] sm:$0xf]
    %v4219 = vld [vmem:[%s4203 + $0x3c] sm:$0xf]
    %v4236 = vunpack.c.l.b16 %v4204
    %v4237 = vunpack.c.l.b16 %v4205
    %v4238 = vunpack.c.l.b16 %v4206
    %v4239 = vunpack.c.l.b16 %v4207
    %v4240 = vunpack.c.l.b16 %v4208
    %v4241 = vunpack.c.l.b16 %v4209
    %v4242 = vunpack.c.l.b16 %v4210
    %v4243 = vunpack.c.l.b16 %v4211
    %v4244 = vunpack.c.l.b16 %v4212
    %v4245 = vunpack.c.l.b16 %v4213
    %v4246 = vunpack.c.l.b16 %v4214
    %v4247 = vunpack.c.l.b16 %v4215
    %v4248 = vunpack.c.l.b16 %v4216
    %v4249 = vunpack.c.l.b16 %v4217
    %v4250 = vunpack.c.l.b16 %v4218
    %v4251 = vunpack.c.l.b16 %v4219
    %v4252 = vpack.c.b16 %v4237, %v4236
    %v4253 = vpack.c.b16 %v4239, %v4238
    %v4254 = vpack.c.b16 %v4241, %v4240
    %v4255 = vpack.c.b16 %v4243, %v4242
    %v4256 = vpack.c.b16 %v4245, %v4244
    %v4257 = vpack.c.b16 %v4247, %v4246
    %v4258 = vpack.c.b16 %v4249, %v4248
    %v4259 = vpack.c.b16 %v4251, %v4250
    %4268 = vmatprep.subr.bf16.mxu0 0
    %4269 = vmatpush1.bf16.msra.mxu0 %v4259
    %4270 = vmatprep.subr.bf16.mxu0 0
    %4271 = vmatpush1.bf16.msra.mxu0 %v4258
    %4272 = vmatprep.subr.bf16.mxu0 0
    %4273 = vmatpush1.bf16.msra.mxu0 %v4257
    %4274 = vmatprep.subr.bf16.mxu0 0
    %4275 = vmatpush1.bf16.msra.mxu0 %v4256
    %4276 = vmatprep.subr.bf16.mxu0 0
    %4277 = vmatpush1.bf16.msra.mxu0 %v4255
    %4278 = vmatprep.subr.bf16.mxu0 0
    %4279 = vmatpush1.bf16.msra.mxu0 %v4254
    %4280 = vmatprep.subr.bf16.mxu0 0
    %4281 = vmatpush1.bf16.msra.mxu0 %v4253
    %4282 = vmatprep.subr.bf16.mxu0 0
    %4283 = vmatpush1.bf16.msra.mxu0 %v4252
    %4284 = vmatprep.subr.bf16.mxu0 0
    %4285 = vmatpush2.bf16.msra.mxu0 0
    %4286 = vmatprep.subr.bf16.mxu0 0
    %4287 = vmatpush2.bf16.msra.mxu0 0
    %4288 = vmatprep.subr.bf16.mxu0 0
    %4289 = vmatpush2.bf16.msra.mxu0 0
    %4290 = vmatprep.subr.bf16.mxu0 0
    %4291 = vmatpush2.bf16.msra.mxu0 0
    %4292 = vmatprep.subr.bf16.mxu0 0
    %4293 = vmatpush2.bf16.msra.mxu0 0
    %4294 = vmatprep.subr.bf16.mxu0 0
    %4295 = vmatpush2.bf16.msra.mxu0 0
    %4296 = vmatprep.subr.bf16.mxu0 0
    %4297 = vmatpush2.bf16.msra.mxu0 0
    %4298 = vmatprep.subr.bf16.mxu0 0
    %4299 = vmatpush2.bf16.msra.mxu0 0
    %4300 = vmatprep.mubr.bf16.mxu0 0
    %4301 = vmatmul.mubr.bf16.gmra.mxu0 %v4171
    %v4302 = vpop.f32.mrf.mxu0
    %v4303 = vadd.f32 0.0, %v4302
    %v4304 = vpop.f32.mrf.mxu0
    %v4305 = vpop.f32.mrf.mxu0
    %v4306 = vadd.f32 0.0, %v4305
    %v4307 = vpop.f32.mrf.mxu0
    %4308 = vmatprep.mubr.bf16.mxu0 0
    %4309 = vmatmul.mubr.bf16.gmra.mxu0 %v4172
    %v4310 = vpop.f32.mrf.mxu0
    %v4311 = vadd.f32 0.0, %v4310
    %v4312 = vpop.f32.mrf.mxu0
    %v4313 = vpop.f32.mrf.mxu0
    %v4314 = vadd.f32 0.0, %v4313
    %v4315 = vpop.f32.mrf.mxu0
    %4316 = vmatprep.mubr.bf16.mxu0 0
    %4317 = vmatmul.mubr.bf16.gmra.mxu0 %v4173
    %v4318 = vpop.f32.mrf.mxu0
    %v4319 = vadd.f32 0.0, %v4318
    %v4320 = vpop.f32.mrf.mxu0
    %v4321 = vpop.f32.mrf.mxu0
    %v4322 = vadd.f32 0.0, %v4321
    %v4323 = vpop.f32.mrf.mxu0
    %4324 = vmatprep.mubr.bf16.mxu0 0
    %4325 = vmatmul.mubr.bf16.gmra.mxu0 %v4174
    %v4326 = vpop.f32.mrf.mxu0
    %v4327 = vadd.f32 0.0, %v4326
    %v4328 = vpop.f32.mrf.mxu0
    %v4329 = vpop.f32.mrf.mxu0
    %v4330 = vadd.f32 0.0, %v4329
    %v4331 = vpop.f32.mrf.mxu0
    %4332 = vmatprep.mubr.bf16.mxu0 0
    %4333 = vmatmul.mubr.bf16.gmra.mxu0 %v4175
    %v4334 = vpop.f32.mrf.mxu0
    %v4335 = vadd.f32 0.0, %v4334
    %v4336 = vpop.f32.mrf.mxu0
    %v4337 = vpop.f32.mrf.mxu0
    %v4338 = vadd.f32 0.0, %v4337
    %v4339 = vpop.f32.mrf.mxu0
    %4340 = vmatprep.mubr.bf16.mxu0 0
    %4341 = vmatmul.mubr.bf16.gmra.mxu0 %v4176
    %v4342 = vpop.f32.mrf.mxu0
    %v4343 = vadd.f32 0.0, %v4342
    %v4344 = vpop.f32.mrf.mxu0
    %v4345 = vpop.f32.mrf.mxu0
    %v4346 = vadd.f32 0.0, %v4345
    %v4347 = vpop.f32.mrf.mxu0
    %4348 = vmatprep.mubr.bf16.mxu0 0
    %4349 = vmatmul.mubr.bf16.gmra.mxu0 %v4177
    %v4350 = vpop.f32.mrf.mxu0
    %v4351 = vadd.f32 0.0, %v4350
    %v4352 = vpop.f32.mrf.mxu0
    %v4353 = vpop.f32.mrf.mxu0
    %v4354 = vadd.f32 0.0, %v4353
    %v4355 = vpop.f32.mrf.mxu0
    %4356 = vmatprep.mubr.bf16.mxu0 0
    %4357 = vmatmul.mubr.bf16.gmra.mxu0 %v4178
    %v4358 = vpop.f32.mrf.mxu0
    %v4359 = vadd.f32 0.0, %v4358
    %v4360 = vpop.f32.mrf.mxu0
    %v4361 = vpop.f32.mrf.mxu0
    %v4362 = vadd.f32 0.0, %v4361
    %v4363 = vpop.f32.mrf.mxu0
    %4364 = vmatprep.mubr.bf16.mxu0 0
    %4365 = vmatmul.mubr.bf16.gmra.mxu0 %v4179
    %v4366 = vpop.f32.mrf.mxu0
    %v4367 = vadd.f32 0.0, %v4366
    %v4368 = vpop.f32.mrf.mxu0
    %v4369 = vpop.f32.mrf.mxu0
    %v4370 = vadd.f32 0.0, %v4369
    %v4371 = vpop.f32.mrf.mxu0
    %4372 = vmatprep.mubr.bf16.mxu0 0
    %4373 = vmatmul.mubr.bf16.gmra.mxu0 %v4180
    %v4374 = vpop.f32.mrf.mxu0
    %v4375 = vadd.f32 0.0, %v4374
    %v4376 = vpop.f32.mrf.mxu0
    %v4377 = vpop.f32.mrf.mxu0
    %v4378 = vadd.f32 0.0, %v4377
    %v4379 = vpop.f32.mrf.mxu0
    %4380 = vmatprep.mubr.bf16.mxu0 0
    %4381 = vmatmul.mubr.bf16.gmra.mxu0 %v4181
    %v4382 = vpop.f32.mrf.mxu0
    %v4383 = vadd.f32 0.0, %v4382
    %v4384 = vpop.f32.mrf.mxu0
    %v4385 = vpop.f32.mrf.mxu0
    %v4386 = vadd.f32 0.0, %v4385
    %v4387 = vpop.f32.mrf.mxu0
    %4388 = vmatprep.mubr.bf16.mxu0 0
    %4389 = vmatmul.mubr.bf16.gmra.mxu0 %v4182
    %v4390 = vpop.f32.mrf.mxu0
    %v4391 = vadd.f32 0.0, %v4390
    %v4392 = vpop.f32.mrf.mxu0
    %v4393 = vpop.f32.mrf.mxu0
    %v4394 = vadd.f32 0.0, %v4393
    %v4395 = vpop.f32.mrf.mxu0
    %4396 = vmatprep.mubr.bf16.mxu0 0
    %4397 = vmatmul.mubr.bf16.gmra.mxu0 %v4183
    %v4398 = vpop.f32.mrf.mxu0
    %v4399 = vadd.f32 0.0, %v4398
    %v4400 = vpop.f32.mrf.mxu0
    %v4401 = vpop.f32.mrf.mxu0
    %v4402 = vadd.f32 0.0, %v4401
    %v4403 = vpop.f32.mrf.mxu0
    %4404 = vmatprep.mubr.bf16.mxu0 0
    %4405 = vmatmul.mubr.bf16.gmra.mxu0 %v4184
    %v4406 = vpop.f32.mrf.mxu0
    %v4407 = vadd.f32 0.0, %v4406
    %v4408 = vpop.f32.mrf.mxu0
    %v4409 = vpop.f32.mrf.mxu0
    %v4410 = vadd.f32 0.0, %v4409
    %v4411 = vpop.f32.mrf.mxu0
    %4412 = vmatprep.mubr.bf16.mxu0 0
    %4413 = vmatmul.mubr.bf16.gmra.mxu0 %v4185
    %v4414 = vpop.f32.mrf.mxu0
    %v4415 = vadd.f32 0.0, %v4414
    %v4416 = vpop.f32.mrf.mxu0
    %v4417 = vpop.f32.mrf.mxu0
    %v4418 = vadd.f32 0.0, %v4417
    %v4419 = vpop.f32.mrf.mxu0
    %4420 = vmatprep.mubr.bf16.mxu0 0
    %4421 = vmatmul.mubr.bf16.gmra.mxu0 %v4186
    %v4422 = vpop.f32.mrf.mxu0
    %v4423 = vadd.f32 0.0, %v4422
    %v4424 = vpop.f32.mrf.mxu0
    %v4425 = vpop.f32.mrf.mxu0
    %v4426 = vadd.f32 0.0, %v4425
    %v4427 = vpop.f32.mrf.mxu0
    %4428 = vmatprep.mubr.bf16.mxu0 0
    %4429 = vmatmul.mubr.bf16.gmra.mxu0 %v4187
    %v4430 = vpop.f32.mrf.mxu0
    %v4431 = vadd.f32 0.0, %v4430
    %v4432 = vpop.f32.mrf.mxu0
    %v4433 = vpop.f32.mrf.mxu0
    %v4434 = vadd.f32 0.0, %v4433
    %v4435 = vpop.f32.mrf.mxu0
    %4436 = vmatprep.mubr.bf16.mxu0 0
    %4437 = vmatmul.mubr.bf16.gmra.mxu0 %v4188
    %v4438 = vpop.f32.mrf.mxu0
    %v4439 = vadd.f32 0.0, %v4438
    %v4440 = vpop.f32.mrf.mxu0
    %v4441 = vpop.f32.mrf.mxu0
    %v4442 = vadd.f32 0.0, %v4441
    %v4443 = vpop.f32.mrf.mxu0
    %4444 = vmatprep.mubr.bf16.mxu0 0
    %4445 = vmatmul.mubr.bf16.gmra.mxu0 %v4189
    %v4446 = vpop.f32.mrf.mxu0
    %v4447 = vadd.f32 0.0, %v4446
    %v4448 = vpop.f32.mrf.mxu0
    %v4449 = vpop.f32.mrf.mxu0
    %v4450 = vadd.f32 0.0, %v4449
    %v4451 = vpop.f32.mrf.mxu0
    %4452 = vmatprep.mubr.bf16.mxu0 0
    %4453 = vmatmul.mubr.bf16.gmra.mxu0 %v4190
    %v4454 = vpop.f32.mrf.mxu0
    %v4455 = vadd.f32 0.0, %v4454
    %v4456 = vpop.f32.mrf.mxu0
    %v4457 = vpop.f32.mrf.mxu0
    %v4458 = vadd.f32 0.0, %v4457
    %v4459 = vpop.f32.mrf.mxu0
    %4460 = vmatprep.mubr.bf16.mxu0 0
    %4461 = vmatmul.mubr.bf16.gmra.mxu0 %v4191
    %v4462 = vpop.f32.mrf.mxu0
    %v4463 = vadd.f32 0.0, %v4462
    %v4464 = vpop.f32.mrf.mxu0
    %v4465 = vpop.f32.mrf.mxu0
    %v4466 = vadd.f32 0.0, %v4465
    %v4467 = vpop.f32.mrf.mxu0
    %4468 = vmatprep.mubr.bf16.mxu0 0
    %4469 = vmatmul.mubr.bf16.gmra.mxu0 %v4192
    %v4470 = vpop.f32.mrf.mxu0
    %v4471 = vadd.f32 0.0, %v4470
    %v4472 = vpop.f32.mrf.mxu0
    %v4473 = vpop.f32.mrf.mxu0
    %v4474 = vadd.f32 0.0, %v4473
    %v4475 = vpop.f32.mrf.mxu0
    %4476 = vmatprep.mubr.bf16.mxu0 0
    %4477 = vmatmul.mubr.bf16.gmra.mxu0 %v4193
    %v4478 = vpop.f32.mrf.mxu0
    %v4479 = vadd.f32 0.0, %v4478
    %v4480 = vpop.f32.mrf.mxu0
    %v4481 = vpop.f32.mrf.mxu0
    %v4482 = vadd.f32 0.0, %v4481
    %v4483 = vpop.f32.mrf.mxu0
    %4484 = vmatprep.mubr.bf16.mxu0 0
    %4485 = vmatmul.mubr.bf16.gmra.mxu0 %v4194
    %v4486 = vpop.f32.mrf.mxu0
    %v4487 = vadd.f32 0.0, %v4486
    %v4488 = vpop.f32.mrf.mxu0
    %v4489 = vpop.f32.mrf.mxu0
    %v4490 = vadd.f32 0.0, %v4489
    %v4491 = vpop.f32.mrf.mxu0
    %4492 = vmatprep.mubr.bf16.mxu0 0
    %4493 = vmatmul.mubr.bf16.gmra.mxu0 %v4195
    %v4494 = vpop.f32.mrf.mxu0
    %v4495 = vadd.f32 0.0, %v4494
    %v4496 = vpop.f32.mrf.mxu0
    %v4497 = vpop.f32.mrf.mxu0
    %v4498 = vadd.f32 0.0, %v4497
    %v4499 = vpop.f32.mrf.mxu0
    %4500 = vmatprep.mubr.bf16.mxu0 0
    %4501 = vmatmul.mubr.bf16.gmra.mxu0 %v4196
    %v4502 = vpop.f32.mrf.mxu0
    %v4503 = vadd.f32 0.0, %v4502
    %v4504 = vpop.f32.mrf.mxu0
    %v4505 = vpop.f32.mrf.mxu0
    %v4506 = vadd.f32 0.0, %v4505
    %v4507 = vpop.f32.mrf.mxu0
    %4508 = vmatprep.mubr.bf16.mxu0 0
    %4509 = vmatmul.mubr.bf16.gmra.mxu0 %v4197
    %v4510 = vpop.f32.mrf.mxu0
    %v4511 = vadd.f32 0.0, %v4510
    %v4512 = vpop.f32.mrf.mxu0
    %v4513 = vpop.f32.mrf.mxu0
    %v4514 = vadd.f32 0.0, %v4513
    %v4515 = vpop.f32.mrf.mxu0
    %4516 = vmatprep.mubr.bf16.mxu0 0
    %4517 = vmatmul.mubr.bf16.gmra.mxu0 %v4198
    %v4518 = vpop.f32.mrf.mxu0
    %v4519 = vadd.f32 0.0, %v4518
    %v4520 = vpop.f32.mrf.mxu0
    %v4521 = vpop.f32.mrf.mxu0
    %v4522 = vadd.f32 0.0, %v4521
    %v4523 = vpop.f32.mrf.mxu0
    %4524 = vmatprep.mubr.bf16.mxu0 0
    %4525 = vmatmul.mubr.bf16.gmra.mxu0 %v4199
    %v4526 = vpop.f32.mrf.mxu0
    %v4527 = vadd.f32 0.0, %v4526
    %v4528 = vpop.f32.mrf.mxu0
    %v4529 = vpop.f32.mrf.mxu0
    %v4530 = vadd.f32 0.0, %v4529
    %v4531 = vpop.f32.mrf.mxu0
    %4532 = vmatprep.mubr.bf16.mxu0 0
    %4533 = vmatmul.mubr.bf16.gmra.mxu0 %v4200
    %v4534 = vpop.f32.mrf.mxu0
    %v4535 = vadd.f32 0.0, %v4534
    %v4536 = vpop.f32.mrf.mxu0
    %v4537 = vpop.f32.mrf.mxu0
    %v4538 = vadd.f32 0.0, %v4537
    %v4539 = vpop.f32.mrf.mxu0
    %4540 = vmatprep.mubr.bf16.mxu0 0
    %4541 = vmatmul.mubr.bf16.gmra.mxu0 %v4201
    %v4542 = vpop.f32.mrf.mxu0
    %v4543 = vadd.f32 0.0, %v4542
    %v4544 = vpop.f32.mrf.mxu0
    %v4545 = vpop.f32.mrf.mxu0
    %v4546 = vadd.f32 0.0, %v4545
    %v4547 = vpop.f32.mrf.mxu0
    %4548 = vmatprep.mubr.bf16.mxu0 0
    %4549 = vmatmul.mubr.bf16.gmra.mxu0 %v4202
    %v4550 = vpop.f32.mrf.mxu0
    %v4551 = vadd.f32 0.0, %v4550
    %v4552 = vpop.f32.mrf.mxu0
    %v4553 = vpop.f32.mrf.mxu0
    %v4554 = vadd.f32 0.0, %v4553
    %v4555 = vpop.f32.mrf.mxu0
    %4556 = vdwg.mxu0
    %v4557 = vadd.f32 %v4042, %v4303
    %v4558 = vadd.f32 %v4043, %v4306
    %v4559 = vadd.f32 %v4044, %v4311
    %v4560 = vadd.f32 %v4045, %v4314
    %v4561 = vadd.f32 %v4046, %v4319
    %v4562 = vadd.f32 %v4047, %v4322
    %v4563 = vadd.f32 %v4048, %v4327
    %v4564 = vadd.f32 %v4049, %v4330
    %v4565 = vadd.f32 %v4050, %v4335
    %v4566 = vadd.f32 %v4051, %v4338
    %v4567 = vadd.f32 %v4052, %v4343
    %v4568 = vadd.f32 %v4053, %v4346
    %v4569 = vadd.f32 %v4054, %v4351
    %v4570 = vadd.f32 %v4055, %v4354
    %v4571 = vadd.f32 %v4056, %v4359
    %v4572 = vadd.f32 %v4057, %v4362
    %v4573 = vadd.f32 %v4058, %v4367
    %v4574 = vadd.f32 %v4059, %v4370
    %v4575 = vadd.f32 %v4060, %v4375
    %v4576 = vadd.f32 %v4061, %v4378
    %v4577 = vadd.f32 %v4062, %v4383
    %v4578 = vadd.f32 %v4063, %v4386
    %v4579 = vadd.f32 %v4064, %v4391
    %v4580 = vadd.f32 %v4065, %v4394
    %v4581 = vadd.f32 %v4066, %v4399
    %v4582 = vadd.f32 %v4067, %v4402
    %v4583 = vadd.f32 %v4068, %v4407
    %v4584 = vadd.f32 %v4069, %v4410
    %v4585 = vadd.f32 %v4070, %v4415
    %v4586 = vadd.f32 %v4071, %v4418
    %v4587 = vadd.f32 %v4072, %v4423
    %v4588 = vadd.f32 %v4073, %v4426
    %v4589 = vadd.f32 %v4074, %v4431
    %v4590 = vadd.f32 %v4075, %v4434
    %v4591 = vadd.f32 %v4076, %v4439
    %v4592 = vadd.f32 %v4077, %v4442
    %v4593 = vadd.f32 %v4078, %v4447
    %v4594 = vadd.f32 %v4079, %v4450
    %v4595 = vadd.f32 %v4080, %v4455
    %v4596 = vadd.f32 %v4081, %v4458
    %v4597 = vadd.f32 %v4082, %v4463
    %v4598 = vadd.f32 %v4083, %v4466
    %v4599 = vadd.f32 %v4084, %v4471
    %v4600 = vadd.f32 %v4085, %v4474
    %v4601 = vadd.f32 %v4086, %v4479
    %v4602 = vadd.f32 %v4087, %v4482
    %v4603 = vadd.f32 %v4088, %v4487
    %v4604 = vadd.f32 %v4089, %v4490
    %v4605 = vadd.f32 %v4090, %v4495
    %v4606 = vadd.f32 %v4091, %v4498
    %v4607 = vadd.f32 %v4092, %v4503
    %v4608 = vadd.f32 %v4093, %v4506
    %v4609 = vadd.f32 %v4094, %v4511
    %v4610 = vadd.f32 %v4095, %v4514
    %v4611 = vadd.f32 %v4096, %v4519
    %v4612 = vadd.f32 %v4097, %v4522
    %v4613 = vadd.f32 %v4098, %v4527
    %v4614 = vadd.f32 %v4099, %v4530
    %v4615 = vadd.f32 %v4100, %v4535
    %v4616 = vadd.f32 %v4101, %v4538
    %v4617 = vadd.f32 %v4102, %v4543
    %v4618 = vadd.f32 %v4103, %v4546
    %v4619 = vadd.f32 %v4104, %v4551
    %v4620 = vadd.f32 %v4105, %v4554
    %v4621 = vadd.f32 %v4557, %v4558
    %v4622 = vadd.f32 %v4621, %v4559
    %v4623 = vadd.f32 %v4622, %v4560
    %v4624 = vadd.f32 %v4623, %v4561
    %v4625 = vadd.f32 %v4624, %v4562
    %v4626 = vadd.f32 %v4625, %v4563
    %v4627 = vadd.f32 %v4626, %v4564
    %v4628 = vadd.f32 %v4627, %v4565
    %v4629 = vadd.f32 %v4628, %v4566
    %v4630 = vadd.f32 %v4629, %v4567
    %v4631 = vadd.f32 %v4630, %v4568
    %v4632 = vadd.f32 %v4631, %v4569
    %v4633 = vadd.f32 %v4632, %v4570
    %v4634 = vadd.f32 %v4633, %v4571
    %v4635 = vadd.f32 %v4634, %v4572
    %v4636 = vadd.f32 %v4635, %v4573
    %v4637 = vadd.f32 %v4636, %v4574
    %v4638 = vadd.f32 %v4637, %v4575
    %v4639 = vadd.f32 %v4638, %v4576
    %v4640 = vadd.f32 %v4639, %v4577
    %v4641 = vadd.f32 %v4640, %v4578
    %v4642 = vadd.f32 %v4641, %v4579
    %v4643 = vadd.f32 %v4642, %v4580
    %v4644 = vadd.f32 %v4643, %v4581
    %v4645 = vadd.f32 %v4644, %v4582
    %v4646 = vadd.f32 %v4645, %v4583
    %v4647 = vadd.f32 %v4646, %v4584
    %v4648 = vadd.f32 %v4647, %v4585
    %v4649 = vadd.f32 %v4648, %v4586
    %v4650 = vadd.f32 %v4649, %v4587
    %v4651 = vadd.f32 %v4650, %v4588
    %v4652 = vadd.f32 %v4651, %v4589
    %v4653 = vadd.f32 %v4652, %v4590
    %v4654 = vadd.f32 %v4653, %v4591
    %v4655 = vadd.f32 %v4654, %v4592
    %v4656 = vadd.f32 %v4655, %v4593
    %v4657 = vadd.f32 %v4656, %v4594
    %v4658 = vadd.f32 %v4657, %v4595
    %v4659 = vadd.f32 %v4658, %v4596
    %v4660 = vadd.f32 %v4659, %v4597
    %v4661 = vadd.f32 %v4660, %v4598
    %v4662 = vadd.f32 %v4661, %v4599
    %v4663 = vadd.f32 %v4662, %v4600
    %v4664 = vadd.f32 %v4663, %v4601
    %v4665 = vadd.f32 %v4664, %v4602
    %v4666 = vadd.f32 %v4665, %v4603
    %v4667 = vadd.f32 %v4666, %v4604
    %v4668 = vadd.f32 %v4667, %v4605
    %v4669 = vadd.f32 %v4668, %v4606
    %v4670 = vadd.f32 %v4669, %v4607
    %v4671 = vadd.f32 %v4670, %v4608
    %v4672 = vadd.f32 %v4671, %v4609
    %v4673 = vadd.f32 %v4672, %v4610
    %v4674 = vadd.f32 %v4673, %v4611
    %v4675 = vadd.f32 %v4674, %v4612
    %v4676 = vadd.f32 %v4675, %v4613
    %v4677 = vadd.f32 %v4676, %v4614
    %v4678 = vadd.f32 %v4677, %v4615
    %v4679 = vadd.f32 %v4678, %v4616
    %v4680 = vadd.f32 %v4679, %v4617
    %v4681 = vadd.f32 %v4680, %v4618
    %v4682 = vadd.f32 %v4681, %v4619
    %v4683 = vadd.f32 %v4682, %v4620
    %v4684 = vrot.slane %v4683, 4
    %v4685 = vadd.f32 %v4683, %v4684
    %v4686 = vrot.slane %v4685, 2
    %v4687 = vadd.f32 %v4685, %v4686
    %v4688 = vrot.slane %v4687, 1
    %v4689 = vadd.f32 %v4687, %v4688
    %v4690 = vmul.f32 %v4689, 0.0078125
    %v4691 = vlaneseq
    %v4692 = vshrl.u32 %v4691, 7
    %vm4693 = vcmp.lt.s32.totalorder %v4692, 2
    %v4694 = vsub.f32 %v4557, %v4690
    %v4695 = vsub.f32 %v4558, %v4690
    %v4696 = vsub.f32 %v4559, %v4690
    %v4697 = vsub.f32 %v4560, %v4690
    %v4698 = vsub.f32 %v4561, %v4690
    %v4699 = vsub.f32 %v4562, %v4690
    %v4700 = vsub.f32 %v4563, %v4690
    %v4701 = vsub.f32 %v4564, %v4690
    %v4702 = vsub.f32 %v4565, %v4690
    %v4703 = vsub.f32 %v4566, %v4690
    %v4704 = vsub.f32 %v4567, %v4690
    %v4705 = vsub.f32 %v4568, %v4690
    %v4706 = vsub.f32 %v4569, %v4690
    %v4707 = vsub.f32 %v4570, %v4690
    %v4708 = vsub.f32 %v4571, %v4690
    %v4709 = vsub.f32 %v4572, %v4690
    %v4710 = vsub.f32 %v4573, %v4690
    %v4711 = vsub.f32 %v4574, %v4690
    %v4712 = vsub.f32 %v4575, %v4690
    %v4713 = vsub.f32 %v4576, %v4690
    %v4714 = vsub.f32 %v4577, %v4690
    %v4715 = vsub.f32 %v4578, %v4690
    %v4716 = vsub.f32 %v4579, %v4690
    %v4717 = vsub.f32 %v4580, %v4690
    %v4718 = vsub.f32 %v4581, %v4690
    %v4719 = vsub.f32 %v4582, %v4690
    %v4720 = vsub.f32 %v4583, %v4690
    %v4721 = vsub.f32 %v4584, %v4690
    %v4722 = vsub.f32 %v4585, %v4690
    %v4723 = vsub.f32 %v4586, %v4690
    %v4724 = vsub.f32 %v4587, %v4690
    %v4725 = vsub.f32 %v4588, %v4690
    %v4726 = vsub.f32 %v4589, %v4690
    %v4727 = vsub.f32 %v4590, %v4690
    %v4728 = vsub.f32 %v4591, %v4690
    %v4729 = vsub.f32 %v4592, %v4690
    %v4730 = vsub.f32 %v4593, %v4690
    %v4731 = vsub.f32 %v4594, %v4690
    %v4732 = vsub.f32 %v4595, %v4690
    %v4733 = vsub.f32 %v4596, %v4690
    %v4734 = vsub.f32 %v4597, %v4690
    %v4735 = vsub.f32 %v4598, %v4690
    %v4736 = vsub.f32 %v4599, %v4690
    %v4737 = vsub.f32 %v4600, %v4690
    %v4738 = vsub.f32 %v4601, %v4690
    %v4739 = vsub.f32 %v4602, %v4690
    %v4740 = vsub.f32 %v4603, %v4690
    %v4741 = vsub.f32 %v4604, %v4690
    %v4742 = vsub.f32 %v4605, %v4690
    %v4743 = vsub.f32 %v4606, %v4690
    %v4744 = vsub.f32 %v4607, %v4690
    %v4745 = vsub.f32 %v4608, %v4690
    %v4746 = vsub.f32 %v4609, %v4690
    %v4747 = vsub.f32 %v4610, %v4690
    %v4748 = vsub.f32 %v4611, %v4690
    %v4749 = vsub.f32 %v4612, %v4690
    %v4750 = vsub.f32 %v4613, %v4690
    %v4751 = vsub.f32 %v4614, %v4690
    %v4752 = vsub.f32 %v4615, %v4690
    %v4753 = vsub.f32 %v4616, %v4690
    %v4754 = vsub.f32 %v4617, %v4690
    %v4755 = vsub.f32 %v4618, %v4690
    %v4756 = vsub.f32 %v4619, %v4690
    %v4757 = vsub.f32 %v4620, %v4690
    %v4758 = vsel %vm4693, 1, 0
    %vm4759 = vcmp.eq.s32.totalorder %v4758, 1
    %v4760 = vsel %vm4759, %v4694, 0.0
    %v4761 = vsel %vm4759, %v4695, 0.0
    %v4762 = vsel %vm4759, %v4696, 0.0
    %v4763 = vsel %vm4759, %v4697, 0.0
    %v4764 = vsel %vm4759, %v4698, 0.0
    %v4765 = vsel %vm4759, %v4699, 0.0
    %v4766 = vsel %vm4759, %v4700, 0.0
    %v4767 = vsel %vm4759, %v4701, 0.0
    %v4768 = vsel %vm4759, %v4702, 0.0
    %v4769 = vsel %vm4759, %v4703, 0.0
    %v4770 = vsel %vm4759, %v4704, 0.0
    %v4771 = vsel %vm4759, %v4705, 0.0
    %v4772 = vsel %vm4759, %v4706, 0.0
    %v4773 = vsel %vm4759, %v4707, 0.0
    %v4774 = vsel %vm4759, %v4708, 0.0
    %v4775 = vsel %vm4759, %v4709, 0.0
    %v4776 = vsel %vm4759, %v4710, 0.0
    %v4777 = vsel %vm4759, %v4711, 0.0
    %v4778 = vsel %vm4759, %v4712, 0.0
    %v4779 = vsel %vm4759, %v4713, 0.0
    %v4780 = vsel %vm4759, %v4714, 0.0
    %v4781 = vsel %vm4759, %v4715, 0.0
    %v4782 = vsel %vm4759, %v4716, 0.0
    %v4783 = vsel %vm4759, %v4717, 0.0
    %v4784 = vsel %vm4759, %v4718, 0.0
    %v4785 = vsel %vm4759, %v4719, 0.0
    %v4786 = vsel %vm4759, %v4720, 0.0
    %v4787 = vsel %vm4759, %v4721, 0.0
    %v4788 = vsel %vm4759, %v4722, 0.0
    %v4789 = vsel %vm4759, %v4723, 0.0
    %v4790 = vsel %vm4759, %v4724, 0.0
    %v4791 = vsel %vm4759, %v4725, 0.0
    %v4792 = vsel %vm4759, %v4726, 0.0
    %v4793 = vsel %vm4759, %v4727, 0.0
    %v4794 = vsel %vm4759, %v4728, 0.0
    %v4795 = vsel %vm4759, %v4729, 0.0
    %v4796 = vsel %vm4759, %v4730, 0.0
    %v4797 = vsel %vm4759, %v4731, 0.0
    %v4798 = vsel %vm4759, %v4732, 0.0
    %v4799 = vsel %vm4759, %v4733, 0.0
    %v4800 = vsel %vm4759, %v4734, 0.0
    %v4801 = vsel %vm4759, %v4735, 0.0
    %v4802 = vsel %vm4759, %v4736, 0.0
    %v4803 = vsel %vm4759, %v4737, 0.0
    %v4804 = vsel %vm4759, %v4738, 0.0
    %v4805 = vsel %vm4759, %v4739, 0.0
    %v4806 = vsel %vm4759, %v4740, 0.0
    %v4807 = vsel %vm4759, %v4741, 0.0
    %v4808 = vsel %vm4759, %v4742, 0.0
    %v4809 = vsel %vm4759, %v4743, 0.0
    %v4810 = vsel %vm4759, %v4744, 0.0
    %v4811 = vsel %vm4759, %v4745, 0.0
    %v4812 = vsel %vm4759, %v4746, 0.0
    %v4813 = vsel %vm4759, %v4747, 0.0
    %v4814 = vsel %vm4759, %v4748, 0.0
    %v4815 = vsel %vm4759, %v4749, 0.0
    %v4816 = vsel %vm4759, %v4750, 0.0
    %v4817 = vsel %vm4759, %v4751, 0.0
    %v4818 = vsel %vm4759, %v4752, 0.0
    %v4819 = vsel %vm4759, %v4753, 0.0
    %v4820 = vsel %vm4759, %v4754, 0.0
    %v4821 = vsel %vm4759, %v4755, 0.0
    %v4822 = vsel %vm4759, %v4756, 0.0
    %v4823 = vsel %vm4759, %v4757, 0.0
    %v4824 = vmul.f32 %v4760, %v4760
    %v4825 = vmul.f32 %v4761, %v4761
    %v4826 = vmul.f32 %v4762, %v4762
    %v4827 = vmul.f32 %v4763, %v4763
    %v4828 = vmul.f32 %v4764, %v4764
    %v4829 = vmul.f32 %v4765, %v4765
    %v4830 = vmul.f32 %v4766, %v4766
    %v4831 = vmul.f32 %v4767, %v4767
    %v4832 = vmul.f32 %v4768, %v4768
    %v4833 = vmul.f32 %v4769, %v4769
    %v4834 = vmul.f32 %v4770, %v4770
    %v4835 = vmul.f32 %v4771, %v4771
    %v4836 = vmul.f32 %v4772, %v4772
    %v4837 = vmul.f32 %v4773, %v4773
    %v4838 = vmul.f32 %v4774, %v4774
    %v4839 = vmul.f32 %v4775, %v4775
    %v4840 = vmul.f32 %v4776, %v4776
    %v4841 = vmul.f32 %v4777, %v4777
    %v4842 = vmul.f32 %v4778, %v4778
    %v4843 = vmul.f32 %v4779, %v4779
    %v4844 = vmul.f32 %v4780, %v4780
    %v4845 = vmul.f32 %v4781, %v4781
    %v4846 = vmul.f32 %v4782, %v4782
    %v4847 = vmul.f32 %v4783, %v4783
    %v4848 = vmul.f32 %v4784, %v4784
    %v4849 = vmul.f32 %v4785, %v4785
    %v4850 = vmul.f32 %v4786, %v4786
    %v4851 = vmul.f32 %v4787, %v4787
    %v4852 = vmul.f32 %v4788, %v4788
    %v4853 = vmul.f32 %v4789, %v4789
    %v4854 = vmul.f32 %v4790, %v4790
    %v4855 = vmul.f32 %v4791, %v4791
    %v4856 = vmul.f32 %v4792, %v4792
    %v4857 = vmul.f32 %v4793, %v4793
    %v4858 = vmul.f32 %v4794, %v4794
    %v4859 = vmul.f32 %v4795, %v4795
    %v4860 = vmul.f32 %v4796, %v4796
    %v4861 = vmul.f32 %v4797, %v4797
    %v4862 = vmul.f32 %v4798, %v4798
    %v4863 = vmul.f32 %v4799, %v4799
    %v4864 = vmul.f32 %v4800, %v4800
    %v4865 = vmul.f32 %v4801, %v4801
    %v4866 = vmul.f32 %v4802, %v4802
    %v4867 = vmul.f32 %v4803, %v4803
    %v4868 = vmul.f32 %v4804, %v4804
    %v4869 = vmul.f32 %v4805, %v4805
    %v4870 = vmul.f32 %v4806, %v4806
    %v4871 = vmul.f32 %v4807, %v4807
    %v4872 = vmul.f32 %v4808, %v4808
    %v4873 = vmul.f32 %v4809, %v4809
    %v4874 = vmul.f32 %v4810, %v4810
    %v4875 = vmul.f32 %v4811, %v4811
    %v4876 = vmul.f32 %v4812, %v4812
    %v4877 = vmul.f32 %v4813, %v4813
    %v4878 = vmul.f32 %v4814, %v4814
    %v4879 = vmul.f32 %v4815, %v4815
    %v4880 = vmul.f32 %v4816, %v4816
    %v4881 = vmul.f32 %v4817, %v4817
    %v4882 = vmul.f32 %v4818, %v4818
    %v4883 = vmul.f32 %v4819, %v4819
    %v4884 = vmul.f32 %v4820, %v4820
    %v4885 = vmul.f32 %v4821, %v4821
    %v4886 = vmul.f32 %v4822, %v4822
    %v4887 = vmul.f32 %v4823, %v4823
    %v4888 = vadd.f32 %v4824, %v4825
    %v4889 = vadd.f32 %v4888, %v4826
    %v4890 = vadd.f32 %v4889, %v4827
    %v4891 = vadd.f32 %v4890, %v4828
    %v4892 = vadd.f32 %v4891, %v4829
    %v4893 = vadd.f32 %v4892, %v4830
    %v4894 = vadd.f32 %v4893, %v4831
    %v4895 = vadd.f32 %v4894, %v4832
    %v4896 = vadd.f32 %v4895, %v4833
    %v4897 = vadd.f32 %v4896, %v4834
    %v4898 = vadd.f32 %v4897, %v4835
    %v4899 = vadd.f32 %v4898, %v4836
    %v4900 = vadd.f32 %v4899, %v4837
    %v4901 = vadd.f32 %v4900, %v4838
    %v4902 = vadd.f32 %v4901, %v4839
    %v4903 = vadd.f32 %v4902, %v4840
    %v4904 = vadd.f32 %v4903, %v4841
    %v4905 = vadd.f32 %v4904, %v4842
    %v4906 = vadd.f32 %v4905, %v4843
    %v4907 = vadd.f32 %v4906, %v4844
    %v4908 = vadd.f32 %v4907, %v4845
    %v4909 = vadd.f32 %v4908, %v4846
    %v4910 = vadd.f32 %v4909, %v4847
    %v4911 = vadd.f32 %v4910, %v4848
    %v4912 = vadd.f32 %v4911, %v4849
    %v4913 = vadd.f32 %v4912, %v4850
    %v4914 = vadd.f32 %v4913, %v4851
    %v4915 = vadd.f32 %v4914, %v4852
    %v4916 = vadd.f32 %v4915, %v4853
    %v4917 = vadd.f32 %v4916, %v4854
    %v4918 = vadd.f32 %v4917, %v4855
    %v4919 = vadd.f32 %v4918, %v4856
    %v4920 = vadd.f32 %v4919, %v4857
    %v4921 = vadd.f32 %v4920, %v4858
    %v4922 = vadd.f32 %v4921, %v4859
    %v4923 = vadd.f32 %v4922, %v4860
    %v4924 = vadd.f32 %v4923, %v4861
    %v4925 = vadd.f32 %v4924, %v4862
    %v4926 = vadd.f32 %v4925, %v4863
    %v4927 = vadd.f32 %v4926, %v4864
    %v4928 = vadd.f32 %v4927, %v4865
    %v4929 = vadd.f32 %v4928, %v4866
    %v4930 = vadd.f32 %v4929, %v4867
    %v4931 = vadd.f32 %v4930, %v4868
    %v4932 = vadd.f32 %v4931, %v4869
    %v4933 = vadd.f32 %v4932, %v4870
    %v4934 = vadd.f32 %v4933, %v4871
    %v4935 = vadd.f32 %v4934, %v4872
    %v4936 = vadd.f32 %v4935, %v4873
    %v4937 = vadd.f32 %v4936, %v4874
    %v4938 = vadd.f32 %v4937, %v4875
    %v4939 = vadd.f32 %v4938, %v4876
    %v4940 = vadd.f32 %v4939, %v4877
    %v4941 = vadd.f32 %v4940, %v4878
    %v4942 = vadd.f32 %v4941, %v4879
    %v4943 = vadd.f32 %v4942, %v4880
    %v4944 = vadd.f32 %v4943, %v4881
    %v4945 = vadd.f32 %v4944, %v4882
    %v4946 = vadd.f32 %v4945, %v4883
    %v4947 = vadd.f32 %v4946, %v4884
    %v4948 = vadd.f32 %v4947, %v4885
    %v4949 = vadd.f32 %v4948, %v4886
    %v4950 = vadd.f32 %v4949, %v4887
    %v4951 = vrot.slane %v4950, 4
    %v4952 = vadd.f32 %v4950, %v4951
    %v4953 = vrot.slane %v4952, 2
    %v4954 = vadd.f32 %v4952, %v4953
    %v4955 = vrot.slane %v4954, 1
    %v4956 = vadd.f32 %v4954, %v4955
    %v4957 = vmul.f32 %v4956, 0.0078125
    %v4958 = vld [vmem:[#allocation8] sm:$0x1]
    %v4959 = vadd.f32 %v4957, 1e-05
    %v4960 = vrsqrt.pop %v4959
    %v4961 = vmul.f32 %v4958, %v4960
    %v4963 = vlaneseq
    %v4964 = vshrl.u32 %v4963, 7
    %v4965 = vsub.s32 0, %v4964
    %v4966 = vrot.slane %v4961, %v4965
    %v4968 = vmul.f32 %v4760, %v4966
    %v4969 = vmul.f32 %v4761, %v4966
    %v4970 = vmul.f32 %v4762, %v4966
    %v4971 = vmul.f32 %v4763, %v4966
    %v4972 = vmul.f32 %v4764, %v4966
    %v4973 = vmul.f32 %v4765, %v4966
    %v4974 = vmul.f32 %v4766, %v4966
    %v4975 = vmul.f32 %v4767, %v4966
    %v4976 = vmul.f32 %v4768, %v4966
    %v4977 = vmul.f32 %v4769, %v4966
    %v4978 = vmul.f32 %v4770, %v4966
    %v4979 = vmul.f32 %v4771, %v4966
    %v4980 = vmul.f32 %v4772, %v4966
    %v4981 = vmul.f32 %v4773, %v4966
    %v4982 = vmul.f32 %v4774, %v4966
    %v4983 = vmul.f32 %v4775, %v4966
    %v4984 = vmul.f32 %v4776, %v4966
    %v4985 = vmul.f32 %v4777, %v4966
    %v4986 = vmul.f32 %v4778, %v4966
    %v4987 = vmul.f32 %v4779, %v4966
    %v4988 = vmul.f32 %v4780, %v4966
    %v4989 = vmul.f32 %v4781, %v4966
    %v4990 = vmul.f32 %v4782, %v4966
    %v4991 = vmul.f32 %v4783, %v4966
    %v4992 = vmul.f32 %v4784, %v4966
    %v4993 = vmul.f32 %v4785, %v4966
    %v4994 = vmul.f32 %v4786, %v4966
    %v4995 = vmul.f32 %v4787, %v4966
    %v4996 = vmul.f32 %v4788, %v4966
    %v4997 = vmul.f32 %v4789, %v4966
    %v4998 = vmul.f32 %v4790, %v4966
    %v4999 = vmul.f32 %v4791, %v4966
    %v5000 = vmul.f32 %v4792, %v4966
    %v5001 = vmul.f32 %v4793, %v4966
    %v5002 = vmul.f32 %v4794, %v4966
    %v5003 = vmul.f32 %v4795, %v4966
    %v5004 = vmul.f32 %v4796, %v4966
    %v5005 = vmul.f32 %v4797, %v4966
    %v5006 = vmul.f32 %v4798, %v4966
    %v5007 = vmul.f32 %v4799, %v4966
    %v5008 = vmul.f32 %v4800, %v4966
    %v5009 = vmul.f32 %v4801, %v4966
    %v5010 = vmul.f32 %v4802, %v4966
    %v5011 = vmul.f32 %v4803, %v4966
    %v5012 = vmul.f32 %v4804, %v4966
    %v5013 = vmul.f32 %v4805, %v4966
    %v5014 = vmul.f32 %v4806, %v4966
    %v5015 = vmul.f32 %v4807, %v4966
    %v5016 = vmul.f32 %v4808, %v4966
    %v5017 = vmul.f32 %v4809, %v4966
    %v5018 = vmul.f32 %v4810, %v4966
    %v5019 = vmul.f32 %v4811, %v4966
    %v5020 = vmul.f32 %v4812, %v4966
    %v5021 = vmul.f32 %v4813, %v4966
    %v5022 = vmul.f32 %v4814, %v4966
    %v5023 = vmul.f32 %v4815, %v4966
    %v5024 = vmul.f32 %v4816, %v4966
    %v5025 = vmul.f32 %v4817, %v4966
    %v5026 = vmul.f32 %v4818, %v4966
    %v5027 = vmul.f32 %v4819, %v4966
    %v5028 = vmul.f32 %v4820, %v4966
    %v5029 = vmul.f32 %v4821, %v4966
    %v5030 = vmul.f32 %v4822, %v4966
    %v5031 = vmul.f32 %v4823, %v4966
    %v5032 = vld [vmem:[#allocation9] sm:$0x1]
    %v5034 = vlaneseq
    %v5035 = vshrl.u32 %v5034, 7
    %v5036 = vsub.s32 0, %v5035
    %v5037 = vrot.slane %v5032, %v5036
    %v5039 = vadd.f32 %v4968, %v5037
    %v5040 = vadd.f32 %v4969, %v5037
    %v5041 = vadd.f32 %v4970, %v5037
    %v5042 = vadd.f32 %v4971, %v5037
    %v5043 = vadd.f32 %v4972, %v5037
    %v5044 = vadd.f32 %v4973, %v5037
    %v5045 = vadd.f32 %v4974, %v5037
    %v5046 = vadd.f32 %v4975, %v5037
    %v5047 = vadd.f32 %v4976, %v5037
    %v5048 = vadd.f32 %v4977, %v5037
    %v5049 = vadd.f32 %v4978, %v5037
    %v5050 = vadd.f32 %v4979, %v5037
    %v5051 = vadd.f32 %v4980, %v5037
    %v5052 = vadd.f32 %v4981, %v5037
    %v5053 = vadd.f32 %v4982, %v5037
    %v5054 = vadd.f32 %v4983, %v5037
    %v5055 = vadd.f32 %v4984, %v5037
    %v5056 = vadd.f32 %v4985, %v5037
    %v5057 = vadd.f32 %v4986, %v5037
    %v5058 = vadd.f32 %v4987, %v5037
    %v5059 = vadd.f32 %v4988, %v5037
    %v5060 = vadd.f32 %v4989, %v5037
    %v5061 = vadd.f32 %v4990, %v5037
    %v5062 = vadd.f32 %v4991, %v5037
    %v5063 = vadd.f32 %v4992, %v5037
    %v5064 = vadd.f32 %v4993, %v5037
    %v5065 = vadd.f32 %v4994, %v5037
    %v5066 = vadd.f32 %v4995, %v5037
    %v5067 = vadd.f32 %v4996, %v5037
    %v5068 = vadd.f32 %v4997, %v5037
    %v5069 = vadd.f32 %v4998, %v5037
    %v5070 = vadd.f32 %v4999, %v5037
    %v5071 = vadd.f32 %v5000, %v5037
    %v5072 = vadd.f32 %v5001, %v5037
    %v5073 = vadd.f32 %v5002, %v5037
    %v5074 = vadd.f32 %v5003, %v5037
    %v5075 = vadd.f32 %v5004, %v5037
    %v5076 = vadd.f32 %v5005, %v5037
    %v5077 = vadd.f32 %v5006, %v5037
    %v5078 = vadd.f32 %v5007, %v5037
    %v5079 = vadd.f32 %v5008, %v5037
    %v5080 = vadd.f32 %v5009, %v5037
    %v5081 = vadd.f32 %v5010, %v5037
    %v5082 = vadd.f32 %v5011, %v5037
    %v5083 = vadd.f32 %v5012, %v5037
    %v5084 = vadd.f32 %v5013, %v5037
    %v5085 = vadd.f32 %v5014, %v5037
    %v5086 = vadd.f32 %v5015, %v5037
    %v5087 = vadd.f32 %v5016, %v5037
    %v5088 = vadd.f32 %v5017, %v5037
    %v5089 = vadd.f32 %v5018, %v5037
    %v5090 = vadd.f32 %v5019, %v5037
    %v5091 = vadd.f32 %v5020, %v5037
    %v5092 = vadd.f32 %v5021, %v5037
    %v5093 = vadd.f32 %v5022, %v5037
    %v5094 = vadd.f32 %v5023, %v5037
    %v5095 = vadd.f32 %v5024, %v5037
    %v5096 = vadd.f32 %v5025, %v5037
    %v5097 = vadd.f32 %v5026, %v5037
    %v5098 = vadd.f32 %v5027, %v5037
    %v5099 = vadd.f32 %v5028, %v5037
    %v5100 = vadd.f32 %v5029, %v5037
    %v5101 = vadd.f32 %v5030, %v5037
    %v5102 = vadd.f32 %v5031, %v5037
    %v5103 = vmax.f32 %v5039, 0.0
    %v5104 = vmax.f32 %v5040, 0.0
    %v5105 = vmax.f32 %v5041, 0.0
    %v5106 = vmax.f32 %v5042, 0.0
    %v5107 = vmax.f32 %v5043, 0.0
    %v5108 = vmax.f32 %v5044, 0.0
    %v5109 = vmax.f32 %v5045, 0.0
    %v5110 = vmax.f32 %v5046, 0.0
    %v5111 = vmax.f32 %v5047, 0.0
    %v5112 = vmax.f32 %v5048, 0.0
    %v5113 = vmax.f32 %v5049, 0.0
    %v5114 = vmax.f32 %v5050, 0.0
    %v5115 = vmax.f32 %v5051, 0.0
    %v5116 = vmax.f32 %v5052, 0.0
    %v5117 = vmax.f32 %v5053, 0.0
    %v5118 = vmax.f32 %v5054, 0.0
    %v5119 = vmax.f32 %v5055, 0.0
    %v5120 = vmax.f32 %v5056, 0.0
    %v5121 = vmax.f32 %v5057, 0.0
    %v5122 = vmax.f32 %v5058, 0.0
    %v5123 = vmax.f32 %v5059, 0.0
    %v5124 = vmax.f32 %v5060, 0.0
    %v5125 = vmax.f32 %v5061, 0.0
    %v5126 = vmax.f32 %v5062, 0.0
    %v5127 = vmax.f32 %v5063, 0.0
    %v5128 = vmax.f32 %v5064, 0.0
    %v5129 = vmax.f32 %v5065, 0.0
    %v5130 = vmax.f32 %v5066, 0.0
    %v5131 = vmax.f32 %v5067, 0.0
    %v5132 = vmax.f32 %v5068, 0.0
    %v5133 = vmax.f32 %v5069, 0.0
    %v5134 = vmax.f32 %v5070, 0.0
    %v5135 = vmax.f32 %v5071, 0.0
    %v5136 = vmax.f32 %v5072, 0.0
    %v5137 = vmax.f32 %v5073, 0.0
    %v5138 = vmax.f32 %v5074, 0.0
    %v5139 = vmax.f32 %v5075, 0.0
    %v5140 = vmax.f32 %v5076, 0.0
    %v5141 = vmax.f32 %v5077, 0.0
    %v5142 = vmax.f32 %v5078, 0.0
    %v5143 = vmax.f32 %v5079, 0.0
    %v5144 = vmax.f32 %v5080, 0.0
    %v5145 = vmax.f32 %v5081, 0.0
    %v5146 = vmax.f32 %v5082, 0.0
    %v5147 = vmax.f32 %v5083, 0.0
    %v5148 = vmax.f32 %v5084, 0.0
    %v5149 = vmax.f32 %v5085, 0.0
    %v5150 = vmax.f32 %v5086, 0.0
    %v5151 = vmax.f32 %v5087, 0.0
    %v5152 = vmax.f32 %v5088, 0.0
    %v5153 = vmax.f32 %v5089, 0.0
    %v5154 = vmax.f32 %v5090, 0.0
    %v5155 = vmax.f32 %v5091, 0.0
    %v5156 = vmax.f32 %v5092, 0.0
    %v5157 = vmax.f32 %v5093, 0.0
    %v5158 = vmax.f32 %v5094, 0.0
    %v5159 = vmax.f32 %v5095, 0.0
    %v5160 = vmax.f32 %v5096, 0.0
    %v5161 = vmax.f32 %v5097, 0.0
    %v5162 = vmax.f32 %v5098, 0.0
    %v5163 = vmax.f32 %v5099, 0.0
    %v5164 = vmax.f32 %v5100, 0.0
    %v5165 = vmax.f32 %v5101, 0.0
    %v5166 = vmax.f32 %v5102, 0.0
    %v5167 = vsel %vm4759, %v5103, 0.0
    %v5168 = vsel %vm4759, %v5104, 0.0
    %v5169 = vsel %vm4759, %v5105, 0.0
    %v5170 = vsel %vm4759, %v5106, 0.0
    %v5171 = vsel %vm4759, %v5107, 0.0
    %v5172 = vsel %vm4759, %v5108, 0.0
    %v5173 = vsel %vm4759, %v5109, 0.0
    %v5174 = vsel %vm4759, %v5110, 0.0
    %v5175 = vsel %vm4759, %v5111, 0.0
    %v5176 = vsel %vm4759, %v5112, 0.0
    %v5177 = vsel %vm4759, %v5113, 0.0
    %v5178 = vsel %vm4759, %v5114, 0.0
    %v5179 = vsel %vm4759, %v5115, 0.0
    %v5180 = vsel %vm4759, %v5116, 0.0
    %v5181 = vsel %vm4759, %v5117, 0.0
    %v5182 = vsel %vm4759, %v5118, 0.0
    %v5183 = vsel %vm4759, %v5119, 0.0
    %v5184 = vsel %vm4759, %v5120, 0.0
    %v5185 = vsel %vm4759, %v5121, 0.0
    %v5186 = vsel %vm4759, %v5122, 0.0
    %v5187 = vsel %vm4759, %v5123, 0.0
    %v5188 = vsel %vm4759, %v5124, 0.0
    %v5189 = vsel %vm4759, %v5125, 0.0
    %v5190 = vsel %vm4759, %v5126, 0.0
    %v5191 = vsel %vm4759, %v5127, 0.0
    %v5192 = vsel %vm4759, %v5128, 0.0
    %v5193 = vsel %vm4759, %v5129, 0.0
    %v5194 = vsel %vm4759, %v5130, 0.0
    %v5195 = vsel %vm4759, %v5131, 0.0
    %v5196 = vsel %vm4759, %v5132, 0.0
    %v5197 = vsel %vm4759, %v5133, 0.0
    %v5198 = vsel %vm4759, %v5134, 0.0
    %v5199 = vsel %vm4759, %v5135, 0.0
    %v5200 = vsel %vm4759, %v5136, 0.0
    %v5201 = vsel %vm4759, %v5137, 0.0
    %v5202 = vsel %vm4759, %v5138, 0.0
    %v5203 = vsel %vm4759, %v5139, 0.0
    %v5204 = vsel %vm4759, %v5140, 0.0
    %v5205 = vsel %vm4759, %v5141, 0.0
    %v5206 = vsel %vm4759, %v5142, 0.0
    %v5207 = vsel %vm4759, %v5143, 0.0
    %v5208 = vsel %vm4759, %v5144, 0.0
    %v5209 = vsel %vm4759, %v5145, 0.0
    %v5210 = vsel %vm4759, %v5146, 0.0
    %v5211 = vsel %vm4759, %v5147, 0.0
    %v5212 = vsel %vm4759, %v5148, 0.0
    %v5213 = vsel %vm4759, %v5149, 0.0
    %v5214 = vsel %vm4759, %v5150, 0.0
    %v5215 = vsel %vm4759, %v5151, 0.0
    %v5216 = vsel %vm4759, %v5152, 0.0
    %v5217 = vsel %vm4759, %v5153, 0.0
    %v5218 = vsel %vm4759, %v5154, 0.0
    %v5219 = vsel %vm4759, %v5155, 0.0
    %v5220 = vsel %vm4759, %v5156, 0.0
    %v5221 = vsel %vm4759, %v5157, 0.0
    %v5222 = vsel %vm4759, %v5158, 0.0
    %v5223 = vsel %vm4759, %v5159, 0.0
    %v5224 = vsel %vm4759, %v5160, 0.0
    %v5225 = vsel %vm4759, %v5161, 0.0
    %v5226 = vsel %vm4759, %v5162, 0.0
    %v5227 = vsel %vm4759, %v5163, 0.0
    %v5228 = vsel %vm4759, %v5164, 0.0
    %v5229 = vsel %vm4759, %v5165, 0.0
    %v5230 = vsel %vm4759, %v5166, 0.0
    %5231 = vst [vmem:[#allocation2] sm:$0xff] 0.0
    %5232 = vst [vmem:[#allocation2 + $0x8] sm:$0xff] 0.0
    %5233 = vst [vmem:[#allocation2 + $0x10] sm:$0xff] 0.0
    %5234 = vst [vmem:[#allocation2 + $0x18] sm:$0xff] 0.0
    %5235 = vst [vmem:[#allocation2 + $0x20] sm:$0xff] 0.0
    %5236 = vst [vmem:[#allocation2 + $0x28] sm:$0xff] 0.0
    %5237 = vst [vmem:[#allocation2 + $0x30] sm:$0xff] 0.0
    %5238 = vst [vmem:[#allocation2 + $0x38] sm:$0xff] 0.0
    %5239 = vst [vmem:[#allocation2 + $0x40] sm:$0xff] 0.0
    %5240 = vst [vmem:[#allocation2 + $0x48] sm:$0xff] 0.0
    %5241 = vst [vmem:[#allocation2 + $0x50] sm:$0xff] 0.0
    %5242 = vst [vmem:[#allocation2 + $0x58] sm:$0xff] 0.0
    %5243 = vst [vmem:[#allocation2 + $0x60] sm:$0xff] 0.0
    %5244 = vst [vmem:[#allocation2 + $0x68] sm:$0xff] 0.0
    %5245 = vst [vmem:[#allocation2 + $0x70] sm:$0xff] 0.0
    %5246 = vst [vmem:[#allocation2 + $0x78] sm:$0xff] 0.0
    %5247 = vst [vmem:[#allocation2 + $0x80] sm:$0xff] 0.0
    %5248 = vst [vmem:[#allocation2 + $0x88] sm:$0xff] 0.0
    %5249 = vst [vmem:[#allocation2 + $0x90] sm:$0xff] 0.0
    %5250 = vst [vmem:[#allocation2 + $0x98] sm:$0xff] 0.0
    %5251 = vst [vmem:[#allocation2 + $0xa0] sm:$0xff] 0.0
    %5252 = vst [vmem:[#allocation2 + $0xa8] sm:$0xff] 0.0
    %5253 = vst [vmem:[#allocation2 + $0xb0] sm:$0xff] 0.0
    %5254 = vst [vmem:[#allocation2 + $0xb8] sm:$0xff] 0.0
    %5255 = vst [vmem:[#allocation2 + $0xc0] sm:$0xff] 0.0
    %5256 = vst [vmem:[#allocation2 + $0xc8] sm:$0xff] 0.0
    %5257 = vst [vmem:[#allocation2 + $0xd0] sm:$0xff] 0.0
    %5258 = vst [vmem:[#allocation2 + $0xd8] sm:$0xff] 0.0
    %5259 = vst [vmem:[#allocation2 + $0xe0] sm:$0xff] 0.0
    %5260 = vst [vmem:[#allocation2 + $0xe8] sm:$0xff] 0.0
    %5261 = vst [vmem:[#allocation2 + $0xf0] sm:$0xff] 0.0
    %5262 = vst [vmem:[#allocation2 + $0xf8] sm:$0xff] 0.0
    %5263 = vst [vmem:[#allocation2 + $0x100] sm:$0xff] 0.0
    %5264 = vst [vmem:[#allocation2 + $0x108] sm:$0xff] 0.0
    %5265 = vst [vmem:[#allocation2 + $0x110] sm:$0xff] 0.0
    %5266 = vst [vmem:[#allocation2 + $0x118] sm:$0xff] 0.0
    %5267 = vst [vmem:[#allocation2 + $0x120] sm:$0xff] 0.0
    %5268 = vst [vmem:[#allocation2 + $0x128] sm:$0xff] 0.0
    %5269 = vst [vmem:[#allocation2 + $0x130] sm:$0xff] 0.0
    %5270 = vst [vmem:[#allocation2 + $0x138] sm:$0xff] 0.0
    %5271 = vst [vmem:[#allocation2 + $0x140] sm:$0xff] 0.0
    %5272 = vst [vmem:[#allocation2 + $0x148] sm:$0xff] 0.0
    %5273 = vst [vmem:[#allocation2 + $0x150] sm:$0xff] 0.0
    %5274 = vst [vmem:[#allocation2 + $0x158] sm:$0xff] 0.0
    %5275 = vst [vmem:[#allocation2 + $0x160] sm:$0xff] 0.0
    %5276 = vst [vmem:[#allocation2 + $0x168] sm:$0xff] 0.0
    %5277 = vst [vmem:[#allocation2 + $0x170] sm:$0xff] 0.0
    %5278 = vst [vmem:[#allocation2 + $0x178] sm:$0xff] 0.0
    %5279 = vst [vmem:[#allocation2 + $0x180] sm:$0xff] 0.0
    %5280 = vst [vmem:[#allocation2 + $0x188] sm:$0xff] 0.0
    %5281 = vst [vmem:[#allocation2 + $0x190] sm:$0xff] 0.0
    %5282 = vst [vmem:[#allocation2 + $0x198] sm:$0xff] 0.0
    %5283 = vst [vmem:[#allocation2 + $0x1a0] sm:$0xff] 0.0
    %5284 = vst [vmem:[#allocation2 + $0x1a8] sm:$0xff] 0.0
    %5285 = vst [vmem:[#allocation2 + $0x1b0] sm:$0xff] 0.0
    %5286 = vst [vmem:[#allocation2 + $0x1b8] sm:$0xff] 0.0
    %5287 = vst [vmem:[#allocation2 + $0x1c0] sm:$0xff] 0.0
    %5288 = vst [vmem:[#allocation2 + $0x1c8] sm:$0xff] 0.0
    %5289 = vst [vmem:[#allocation2 + $0x1d0] sm:$0xff] 0.0
    %5290 = vst [vmem:[#allocation2 + $0x1d8] sm:$0xff] 0.0
    %5291 = vst [vmem:[#allocation2 + $0x1e0] sm:$0xff] 0.0
    %5292 = vst [vmem:[#allocation2 + $0x1e8] sm:$0xff] 0.0
    %5293 = vst [vmem:[#allocation2 + $0x1f0] sm:$0xff] 0.0
    %5294 = vst [vmem:[#allocation2 + $0x1f8] sm:$0xff] 0.0
    %5295 = vst [vmem:[#allocation2 + $0x200] sm:$0xff] 0.0
    %5296 = vst [vmem:[#allocation2 + $0x208] sm:$0xff] 0.0
    %5297 = vst [vmem:[#allocation2 + $0x210] sm:$0xff] 0.0
    %5298 = vst [vmem:[#allocation2 + $0x218] sm:$0xff] 0.0
    %5299 = vst [vmem:[#allocation2 + $0x220] sm:$0xff] 0.0
    %5300 = vst [vmem:[#allocation2 + $0x228] sm:$0xff] 0.0
    %5301 = vst [vmem:[#allocation2 + $0x230] sm:$0xff] 0.0
    %5302 = vst [vmem:[#allocation2 + $0x238] sm:$0xff] 0.0
    %5303 = vst [vmem:[#allocation2 + $0x240] sm:$0xff] 0.0
    %5304 = vst [vmem:[#allocation2 + $0x248] sm:$0xff] 0.0
    %5305 = vst [vmem:[#allocation2 + $0x250] sm:$0xff] 0.0
    %5306 = vst [vmem:[#allocation2 + $0x258] sm:$0xff] 0.0
    %5307 = vst [vmem:[#allocation2 + $0x260] sm:$0xff] 0.0
    %5308 = vst [vmem:[#allocation2 + $0x268] sm:$0xff] 0.0
    %5309 = vst [vmem:[#allocation2 + $0x270] sm:$0xff] 0.0
    %5310 = vst [vmem:[#allocation2 + $0x278] sm:$0xff] 0.0
    %5311 = vst [vmem:[#allocation2 + $0x280] sm:$0xff] 0.0
    %5312 = vst [vmem:[#allocation2 + $0x288] sm:$0xff] 0.0
    %5313 = vst [vmem:[#allocation2 + $0x290] sm:$0xff] 0.0
    %5314 = vst [vmem:[#allocation2 + $0x298] sm:$0xff] 0.0
    %5315 = vst [vmem:[#allocation2 + $0x2a0] sm:$0xff] 0.0
    %5316 = vst [vmem:[#allocation2 + $0x2a8] sm:$0xff] 0.0
    %5317 = vst [vmem:[#allocation2 + $0x2b0] sm:$0xff] 0.0
    %5318 = vst [vmem:[#allocation2 + $0x2b8] sm:$0xff] 0.0
    %5319 = vst [vmem:[#allocation2 + $0x2c0] sm:$0xff] 0.0
    %5320 = vst [vmem:[#allocation2 + $0x2c8] sm:$0xff] 0.0
    %5321 = vst [vmem:[#allocation2 + $0x2d0] sm:$0xff] 0.0
    %5322 = vst [vmem:[#allocation2 + $0x2d8] sm:$0xff] 0.0
    %5323 = vst [vmem:[#allocation2 + $0x2e0] sm:$0xff] 0.0
    %5324 = vst [vmem:[#allocation2 + $0x2e8] sm:$0xff] 0.0
    %5325 = vst [vmem:[#allocation2 + $0x2f0] sm:$0xff] 0.0
    %5326 = vst [vmem:[#allocation2 + $0x2f8] sm:$0xff] 0.0
    %5327 = vst [vmem:[#allocation2 + $0x300] sm:$0xff] 0.0
    %5328 = vst [vmem:[#allocation2 + $0x308] sm:$0xff] 0.0
    %5329 = vst [vmem:[#allocation2 + $0x310] sm:$0xff] 0.0
    %5330 = vst [vmem:[#allocation2 + $0x318] sm:$0xff] 0.0
    %5331 = vst [vmem:[#allocation2 + $0x320] sm:$0xff] 0.0
    %5332 = vst [vmem:[#allocation2 + $0x328] sm:$0xff] 0.0
    %5333 = vst [vmem:[#allocation2 + $0x330] sm:$0xff] 0.0
    %5334 = vst [vmem:[#allocation2 + $0x338] sm:$0xff] 0.0
    %5335 = vst [vmem:[#allocation2 + $0x340] sm:$0xff] 0.0
    %5336 = vst [vmem:[#allocation2 + $0x348] sm:$0xff] 0.0
    %5337 = vst [vmem:[#allocation2 + $0x350] sm:$0xff] 0.0
    %5338 = vst [vmem:[#allocation2 + $0x358] sm:$0xff] 0.0
    %s5339 = scalar_lea.vmem [#allocation2], 2016
    %5340 = vst [vmem:[%s5339] sm:$0xff] 0.0
    %5341 = vst [vmem:[%s5339 + $0x8] sm:$0xff] 0.0
    %5342 = vst [vmem:[%s5339 + $0x10] sm:$0xff] 0.0
    %5343 = vst [vmem:[%s5339 + $0x18] sm:$0xff] 0.0
    %5344 = vst [vmem:[%s5339 + $0x20] sm:$0xff] 0.0
    %5345 = vst [vmem:[%s5339 + $0x28] sm:$0xff] 0.0
    %5346 = vst [vmem:[%s5339 + $0x30] sm:$0xff] 0.0
    %5347 = vst [vmem:[%s5339 + $0x38] sm:$0xff] 0.0
    %5348 = vst [vmem:[%s5339 + $0x40] sm:$0xff] 0.0
    %5349 = vst [vmem:[%s5339 + $0x48] sm:$0xff] 0.0
    %5350 = vst [vmem:[%s5339 + $0x50] sm:$0xff] 0.0
    %5351 = vst [vmem:[%s5339 + $0x58] sm:$0xff] 0.0
    %5352 = vst [vmem:[%s5339 + $0x60] sm:$0xff] 0.0
    %5353 = vst [vmem:[%s5339 + $0x68] sm:$0xff] 0.0
    %5354 = vst [vmem:[%s5339 + $0x70] sm:$0xff] 0.0
    %5355 = vst [vmem:[%s5339 + $0x78] sm:$0xff] 0.0
    %5356 = vst [vmem:[%s5339 + $0x80] sm:$0xff] 0.0
    %5357 = vst [vmem:[%s5339 + $0x88] sm:$0xff] 0.0
    %5358 = vst [vmem:[%s5339 + $0x90] sm:$0xff] 0.0
    %5359 = vst [vmem:[%s5339 + $0x98] sm:$0xff] 0.0
    %5360 = vst [vmem:[%s5339 + $0xa0] sm:$0xff] 0.0
    %5361 = vst [vmem:[%s5339 + $0xa8] sm:$0xff] 0.0
    %5362 = vst [vmem:[%s5339 + $0xb0] sm:$0xff] 0.0
    %5363 = vst [vmem:[%s5339 + $0xb8] sm:$0xff] 0.0
    %5364 = vst [vmem:[%s5339 + $0xc0] sm:$0xff] 0.0
    %5365 = vst [vmem:[%s5339 + $0xc8] sm:$0xff] 0.0
    %5366 = vst [vmem:[%s5339 + $0xd0] sm:$0xff] 0.0
    %5367 = vst [vmem:[%s5339 + $0xd8] sm:$0xff] 0.0
    %5368 = vst [vmem:[%s5339 + $0xe0] sm:$0xff] 0.0
    %5369 = vst [vmem:[%s5339 + $0xe8] sm:$0xff] 0.0
    %5370 = vst [vmem:[%s5339 + $0xf0] sm:$0xff] 0.0
    %5371 = vst [vmem:[%s5339 + $0xf8] sm:$0xff] 0.0
    %5372 = vst [vmem:[%s5339 + $0x100] sm:$0xff] 0.0
    %5373 = vst [vmem:[%s5339 + $0x108] sm:$0xff] 0.0
    %5374 = vst [vmem:[%s5339 + $0x110] sm:$0xff] 0.0
    %5375 = vst [vmem:[%s5339 + $0x118] sm:$0xff] 0.0
    %5376 = vst [vmem:[%s5339 + $0x120] sm:$0xff] 0.0
    %5377 = vst [vmem:[%s5339 + $0x128] sm:$0xff] 0.0
    %5378 = vst [vmem:[%s5339 + $0x130] sm:$0xff] 0.0
    %5379 = vst [vmem:[%s5339 + $0x138] sm:$0xff] 0.0
    %5380 = vst [vmem:[%s5339 + $0x140] sm:$0xff] 0.0
    %5381 = vst [vmem:[%s5339 + $0x148] sm:$0xff] 0.0
    %5382 = vst [vmem:[%s5339 + $0x150] sm:$0xff] 0.0
    %5383 = vst [vmem:[%s5339 + $0x158] sm:$0xff] 0.0
    %5384 = vst [vmem:[%s5339 + $0x160] sm:$0xff] 0.0
    %5385 = vst [vmem:[%s5339 + $0x168] sm:$0xff] 0.0
    %5386 = vst [vmem:[%s5339 + $0x170] sm:$0xff] 0.0
    %5387 = vst [vmem:[%s5339 + $0x178] sm:$0xff] 0.0
    %5388 = vst [vmem:[%s5339 + $0x180] sm:$0xff] 0.0
    %5389 = vst [vmem:[%s5339 + $0x188] sm:$0xff] 0.0
    %5390 = vst [vmem:[%s5339 + $0x190] sm:$0xff] 0.0
    %5391 = vst [vmem:[%s5339 + $0x198] sm:$0xff] 0.0
    %5392 = vst [vmem:[%s5339 + $0x1a0] sm:$0xff] 0.0
    %5393 = vst [vmem:[%s5339 + $0x1a8] sm:$0xff] 0.0
    %5394 = vst [vmem:[%s5339 + $0x1b0] sm:$0xff] 0.0
    %5395 = vst [vmem:[%s5339 + $0x1b8] sm:$0xff] 0.0
    %5396 = vst [vmem:[%s5339 + $0x1c0] sm:$0xff] 0.0
    %5397 = vst [vmem:[%s5339 + $0x1c8] sm:$0xff] 0.0
    %5398 = vst [vmem:[%s5339 + $0x1d0] sm:$0xff] 0.0
    %5399 = vst [vmem:[%s5339 + $0x1d8] sm:$0xff] 0.0
    %5400 = vst [vmem:[%s5339 + $0x1e0] sm:$0xff] 0.0
    %5401 = vst [vmem:[%s5339 + $0x1e8] sm:$0xff] 0.0
    %5402 = vst [vmem:[%s5339 + $0x1f0] sm:$0xff] 0.0
    %5403 = vst [vmem:[%s5339 + $0x1f8] sm:$0xff] 0.0
    %5404 = vst [vmem:[%s5339 + $0x200] sm:$0xff] 0.0
    %5405 = vst [vmem:[%s5339 + $0x208] sm:$0xff] 0.0
    %5406 = vst [vmem:[%s5339 + $0x210] sm:$0xff] 0.0
    %5407 = vst [vmem:[%s5339 + $0x218] sm:$0xff] 0.0
    %5408 = vst [vmem:[%s5339 + $0x220] sm:$0xff] 0.0
    %5409 = vst [vmem:[%s5339 + $0x228] sm:$0xff] 0.0
    %5410 = vst [vmem:[%s5339 + $0x230] sm:$0xff] 0.0
    %5411 = vst [vmem:[%s5339 + $0x238] sm:$0xff] 0.0
    %s5412 = scalar_lea.vmem [#allocation2], 864
    %5413 = vst [vmem:[%s5412] sm:$0xff] 0.0
    %5414 = vst [vmem:[%s5412 + $0x8] sm:$0xff] 0.0
    %5415 = vst [vmem:[%s5412 + $0x10] sm:$0xff] 0.0
    %5416 = vst [vmem:[%s5412 + $0x18] sm:$0xff] 0.0
    %5417 = vst [vmem:[%s5412 + $0x20] sm:$0xff] 0.0
    %5418 = vst [vmem:[%s5412 + $0x28] sm:$0xff] 0.0
    %5419 = vst [vmem:[%s5412 + $0x90] sm:$0xff] 0.0
    %5420 = vst [vmem:[%s5412 + $0x98] sm:$0xff] 0.0
    %5421 = vst [vmem:[%s5412 + $0xa0] sm:$0xff] 0.0
    %5422 = vst [vmem:[%s5412 + $0xa8] sm:$0xff] 0.0
    %5423 = vst [vmem:[%s5412 + $0xb0] sm:$0xff] 0.0
    %5424 = vst [vmem:[%s5412 + $0xb8] sm:$0xff] 0.0
    %5425 = vst [vmem:[%s5412 + $0x120] sm:$0xff] 0.0
    %5426 = vst [vmem:[%s5412 + $0x128] sm:$0xff] 0.0
    %5427 = vst [vmem:[%s5412 + $0x130] sm:$0xff] 0.0
    %5428 = vst [vmem:[%s5412 + $0x138] sm:$0xff] 0.0
    %5429 = vst [vmem:[%s5412 + $0x140] sm:$0xff] 0.0
    %5430 = vst [vmem:[%s5412 + $0x148] sm:$0xff] 0.0
    %5431 = vst [vmem:[%s5412 + $0x1b0] sm:$0xff] 0.0
    %5432 = vst [vmem:[%s5412 + $0x1b8] sm:$0xff] 0.0
    %5433 = vst [vmem:[%s5412 + $0x1c0] sm:$0xff] 0.0
    %5434 = vst [vmem:[%s5412 + $0x1c8] sm:$0xff] 0.0
    %5435 = vst [vmem:[%s5412 + $0x1d0] sm:$0xff] 0.0
    %5436 = vst [vmem:[%s5412 + $0x1d8] sm:$0xff] 0.0
    %5437 = vst [vmem:[%s5412 + $0x240] sm:$0xff] 0.0
    %5438 = vst [vmem:[%s5412 + $0x248] sm:$0xff] 0.0
    %5439 = vst [vmem:[%s5412 + $0x250] sm:$0xff] 0.0
    %5440 = vst [vmem:[%s5412 + $0x258] sm:$0xff] 0.0
    %5441 = vst [vmem:[%s5412 + $0x260] sm:$0xff] 0.0
    %5442 = vst [vmem:[%s5412 + $0x268] sm:$0xff] 0.0
    %5443 = vst [vmem:[%s5412 + $0x2d0] sm:$0xff] 0.0
    %5444 = vst [vmem:[%s5412 + $0x2d8] sm:$0xff] 0.0
    %5445 = vst [vmem:[%s5412 + $0x2e0] sm:$0xff] 0.0
    %5446 = vst [vmem:[%s5412 + $0x2e8] sm:$0xff] 0.0
    %5447 = vst [vmem:[%s5412 + $0x2f0] sm:$0xff] 0.0
    %5448 = vst [vmem:[%s5412 + $0x2f8] sm:$0xff] 0.0
    %5449 = vst [vmem:[%s5412 + $0x360] sm:$0xff] 0.0
    %5450 = vst [vmem:[%s5412 + $0x368] sm:$0xff] 0.0
    %5451 = vst [vmem:[%s5412 + $0x370] sm:$0xff] 0.0
    %5452 = vst [vmem:[%s5412 + $0x378] sm:$0xff] 0.0
    %5453 = vst [vmem:[%s5412 + $0x380] sm:$0xff] 0.0
    %5454 = vst [vmem:[%s5412 + $0x388] sm:$0xff] 0.0
    %5455 = vst [vmem:[%s5412 + $0x3f0] sm:$0xff] 0.0
    %5456 = vst [vmem:[%s5412 + $0x3f8] sm:$0xff] 0.0
    %5457 = vst [vmem:[%s5412 + $0x400] sm:$0xff] 0.0
    %5458 = vst [vmem:[%s5412 + $0x408] sm:$0xff] 0.0
    %5459 = vst [vmem:[%s5412 + $0x410] sm:$0xff] 0.0
    %5460 = vst [vmem:[%s5412 + $0x418] sm:$0xff] 0.0
    %s5461 = scalar_lea.vmem [#allocation2], 976
    %5462 = vst [vmem:[%s5461] sm:$0xff] 0.0
    %5463 = vst [vmem:[%s5461 + $0x8] sm:$0xff] 0.0
    %5464 = vst [vmem:[%s5461 + $0x10] sm:$0xff] 0.0
    %5465 = vst [vmem:[%s5461 + $0x18] sm:$0xff] 0.0
    %5466 = vst [vmem:[%s5461 + $0x90] sm:$0xff] 0.0
    %5467 = vst [vmem:[%s5461 + $0x98] sm:$0xff] 0.0
    %5468 = vst [vmem:[%s5461 + $0xa0] sm:$0xff] 0.0
    %5469 = vst [vmem:[%s5461 + $0xa8] sm:$0xff] 0.0
    %5470 = vst [vmem:[%s5461 + $0x120] sm:$0xff] 0.0
    %5471 = vst [vmem:[%s5461 + $0x128] sm:$0xff] 0.0
    %5472 = vst [vmem:[%s5461 + $0x130] sm:$0xff] 0.0
    %5473 = vst [vmem:[%s5461 + $0x138] sm:$0xff] 0.0
    %5474 = vst [vmem:[%s5461 + $0x1b0] sm:$0xff] 0.0
    %5475 = vst [vmem:[%s5461 + $0x1b8] sm:$0xff] 0.0
    %5476 = vst [vmem:[%s5461 + $0x1c0] sm:$0xff] 0.0
    %5477 = vst [vmem:[%s5461 + $0x1c8] sm:$0xff] 0.0
    %5478 = vst [vmem:[%s5461 + $0x240] sm:$0xff] 0.0
    %5479 = vst [vmem:[%s5461 + $0x248] sm:$0xff] 0.0
    %5480 = vst [vmem:[%s5461 + $0x250] sm:$0xff] 0.0
    %5481 = vst [vmem:[%s5461 + $0x258] sm:$0xff] 0.0
    %5482 = vst [vmem:[%s5461 + $0x2d0] sm:$0xff] 0.0
    %5483 = vst [vmem:[%s5461 + $0x2d8] sm:$0xff] 0.0
    %5484 = vst [vmem:[%s5461 + $0x2e0] sm:$0xff] 0.0
    %5485 = vst [vmem:[%s5461 + $0x2e8] sm:$0xff] 0.0
    %5486 = vst [vmem:[%s5461 + $0x360] sm:$0xff] 0.0
    %5487 = vst [vmem:[%s5461 + $0x368] sm:$0xff] 0.0
    %5488 = vst [vmem:[%s5461 + $0x370] sm:$0xff] 0.0
    %5489 = vst [vmem:[%s5461 + $0x378] sm:$0xff] 0.0
    %5490 = vst [vmem:[%s5461 + $0x3f0] sm:$0xff] 0.0
    %5491 = vst [vmem:[%s5461 + $0x3f8] sm:$0xff] 0.0
    %5492 = vst [vmem:[%s5461 + $0x400] sm:$0xff] 0.0
    %5493 = vst [vmem:[%s5461 + $0x408] sm:$0xff] 0.0
    %s5494 = scalar_lea.vmem [#allocation2], 912
    %5495 = vst [vmem:[%s5494] sm:$0xff] %v5167
    %5496 = vst [vmem:[%s5494 + $0x8] sm:$0xff] %v5168
    %5497 = vst [vmem:[%s5494 + $0x10] sm:$0xff] %v5169
    %5498 = vst [vmem:[%s5494 + $0x18] sm:$0xff] %v5170
    %5499 = vst [vmem:[%s5494 + $0x20] sm:$0xff] %v5171
    %5500 = vst [vmem:[%s5494 + $0x28] sm:$0xff] %v5172
    %5501 = vst [vmem:[%s5494 + $0x30] sm:$0xff] %v5173
    %5502 = vst [vmem:[%s5494 + $0x38] sm:$0xff] %v5174
    %5503 = vst [vmem:[%s5494 + $0x90] sm:$0xff] %v5175
    %5504 = vst [vmem:[%s5494 + $0x98] sm:$0xff] %v5176
    %5505 = vst [vmem:[%s5494 + $0xa0] sm:$0xff] %v5177
    %5506 = vst [vmem:[%s5494 + $0xa8] sm:$0xff] %v5178
    %5507 = vst [vmem:[%s5494 + $0xb0] sm:$0xff] %v5179
    %5508 = vst [vmem:[%s5494 + $0xb8] sm:$0xff] %v5180
    %5509 = vst [vmem:[%s5494 + $0xc0] sm:$0xff] %v5181
    %5510 = vst [vmem:[%s5494 + $0xc8] sm:$0xff] %v5182
    %5511 = vst [vmem:[%s5494 + $0x120] sm:$0xff] %v5183
    %5512 = vst [vmem:[%s5494 + $0x128] sm:$0xff] %v5184
    %5513 = vst [vmem:[%s5494 + $0x130] sm:$0xff] %v5185
    %5514 = vst [vmem:[%s5494 + $0x138] sm:$0xff] %v5186
    %5515 = vst [vmem:[%s5494 + $0x140] sm:$0xff] %v5187
    %5516 = vst [vmem:[%s5494 + $0x148] sm:$0xff] %v5188
    %5517 = vst [vmem:[%s5494 + $0x150] sm:$0xff] %v5189
    %5518 = vst [vmem:[%s5494 + $0x158] sm:$0xff] %v5190
    %5519 = vst [vmem:[%s5494 + $0x1b0] sm:$0xff] %v5191
    %5520 = vst [vmem:[%s5494 + $0x1b8] sm:$0xff] %v5192
    %5521 = vst [vmem:[%s5494 + $0x1c0] sm:$0xff] %v5193
    %5522 = vst [vmem:[%s5494 + $0x1c8] sm:$0xff] %v5194
    %5523 = vst [vmem:[%s5494 + $0x1d0] sm:$0xff] %v5195
    %5524 = vst [vmem:[%s5494 + $0x1d8] sm:$0xff] %v5196
    %5525 = vst [vmem:[%s5494 + $0x1e0] sm:$0xff] %v5197
    %5526 = vst [vmem:[%s5494 + $0x1e8] sm:$0xff] %v5198
    %5527 = vst [vmem:[%s5494 + $0x240] sm:$0xff] %v5199
    %5528 = vst [vmem:[%s5494 + $0x248] sm:$0xff] %v5200
    %5529 = vst [vmem:[%s5494 + $0x250] sm:$0xff] %v5201
    %5530 = vst [vmem:[%s5494 + $0x258] sm:$0xff] %v5202
    %5531 = vst [vmem:[%s5494 + $0x260] sm:$0xff] %v5203
    %5532 = vst [vmem:[%s5494 + $0x268] sm:$0xff] %v5204
    %5533 = vst [vmem:[%s5494 + $0x270] sm:$0xff] %v5205
    %5534 = vst [vmem:[%s5494 + $0x278] sm:$0xff] %v5206
    %5535 = vst [vmem:[%s5494 + $0x2d0] sm:$0xff] %v5207
    %5536 = vst [vmem:[%s5494 + $0x2d8] sm:$0xff] %v5208
    %5537 = vst [vmem:[%s5494 + $0x2e0] sm:$0xff] %v5209
    %5538 = vst [vmem:[%s5494 + $0x2e8] sm:$0xff] %v5210
    %5539 = vst [vmem:[%s5494 + $0x2f0] sm:$0xff] %v5211
    %5540 = vst [vmem:[%s5494 + $0x2f8] sm:$0xff] %v5212
    %5541 = vst [vmem:[%s5494 + $0x300] sm:$0xff] %v5213
    %5542 = vst [vmem:[%s5494 + $0x308] sm:$0xff] %v5214
    %5543 = vst [vmem:[%s5494 + $0x360] sm:$0xff] %v5215
    %5544 = vst [vmem:[%s5494 + $0x368] sm:$0xff] %v5216
    %5545 = vst [vmem:[%s5494 + $0x370] sm:$0xff] %v5217
    %5546 = vst [vmem:[%s5494 + $0x378] sm:$0xff] %v5218
    %5547 = vst [vmem:[%s5494 + $0x380] sm:$0xff] %v5219
    %5548 = vst [vmem:[%s5494 + $0x388] sm:$0xff] %v5220
    %5549 = vst [vmem:[%s5494 + $0x390] sm:$0xff] %v5221
    %5550 = vst [vmem:[%s5494 + $0x398] sm:$0xff] %v5222
    %5551 = vst [vmem:[%s5494 + $0x3f0] sm:$0xff] %v5223
    %5552 = vst [vmem:[%s5494 + $0x3f8] sm:$0xff] %v5224
    %5553 = vst [vmem:[%s5494 + $0x400] sm:$0xff] %v5225
    %5554 = vst [vmem:[%s5494 + $0x408] sm:$0xff] %v5226
    %5555 = vst [vmem:[%s5494 + $0x410] sm:$0xff] %v5227
    %5556 = vst [vmem:[%s5494 + $0x418] sm:$0xff] %v5228
    %5557 = vst [vmem:[%s5494 + $0x420] sm:$0xff] %v5229
    %5558 = vst [vmem:[%s5494 + $0x428] sm:$0xff] %v5230
    %s5559 = scalar_lea.vmem [#allocation2], 152
    %v5560 = vld [vmem:[%s5559] sm:$0xff]
    %v5561 = vld [vmem:[%s5559 + $0x10] sm:$0xff]
    %v5562 = vld [vmem:[%s5559 + $0x20] sm:$0xff]
    %v5563 = vld [vmem:[%s5559 + $0x30] sm:$0xff]
    %v5564 = vld [vmem:[%s5559 + $0x40] sm:$0xff]
    %v5565 = vld [vmem:[%s5559 + $0x50] sm:$0xff]
    %v5566 = vld [vmem:[%s5559 + $0x60] sm:$0xff]
    %v5567 = vld [vmem:[%s5559 + $0x70] sm:$0xff]
    %v5568 = vld [vmem:[%s5559 + $0x120] sm:$0xff]
    %v5569 = vld [vmem:[%s5559 + $0x130] sm:$0xff]
    %v5570 = vld [vmem:[%s5559 + $0x140] sm:$0xff]
    %v5571 = vld [vmem:[%s5559 + $0x150] sm:$0xff]
    %v5572 = vld [vmem:[%s5559 + $0x160] sm:$0xff]
    %v5573 = vld [vmem:[%s5559 + $0x170] sm:$0xff]
    %v5574 = vld [vmem:[%s5559 + $0x180] sm:$0xff]
    %v5575 = vld [vmem:[%s5559 + $0x190] sm:$0xff]
    %v5576 = vld [vmem:[%s5559 + $0x240] sm:$0xff]
    %v5577 = vld [vmem:[%s5559 + $0x250] sm:$0xff]
    %v5578 = vld [vmem:[%s5559 + $0x260] sm:$0xff]
    %v5579 = vld [vmem:[%s5559 + $0x270] sm:$0xff]
    %v5580 = vld [vmem:[%s5559 + $0x280] sm:$0xff]
    %v5581 = vld [vmem:[%s5559 + $0x290] sm:$0xff]
    %v5582 = vld [vmem:[%s5559 + $0x2a0] sm:$0xff]
    %v5583 = vld [vmem:[%s5559 + $0x2b0] sm:$0xff]
    %v5584 = vld [vmem:[%s5559 + $0x360] sm:$0xff]
    %v5585 = vld [vmem:[%s5559 + $0x370] sm:$0xff]
    %v5586 = vld [vmem:[%s5559 + $0x380] sm:$0xff]
    %v5587 = vld [vmem:[%s5559 + $0x390] sm:$0xff]
    %v5588 = vld [vmem:[%s5559 + $0x3a0] sm:$0xff]
    %v5589 = vld [vmem:[%s5559 + $0x3b0] sm:$0xff]
    %v5590 = vld [vmem:[%s5559 + $0x3c0] sm:$0xff]
    %v5591 = vld [vmem:[%s5559 + $0x3d0] sm:$0xff]
    %v5592 = vld [vmem:[%s5559 + $0x480] sm:$0xff]
    %v5593 = vld [vmem:[%s5559 + $0x490] sm:$0xff]
    %v5594 = vld [vmem:[%s5559 + $0x4a0] sm:$0xff]
    %v5595 = vld [vmem:[%s5559 + $0x4b0] sm:$0xff]
    %v5596 = vld [vmem:[%s5559 + $0x4c0] sm:$0xff]
    %v5597 = vld [vmem:[%s5559 + $0x4d0] sm:$0xff]
    %v5598 = vld [vmem:[%s5559 + $0x4e0] sm:$0xff]
    %v5599 = vld [vmem:[%s5559 + $0x4f0] sm:$0xff]
    %v5600 = vld [vmem:[%s5559 + $0x5a0] sm:$0xff]
    %v5601 = vld [vmem:[%s5559 + $0x5b0] sm:$0xff]
    %v5602 = vld [vmem:[%s5559 + $0x5c0] sm:$0xff]
    %v5603 = vld [vmem:[%s5559 + $0x5d0] sm:$0xff]
    %v5604 = vld [vmem:[%s5559 + $0x5e0] sm:$0xff]
    %v5605 = vld [vmem:[%s5559 + $0x5f0] sm:$0xff]
    %v5606 = vld [vmem:[%s5559 + $0x600] sm:$0xff]
    %v5607 = vld [vmem:[%s5559 + $0x610] sm:$0xff]
    %v5608 = vld [vmem:[%s5559 + $0x6c0] sm:$0xff]
    %v5609 = vld [vmem:[%s5559 + $0x6d0] sm:$0xff]
    %v5610 = vld [vmem:[%s5559 + $0x6e0] sm:$0xff]
    %v5611 = vld [vmem:[%s5559 + $0x6f0] sm:$0xff]
    %v5612 = vld [vmem:[%s5559 + $0x700] sm:$0xff]
    %v5613 = vld [vmem:[%s5559 + $0x710] sm:$0xff]
    %v5614 = vld [vmem:[%s5559 + $0x720] sm:$0xff]
    %v5615 = vld [vmem:[%s5559 + $0x730] sm:$0xff]
    %v5616 = vld [vmem:[%s5559 + $0x7e0] sm:$0xff]
    %v5617 = vld [vmem:[%s5559 + $0x7f0] sm:$0xff]
    %v5618 = vld [vmem:[%s5559 + $0x800] sm:$0xff]
    %v5619 = vld [vmem:[%s5559 + $0x810] sm:$0xff]
    %v5620 = vld [vmem:[%s5559 + $0x820] sm:$0xff]
    %v5621 = vld [vmem:[%s5559 + $0x830] sm:$0xff]
    %v5622 = vld [vmem:[%s5559 + $0x840] sm:$0xff]
    %v5623 = vld [vmem:[%s5559 + $0x850] sm:$0xff]
    %v5624 = vpack.c.bf16 %v5561, %v5560
    %v5625 = vpack.c.bf16 %v5563, %v5562
    %v5626 = vpack.c.bf16 %v5565, %v5564
    %v5627 = vpack.c.bf16 %v5567, %v5566
    %v5628 = vpack.c.bf16 %v5569, %v5568
    %v5629 = vpack.c.bf16 %v5571, %v5570
    %v5630 = vpack.c.bf16 %v5573, %v5572
    %v5631 = vpack.c.bf16 %v5575, %v5574
    %v5632 = vpack.c.bf16 %v5577, %v5576
    %v5633 = vpack.c.bf16 %v5579, %v5578
    %v5634 = vpack.c.bf16 %v5581, %v5580
    %v5635 = vpack.c.bf16 %v5583, %v5582
    %v5636 = vpack.c.bf16 %v5585, %v5584
    %v5637 = vpack.c.bf16 %v5587, %v5586
    %v5638 = vpack.c.bf16 %v5589, %v5588
    %v5639 = vpack.c.bf16 %v5591, %v5590
    %v5640 = vpack.c.bf16 %v5593, %v5592
    %v5641 = vpack.c.bf16 %v5595, %v5594
    %v5642 = vpack.c.bf16 %v5597, %v5596
    %v5643 = vpack.c.bf16 %v5599, %v5598
    %v5644 = vpack.c.bf16 %v5601, %v5600
    %v5645 = vpack.c.bf16 %v5603, %v5602
    %v5646 = vpack.c.bf16 %v5605, %v5604
    %v5647 = vpack.c.bf16 %v5607, %v5606
    %v5648 = vpack.c.bf16 %v5609, %v5608
    %v5649 = vpack.c.bf16 %v5611, %v5610
    %v5650 = vpack.c.bf16 %v5613, %v5612
    %v5651 = vpack.c.bf16 %v5615, %v5614
    %v5652 = vpack.c.bf16 %v5617, %v5616
    %v5653 = vpack.c.bf16 %v5619, %v5618
    %v5654 = vpack.c.bf16 %v5621, %v5620
    %v5655 = vpack.c.bf16 %v5623, %v5622
    %v5656 = vld [vmem:[#allocation11] sm:$0xf]
    %v5657 = vld [vmem:[#allocation11 + $0x4] sm:$0xf]
    %v5658 = vld [vmem:[#allocation11 + $0x8] sm:$0xf]
    %v5659 = vld [vmem:[#allocation11 + $0xc] sm:$0xf]
    %v5660 = vld [vmem:[#allocation11 + $0x10] sm:$0xf]
    %v5661 = vld [vmem:[#allocation11 + $0x14] sm:$0xf]
    %v5662 = vld [vmem:[#allocation11 + $0x18] sm:$0xf]
    %v5663 = vld [vmem:[#allocation11 + $0x1c] sm:$0xf]
    %v5664 = vld [vmem:[#allocation11 + $0x20] sm:$0xf]
    %v5665 = vld [vmem:[#allocation11 + $0x24] sm:$0xf]
    %v5666 = vld [vmem:[#allocation11 + $0x28] sm:$0xf]
    %v5667 = vld [vmem:[#allocation11 + $0x2c] sm:$0xf]
    %v5668 = vld [vmem:[#allocation11 + $0x30] sm:$0xf]
    %v5669 = vld [vmem:[#allocation11 + $0x34] sm:$0xf]
    %v5670 = vld [vmem:[#allocation11 + $0x38] sm:$0xf]
    %v5671 = vld [vmem:[#allocation11 + $0x3c] sm:$0xf]
    %s5672 = scalar_lea.vmem [#allocation2], 160
    %v5673 = vld [vmem:[%s5672] sm:$0xff]
    %v5674 = vld [vmem:[%s5672 + $0x10] sm:$0xff]
    %v5675 = vld [vmem:[%s5672 + $0x20] sm:$0xff]
    %v5676 = vld [vmem:[%s5672 + $0x30] sm:$0xff]
    %v5677 = vld [vmem:[%s5672 + $0x40] sm:$0xff]
    %v5678 = vld [vmem:[%s5672 + $0x50] sm:$0xff]
    %v5679 = vld [vmem:[%s5672 + $0x60] sm:$0xff]
    %v5680 = vld [vmem:[%s5672 + $0x70] sm:$0xff]
    %v5681 = vld [vmem:[%s5672 + $0x120] sm:$0xff]
    %v5682 = vld [vmem:[%s5672 + $0x130] sm:$0xff]
    %v5683 = vld [vmem:[%s5672 + $0x140] sm:$0xff]
    %v5684 = vld [vmem:[%s5672 + $0x150] sm:$0xff]
    %v5685 = vld [vmem:[%s5672 + $0x160] sm:$0xff]
    %v5686 = vld [vmem:[%s5672 + $0x170] sm:$0xff]
    %v5687 = vld [vmem:[%s5672 + $0x180] sm:$0xff]
    %v5688 = vld [vmem:[%s5672 + $0x190] sm:$0xff]
    %v5689 = vld [vmem:[%s5672 + $0x240] sm:$0xff]
    %v5690 = vld [vmem:[%s5672 + $0x250] sm:$0xff]
    %v5691 = vld [vmem:[%s5672 + $0x260] sm:$0xff]
    %v5692 = vld [vmem:[%s5672 + $0x270] sm:$0xff]
    %v5693 = vld [vmem:[%s5672 + $0x280] sm:$0xff]
    %v5694 = vld [vmem:[%s5672 + $0x290] sm:$0xff]
    %v5695 = vld [vmem:[%s5672 + $0x2a0] sm:$0xff]
    %v5696 = vld [vmem:[%s5672 + $0x2b0] sm:$0xff]
    %v5697 = vld [vmem:[%s5672 + $0x360] sm:$0xff]
    %v5698 = vld [vmem:[%s5672 + $0x370] sm:$0xff]
    %v5699 = vld [vmem:[%s5672 + $0x380] sm:$0xff]
    %v5700 = vld [vmem:[%s5672 + $0x390] sm:$0xff]
    %v5701 = vld [vmem:[%s5672 + $0x3a0] sm:$0xff]
    %v5702 = vld [vmem:[%s5672 + $0x3b0] sm:$0xff]
    %v5703 = vld [vmem:[%s5672 + $0x3c0] sm:$0xff]
    %v5704 = vld [vmem:[%s5672 + $0x3d0] sm:$0xff]
    %v5705 = vld [vmem:[%s5672 + $0x480] sm:$0xff]
    %v5706 = vld [vmem:[%s5672 + $0x490] sm:$0xff]
    %v5707 = vld [vmem:[%s5672 + $0x4a0] sm:$0xff]
    %v5708 = vld [vmem:[%s5672 + $0x4b0] sm:$0xff]
    %v5709 = vld [vmem:[%s5672 + $0x4c0] sm:$0xff]
    %v5710 = vld [vmem:[%s5672 + $0x4d0] sm:$0xff]
    %v5711 = vld [vmem:[%s5672 + $0x4e0] sm:$0xff]
    %v5712 = vld [vmem:[%s5672 + $0x4f0] sm:$0xff]
    %v5713 = vld [vmem:[%s5672 + $0x5a0] sm:$0xff]
    %v5714 = vld [vmem:[%s5672 + $0x5b0] sm:$0xff]
    %v5715 = vld [vmem:[%s5672 + $0x5c0] sm:$0xff]
    %v5716 = vld [vmem:[%s5672 + $0x5d0] sm:$0xff]
    %v5717 = vld [vmem:[%s5672 + $0x5e0] sm:$0xff]
    %v5718 = vld [vmem:[%s5672 + $0x5f0] sm:$0xff]
    %v5719 = vld [vmem:[%s5672 + $0x600] sm:$0xff]
    %v5720 = vld [vmem:[%s5672 + $0x610] sm:$0xff]
    %v5721 = vld [vmem:[%s5672 + $0x6c0] sm:$0xff]
    %v5722 = vld [vmem:[%s5672 + $0x6d0] sm:$0xff]
    %v5723 = vld [vmem:[%s5672 + $0x6e0] sm:$0xff]
    %v5724 = vld [vmem:[%s5672 + $0x6f0] sm:$0xff]
    %v5725 = vld [vmem:[%s5672 + $0x700] sm:$0xff]
    %v5726 = vld [vmem:[%s5672 + $0x710] sm:$0xff]
    %v5727 = vld [vmem:[%s5672 + $0x720] sm:$0xff]
    %v5728 = vld [vmem:[%s5672 + $0x730] sm:$0xff]
    %v5729 = vld [vmem:[%s5672 + $0x7e0] sm:$0xff]
    %v5730 = vld [vmem:[%s5672 + $0x7f0] sm:$0xff]
    %v5731 = vld [vmem:[%s5672 + $0x800] sm:$0xff]
    %v5732 = vld [vmem:[%s5672 + $0x810] sm:$0xff]
    %v5733 = vld [vmem:[%s5672 + $0x820] sm:$0xff]
    %v5734 = vld [vmem:[%s5672 + $0x830] sm:$0xff]
    %v5735 = vld [vmem:[%s5672 + $0x840] sm:$0xff]
    %v5736 = vld [vmem:[%s5672 + $0x850] sm:$0xff]
    %v5737 = vpack.c.bf16 %v5674, %v5673
    %v5738 = vpack.c.bf16 %v5676, %v5675
    %v5739 = vpack.c.bf16 %v5678, %v5677
    %v5740 = vpack.c.bf16 %v5680, %v5679
    %v5741 = vpack.c.bf16 %v5682, %v5681
    %v5742 = vpack.c.bf16 %v5684, %v5683
    %v5743 = vpack.c.bf16 %v5686, %v5685
    %v5744 = vpack.c.bf16 %v5688, %v5687
    %v5745 = vpack.c.bf16 %v5690, %v5689
    %v5746 = vpack.c.bf16 %v5692, %v5691
    %v5747 = vpack.c.bf16 %v5694, %v5693
    %v5748 = vpack.c.bf16 %v5696, %v5695
    %v5749 = vpack.c.bf16 %v5698, %v5697
    %v5750 = vpack.c.bf16 %v5700, %v5699
    %v5751 = vpack.c.bf16 %v5702, %v5701
    %v5752 = vpack.c.bf16 %v5704, %v5703
    %v5753 = vpack.c.bf16 %v5706, %v5705
    %v5754 = vpack.c.bf16 %v5708, %v5707
    %v5755 = vpack.c.bf16 %v5710, %v5709
    %v5756 = vpack.c.bf16 %v5712, %v5711
    %v5757 = vpack.c.bf16 %v5714, %v5713
    %v5758 = vpack.c.bf16 %v5716, %v5715
    %v5759 = vpack.c.bf16 %v5718, %v5717
    %v5760 = vpack.c.bf16 %v5720, %v5719
    %v5761 = vpack.c.bf16 %v5722, %v5721
    %v5762 = vpack.c.bf16 %v5724, %v5723
    %v5763 = vpack.c.bf16 %v5726, %v5725
    %v5764 = vpack.c.bf16 %v5728, %v5727
    %v5765 = vpack.c.bf16 %v5730, %v5729
    %v5766 = vpack.c.bf16 %v5732, %v5731
    %v5767 = vpack.c.bf16 %v5734, %v5733
    %v5768 = vpack.c.bf16 %v5736, %v5735
    %s5769 = scalar_lea.vmem [#allocation11], 64
    %v5770 = vld [vmem:[%s5769] sm:$0xf]
    %v5771 = vld [vmem:[%s5769 + $0x4] sm:$0xf]
    %v5772 = vld [vmem:[%s5769 + $0x8] sm:$0xf]
    %v5773 = vld [vmem:[%s5769 + $0xc] sm:$0xf]
    %v5774 = vld [vmem:[%s5769 + $0x10] sm:$0xf]
    %v5775 = vld [vmem:[%s5769 + $0x14] sm:$0xf]
    %v5776 = vld [vmem:[%s5769 + $0x18] sm:$0xf]
    %v5777 = vld [vmem:[%s5769 + $0x1c] sm:$0xf]
    %v5778 = vld [vmem:[%s5769 + $0x20] sm:$0xf]
    %v5779 = vld [vmem:[%s5769 + $0x24] sm:$0xf]
    %v5780 = vld [vmem:[%s5769 + $0x28] sm:$0xf]
    %v5781 = vld [vmem:[%s5769 + $0x2c] sm:$0xf]
    %v5782 = vld [vmem:[%s5769 + $0x30] sm:$0xf]
    %v5783 = vld [vmem:[%s5769 + $0x34] sm:$0xf]
    %v5784 = vld [vmem:[%s5769 + $0x38] sm:$0xf]
    %v5785 = vld [vmem:[%s5769 + $0x3c] sm:$0xf]
    %v5802 = vunpack.c.l.b16 %v5770
    %v5803 = vunpack.c.l.b16 %v5771
    %v5804 = vunpack.c.l.b16 %v5772
    %v5805 = vunpack.c.l.b16 %v5773
    %v5806 = vunpack.c.l.b16 %v5774
    %v5807 = vunpack.c.l.b16 %v5775
    %v5808 = vunpack.c.l.b16 %v5776
    %v5809 = vunpack.c.l.b16 %v5777
    %v5810 = vunpack.c.l.b16 %v5778
    %v5811 = vunpack.c.l.b16 %v5779
    %v5812 = vunpack.c.l.b16 %v5780
    %v5813 = vunpack.c.l.b16 %v5781
    %v5814 = vunpack.c.l.b16 %v5782
    %v5815 = vunpack.c.l.b16 %v5783
    %v5816 = vunpack.c.l.b16 %v5784
    %v5817 = vunpack.c.l.b16 %v5785
    %v5818 = vpack.c.b16 %v5803, %v5802
    %v5819 = vpack.c.b16 %v5805, %v5804
    %v5820 = vpack.c.b16 %v5807, %v5806
    %v5821 = vpack.c.b16 %v5809, %v5808
    %v5822 = vpack.c.b16 %v5811, %v5810
    %v5823 = vpack.c.b16 %v5813, %v5812
    %v5824 = vpack.c.b16 %v5815, %v5814
    %v5825 = vpack.c.b16 %v5817, %v5816
    %5834 = vmatprep.subr.bf16.mxu0 0
    %5835 = vmatpush1.bf16.msra.mxu0 %v5825
    %5836 = vmatprep.subr.bf16.mxu0 0
    %5837 = vmatpush1.bf16.msra.mxu0 %v5824
    %5838 = vmatprep.subr.bf16.mxu0 0
    %5839 = vmatpush1.bf16.msra.mxu0 %v5823
    %5840 = vmatprep.subr.bf16.mxu0 0
    %5841 = vmatpush1.bf16.msra.mxu0 %v5822
    %5842 = vmatprep.subr.bf16.mxu0 0
    %5843 = vmatpush1.bf16.msra.mxu0 %v5821
    %5844 = vmatprep.subr.bf16.mxu0 0
    %5845 = vmatpush1.bf16.msra.mxu0 %v5820
    %5846 = vmatprep.subr.bf16.mxu0 0
    %5847 = vmatpush1.bf16.msra.mxu0 %v5819
    %5848 = vmatprep.subr.bf16.mxu0 0
    %5849 = vmatpush1.bf16.msra.mxu0 %v5818
    %5850 = vmatprep.subr.bf16.mxu0 0
    %5851 = vmatpush2.bf16.msra.mxu0 0
    %5852 = vmatprep.subr.bf16.mxu0 0
    %5853 = vmatpush2.bf16.msra.mxu0 0
    %5854 = vmatprep.subr.bf16.mxu0 0
    %5855 = vmatpush2.bf16.msra.mxu0 0
    %5856 = vmatprep.subr.bf16.mxu0 0
    %5857 = vmatpush2.bf16.msra.mxu0 0
    %5858 = vmatprep.subr.bf16.mxu0 0
    %5859 = vmatpush2.bf16.msra.mxu0 0
    %5860 = vmatprep.subr.bf16.mxu0 0
    %5861 = vmatpush2.bf16.msra.mxu0 0
    %5862 = vmatprep.subr.bf16.mxu0 0
    %5863 = vmatpush2.bf16.msra.mxu0 0
    %5864 = vmatprep.subr.bf16.mxu0 0
    %5865 = vmatpush2.bf16.msra.mxu0 0
    %5866 = vmatprep.mubr.bf16.mxu0 0
    %5867 = vmatmul.mubr.bf16.gmra.mxu0 %v5737
    %v5868 = vpop.f32.mrf.mxu0
    %v5869 = vadd.f32 0.0, %v5868
    %v5870 = vpop.f32.mrf.mxu0
    %v5871 = vpop.f32.mrf.mxu0
    %v5872 = vadd.f32 0.0, %v5871
    %v5873 = vpop.f32.mrf.mxu0
    %5874 = vmatprep.mubr.bf16.mxu0 0
    %5875 = vmatmul.mubr.bf16.gmra.mxu0 %v5738
    %v5876 = vpop.f32.mrf.mxu0
    %v5877 = vadd.f32 0.0, %v5876
    %v5878 = vpop.f32.mrf.mxu0
    %v5879 = vpop.f32.mrf.mxu0
    %v5880 = vadd.f32 0.0, %v5879
    %v5881 = vpop.f32.mrf.mxu0
    %5882 = vmatprep.mubr.bf16.mxu0 0
    %5883 = vmatmul.mubr.bf16.gmra.mxu0 %v5739
    %v5884 = vpop.f32.mrf.mxu0
    %v5885 = vadd.f32 0.0, %v5884
    %v5886 = vpop.f32.mrf.mxu0
    %v5887 = vpop.f32.mrf.mxu0
    %v5888 = vadd.f32 0.0, %v5887
    %v5889 = vpop.f32.mrf.mxu0
    %5890 = vmatprep.mubr.bf16.mxu0 0
    %5891 = vmatmul.mubr.bf16.gmra.mxu0 %v5740
    %v5892 = vpop.f32.mrf.mxu0
    %v5893 = vadd.f32 0.0, %v5892
    %v5894 = vpop.f32.mrf.mxu0
    %v5895 = vpop.f32.mrf.mxu0
    %v5896 = vadd.f32 0.0, %v5895
    %v5897 = vpop.f32.mrf.mxu0
    %5898 = vmatprep.mubr.bf16.mxu0 0
    %5899 = vmatmul.mubr.bf16.gmra.mxu0 %v5741
    %v5900 = vpop.f32.mrf.mxu0
    %v5901 = vadd.f32 0.0, %v5900
    %v5902 = vpop.f32.mrf.mxu0
    %v5903 = vpop.f32.mrf.mxu0
    %v5904 = vadd.f32 0.0, %v5903
    %v5905 = vpop.f32.mrf.mxu0
    %5906 = vmatprep.mubr.bf16.mxu0 0
    %5907 = vmatmul.mubr.bf16.gmra.mxu0 %v5742
    %v5908 = vpop.f32.mrf.mxu0
    %v5909 = vadd.f32 0.0, %v5908
    %v5910 = vpop.f32.mrf.mxu0
    %v5911 = vpop.f32.mrf.mxu0
    %v5912 = vadd.f32 0.0, %v5911
    %v5913 = vpop.f32.mrf.mxu0
    %5914 = vmatprep.mubr.bf16.mxu0 0
    %5915 = vmatmul.mubr.bf16.gmra.mxu0 %v5743
    %v5916 = vpop.f32.mrf.mxu0
    %v5917 = vadd.f32 0.0, %v5916
    %v5918 = vpop.f32.mrf.mxu0
    %v5919 = vpop.f32.mrf.mxu0
    %v5920 = vadd.f32 0.0, %v5919
    %v5921 = vpop.f32.mrf.mxu0
    %5922 = vmatprep.mubr.bf16.mxu0 0
    %5923 = vmatmul.mubr.bf16.gmra.mxu0 %v5744
    %v5924 = vpop.f32.mrf.mxu0
    %v5925 = vadd.f32 0.0, %v5924
    %v5926 = vpop.f32.mrf.mxu0
    %v5927 = vpop.f32.mrf.mxu0
    %v5928 = vadd.f32 0.0, %v5927
    %v5929 = vpop.f32.mrf.mxu0
    %5930 = vmatprep.mubr.bf16.mxu0 0
    %5931 = vmatmul.mubr.bf16.gmra.mxu0 %v5745
    %v5932 = vpop.f32.mrf.mxu0
    %v5933 = vadd.f32 0.0, %v5932
    %v5934 = vpop.f32.mrf.mxu0
    %v5935 = vpop.f32.mrf.mxu0
    %v5936 = vadd.f32 0.0, %v5935
    %v5937 = vpop.f32.mrf.mxu0
    %5938 = vmatprep.mubr.bf16.mxu0 0
    %5939 = vmatmul.mubr.bf16.gmra.mxu0 %v5746
    %v5940 = vpop.f32.mrf.mxu0
    %v5941 = vadd.f32 0.0, %v5940
    %v5942 = vpop.f32.mrf.mxu0
    %v5943 = vpop.f32.mrf.mxu0
    %v5944 = vadd.f32 0.0, %v5943
    %v5945 = vpop.f32.mrf.mxu0
    %5946 = vmatprep.mubr.bf16.mxu0 0
    %5947 = vmatmul.mubr.bf16.gmra.mxu0 %v5747
    %v5948 = vpop.f32.mrf.mxu0
    %v5949 = vadd.f32 0.0, %v5948
    %v5950 = vpop.f32.mrf.mxu0
    %v5951 = vpop.f32.mrf.mxu0
    %v5952 = vadd.f32 0.0, %v5951
    %v5953 = vpop.f32.mrf.mxu0
    %5954 = vmatprep.mubr.bf16.mxu0 0
    %5955 = vmatmul.mubr.bf16.gmra.mxu0 %v5748
    %v5956 = vpop.f32.mrf.mxu0
    %v5957 = vadd.f32 0.0, %v5956
    %v5958 = vpop.f32.mrf.mxu0
    %v5959 = vpop.f32.mrf.mxu0
    %v5960 = vadd.f32 0.0, %v5959
    %v5961 = vpop.f32.mrf.mxu0
    %5962 = vmatprep.mubr.bf16.mxu0 0
    %5963 = vmatmul.mubr.bf16.gmra.mxu0 %v5749
    %v5964 = vpop.f32.mrf.mxu0
    %v5965 = vadd.f32 0.0, %v5964
    %v5966 = vpop.f32.mrf.mxu0
    %v5967 = vpop.f32.mrf.mxu0
    %v5968 = vadd.f32 0.0, %v5967
    %v5969 = vpop.f32.mrf.mxu0
    %5970 = vmatprep.mubr.bf16.mxu0 0
    %5971 = vmatmul.mubr.bf16.gmra.mxu0 %v5750
    %v5972 = vpop.f32.mrf.mxu0
    %v5973 = vadd.f32 0.0, %v5972
    %v5974 = vpop.f32.mrf.mxu0
    %v5975 = vpop.f32.mrf.mxu0
    %v5976 = vadd.f32 0.0, %v5975
    %v5977 = vpop.f32.mrf.mxu0
    %5978 = vmatprep.mubr.bf16.mxu0 0
    %5979 = vmatmul.mubr.bf16.gmra.mxu0 %v5751
    %v5980 = vpop.f32.mrf.mxu0
    %v5981 = vadd.f32 0.0, %v5980
    %v5982 = vpop.f32.mrf.mxu0
    %v5983 = vpop.f32.mrf.mxu0
    %v5984 = vadd.f32 0.0, %v5983
    %v5985 = vpop.f32.mrf.mxu0
    %5986 = vmatprep.mubr.bf16.mxu0 0
    %5987 = vmatmul.mubr.bf16.gmra.mxu0 %v5752
    %v5988 = vpop.f32.mrf.mxu0
    %v5989 = vadd.f32 0.0, %v5988
    %v5990 = vpop.f32.mrf.mxu0
    %v5991 = vpop.f32.mrf.mxu0
    %v5992 = vadd.f32 0.0, %v5991
    %v5993 = vpop.f32.mrf.mxu0
    %5994 = vmatprep.mubr.bf16.mxu0 0
    %5995 = vmatmul.mubr.bf16.gmra.mxu0 %v5753
    %v5996 = vpop.f32.mrf.mxu0
    %v5997 = vadd.f32 0.0, %v5996
    %v5998 = vpop.f32.mrf.mxu0
    %v5999 = vpop.f32.mrf.mxu0
    %v6000 = vadd.f32 0.0, %v5999
    %v6001 = vpop.f32.mrf.mxu0
    %6002 = vmatprep.mubr.bf16.mxu0 0
    %6003 = vmatmul.mubr.bf16.gmra.mxu0 %v5754
    %v6004 = vpop.f32.mrf.mxu0
    %v6005 = vadd.f32 0.0, %v6004
    %v6006 = vpop.f32.mrf.mxu0
    %v6007 = vpop.f32.mrf.mxu0
    %v6008 = vadd.f32 0.0, %v6007
    %v6009 = vpop.f32.mrf.mxu0
    %6010 = vmatprep.mubr.bf16.mxu0 0
    %6011 = vmatmul.mubr.bf16.gmra.mxu0 %v5755
    %v6012 = vpop.f32.mrf.mxu0
    %v6013 = vadd.f32 0.0, %v6012
    %v6014 = vpop.f32.mrf.mxu0
    %v6015 = vpop.f32.mrf.mxu0
    %v6016 = vadd.f32 0.0, %v6015
    %v6017 = vpop.f32.mrf.mxu0
    %6018 = vmatprep.mubr.bf16.mxu0 0
    %6019 = vmatmul.mubr.bf16.gmra.mxu0 %v5756
    %v6020 = vpop.f32.mrf.mxu0
    %v6021 = vadd.f32 0.0, %v6020
    %v6022 = vpop.f32.mrf.mxu0
    %v6023 = vpop.f32.mrf.mxu0
    %v6024 = vadd.f32 0.0, %v6023
    %v6025 = vpop.f32.mrf.mxu0
    %6026 = vmatprep.mubr.bf16.mxu0 0
    %6027 = vmatmul.mubr.bf16.gmra.mxu0 %v5757
    %v6028 = vpop.f32.mrf.mxu0
    %v6029 = vadd.f32 0.0, %v6028
    %v6030 = vpop.f32.mrf.mxu0
    %v6031 = vpop.f32.mrf.mxu0
    %v6032 = vadd.f32 0.0, %v6031
    %v6033 = vpop.f32.mrf.mxu0
    %6034 = vmatprep.mubr.bf16.mxu0 0
    %6035 = vmatmul.mubr.bf16.gmra.mxu0 %v5758
    %v6036 = vpop.f32.mrf.mxu0
    %v6037 = vadd.f32 0.0, %v6036
    %v6038 = vpop.f32.mrf.mxu0
    %v6039 = vpop.f32.mrf.mxu0
    %v6040 = vadd.f32 0.0, %v6039
    %v6041 = vpop.f32.mrf.mxu0
    %6042 = vmatprep.mubr.bf16.mxu0 0
    %6043 = vmatmul.mubr.bf16.gmra.mxu0 %v5759
    %v6044 = vpop.f32.mrf.mxu0
    %v6045 = vadd.f32 0.0, %v6044
    %v6046 = vpop.f32.mrf.mxu0
    %v6047 = vpop.f32.mrf.mxu0
    %v6048 = vadd.f32 0.0, %v6047
    %v6049 = vpop.f32.mrf.mxu0
    %6050 = vmatprep.mubr.bf16.mxu0 0
    %6051 = vmatmul.mubr.bf16.gmra.mxu0 %v5760
    %v6052 = vpop.f32.mrf.mxu0
    %v6053 = vadd.f32 0.0, %v6052
    %v6054 = vpop.f32.mrf.mxu0
    %v6055 = vpop.f32.mrf.mxu0
    %v6056 = vadd.f32 0.0, %v6055
    %v6057 = vpop.f32.mrf.mxu0
    %6058 = vmatprep.mubr.bf16.mxu0 0
    %6059 = vmatmul.mubr.bf16.gmra.mxu0 %v5761
    %v6060 = vpop.f32.mrf.mxu0
    %v6061 = vadd.f32 0.0, %v6060
    %v6062 = vpop.f32.mrf.mxu0
    %v6063 = vpop.f32.mrf.mxu0
    %v6064 = vadd.f32 0.0, %v6063
    %v6065 = vpop.f32.mrf.mxu0
    %6066 = vmatprep.mubr.bf16.mxu0 0
    %6067 = vmatmul.mubr.bf16.gmra.mxu0 %v5762
    %v6068 = vpop.f32.mrf.mxu0
    %v6069 = vadd.f32 0.0, %v6068
    %v6070 = vpop.f32.mrf.mxu0
    %v6071 = vpop.f32.mrf.mxu0
    %v6072 = vadd.f32 0.0, %v6071
    %v6073 = vpop.f32.mrf.mxu0
    %6074 = vmatprep.mubr.bf16.mxu0 0
    %6075 = vmatmul.mubr.bf16.gmra.mxu0 %v5763
    %v6076 = vpop.f32.mrf.mxu0
    %v6077 = vadd.f32 0.0, %v6076
    %v6078 = vpop.f32.mrf.mxu0
    %v6079 = vpop.f32.mrf.mxu0
    %v6080 = vadd.f32 0.0, %v6079
    %v6081 = vpop.f32.mrf.mxu0
    %6082 = vmatprep.mubr.bf16.mxu0 0
    %6083 = vmatmul.mubr.bf16.gmra.mxu0 %v5764
    %v6084 = vpop.f32.mrf.mxu0
    %v6085 = vadd.f32 0.0, %v6084
    %v6086 = vpop.f32.mrf.mxu0
    %v6087 = vpop.f32.mrf.mxu0
    %v6088 = vadd.f32 0.0, %v6087
    %v6089 = vpop.f32.mrf.mxu0
    %6090 = vmatprep.mubr.bf16.mxu0 0
    %6091 = vmatmul.mubr.bf16.gmra.mxu0 %v5765
    %v6092 = vpop.f32.mrf.mxu0
    %v6093 = vadd.f32 0.0, %v6092
    %v6094 = vpop.f32.mrf.mxu0
    %v6095 = vpop.f32.mrf.mxu0
    %v6096 = vadd.f32 0.0, %v6095
    %v6097 = vpop.f32.mrf.mxu0
    %6098 = vmatprep.mubr.bf16.mxu0 0
    %6099 = vmatmul.mubr.bf16.gmra.mxu0 %v5766
    %v6100 = vpop.f32.mrf.mxu0
    %v6101 = vadd.f32 0.0, %v6100
    %v6102 = vpop.f32.mrf.mxu0
    %v6103 = vpop.f32.mrf.mxu0
    %v6104 = vadd.f32 0.0, %v6103
    %v6105 = vpop.f32.mrf.mxu0
    %6106 = vmatprep.mubr.bf16.mxu0 0
    %6107 = vmatmul.mubr.bf16.gmra.mxu0 %v5767
    %v6108 = vpop.f32.mrf.mxu0
    %v6109 = vadd.f32 0.0, %v6108
    %v6110 = vpop.f32.mrf.mxu0
    %v6111 = vpop.f32.mrf.mxu0
    %v6112 = vadd.f32 0.0, %v6111
    %v6113 = vpop.f32.mrf.mxu0
    %6114 = vmatprep.mubr.bf16.mxu0 0
    %6115 = vmatmul.mubr.bf16.gmra.mxu0 %v5768
    %v6116 = vpop.f32.mrf.mxu0
    %v6117 = vadd.f32 0.0, %v6116
    %v6118 = vpop.f32.mrf.mxu0
    %v6119 = vpop.f32.mrf.mxu0
    %v6120 = vadd.f32 0.0, %v6119
    %v6121 = vpop.f32.mrf.mxu0
    %6122 = vdwg.mxu0
    %v6139 = vunpack.c.l.b16 %v5656
    %v6140 = vunpack.c.l.b16 %v5657
    %v6141 = vunpack.c.l.b16 %v5658
    %v6142 = vunpack.c.l.b16 %v5659
    %v6143 = vunpack.c.l.b16 %v5660
    %v6144 = vunpack.c.l.b16 %v5661
    %v6145 = vunpack.c.l.b16 %v5662
    %v6146 = vunpack.c.l.b16 %v5663
    %v6147 = vunpack.c.l.b16 %v5664
    %v6148 = vunpack.c.l.b16 %v5665
    %v6149 = vunpack.c.l.b16 %v5666
    %v6150 = vunpack.c.l.b16 %v5667
    %v6151 = vunpack.c.l.b16 %v5668
    %v6152 = vunpack.c.l.b16 %v5669
    %v6153 = vunpack.c.l.b16 %v5670
    %v6154 = vunpack.c.l.b16 %v5671
    %v6155 = vpack.c.b16 %v6140, %v6139
    %v6156 = vpack.c.b16 %v6142, %v6141
    %v6157 = vpack.c.b16 %v6144, %v6143
    %v6158 = vpack.c.b16 %v6146, %v6145
    %v6159 = vpack.c.b16 %v6148, %v6147
    %v6160 = vpack.c.b16 %v6150, %v6149
    %v6161 = vpack.c.b16 %v6152, %v6151
    %v6162 = vpack.c.b16 %v6154, %v6153
    %6171 = vmatprep.subr.bf16.mxu0 0
    %6172 = vmatpush1.bf16.msra.mxu0 %v6162
    %6173 = vmatprep.subr.bf16.mxu0 0
    %6174 = vmatpush1.bf16.msra.mxu0 %v6161
    %6175 = vmatprep.subr.bf16.mxu0 0
    %6176 = vmatpush1.bf16.msra.mxu0 %v6160
    %6177 = vmatprep.subr.bf16.mxu0 0
    %6178 = vmatpush1.bf16.msra.mxu0 %v6159
    %6179 = vmatprep.subr.bf16.mxu0 0
    %6180 = vmatpush1.bf16.msra.mxu0 %v6158
    %6181 = vmatprep.subr.bf16.mxu0 0
    %6182 = vmatpush1.bf16.msra.mxu0 %v6157
    %6183 = vmatprep.subr.bf16.mxu0 0
    %6184 = vmatpush1.bf16.msra.mxu0 %v6156
    %6185 = vmatprep.subr.bf16.mxu0 0
    %6186 = vmatpush1.bf16.msra.mxu0 %v6155
    %6187 = vmatprep.subr.bf16.mxu0 0
    %6188 = vmatpush2.bf16.msra.mxu0 0
    %6189 = vmatprep.subr.bf16.mxu0 0
    %6190 = vmatpush2.bf16.msra.mxu0 0
    %6191 = vmatprep.subr.bf16.mxu0 0
    %6192 = vmatpush2.bf16.msra.mxu0 0
    %6193 = vmatprep.subr.bf16.mxu0 0
    %6194 = vmatpush2.bf16.msra.mxu0 0
    %6195 = vmatprep.subr.bf16.mxu0 0
    %6196 = vmatpush2.bf16.msra.mxu0 0
    %6197 = vmatprep.subr.bf16.mxu0 0
    %6198 = vmatpush2.bf16.msra.mxu0 0
    %6199 = vmatprep.subr.bf16.mxu0 0
    %6200 = vmatpush2.bf16.msra.mxu0 0
    %6201 = vmatprep.subr.bf16.mxu0 0
    %6202 = vmatpush2.bf16.msra.mxu0 0
    %6203 = vmatprep.mubr.bf16.mxu0 0
    %6204 = vmatmul.mubr.bf16.gmra.mxu0 %v5624
    %v6205 = vpop.f32.mrf.mxu0
    %v6206 = vadd.f32 %v5869, %v6205
    %v6207 = vpop.f32.mrf.mxu0
    %v6208 = vpop.f32.mrf.mxu0
    %v6209 = vadd.f32 %v5872, %v6208
    %v6210 = vpop.f32.mrf.mxu0
    %6211 = vmatprep.mubr.bf16.mxu0 0
    %6212 = vmatmul.mubr.bf16.gmra.mxu0 %v5625
    %v6213 = vpop.f32.mrf.mxu0
    %v6214 = vadd.f32 %v5877, %v6213
    %v6215 = vpop.f32.mrf.mxu0
    %v6216 = vpop.f32.mrf.mxu0
    %v6217 = vadd.f32 %v5880, %v6216
    %v6218 = vpop.f32.mrf.mxu0
    %6219 = vmatprep.mubr.bf16.mxu0 0
    %6220 = vmatmul.mubr.bf16.gmra.mxu0 %v5626
    %v6221 = vpop.f32.mrf.mxu0
    %v6222 = vadd.f32 %v5885, %v6221
    %v6223 = vpop.f32.mrf.mxu0
    %v6224 = vpop.f32.mrf.mxu0
    %v6225 = vadd.f32 %v5888, %v6224
    %v6226 = vpop.f32.mrf.mxu0
    %6227 = vmatprep.mubr.bf16.mxu0 0
    %6228 = vmatmul.mubr.bf16.gmra.mxu0 %v5627
    %v6229 = vpop.f32.mrf.mxu0
    %v6230 = vadd.f32 %v5893, %v6229
    %v6231 = vpop.f32.mrf.mxu0
    %v6232 = vpop.f32.mrf.mxu0
    %v6233 = vadd.f32 %v5896, %v6232
    %v6234 = vpop.f32.mrf.mxu0
    %6235 = vmatprep.mubr.bf16.mxu0 0
    %6236 = vmatmul.mubr.bf16.gmra.mxu0 %v5628
    %v6237 = vpop.f32.mrf.mxu0
    %v6238 = vadd.f32 %v5901, %v6237
    %v6239 = vpop.f32.mrf.mxu0
    %v6240 = vpop.f32.mrf.mxu0
    %v6241 = vadd.f32 %v5904, %v6240
    %v6242 = vpop.f32.mrf.mxu0
    %6243 = vmatprep.mubr.bf16.mxu0 0
    %6244 = vmatmul.mubr.bf16.gmra.mxu0 %v5629
    %v6245 = vpop.f32.mrf.mxu0
    %v6246 = vadd.f32 %v5909, %v6245
    %v6247 = vpop.f32.mrf.mxu0
    %v6248 = vpop.f32.mrf.mxu0
    %v6249 = vadd.f32 %v5912, %v6248
    %v6250 = vpop.f32.mrf.mxu0
    %6251 = vmatprep.mubr.bf16.mxu0 0
    %6252 = vmatmul.mubr.bf16.gmra.mxu0 %v5630
    %v6253 = vpop.f32.mrf.mxu0
    %v6254 = vadd.f32 %v5917, %v6253
    %v6255 = vpop.f32.mrf.mxu0
    %v6256 = vpop.f32.mrf.mxu0
    %v6257 = vadd.f32 %v5920, %v6256
    %v6258 = vpop.f32.mrf.mxu0
    %6259 = vmatprep.mubr.bf16.mxu0 0
    %6260 = vmatmul.mubr.bf16.gmra.mxu0 %v5631
    %v6261 = vpop.f32.mrf.mxu0
    %v6262 = vadd.f32 %v5925, %v6261
    %v6263 = vpop.f32.mrf.mxu0
    %v6264 = vpop.f32.mrf.mxu0
    %v6265 = vadd.f32 %v5928, %v6264
    %v6266 = vpop.f32.mrf.mxu0
    %6267 = vmatprep.mubr.bf16.mxu0 0
    %6268 = vmatmul.mubr.bf16.gmra.mxu0 %v5632
    %v6269 = vpop.f32.mrf.mxu0
    %v6270 = vadd.f32 %v5933, %v6269
    %v6271 = vpop.f32.mrf.mxu0
    %v6272 = vpop.f32.mrf.mxu0
    %v6273 = vadd.f32 %v5936, %v6272
    %v6274 = vpop.f32.mrf.mxu0
    %6275 = vmatprep.mubr.bf16.mxu0 0
    %6276 = vmatmul.mubr.bf16.gmra.mxu0 %v5633
    %v6277 = vpop.f32.mrf.mxu0
    %v6278 = vadd.f32 %v5941, %v6277
    %v6279 = vpop.f32.mrf.mxu0
    %v6280 = vpop.f32.mrf.mxu0
    %v6281 = vadd.f32 %v5944, %v6280
    %v6282 = vpop.f32.mrf.mxu0
    %6283 = vmatprep.mubr.bf16.mxu0 0
    %6284 = vmatmul.mubr.bf16.gmra.mxu0 %v5634
    %v6285 = vpop.f32.mrf.mxu0
    %v6286 = vadd.f32 %v5949, %v6285
    %v6287 = vpop.f32.mrf.mxu0
    %v6288 = vpop.f32.mrf.mxu0
    %v6289 = vadd.f32 %v5952, %v6288
    %v6290 = vpop.f32.mrf.mxu0
    %6291 = vmatprep.mubr.bf16.mxu0 0
    %6292 = vmatmul.mubr.bf16.gmra.mxu0 %v5635
    %v6293 = vpop.f32.mrf.mxu0
    %v6294 = vadd.f32 %v5957, %v6293
    %v6295 = vpop.f32.mrf.mxu0
    %v6296 = vpop.f32.mrf.mxu0
    %v6297 = vadd.f32 %v5960, %v6296
    %v6298 = vpop.f32.mrf.mxu0
    %6299 = vmatprep.mubr.bf16.mxu0 0
    %6300 = vmatmul.mubr.bf16.gmra.mxu0 %v5636
    %v6301 = vpop.f32.mrf.mxu0
    %v6302 = vadd.f32 %v5965, %v6301
    %v6303 = vpop.f32.mrf.mxu0
    %v6304 = vpop.f32.mrf.mxu0
    %v6305 = vadd.f32 %v5968, %v6304
    %v6306 = vpop.f32.mrf.mxu0
    %6307 = vmatprep.mubr.bf16.mxu0 0
    %6308 = vmatmul.mubr.bf16.gmra.mxu0 %v5637
    %v6309 = vpop.f32.mrf.mxu0
    %v6310 = vadd.f32 %v5973, %v6309
    %v6311 = vpop.f32.mrf.mxu0
    %v6312 = vpop.f32.mrf.mxu0
    %v6313 = vadd.f32 %v5976, %v6312
    %v6314 = vpop.f32.mrf.mxu0
    %6315 = vmatprep.mubr.bf16.mxu0 0
    %6316 = vmatmul.mubr.bf16.gmra.mxu0 %v5638
    %v6317 = vpop.f32.mrf.mxu0
    %v6318 = vadd.f32 %v5981, %v6317
    %v6319 = vpop.f32.mrf.mxu0
    %v6320 = vpop.f32.mrf.mxu0
    %v6321 = vadd.f32 %v5984, %v6320
    %v6322 = vpop.f32.mrf.mxu0
    %6323 = vmatprep.mubr.bf16.mxu0 0
    %6324 = vmatmul.mubr.bf16.gmra.mxu0 %v5639
    %v6325 = vpop.f32.mrf.mxu0
    %v6326 = vadd.f32 %v5989, %v6325
    %v6327 = vpop.f32.mrf.mxu0
    %v6328 = vpop.f32.mrf.mxu0
    %v6329 = vadd.f32 %v5992, %v6328
    %v6330 = vpop.f32.mrf.mxu0
    %6331 = vmatprep.mubr.bf16.mxu0 0
    %6332 = vmatmul.mubr.bf16.gmra.mxu0 %v5640
    %v6333 = vpop.f32.mrf.mxu0
    %v6334 = vadd.f32 %v5997, %v6333
    %v6335 = vpop.f32.mrf.mxu0
    %v6336 = vpop.f32.mrf.mxu0
    %v6337 = vadd.f32 %v6000, %v6336
    %v6338 = vpop.f32.mrf.mxu0
    %6339 = vmatprep.mubr.bf16.mxu0 0
    %6340 = vmatmul.mubr.bf16.gmra.mxu0 %v5641
    %v6341 = vpop.f32.mrf.mxu0
    %v6342 = vadd.f32 %v6005, %v6341
    %v6343 = vpop.f32.mrf.mxu0
    %v6344 = vpop.f32.mrf.mxu0
    %v6345 = vadd.f32 %v6008, %v6344
    %v6346 = vpop.f32.mrf.mxu0
    %6347 = vmatprep.mubr.bf16.mxu0 0
    %6348 = vmatmul.mubr.bf16.gmra.mxu0 %v5642
    %v6349 = vpop.f32.mrf.mxu0
    %v6350 = vadd.f32 %v6013, %v6349
    %v6351 = vpop.f32.mrf.mxu0
    %v6352 = vpop.f32.mrf.mxu0
    %v6353 = vadd.f32 %v6016, %v6352
    %v6354 = vpop.f32.mrf.mxu0
    %6355 = vmatprep.mubr.bf16.mxu0 0
    %6356 = vmatmul.mubr.bf16.gmra.mxu0 %v5643
    %v6357 = vpop.f32.mrf.mxu0
    %v6358 = vadd.f32 %v6021, %v6357
    %v6359 = vpop.f32.mrf.mxu0
    %v6360 = vpop.f32.mrf.mxu0
    %v6361 = vadd.f32 %v6024, %v6360
    %v6362 = vpop.f32.mrf.mxu0
    %6363 = vmatprep.mubr.bf16.mxu0 0
    %6364 = vmatmul.mubr.bf16.gmra.mxu0 %v5644
    %v6365 = vpop.f32.mrf.mxu0
    %v6366 = vadd.f32 %v6029, %v6365
    %v6367 = vpop.f32.mrf.mxu0
    %v6368 = vpop.f32.mrf.mxu0
    %v6369 = vadd.f32 %v6032, %v6368
    %v6370 = vpop.f32.mrf.mxu0
    %6371 = vmatprep.mubr.bf16.mxu0 0
    %6372 = vmatmul.mubr.bf16.gmra.mxu0 %v5645
    %v6373 = vpop.f32.mrf.mxu0
    %v6374 = vadd.f32 %v6037, %v6373
    %v6375 = vpop.f32.mrf.mxu0
    %v6376 = vpop.f32.mrf.mxu0
    %v6377 = vadd.f32 %v6040, %v6376
    %v6378 = vpop.f32.mrf.mxu0
    %6379 = vmatprep.mubr.bf16.mxu0 0
    %6380 = vmatmul.mubr.bf16.gmra.mxu0 %v5646
    %v6381 = vpop.f32.mrf.mxu0
    %v6382 = vadd.f32 %v6045, %v6381
    %v6383 = vpop.f32.mrf.mxu0
    %v6384 = vpop.f32.mrf.mxu0
    %v6385 = vadd.f32 %v6048, %v6384
    %v6386 = vpop.f32.mrf.mxu0
    %6387 = vmatprep.mubr.bf16.mxu0 0
    %6388 = vmatmul.mubr.bf16.gmra.mxu0 %v5647
    %v6389 = vpop.f32.mrf.mxu0
    %v6390 = vadd.f32 %v6053, %v6389
    %v6391 = vpop.f32.mrf.mxu0
    %v6392 = vpop.f32.mrf.mxu0
    %v6393 = vadd.f32 %v6056, %v6392
    %v6394 = vpop.f32.mrf.mxu0
    %6395 = vmatprep.mubr.bf16.mxu0 0
    %6396 = vmatmul.mubr.bf16.gmra.mxu0 %v5648
    %v6397 = vpop.f32.mrf.mxu0
    %v6398 = vadd.f32 %v6061, %v6397
    %v6399 = vpop.f32.mrf.mxu0
    %v6400 = vpop.f32.mrf.mxu0
    %v6401 = vadd.f32 %v6064, %v6400
    %v6402 = vpop.f32.mrf.mxu0
    %6403 = vmatprep.mubr.bf16.mxu0 0
    %6404 = vmatmul.mubr.bf16.gmra.mxu0 %v5649
    %v6405 = vpop.f32.mrf.mxu0
    %v6406 = vadd.f32 %v6069, %v6405
    %v6407 = vpop.f32.mrf.mxu0
    %v6408 = vpop.f32.mrf.mxu0
    %v6409 = vadd.f32 %v6072, %v6408
    %v6410 = vpop.f32.mrf.mxu0
    %6411 = vmatprep.mubr.bf16.mxu0 0
    %6412 = vmatmul.mubr.bf16.gmra.mxu0 %v5650
    %v6413 = vpop.f32.mrf.mxu0
    %v6414 = vadd.f32 %v6077, %v6413
    %v6415 = vpop.f32.mrf.mxu0
    %v6416 = vpop.f32.mrf.mxu0
    %v6417 = vadd.f32 %v6080, %v6416
    %v6418 = vpop.f32.mrf.mxu0
    %6419 = vmatprep.mubr.bf16.mxu0 0
    %6420 = vmatmul.mubr.bf16.gmra.mxu0 %v5651
    %v6421 = vpop.f32.mrf.mxu0
    %v6422 = vadd.f32 %v6085, %v6421
    %v6423 = vpop.f32.mrf.mxu0
    %v6424 = vpop.f32.mrf.mxu0
    %v6425 = vadd.f32 %v6088, %v6424
    %v6426 = vpop.f32.mrf.mxu0
    %6427 = vmatprep.mubr.bf16.mxu0 0
    %6428 = vmatmul.mubr.bf16.gmra.mxu0 %v5652
    %v6429 = vpop.f32.mrf.mxu0
    %v6430 = vadd.f32 %v6093, %v6429
    %v6431 = vpop.f32.mrf.mxu0
    %v6432 = vpop.f32.mrf.mxu0
    %v6433 = vadd.f32 %v6096, %v6432
    %v6434 = vpop.f32.mrf.mxu0
    %6435 = vmatprep.mubr.bf16.mxu0 0
    %6436 = vmatmul.mubr.bf16.gmra.mxu0 %v5653
    %v6437 = vpop.f32.mrf.mxu0
    %v6438 = vadd.f32 %v6101, %v6437
    %v6439 = vpop.f32.mrf.mxu0
    %v6440 = vpop.f32.mrf.mxu0
    %v6441 = vadd.f32 %v6104, %v6440
    %v6442 = vpop.f32.mrf.mxu0
    %6443 = vmatprep.mubr.bf16.mxu0 0
    %6444 = vmatmul.mubr.bf16.gmra.mxu0 %v5654
    %v6445 = vpop.f32.mrf.mxu0
    %v6446 = vadd.f32 %v6109, %v6445
    %v6447 = vpop.f32.mrf.mxu0
    %v6448 = vpop.f32.mrf.mxu0
    %v6449 = vadd.f32 %v6112, %v6448
    %v6450 = vpop.f32.mrf.mxu0
    %6451 = vmatprep.mubr.bf16.mxu0 0
    %6452 = vmatmul.mubr.bf16.gmra.mxu0 %v5655
    %v6453 = vpop.f32.mrf.mxu0
    %v6454 = vadd.f32 %v6117, %v6453
    %v6455 = vpop.f32.mrf.mxu0
    %v6456 = vpop.f32.mrf.mxu0
    %v6457 = vadd.f32 %v6120, %v6456
    %v6458 = vpop.f32.mrf.mxu0
    %6459 = vdwg.mxu0
    %s6460 = scalar_lea.vmem [#allocation2], 168
    %v6461 = vld [vmem:[%s6460] sm:$0xff]
    %v6462 = vld [vmem:[%s6460 + $0x10] sm:$0xff]
    %v6463 = vld [vmem:[%s6460 + $0x20] sm:$0xff]
    %v6464 = vld [vmem:[%s6460 + $0x30] sm:$0xff]
    %v6465 = vld [vmem:[%s6460 + $0x40] sm:$0xff]
    %v6466 = vld [vmem:[%s6460 + $0x50] sm:$0xff]
    %v6467 = vld [vmem:[%s6460 + $0x60] sm:$0xff]
    %v6468 = vld [vmem:[%s6460 + $0x70] sm:$0xff]
    %v6469 = vld [vmem:[%s6460 + $0x120] sm:$0xff]
    %v6470 = vld [vmem:[%s6460 + $0x130] sm:$0xff]
    %v6471 = vld [vmem:[%s6460 + $0x140] sm:$0xff]
    %v6472 = vld [vmem:[%s6460 + $0x150] sm:$0xff]
    %v6473 = vld [vmem:[%s6460 + $0x160] sm:$0xff]
    %v6474 = vld [vmem:[%s6460 + $0x170] sm:$0xff]
    %v6475 = vld [vmem:[%s6460 + $0x180] sm:$0xff]
    %v6476 = vld [vmem:[%s6460 + $0x190] sm:$0xff]
    %v6477 = vld [vmem:[%s6460 + $0x240] sm:$0xff]
    %v6478 = vld [vmem:[%s6460 + $0x250] sm:$0xff]
    %v6479 = vld [vmem:[%s6460 + $0x260] sm:$0xff]
    %v6480 = vld [vmem:[%s6460 + $0x270] sm:$0xff]
    %v6481 = vld [vmem:[%s6460 + $0x280] sm:$0xff]
    %v6482 = vld [vmem:[%s6460 + $0x290] sm:$0xff]
    %v6483 = vld [vmem:[%s6460 + $0x2a0] sm:$0xff]
    %v6484 = vld [vmem:[%s6460 + $0x2b0] sm:$0xff]
    %v6485 = vld [vmem:[%s6460 + $0x360] sm:$0xff]
    %v6486 = vld [vmem:[%s6460 + $0x370] sm:$0xff]
    %v6487 = vld [vmem:[%s6460 + $0x380] sm:$0xff]
    %v6488 = vld [vmem:[%s6460 + $0x390] sm:$0xff]
    %v6489 = vld [vmem:[%s6460 + $0x3a0] sm:$0xff]
    %v6490 = vld [vmem:[%s6460 + $0x3b0] sm:$0xff]
    %v6491 = vld [vmem:[%s6460 + $0x3c0] sm:$0xff]
    %v6492 = vld [vmem:[%s6460 + $0x3d0] sm:$0xff]
    %v6493 = vld [vmem:[%s6460 + $0x480] sm:$0xff]
    %v6494 = vld [vmem:[%s6460 + $0x490] sm:$0xff]
    %v6495 = vld [vmem:[%s6460 + $0x4a0] sm:$0xff]
    %v6496 = vld [vmem:[%s6460 + $0x4b0] sm:$0xff]
    %v6497 = vld [vmem:[%s6460 + $0x4c0] sm:$0xff]
    %v6498 = vld [vmem:[%s6460 + $0x4d0] sm:$0xff]
    %v6499 = vld [vmem:[%s6460 + $0x4e0] sm:$0xff]
    %v6500 = vld [vmem:[%s6460 + $0x4f0] sm:$0xff]
    %v6501 = vld [vmem:[%s6460 + $0x5a0] sm:$0xff]
    %v6502 = vld [vmem:[%s6460 + $0x5b0] sm:$0xff]
    %v6503 = vld [vmem:[%s6460 + $0x5c0] sm:$0xff]
    %v6504 = vld [vmem:[%s6460 + $0x5d0] sm:$0xff]
    %v6505 = vld [vmem:[%s6460 + $0x5e0] sm:$0xff]
    %v6506 = vld [vmem:[%s6460 + $0x5f0] sm:$0xff]
    %v6507 = vld [vmem:[%s6460 + $0x600] sm:$0xff]
    %v6508 = vld [vmem:[%s6460 + $0x610] sm:$0xff]
    %v6509 = vld [vmem:[%s6460 + $0x6c0] sm:$0xff]
    %v6510 = vld [vmem:[%s6460 + $0x6d0] sm:$0xff]
    %v6511 = vld [vmem:[%s6460 + $0x6e0] sm:$0xff]
    %v6512 = vld [vmem:[%s6460 + $0x6f0] sm:$0xff]
    %v6513 = vld [vmem:[%s6460 + $0x700] sm:$0xff]
    %v6514 = vld [vmem:[%s6460 + $0x710] sm:$0xff]
    %v6515 = vld [vmem:[%s6460 + $0x720] sm:$0xff]
    %v6516 = vld [vmem:[%s6460 + $0x730] sm:$0xff]
    %v6517 = vld [vmem:[%s6460 + $0x7e0] sm:$0xff]
    %v6518 = vld [vmem:[%s6460 + $0x7f0] sm:$0xff]
    %v6519 = vld [vmem:[%s6460 + $0x800] sm:$0xff]
    %v6520 = vld [vmem:[%s6460 + $0x810] sm:$0xff]
    %v6521 = vld [vmem:[%s6460 + $0x820] sm:$0xff]
    %v6522 = vld [vmem:[%s6460 + $0x830] sm:$0xff]
    %v6523 = vld [vmem:[%s6460 + $0x840] sm:$0xff]
    %v6524 = vld [vmem:[%s6460 + $0x850] sm:$0xff]
    %v6525 = vpack.c.bf16 %v6462, %v6461
    %v6526 = vpack.c.bf16 %v6464, %v6463
    %v6527 = vpack.c.bf16 %v6466, %v6465
    %v6528 = vpack.c.bf16 %v6468, %v6467
    %v6529 = vpack.c.bf16 %v6470, %v6469
    %v6530 = vpack.c.bf16 %v6472, %v6471
    %v6531 = vpack.c.bf16 %v6474, %v6473
    %v6532 = vpack.c.bf16 %v6476, %v6475
    %v6533 = vpack.c.bf16 %v6478, %v6477
    %v6534 = vpack.c.bf16 %v6480, %v6479
    %v6535 = vpack.c.bf16 %v6482, %v6481
    %v6536 = vpack.c.bf16 %v6484, %v6483
    %v6537 = vpack.c.bf16 %v6486, %v6485
    %v6538 = vpack.c.bf16 %v6488, %v6487
    %v6539 = vpack.c.bf16 %v6490, %v6489
    %v6540 = vpack.c.bf16 %v6492, %v6491
    %v6541 = vpack.c.bf16 %v6494, %v6493
    %v6542 = vpack.c.bf16 %v6496, %v6495
    %v6543 = vpack.c.bf16 %v6498, %v6497
    %v6544 = vpack.c.bf16 %v6500, %v6499
    %v6545 = vpack.c.bf16 %v6502, %v6501
    %v6546 = vpack.c.bf16 %v6504, %v6503
    %v6547 = vpack.c.bf16 %v6506, %v6505
    %v6548 = vpack.c.bf16 %v6508, %v6507
    %v6549 = vpack.c.bf16 %v6510, %v6509
    %v6550 = vpack.c.bf16 %v6512, %v6511
    %v6551 = vpack.c.bf16 %v6514, %v6513
    %v6552 = vpack.c.bf16 %v6516, %v6515
    %v6553 = vpack.c.bf16 %v6518, %v6517
    %v6554 = vpack.c.bf16 %v6520, %v6519
    %v6555 = vpack.c.bf16 %v6522, %v6521
    %v6556 = vpack.c.bf16 %v6524, %v6523
    %s6557 = scalar_lea.vmem [#allocation11], 128
    %v6558 = vld [vmem:[%s6557] sm:$0xf]
    %v6559 = vld [vmem:[%s6557 + $0x4] sm:$0xf]
    %v6560 = vld [vmem:[%s6557 + $0x8] sm:$0xf]
    %v6561 = vld [vmem:[%s6557 + $0xc] sm:$0xf]
    %v6562 = vld [vmem:[%s6557 + $0x10] sm:$0xf]
    %v6563 = vld [vmem:[%s6557 + $0x14] sm:$0xf]
    %v6564 = vld [vmem:[%s6557 + $0x18] sm:$0xf]
    %v6565 = vld [vmem:[%s6557 + $0x1c] sm:$0xf]
    %v6566 = vld [vmem:[%s6557 + $0x20] sm:$0xf]
    %v6567 = vld [vmem:[%s6557 + $0x24] sm:$0xf]
    %v6568 = vld [vmem:[%s6557 + $0x28] sm:$0xf]
    %v6569 = vld [vmem:[%s6557 + $0x2c] sm:$0xf]
    %v6570 = vld [vmem:[%s6557 + $0x30] sm:$0xf]
    %v6571 = vld [vmem:[%s6557 + $0x34] sm:$0xf]
    %v6572 = vld [vmem:[%s6557 + $0x38] sm:$0xf]
    %v6573 = vld [vmem:[%s6557 + $0x3c] sm:$0xf]
    %v6590 = vunpack.c.l.b16 %v6558
    %v6591 = vunpack.c.l.b16 %v6559
    %v6592 = vunpack.c.l.b16 %v6560
    %v6593 = vunpack.c.l.b16 %v6561
    %v6594 = vunpack.c.l.b16 %v6562
    %v6595 = vunpack.c.l.b16 %v6563
    %v6596 = vunpack.c.l.b16 %v6564
    %v6597 = vunpack.c.l.b16 %v6565
    %v6598 = vunpack.c.l.b16 %v6566
    %v6599 = vunpack.c.l.b16 %v6567
    %v6600 = vunpack.c.l.b16 %v6568
    %v6601 = vunpack.c.l.b16 %v6569
    %v6602 = vunpack.c.l.b16 %v6570
    %v6603 = vunpack.c.l.b16 %v6571
    %v6604 = vunpack.c.l.b16 %v6572
    %v6605 = vunpack.c.l.b16 %v6573
    %v6606 = vpack.c.b16 %v6591, %v6590
    %v6607 = vpack.c.b16 %v6593, %v6592
    %v6608 = vpack.c.b16 %v6595, %v6594
    %v6609 = vpack.c.b16 %v6597, %v6596
    %v6610 = vpack.c.b16 %v6599, %v6598
    %v6611 = vpack.c.b16 %v6601, %v6600
    %v6612 = vpack.c.b16 %v6603, %v6602
    %v6613 = vpack.c.b16 %v6605, %v6604
    %6622 = vmatprep.subr.bf16.mxu0 0
    %6623 = vmatpush1.bf16.msra.mxu0 %v6613
    %6624 = vmatprep.subr.bf16.mxu0 0
    %6625 = vmatpush1.bf16.msra.mxu0 %v6612
    %6626 = vmatprep.subr.bf16.mxu0 0
    %6627 = vmatpush1.bf16.msra.mxu0 %v6611
    %6628 = vmatprep.subr.bf16.mxu0 0
    %6629 = vmatpush1.bf16.msra.mxu0 %v6610
    %6630 = vmatprep.subr.bf16.mxu0 0
    %6631 = vmatpush1.bf16.msra.mxu0 %v6609
    %6632 = vmatprep.subr.bf16.mxu0 0
    %6633 = vmatpush1.bf16.msra.mxu0 %v6608
    %6634 = vmatprep.subr.bf16.mxu0 0
    %6635 = vmatpush1.bf16.msra.mxu0 %v6607
    %6636 = vmatprep.subr.bf16.mxu0 0
    %6637 = vmatpush1.bf16.msra.mxu0 %v6606
    %6638 = vmatprep.subr.bf16.mxu0 0
    %6639 = vmatpush2.bf16.msra.mxu0 0
    %6640 = vmatprep.subr.bf16.mxu0 0
    %6641 = vmatpush2.bf16.msra.mxu0 0
    %6642 = vmatprep.subr.bf16.mxu0 0
    %6643 = vmatpush2.bf16.msra.mxu0 0
    %6644 = vmatprep.subr.bf16.mxu0 0
    %6645 = vmatpush2.bf16.msra.mxu0 0
    %6646 = vmatprep.subr.bf16.mxu0 0
    %6647 = vmatpush2.bf16.msra.mxu0 0
    %6648 = vmatprep.subr.bf16.mxu0 0
    %6649 = vmatpush2.bf16.msra.mxu0 0
    %6650 = vmatprep.subr.bf16.mxu0 0
    %6651 = vmatpush2.bf16.msra.mxu0 0
    %6652 = vmatprep.subr.bf16.mxu0 0
    %6653 = vmatpush2.bf16.msra.mxu0 0
    %6654 = vmatprep.mubr.bf16.mxu0 0
    %6655 = vmatmul.mubr.bf16.gmra.mxu0 %v6525
    %v6656 = vpop.f32.mrf.mxu0
    %v6657 = vadd.f32 0.0, %v6656
    %v6658 = vpop.f32.mrf.mxu0
    %v6659 = vpop.f32.mrf.mxu0
    %v6660 = vadd.f32 0.0, %v6659
    %v6661 = vpop.f32.mrf.mxu0
    %6662 = vmatprep.mubr.bf16.mxu0 0
    %6663 = vmatmul.mubr.bf16.gmra.mxu0 %v6526
    %v6664 = vpop.f32.mrf.mxu0
    %v6665 = vadd.f32 0.0, %v6664
    %v6666 = vpop.f32.mrf.mxu0
    %v6667 = vpop.f32.mrf.mxu0
    %v6668 = vadd.f32 0.0, %v6667
    %v6669 = vpop.f32.mrf.mxu0
    %6670 = vmatprep.mubr.bf16.mxu0 0
    %6671 = vmatmul.mubr.bf16.gmra.mxu0 %v6527
    %v6672 = vpop.f32.mrf.mxu0
    %v6673 = vadd.f32 0.0, %v6672
    %v6674 = vpop.f32.mrf.mxu0
    %v6675 = vpop.f32.mrf.mxu0
    %v6676 = vadd.f32 0.0, %v6675
    %v6677 = vpop.f32.mrf.mxu0
    %6678 = vmatprep.mubr.bf16.mxu0 0
    %6679 = vmatmul.mubr.bf16.gmra.mxu0 %v6528
    %v6680 = vpop.f32.mrf.mxu0
    %v6681 = vadd.f32 0.0, %v6680
    %v6682 = vpop.f32.mrf.mxu0
    %v6683 = vpop.f32.mrf.mxu0
    %v6684 = vadd.f32 0.0, %v6683
    %v6685 = vpop.f32.mrf.mxu0
    %6686 = vmatprep.mubr.bf16.mxu0 0
    %6687 = vmatmul.mubr.bf16.gmra.mxu0 %v6529
    %v6688 = vpop.f32.mrf.mxu0
    %v6689 = vadd.f32 0.0, %v6688
    %v6690 = vpop.f32.mrf.mxu0
    %v6691 = vpop.f32.mrf.mxu0
    %v6692 = vadd.f32 0.0, %v6691
    %v6693 = vpop.f32.mrf.mxu0
    %6694 = vmatprep.mubr.bf16.mxu0 0
    %6695 = vmatmul.mubr.bf16.gmra.mxu0 %v6530
    %v6696 = vpop.f32.mrf.mxu0
    %v6697 = vadd.f32 0.0, %v6696
    %v6698 = vpop.f32.mrf.mxu0
    %v6699 = vpop.f32.mrf.mxu0
    %v6700 = vadd.f32 0.0, %v6699
    %v6701 = vpop.f32.mrf.mxu0
    %6702 = vmatprep.mubr.bf16.mxu0 0
    %6703 = vmatmul.mubr.bf16.gmra.mxu0 %v6531
    %v6704 = vpop.f32.mrf.mxu0
    %v6705 = vadd.f32 0.0, %v6704
    %v6706 = vpop.f32.mrf.mxu0
    %v6707 = vpop.f32.mrf.mxu0
    %v6708 = vadd.f32 0.0, %v6707
    %v6709 = vpop.f32.mrf.mxu0
    %6710 = vmatprep.mubr.bf16.mxu0 0
    %6711 = vmatmul.mubr.bf16.gmra.mxu0 %v6532
    %v6712 = vpop.f32.mrf.mxu0
    %v6713 = vadd.f32 0.0, %v6712
    %v6714 = vpop.f32.mrf.mxu0
    %v6715 = vpop.f32.mrf.mxu0
    %v6716 = vadd.f32 0.0, %v6715
    %v6717 = vpop.f32.mrf.mxu0
    %6718 = vmatprep.mubr.bf16.mxu0 0
    %6719 = vmatmul.mubr.bf16.gmra.mxu0 %v6533
    %v6720 = vpop.f32.mrf.mxu0
    %v6721 = vadd.f32 0.0, %v6720
    %v6722 = vpop.f32.mrf.mxu0
    %v6723 = vpop.f32.mrf.mxu0
    %v6724 = vadd.f32 0.0, %v6723
    %v6725 = vpop.f32.mrf.mxu0
    %6726 = vmatprep.mubr.bf16.mxu0 0
    %6727 = vmatmul.mubr.bf16.gmra.mxu0 %v6534
    %v6728 = vpop.f32.mrf.mxu0
    %v6729 = vadd.f32 0.0, %v6728
    %v6730 = vpop.f32.mrf.mxu0
    %v6731 = vpop.f32.mrf.mxu0
    %v6732 = vadd.f32 0.0, %v6731
    %v6733 = vpop.f32.mrf.mxu0
    %6734 = vmatprep.mubr.bf16.mxu0 0
    %6735 = vmatmul.mubr.bf16.gmra.mxu0 %v6535
    %v6736 = vpop.f32.mrf.mxu0
    %v6737 = vadd.f32 0.0, %v6736
    %v6738 = vpop.f32.mrf.mxu0
    %v6739 = vpop.f32.mrf.mxu0
    %v6740 = vadd.f32 0.0, %v6739
    %v6741 = vpop.f32.mrf.mxu0
    %6742 = vmatprep.mubr.bf16.mxu0 0
    %6743 = vmatmul.mubr.bf16.gmra.mxu0 %v6536
    %v6744 = vpop.f32.mrf.mxu0
    %v6745 = vadd.f32 0.0, %v6744
    %v6746 = vpop.f32.mrf.mxu0
    %v6747 = vpop.f32.mrf.mxu0
    %v6748 = vadd.f32 0.0, %v6747
    %v6749 = vpop.f32.mrf.mxu0
    %6750 = vmatprep.mubr.bf16.mxu0 0
    %6751 = vmatmul.mubr.bf16.gmra.mxu0 %v6537
    %v6752 = vpop.f32.mrf.mxu0
    %v6753 = vadd.f32 0.0, %v6752
    %v6754 = vpop.f32.mrf.mxu0
    %v6755 = vpop.f32.mrf.mxu0
    %v6756 = vadd.f32 0.0, %v6755
    %v6757 = vpop.f32.mrf.mxu0
    %6758 = vmatprep.mubr.bf16.mxu0 0
    %6759 = vmatmul.mubr.bf16.gmra.mxu0 %v6538
    %v6760 = vpop.f32.mrf.mxu0
    %v6761 = vadd.f32 0.0, %v6760
    %v6762 = vpop.f32.mrf.mxu0
    %v6763 = vpop.f32.mrf.mxu0
    %v6764 = vadd.f32 0.0, %v6763
    %v6765 = vpop.f32.mrf.mxu0
    %6766 = vmatprep.mubr.bf16.mxu0 0
    %6767 = vmatmul.mubr.bf16.gmra.mxu0 %v6539
    %v6768 = vpop.f32.mrf.mxu0
    %v6769 = vadd.f32 0.0, %v6768
    %v6770 = vpop.f32.mrf.mxu0
    %v6771 = vpop.f32.mrf.mxu0
    %v6772 = vadd.f32 0.0, %v6771
    %v6773 = vpop.f32.mrf.mxu0
    %6774 = vmatprep.mubr.bf16.mxu0 0
    %6775 = vmatmul.mubr.bf16.gmra.mxu0 %v6540
    %v6776 = vpop.f32.mrf.mxu0
    %v6777 = vadd.f32 0.0, %v6776
    %v6778 = vpop.f32.mrf.mxu0
    %v6779 = vpop.f32.mrf.mxu0
    %v6780 = vadd.f32 0.0, %v6779
    %v6781 = vpop.f32.mrf.mxu0
    %6782 = vmatprep.mubr.bf16.mxu0 0
    %6783 = vmatmul.mubr.bf16.gmra.mxu0 %v6541
    %v6784 = vpop.f32.mrf.mxu0
    %v6785 = vadd.f32 0.0, %v6784
    %v6786 = vpop.f32.mrf.mxu0
    %v6787 = vpop.f32.mrf.mxu0
    %v6788 = vadd.f32 0.0, %v6787
    %v6789 = vpop.f32.mrf.mxu0
    %6790 = vmatprep.mubr.bf16.mxu0 0
    %6791 = vmatmul.mubr.bf16.gmra.mxu0 %v6542
    %v6792 = vpop.f32.mrf.mxu0
    %v6793 = vadd.f32 0.0, %v6792
    %v6794 = vpop.f32.mrf.mxu0
    %v6795 = vpop.f32.mrf.mxu0
    %v6796 = vadd.f32 0.0, %v6795
    %v6797 = vpop.f32.mrf.mxu0
    %6798 = vmatprep.mubr.bf16.mxu0 0
    %6799 = vmatmul.mubr.bf16.gmra.mxu0 %v6543
    %v6800 = vpop.f32.mrf.mxu0
    %v6801 = vadd.f32 0.0, %v6800
    %v6802 = vpop.f32.mrf.mxu0
    %v6803 = vpop.f32.mrf.mxu0
    %v6804 = vadd.f32 0.0, %v6803
    %v6805 = vpop.f32.mrf.mxu0
    %6806 = vmatprep.mubr.bf16.mxu0 0
    %6807 = vmatmul.mubr.bf16.gmra.mxu0 %v6544
    %v6808 = vpop.f32.mrf.mxu0
    %v6809 = vadd.f32 0.0, %v6808
    %v6810 = vpop.f32.mrf.mxu0
    %v6811 = vpop.f32.mrf.mxu0
    %v6812 = vadd.f32 0.0, %v6811
    %v6813 = vpop.f32.mrf.mxu0
    %6814 = vmatprep.mubr.bf16.mxu0 0
    %6815 = vmatmul.mubr.bf16.gmra.mxu0 %v6545
    %v6816 = vpop.f32.mrf.mxu0
    %v6817 = vadd.f32 0.0, %v6816
    %v6818 = vpop.f32.mrf.mxu0
    %v6819 = vpop.f32.mrf.mxu0
    %v6820 = vadd.f32 0.0, %v6819
    %v6821 = vpop.f32.mrf.mxu0
    %6822 = vmatprep.mubr.bf16.mxu0 0
    %6823 = vmatmul.mubr.bf16.gmra.mxu0 %v6546
    %v6824 = vpop.f32.mrf.mxu0
    %v6825 = vadd.f32 0.0, %v6824
    %v6826 = vpop.f32.mrf.mxu0
    %v6827 = vpop.f32.mrf.mxu0
    %v6828 = vadd.f32 0.0, %v6827
    %v6829 = vpop.f32.mrf.mxu0
    %6830 = vmatprep.mubr.bf16.mxu0 0
    %6831 = vmatmul.mubr.bf16.gmra.mxu0 %v6547
    %v6832 = vpop.f32.mrf.mxu0
    %v6833 = vadd.f32 0.0, %v6832
    %v6834 = vpop.f32.mrf.mxu0
    %v6835 = vpop.f32.mrf.mxu0
    %v6836 = vadd.f32 0.0, %v6835
    %v6837 = vpop.f32.mrf.mxu0
    %6838 = vmatprep.mubr.bf16.mxu0 0
    %6839 = vmatmul.mubr.bf16.gmra.mxu0 %v6548
    %v6840 = vpop.f32.mrf.mxu0
    %v6841 = vadd.f32 0.0, %v6840
    %v6842 = vpop.f32.mrf.mxu0
    %v6843 = vpop.f32.mrf.mxu0
    %v6844 = vadd.f32 0.0, %v6843
    %v6845 = vpop.f32.mrf.mxu0
    %6846 = vmatprep.mubr.bf16.mxu0 0
    %6847 = vmatmul.mubr.bf16.gmra.mxu0 %v6549
    %v6848 = vpop.f32.mrf.mxu0
    %v6849 = vadd.f32 0.0, %v6848
    %v6850 = vpop.f32.mrf.mxu0
    %v6851 = vpop.f32.mrf.mxu0
    %v6852 = vadd.f32 0.0, %v6851
    %v6853 = vpop.f32.mrf.mxu0
    %6854 = vmatprep.mubr.bf16.mxu0 0
    %6855 = vmatmul.mubr.bf16.gmra.mxu0 %v6550
    %v6856 = vpop.f32.mrf.mxu0
    %v6857 = vadd.f32 0.0, %v6856
    %v6858 = vpop.f32.mrf.mxu0
    %v6859 = vpop.f32.mrf.mxu0
    %v6860 = vadd.f32 0.0, %v6859
    %v6861 = vpop.f32.mrf.mxu0
    %6862 = vmatprep.mubr.bf16.mxu0 0
    %6863 = vmatmul.mubr.bf16.gmra.mxu0 %v6551
    %v6864 = vpop.f32.mrf.mxu0
    %v6865 = vadd.f32 0.0, %v6864
    %v6866 = vpop.f32.mrf.mxu0
    %v6867 = vpop.f32.mrf.mxu0
    %v6868 = vadd.f32 0.0, %v6867
    %v6869 = vpop.f32.mrf.mxu0
    %6870 = vmatprep.mubr.bf16.mxu0 0
    %6871 = vmatmul.mubr.bf16.gmra.mxu0 %v6552
    %v6872 = vpop.f32.mrf.mxu0
    %v6873 = vadd.f32 0.0, %v6872
    %v6874 = vpop.f32.mrf.mxu0
    %v6875 = vpop.f32.mrf.mxu0
    %v6876 = vadd.f32 0.0, %v6875
    %v6877 = vpop.f32.mrf.mxu0
    %6878 = vmatprep.mubr.bf16.mxu0 0
    %6879 = vmatmul.mubr.bf16.gmra.mxu0 %v6553
    %v6880 = vpop.f32.mrf.mxu0
    %v6881 = vadd.f32 0.0, %v6880
    %v6882 = vpop.f32.mrf.mxu0
    %v6883 = vpop.f32.mrf.mxu0
    %v6884 = vadd.f32 0.0, %v6883
    %v6885 = vpop.f32.mrf.mxu0
    %6886 = vmatprep.mubr.bf16.mxu0 0
    %6887 = vmatmul.mubr.bf16.gmra.mxu0 %v6554
    %v6888 = vpop.f32.mrf.mxu0
    %v6889 = vadd.f32 0.0, %v6888
    %v6890 = vpop.f32.mrf.mxu0
    %v6891 = vpop.f32.mrf.mxu0
    %v6892 = vadd.f32 0.0, %v6891
    %v6893 = vpop.f32.mrf.mxu0
    %6894 = vmatprep.mubr.bf16.mxu0 0
    %6895 = vmatmul.mubr.bf16.gmra.mxu0 %v6555
    %v6896 = vpop.f32.mrf.mxu0
    %v6897 = vadd.f32 0.0, %v6896
    %v6898 = vpop.f32.mrf.mxu0
    %v6899 = vpop.f32.mrf.mxu0
    %v6900 = vadd.f32 0.0, %v6899
    %v6901 = vpop.f32.mrf.mxu0
    %6902 = vmatprep.mubr.bf16.mxu0 0
    %6903 = vmatmul.mubr.bf16.gmra.mxu0 %v6556
    %v6904 = vpop.f32.mrf.mxu0
    %v6905 = vadd.f32 0.0, %v6904
    %v6906 = vpop.f32.mrf.mxu0
    %v6907 = vpop.f32.mrf.mxu0
    %v6908 = vadd.f32 0.0, %v6907
    %v6909 = vpop.f32.mrf.mxu0
    %6910 = vdwg.mxu0
    %v6911 = vadd.f32 %v6206, %v6657
    %v6912 = vadd.f32 %v6209, %v6660
    %v6913 = vadd.f32 %v6214, %v6665
    %v6914 = vadd.f32 %v6217, %v6668
    %v6915 = vadd.f32 %v6222, %v6673
    %v6916 = vadd.f32 %v6225, %v6676
    %v6917 = vadd.f32 %v6230, %v6681
    %v6918 = vadd.f32 %v6233, %v6684
    %v6919 = vadd.f32 %v6238, %v6689
    %v6920 = vadd.f32 %v6241, %v6692
    %v6921 = vadd.f32 %v6246, %v6697
    %v6922 = vadd.f32 %v6249, %v6700
    %v6923 = vadd.f32 %v6254, %v6705
    %v6924 = vadd.f32 %v6257, %v6708
    %v6925 = vadd.f32 %v6262, %v6713
    %v6926 = vadd.f32 %v6265, %v6716
    %v6927 = vadd.f32 %v6270, %v6721
    %v6928 = vadd.f32 %v6273, %v6724
    %v6929 = vadd.f32 %v6278, %v6729
    %v6930 = vadd.f32 %v6281, %v6732
    %v6931 = vadd.f32 %v6286, %v6737
    %v6932 = vadd.f32 %v6289, %v6740
    %v6933 = vadd.f32 %v6294, %v6745
    %v6934 = vadd.f32 %v6297, %v6748
    %v6935 = vadd.f32 %v6302, %v6753
    %v6936 = vadd.f32 %v6305, %v6756
    %v6937 = vadd.f32 %v6310, %v6761
    %v6938 = vadd.f32 %v6313, %v6764
    %v6939 = vadd.f32 %v6318, %v6769
    %v6940 = vadd.f32 %v6321, %v6772
    %v6941 = vadd.f32 %v6326, %v6777
    %v6942 = vadd.f32 %v6329, %v6780
    %v6943 = vadd.f32 %v6334, %v6785
    %v6944 = vadd.f32 %v6337, %v6788
    %v6945 = vadd.f32 %v6342, %v6793
    %v6946 = vadd.f32 %v6345, %v6796
    %v6947 = vadd.f32 %v6350, %v6801
    %v6948 = vadd.f32 %v6353, %v6804
    %v6949 = vadd.f32 %v6358, %v6809
    %v6950 = vadd.f32 %v6361, %v6812
    %v6951 = vadd.f32 %v6366, %v6817
    %v6952 = vadd.f32 %v6369, %v6820
    %v6953 = vadd.f32 %v6374, %v6825
    %v6954 = vadd.f32 %v6377, %v6828
    %v6955 = vadd.f32 %v6382, %v6833
    %v6956 = vadd.f32 %v6385, %v6836
    %v6957 = vadd.f32 %v6390, %v6841
    %v6958 = vadd.f32 %v6393, %v6844
    %v6959 = vadd.f32 %v6398, %v6849
    %v6960 = vadd.f32 %v6401, %v6852
    %v6961 = vadd.f32 %v6406, %v6857
    %v6962 = vadd.f32 %v6409, %v6860
    %v6963 = vadd.f32 %v6414, %v6865
    %v6964 = vadd.f32 %v6417, %v6868
    %v6965 = vadd.f32 %v6422, %v6873
    %v6966 = vadd.f32 %v6425, %v6876
    %v6967 = vadd.f32 %v6430, %v6881
    %v6968 = vadd.f32 %v6433, %v6884
    %v6969 = vadd.f32 %v6438, %v6889
    %v6970 = vadd.f32 %v6441, %v6892
    %v6971 = vadd.f32 %v6446, %v6897
    %v6972 = vadd.f32 %v6449, %v6900
    %v6973 = vadd.f32 %v6454, %v6905
    %v6974 = vadd.f32 %v6457, %v6908
    %s6975 = scalar_lea.vmem [#allocation2], 296
    %v6976 = vld [vmem:[%s6975] sm:$0xff]
    %v6977 = vld [vmem:[%s6975 + $0x10] sm:$0xff]
    %v6978 = vld [vmem:[%s6975 + $0x20] sm:$0xff]
    %v6979 = vld [vmem:[%s6975 + $0x30] sm:$0xff]
    %v6980 = vld [vmem:[%s6975 + $0x40] sm:$0xff]
    %v6981 = vld [vmem:[%s6975 + $0x50] sm:$0xff]
    %v6982 = vld [vmem:[%s6975 + $0x60] sm:$0xff]
    %v6983 = vld [vmem:[%s6975 + $0x70] sm:$0xff]
    %v6984 = vld [vmem:[%s6975 + $0x120] sm:$0xff]
    %v6985 = vld [vmem:[%s6975 + $0x130] sm:$0xff]
    %v6986 = vld [vmem:[%s6975 + $0x140] sm:$0xff]
    %v6987 = vld [vmem:[%s6975 + $0x150] sm:$0xff]
    %v6988 = vld [vmem:[%s6975 + $0x160] sm:$0xff]
    %v6989 = vld [vmem:[%s6975 + $0x170] sm:$0xff]
    %v6990 = vld [vmem:[%s6975 + $0x180] sm:$0xff]
    %v6991 = vld [vmem:[%s6975 + $0x190] sm:$0xff]
    %v6992 = vld [vmem:[%s6975 + $0x240] sm:$0xff]
    %v6993 = vld [vmem:[%s6975 + $0x250] sm:$0xff]
    %v6994 = vld [vmem:[%s6975 + $0x260] sm:$0xff]
    %v6995 = vld [vmem:[%s6975 + $0x270] sm:$0xff]
    %v6996 = vld [vmem:[%s6975 + $0x280] sm:$0xff]
    %v6997 = vld [vmem:[%s6975 + $0x290] sm:$0xff]
    %v6998 = vld [vmem:[%s6975 + $0x2a0] sm:$0xff]
    %v6999 = vld [vmem:[%s6975 + $0x2b0] sm:$0xff]
    %v7000 = vld [vmem:[%s6975 + $0x360] sm:$0xff]
    %v7001 = vld [vmem:[%s6975 + $0x370] sm:$0xff]
    %v7002 = vld [vmem:[%s6975 + $0x380] sm:$0xff]
    %v7003 = vld [vmem:[%s6975 + $0x390] sm:$0xff]
    %v7004 = vld [vmem:[%s6975 + $0x3a0] sm:$0xff]
    %v7005 = vld [vmem:[%s6975 + $0x3b0] sm:$0xff]
    %v7006 = vld [vmem:[%s6975 + $0x3c0] sm:$0xff]
    %v7007 = vld [vmem:[%s6975 + $0x3d0] sm:$0xff]
    %v7008 = vld [vmem:[%s6975 + $0x480] sm:$0xff]
    %v7009 = vld [vmem:[%s6975 + $0x490] sm:$0xff]
    %v7010 = vld [vmem:[%s6975 + $0x4a0] sm:$0xff]
    %v7011 = vld [vmem:[%s6975 + $0x4b0] sm:$0xff]
    %v7012 = vld [vmem:[%s6975 + $0x4c0] sm:$0xff]
    %v7013 = vld [vmem:[%s6975 + $0x4d0] sm:$0xff]
    %v7014 = vld [vmem:[%s6975 + $0x4e0] sm:$0xff]
    %v7015 = vld [vmem:[%s6975 + $0x4f0] sm:$0xff]
    %v7016 = vld [vmem:[%s6975 + $0x5a0] sm:$0xff]
    %v7017 = vld [vmem:[%s6975 + $0x5b0] sm:$0xff]
    %v7018 = vld [vmem:[%s6975 + $0x5c0] sm:$0xff]
    %v7019 = vld [vmem:[%s6975 + $0x5d0] sm:$0xff]
    %v7020 = vld [vmem:[%s6975 + $0x5e0] sm:$0xff]
    %v7021 = vld [vmem:[%s6975 + $0x5f0] sm:$0xff]
    %v7022 = vld [vmem:[%s6975 + $0x600] sm:$0xff]
    %v7023 = vld [vmem:[%s6975 + $0x610] sm:$0xff]
    %v7024 = vld [vmem:[%s6975 + $0x6c0] sm:$0xff]
    %v7025 = vld [vmem:[%s6975 + $0x6d0] sm:$0xff]
    %v7026 = vld [vmem:[%s6975 + $0x6e0] sm:$0xff]
    %v7027 = vld [vmem:[%s6975 + $0x6f0] sm:$0xff]
    %v7028 = vld [vmem:[%s6975 + $0x700] sm:$0xff]
    %v7029 = vld [vmem:[%s6975 + $0x710] sm:$0xff]
    %v7030 = vld [vmem:[%s6975 + $0x720] sm:$0xff]
    %v7031 = vld [vmem:[%s6975 + $0x730] sm:$0xff]
    %v7032 = vld [vmem:[%s6975 + $0x7e0] sm:$0xff]
    %v7033 = vld [vmem:[%s6975 + $0x7f0] sm:$0xff]
    %v7034 = vld [vmem:[%s6975 + $0x800] sm:$0xff]
    %v7035 = vld [vmem:[%s6975 + $0x810] sm:$0xff]
    %v7036 = vld [vmem:[%s6975 + $0x820] sm:$0xff]
    %v7037 = vld [vmem:[%s6975 + $0x830] sm:$0xff]
    %v7038 = vld [vmem:[%s6975 + $0x840] sm:$0xff]
    %v7039 = vld [vmem:[%s6975 + $0x850] sm:$0xff]
    %v7040 = vpack.c.bf16 %v6977, %v6976
    %v7041 = vpack.c.bf16 %v6979, %v6978
    %v7042 = vpack.c.bf16 %v6981, %v6980
    %v7043 = vpack.c.bf16 %v6983, %v6982
    %v7044 = vpack.c.bf16 %v6985, %v6984
    %v7045 = vpack.c.bf16 %v6987, %v6986
    %v7046 = vpack.c.bf16 %v6989, %v6988
    %v7047 = vpack.c.bf16 %v6991, %v6990
    %v7048 = vpack.c.bf16 %v6993, %v6992
    %v7049 = vpack.c.bf16 %v6995, %v6994
    %v7050 = vpack.c.bf16 %v6997, %v6996
    %v7051 = vpack.c.bf16 %v6999, %v6998
    %v7052 = vpack.c.bf16 %v7001, %v7000
    %v7053 = vpack.c.bf16 %v7003, %v7002
    %v7054 = vpack.c.bf16 %v7005, %v7004
    %v7055 = vpack.c.bf16 %v7007, %v7006
    %v7056 = vpack.c.bf16 %v7009, %v7008
    %v7057 = vpack.c.bf16 %v7011, %v7010
    %v7058 = vpack.c.bf16 %v7013, %v7012
    %v7059 = vpack.c.bf16 %v7015, %v7014
    %v7060 = vpack.c.bf16 %v7017, %v7016
    %v7061 = vpack.c.bf16 %v7019, %v7018
    %v7062 = vpack.c.bf16 %v7021, %v7020
    %v7063 = vpack.c.bf16 %v7023, %v7022
    %v7064 = vpack.c.bf16 %v7025, %v7024
    %v7065 = vpack.c.bf16 %v7027, %v7026
    %v7066 = vpack.c.bf16 %v7029, %v7028
    %v7067 = vpack.c.bf16 %v7031, %v7030
    %v7068 = vpack.c.bf16 %v7033, %v7032
    %v7069 = vpack.c.bf16 %v7035, %v7034
    %v7070 = vpack.c.bf16 %v7037, %v7036
    %v7071 = vpack.c.bf16 %v7039, %v7038
    %s7072 = scalar_lea.vmem [#allocation11], 192
    %v7073 = vld [vmem:[%s7072] sm:$0xf]
    %v7074 = vld [vmem:[%s7072 + $0x4] sm:$0xf]
    %v7075 = vld [vmem:[%s7072 + $0x8] sm:$0xf]
    %v7076 = vld [vmem:[%s7072 + $0xc] sm:$0xf]
    %v7077 = vld [vmem:[%s7072 + $0x10] sm:$0xf]
    %v7078 = vld [vmem:[%s7072 + $0x14] sm:$0xf]
    %v7079 = vld [vmem:[%s7072 + $0x18] sm:$0xf]
    %v7080 = vld [vmem:[%s7072 + $0x1c] sm:$0xf]
    %v7081 = vld [vmem:[%s7072 + $0x20] sm:$0xf]
    %v7082 = vld [vmem:[%s7072 + $0x24] sm:$0xf]
    %v7083 = vld [vmem:[%s7072 + $0x28] sm:$0xf]
    %v7084 = vld [vmem:[%s7072 + $0x2c] sm:$0xf]
    %v7085 = vld [vmem:[%s7072 + $0x30] sm:$0xf]
    %v7086 = vld [vmem:[%s7072 + $0x34] sm:$0xf]
    %v7087 = vld [vmem:[%s7072 + $0x38] sm:$0xf]
    %v7088 = vld [vmem:[%s7072 + $0x3c] sm:$0xf]
    %v7105 = vunpack.c.l.b16 %v7073
    %v7106 = vunpack.c.l.b16 %v7074
    %v7107 = vunpack.c.l.b16 %v7075
    %v7108 = vunpack.c.l.b16 %v7076
    %v7109 = vunpack.c.l.b16 %v7077
    %v7110 = vunpack.c.l.b16 %v7078
    %v7111 = vunpack.c.l.b16 %v7079
    %v7112 = vunpack.c.l.b16 %v7080
    %v7113 = vunpack.c.l.b16 %v7081
    %v7114 = vunpack.c.l.b16 %v7082
    %v7115 = vunpack.c.l.b16 %v7083
    %v7116 = vunpack.c.l.b16 %v7084
    %v7117 = vunpack.c.l.b16 %v7085
    %v7118 = vunpack.c.l.b16 %v7086
    %v7119 = vunpack.c.l.b16 %v7087
    %v7120 = vunpack.c.l.b16 %v7088
    %v7121 = vpack.c.b16 %v7106, %v7105
    %v7122 = vpack.c.b16 %v7108, %v7107
    %v7123 = vpack.c.b16 %v7110, %v7109
    %v7124 = vpack.c.b16 %v7112, %v7111
    %v7125 = vpack.c.b16 %v7114, %v7113
    %v7126 = vpack.c.b16 %v7116, %v7115
    %v7127 = vpack.c.b16 %v7118, %v7117
    %v7128 = vpack.c.b16 %v7120, %v7119
    %7137 = vmatprep.subr.bf16.mxu0 0
    %7138 = vmatpush1.bf16.msra.mxu0 %v7128
    %7139 = vmatprep.subr.bf16.mxu0 0
    %7140 = vmatpush1.bf16.msra.mxu0 %v7127
    %7141 = vmatprep.subr.bf16.mxu0 0
    %7142 = vmatpush1.bf16.msra.mxu0 %v7126
    %7143 = vmatprep.subr.bf16.mxu0 0
    %7144 = vmatpush1.bf16.msra.mxu0 %v7125
    %7145 = vmatprep.subr.bf16.mxu0 0
    %7146 = vmatpush1.bf16.msra.mxu0 %v7124
    %7147 = vmatprep.subr.bf16.mxu0 0
    %7148 = vmatpush1.bf16.msra.mxu0 %v7123
    %7149 = vmatprep.subr.bf16.mxu0 0
    %7150 = vmatpush1.bf16.msra.mxu0 %v7122
    %7151 = vmatprep.subr.bf16.mxu0 0
    %7152 = vmatpush1.bf16.msra.mxu0 %v7121
    %7153 = vmatprep.subr.bf16.mxu0 0
    %7154 = vmatpush2.bf16.msra.mxu0 0
    %7155 = vmatprep.subr.bf16.mxu0 0
    %7156 = vmatpush2.bf16.msra.mxu0 0
    %7157 = vmatprep.subr.bf16.mxu0 0
    %7158 = vmatpush2.bf16.msra.mxu0 0
    %7159 = vmatprep.subr.bf16.mxu0 0
    %7160 = vmatpush2.bf16.msra.mxu0 0
    %7161 = vmatprep.subr.bf16.mxu0 0
    %7162 = vmatpush2.bf16.msra.mxu0 0
    %7163 = vmatprep.subr.bf16.mxu0 0
    %7164 = vmatpush2.bf16.msra.mxu0 0
    %7165 = vmatprep.subr.bf16.mxu0 0
    %7166 = vmatpush2.bf16.msra.mxu0 0
    %7167 = vmatprep.subr.bf16.mxu0 0
    %7168 = vmatpush2.bf16.msra.mxu0 0
    %7169 = vmatprep.mubr.bf16.mxu0 0
    %7170 = vmatmul.mubr.bf16.gmra.mxu0 %v7040
    %v7171 = vpop.f32.mrf.mxu0
    %v7172 = vadd.f32 0.0, %v7171
    %v7173 = vpop.f32.mrf.mxu0
    %v7174 = vpop.f32.mrf.mxu0
    %v7175 = vadd.f32 0.0, %v7174
    %v7176 = vpop.f32.mrf.mxu0
    %7177 = vmatprep.mubr.bf16.mxu0 0
    %7178 = vmatmul.mubr.bf16.gmra.mxu0 %v7041
    %v7179 = vpop.f32.mrf.mxu0
    %v7180 = vadd.f32 0.0, %v7179
    %v7181 = vpop.f32.mrf.mxu0
    %v7182 = vpop.f32.mrf.mxu0
    %v7183 = vadd.f32 0.0, %v7182
    %v7184 = vpop.f32.mrf.mxu0
    %7185 = vmatprep.mubr.bf16.mxu0 0
    %7186 = vmatmul.mubr.bf16.gmra.mxu0 %v7042
    %v7187 = vpop.f32.mrf.mxu0
    %v7188 = vadd.f32 0.0, %v7187
    %v7189 = vpop.f32.mrf.mxu0
    %v7190 = vpop.f32.mrf.mxu0
    %v7191 = vadd.f32 0.0, %v7190
    %v7192 = vpop.f32.mrf.mxu0
    %7193 = vmatprep.mubr.bf16.mxu0 0
    %7194 = vmatmul.mubr.bf16.gmra.mxu0 %v7043
    %v7195 = vpop.f32.mrf.mxu0
    %v7196 = vadd.f32 0.0, %v7195
    %v7197 = vpop.f32.mrf.mxu0
    %v7198 = vpop.f32.mrf.mxu0
    %v7199 = vadd.f32 0.0, %v7198
    %v7200 = vpop.f32.mrf.mxu0
    %7201 = vmatprep.mubr.bf16.mxu0 0
    %7202 = vmatmul.mubr.bf16.gmra.mxu0 %v7044
    %v7203 = vpop.f32.mrf.mxu0
    %v7204 = vadd.f32 0.0, %v7203
    %v7205 = vpop.f32.mrf.mxu0
    %v7206 = vpop.f32.mrf.mxu0
    %v7207 = vadd.f32 0.0, %v7206
    %v7208 = vpop.f32.mrf.mxu0
    %7209 = vmatprep.mubr.bf16.mxu0 0
    %7210 = vmatmul.mubr.bf16.gmra.mxu0 %v7045
    %v7211 = vpop.f32.mrf.mxu0
    %v7212 = vadd.f32 0.0, %v7211
    %v7213 = vpop.f32.mrf.mxu0
    %v7214 = vpop.f32.mrf.mxu0
    %v7215 = vadd.f32 0.0, %v7214
    %v7216 = vpop.f32.mrf.mxu0
    %7217 = vmatprep.mubr.bf16.mxu0 0
    %7218 = vmatmul.mubr.bf16.gmra.mxu0 %v7046
    %v7219 = vpop.f32.mrf.mxu0
    %v7220 = vadd.f32 0.0, %v7219
    %v7221 = vpop.f32.mrf.mxu0
    %v7222 = vpop.f32.mrf.mxu0
    %v7223 = vadd.f32 0.0, %v7222
    %v7224 = vpop.f32.mrf.mxu0
    %7225 = vmatprep.mubr.bf16.mxu0 0
    %7226 = vmatmul.mubr.bf16.gmra.mxu0 %v7047
    %v7227 = vpop.f32.mrf.mxu0
    %v7228 = vadd.f32 0.0, %v7227
    %v7229 = vpop.f32.mrf.mxu0
    %v7230 = vpop.f32.mrf.mxu0
    %v7231 = vadd.f32 0.0, %v7230
    %v7232 = vpop.f32.mrf.mxu0
    %7233 = vmatprep.mubr.bf16.mxu0 0
    %7234 = vmatmul.mubr.bf16.gmra.mxu0 %v7048
    %v7235 = vpop.f32.mrf.mxu0
    %v7236 = vadd.f32 0.0, %v7235
    %v7237 = vpop.f32.mrf.mxu0
    %v7238 = vpop.f32.mrf.mxu0
    %v7239 = vadd.f32 0.0, %v7238
    %v7240 = vpop.f32.mrf.mxu0
    %7241 = vmatprep.mubr.bf16.mxu0 0
    %7242 = vmatmul.mubr.bf16.gmra.mxu0 %v7049
    %v7243 = vpop.f32.mrf.mxu0
    %v7244 = vadd.f32 0.0, %v7243
    %v7245 = vpop.f32.mrf.mxu0
    %v7246 = vpop.f32.mrf.mxu0
    %v7247 = vadd.f32 0.0, %v7246
    %v7248 = vpop.f32.mrf.mxu0
    %7249 = vmatprep.mubr.bf16.mxu0 0
    %7250 = vmatmul.mubr.bf16.gmra.mxu0 %v7050
    %v7251 = vpop.f32.mrf.mxu0
    %v7252 = vadd.f32 0.0, %v7251
    %v7253 = vpop.f32.mrf.mxu0
    %v7254 = vpop.f32.mrf.mxu0
    %v7255 = vadd.f32 0.0, %v7254
    %v7256 = vpop.f32.mrf.mxu0
    %7257 = vmatprep.mubr.bf16.mxu0 0
    %7258 = vmatmul.mubr.bf16.gmra.mxu0 %v7051
    %v7259 = vpop.f32.mrf.mxu0
    %v7260 = vadd.f32 0.0, %v7259
    %v7261 = vpop.f32.mrf.mxu0
    %v7262 = vpop.f32.mrf.mxu0
    %v7263 = vadd.f32 0.0, %v7262
    %v7264 = vpop.f32.mrf.mxu0
    %7265 = vmatprep.mubr.bf16.mxu0 0
    %7266 = vmatmul.mubr.bf16.gmra.mxu0 %v7052
    %v7267 = vpop.f32.mrf.mxu0
    %v7268 = vadd.f32 0.0, %v7267
    %v7269 = vpop.f32.mrf.mxu0
    %v7270 = vpop.f32.mrf.mxu0
    %v7271 = vadd.f32 0.0, %v7270
    %v7272 = vpop.f32.mrf.mxu0
    %7273 = vmatprep.mubr.bf16.mxu0 0
    %7274 = vmatmul.mubr.bf16.gmra.mxu0 %v7053
    %v7275 = vpop.f32.mrf.mxu0
    %v7276 = vadd.f32 0.0, %v7275
    %v7277 = vpop.f32.mrf.mxu0
    %v7278 = vpop.f32.mrf.mxu0
    %v7279 = vadd.f32 0.0, %v7278
    %v7280 = vpop.f32.mrf.mxu0
    %7281 = vmatprep.mubr.bf16.mxu0 0
    %7282 = vmatmul.mubr.bf16.gmra.mxu0 %v7054
    %v7283 = vpop.f32.mrf.mxu0
    %v7284 = vadd.f32 0.0, %v7283
    %v7285 = vpop.f32.mrf.mxu0
    %v7286 = vpop.f32.mrf.mxu0
    %v7287 = vadd.f32 0.0, %v7286
    %v7288 = vpop.f32.mrf.mxu0
    %7289 = vmatprep.mubr.bf16.mxu0 0
    %7290 = vmatmul.mubr.bf16.gmra.mxu0 %v7055
    %v7291 = vpop.f32.mrf.mxu0
    %v7292 = vadd.f32 0.0, %v7291
    %v7293 = vpop.f32.mrf.mxu0
    %v7294 = vpop.f32.mrf.mxu0
    %v7295 = vadd.f32 0.0, %v7294
    %v7296 = vpop.f32.mrf.mxu0
    %7297 = vmatprep.mubr.bf16.mxu0 0
    %7298 = vmatmul.mubr.bf16.gmra.mxu0 %v7056
    %v7299 = vpop.f32.mrf.mxu0
    %v7300 = vadd.f32 0.0, %v7299
    %v7301 = vpop.f32.mrf.mxu0
    %v7302 = vpop.f32.mrf.mxu0
    %v7303 = vadd.f32 0.0, %v7302
    %v7304 = vpop.f32.mrf.mxu0
    %7305 = vmatprep.mubr.bf16.mxu0 0
    %7306 = vmatmul.mubr.bf16.gmra.mxu0 %v7057
    %v7307 = vpop.f32.mrf.mxu0
    %v7308 = vadd.f32 0.0, %v7307
    %v7309 = vpop.f32.mrf.mxu0
    %v7310 = vpop.f32.mrf.mxu0
    %v7311 = vadd.f32 0.0, %v7310
    %v7312 = vpop.f32.mrf.mxu0
    %7313 = vmatprep.mubr.bf16.mxu0 0
    %7314 = vmatmul.mubr.bf16.gmra.mxu0 %v7058
    %v7315 = vpop.f32.mrf.mxu0
    %v7316 = vadd.f32 0.0, %v7315
    %v7317 = vpop.f32.mrf.mxu0
    %v7318 = vpop.f32.mrf.mxu0
    %v7319 = vadd.f32 0.0, %v7318
    %v7320 = vpop.f32.mrf.mxu0
    %7321 = vmatprep.mubr.bf16.mxu0 0
    %7322 = vmatmul.mubr.bf16.gmra.mxu0 %v7059
    %v7323 = vpop.f32.mrf.mxu0
    %v7324 = vadd.f32 0.0, %v7323
    %v7325 = vpop.f32.mrf.mxu0
    %v7326 = vpop.f32.mrf.mxu0
    %v7327 = vadd.f32 0.0, %v7326
    %v7328 = vpop.f32.mrf.mxu0
    %7329 = vmatprep.mubr.bf16.mxu0 0
    %7330 = vmatmul.mubr.bf16.gmra.mxu0 %v7060
    %v7331 = vpop.f32.mrf.mxu0
    %v7332 = vadd.f32 0.0, %v7331
    %v7333 = vpop.f32.mrf.mxu0
    %v7334 = vpop.f32.mrf.mxu0
    %v7335 = vadd.f32 0.0, %v7334
    %v7336 = vpop.f32.mrf.mxu0
    %7337 = vmatprep.mubr.bf16.mxu0 0
    %7338 = vmatmul.mubr.bf16.gmra.mxu0 %v7061
    %v7339 = vpop.f32.mrf.mxu0
    %v7340 = vadd.f32 0.0, %v7339
    %v7341 = vpop.f32.mrf.mxu0
    %v7342 = vpop.f32.mrf.mxu0
    %v7343 = vadd.f32 0.0, %v7342
    %v7344 = vpop.f32.mrf.mxu0
    %7345 = vmatprep.mubr.bf16.mxu0 0
    %7346 = vmatmul.mubr.bf16.gmra.mxu0 %v7062
    %v7347 = vpop.f32.mrf.mxu0
    %v7348 = vadd.f32 0.0, %v7347
    %v7349 = vpop.f32.mrf.mxu0
    %v7350 = vpop.f32.mrf.mxu0
    %v7351 = vadd.f32 0.0, %v7350
    %v7352 = vpop.f32.mrf.mxu0
    %7353 = vmatprep.mubr.bf16.mxu0 0
    %7354 = vmatmul.mubr.bf16.gmra.mxu0 %v7063
    %v7355 = vpop.f32.mrf.mxu0
    %v7356 = vadd.f32 0.0, %v7355
    %v7357 = vpop.f32.mrf.mxu0
    %v7358 = vpop.f32.mrf.mxu0
    %v7359 = vadd.f32 0.0, %v7358
    %v7360 = vpop.f32.mrf.mxu0
    %7361 = vmatprep.mubr.bf16.mxu0 0
    %7362 = vmatmul.mubr.bf16.gmra.mxu0 %v7064
    %v7363 = vpop.f32.mrf.mxu0
    %v7364 = vadd.f32 0.0, %v7363
    %v7365 = vpop.f32.mrf.mxu0
    %v7366 = vpop.f32.mrf.mxu0
    %v7367 = vadd.f32 0.0, %v7366
    %v7368 = vpop.f32.mrf.mxu0
    %7369 = vmatprep.mubr.bf16.mxu0 0
    %7370 = vmatmul.mubr.bf16.gmra.mxu0 %v7065
    %v7371 = vpop.f32.mrf.mxu0
    %v7372 = vadd.f32 0.0, %v7371
    %v7373 = vpop.f32.mrf.mxu0
    %v7374 = vpop.f32.mrf.mxu0
    %v7375 = vadd.f32 0.0, %v7374
    %v7376 = vpop.f32.mrf.mxu0
    %7377 = vmatprep.mubr.bf16.mxu0 0
    %7378 = vmatmul.mubr.bf16.gmra.mxu0 %v7066
    %v7379 = vpop.f32.mrf.mxu0
    %v7380 = vadd.f32 0.0, %v7379
    %v7381 = vpop.f32.mrf.mxu0
    %v7382 = vpop.f32.mrf.mxu0
    %v7383 = vadd.f32 0.0, %v7382
    %v7384 = vpop.f32.mrf.mxu0
    %7385 = vmatprep.mubr.bf16.mxu0 0
    %7386 = vmatmul.mubr.bf16.gmra.mxu0 %v7067
    %v7387 = vpop.f32.mrf.mxu0
    %v7388 = vadd.f32 0.0, %v7387
    %v7389 = vpop.f32.mrf.mxu0
    %v7390 = vpop.f32.mrf.mxu0
    %v7391 = vadd.f32 0.0, %v7390
    %v7392 = vpop.f32.mrf.mxu0
    %7393 = vmatprep.mubr.bf16.mxu0 0
    %7394 = vmatmul.mubr.bf16.gmra.mxu0 %v7068
    %v7395 = vpop.f32.mrf.mxu0
    %v7396 = vadd.f32 0.0, %v7395
    %v7397 = vpop.f32.mrf.mxu0
    %v7398 = vpop.f32.mrf.mxu0
    %v7399 = vadd.f32 0.0, %v7398
    %v7400 = vpop.f32.mrf.mxu0
    %7401 = vmatprep.mubr.bf16.mxu0 0
    %7402 = vmatmul.mubr.bf16.gmra.mxu0 %v7069
    %v7403 = vpop.f32.mrf.mxu0
    %v7404 = vadd.f32 0.0, %v7403
    %v7405 = vpop.f32.mrf.mxu0
    %v7406 = vpop.f32.mrf.mxu0
    %v7407 = vadd.f32 0.0, %v7406
    %v7408 = vpop.f32.mrf.mxu0
    %7409 = vmatprep.mubr.bf16.mxu0 0
    %7410 = vmatmul.mubr.bf16.gmra.mxu0 %v7070
    %v7411 = vpop.f32.mrf.mxu0
    %v7412 = vadd.f32 0.0, %v7411
    %v7413 = vpop.f32.mrf.mxu0
    %v7414 = vpop.f32.mrf.mxu0
    %v7415 = vadd.f32 0.0, %v7414
    %v7416 = vpop.f32.mrf.mxu0
    %7417 = vmatprep.mubr.bf16.mxu0 0
    %7418 = vmatmul.mubr.bf16.gmra.mxu0 %v7071
    %v7419 = vpop.f32.mrf.mxu0
    %v7420 = vadd.f32 0.0, %v7419
    %v7421 = vpop.f32.mrf.mxu0
    %v7422 = vpop.f32.mrf.mxu0
    %v7423 = vadd.f32 0.0, %v7422
    %v7424 = vpop.f32.mrf.mxu0
    %7425 = vdwg.mxu0
    %v7426 = vadd.f32 %v6911, %v7172
    %v7427 = vadd.f32 %v6912, %v7175
    %v7428 = vadd.f32 %v6913, %v7180
    %v7429 = vadd.f32 %v6914, %v7183
    %v7430 = vadd.f32 %v6915, %v7188
    %v7431 = vadd.f32 %v6916, %v7191
    %v7432 = vadd.f32 %v6917, %v7196
    %v7433 = vadd.f32 %v6918, %v7199
    %v7434 = vadd.f32 %v6919, %v7204
    %v7435 = vadd.f32 %v6920, %v7207
    %v7436 = vadd.f32 %v6921, %v7212
    %v7437 = vadd.f32 %v6922, %v7215
    %v7438 = vadd.f32 %v6923, %v7220
    %v7439 = vadd.f32 %v6924, %v7223
    %v7440 = vadd.f32 %v6925, %v7228
    %v7441 = vadd.f32 %v6926, %v7231
    %v7442 = vadd.f32 %v6927, %v7236
    %v7443 = vadd.f32 %v6928, %v7239
    %v7444 = vadd.f32 %v6929, %v7244
    %v7445 = vadd.f32 %v6930, %v7247
    %v7446 = vadd.f32 %v6931, %v7252
    %v7447 = vadd.f32 %v6932, %v7255
    %v7448 = vadd.f32 %v6933, %v7260
    %v7449 = vadd.f32 %v6934, %v7263
    %v7450 = vadd.f32 %v6935, %v7268
    %v7451 = vadd.f32 %v6936, %v7271
    %v7452 = vadd.f32 %v6937, %v7276
    %v7453 = vadd.f32 %v6938, %v7279
    %v7454 = vadd.f32 %v6939, %v7284
    %v7455 = vadd.f32 %v6940, %v7287
    %v7456 = vadd.f32 %v6941, %v7292
    %v7457 = vadd.f32 %v6942, %v7295
    %v7458 = vadd.f32 %v6943, %v7300
    %v7459 = vadd.f32 %v6944, %v7303
    %v7460 = vadd.f32 %v6945, %v7308
    %v7461 = vadd.f32 %v6946, %v7311
    %v7462 = vadd.f32 %v6947, %v7316
    %v7463 = vadd.f32 %v6948, %v7319
    %v7464 = vadd.f32 %v6949, %v7324
    %v7465 = vadd.f32 %v6950, %v7327
    %v7466 = vadd.f32 %v6951, %v7332
    %v7467 = vadd.f32 %v6952, %v7335
    %v7468 = vadd.f32 %v6953, %v7340
    %v7469 = vadd.f32 %v6954, %v7343
    %v7470 = vadd.f32 %v6955, %v7348
    %v7471 = vadd.f32 %v6956, %v7351
    %v7472 = vadd.f32 %v6957, %v7356
    %v7473 = vadd.f32 %v6958, %v7359
    %v7474 = vadd.f32 %v6959, %v7364
    %v7475 = vadd.f32 %v6960, %v7367
    %v7476 = vadd.f32 %v6961, %v7372
    %v7477 = vadd.f32 %v6962, %v7375
    %v7478 = vadd.f32 %v6963, %v7380
    %v7479 = vadd.f32 %v6964, %v7383
    %v7480 = vadd.f32 %v6965, %v7388
    %v7481 = vadd.f32 %v6966, %v7391
    %v7482 = vadd.f32 %v6967, %v7396
    %v7483 = vadd.f32 %v6968, %v7399
    %v7484 = vadd.f32 %v6969, %v7404
    %v7485 = vadd.f32 %v6970, %v7407
    %v7486 = vadd.f32 %v6971, %v7412
    %v7487 = vadd.f32 %v6972, %v7415
    %v7488 = vadd.f32 %v6973, %v7420
    %v7489 = vadd.f32 %v6974, %v7423
    %s7490 = scalar_lea.vmem [#allocation2], 304
    %v7491 = vld [vmem:[%s7490] sm:$0xff]
    %v7492 = vld [vmem:[%s7490 + $0x10] sm:$0xff]
    %v7493 = vld [vmem:[%s7490 + $0x20] sm:$0xff]
    %v7494 = vld [vmem:[%s7490 + $0x30] sm:$0xff]
    %v7495 = vld [vmem:[%s7490 + $0x40] sm:$0xff]
    %v7496 = vld [vmem:[%s7490 + $0x50] sm:$0xff]
    %v7497 = vld [vmem:[%s7490 + $0x60] sm:$0xff]
    %v7498 = vld [vmem:[%s7490 + $0x70] sm:$0xff]
    %v7499 = vld [vmem:[%s7490 + $0x120] sm:$0xff]
    %v7500 = vld [vmem:[%s7490 + $0x130] sm:$0xff]
    %v7501 = vld [vmem:[%s7490 + $0x140] sm:$0xff]
    %v7502 = vld [vmem:[%s7490 + $0x150] sm:$0xff]
    %v7503 = vld [vmem:[%s7490 + $0x160] sm:$0xff]
    %v7504 = vld [vmem:[%s7490 + $0x170] sm:$0xff]
    %v7505 = vld [vmem:[%s7490 + $0x180] sm:$0xff]
    %v7506 = vld [vmem:[%s7490 + $0x190] sm:$0xff]
    %v7507 = vld [vmem:[%s7490 + $0x240] sm:$0xff]
    %v7508 = vld [vmem:[%s7490 + $0x250] sm:$0xff]
    %v7509 = vld [vmem:[%s7490 + $0x260] sm:$0xff]
    %v7510 = vld [vmem:[%s7490 + $0x270] sm:$0xff]
    %v7511 = vld [vmem:[%s7490 + $0x280] sm:$0xff]
    %v7512 = vld [vmem:[%s7490 + $0x290] sm:$0xff]
    %v7513 = vld [vmem:[%s7490 + $0x2a0] sm:$0xff]
    %v7514 = vld [vmem:[%s7490 + $0x2b0] sm:$0xff]
    %v7515 = vld [vmem:[%s7490 + $0x360] sm:$0xff]
    %v7516 = vld [vmem:[%s7490 + $0x370] sm:$0xff]
    %v7517 = vld [vmem:[%s7490 + $0x380] sm:$0xff]
    %v7518 = vld [vmem:[%s7490 + $0x390] sm:$0xff]
    %v7519 = vld [vmem:[%s7490 + $0x3a0] sm:$0xff]
    %v7520 = vld [vmem:[%s7490 + $0x3b0] sm:$0xff]
    %v7521 = vld [vmem:[%s7490 + $0x3c0] sm:$0xff]
    %v7522 = vld [vmem:[%s7490 + $0x3d0] sm:$0xff]
    %v7523 = vld [vmem:[%s7490 + $0x480] sm:$0xff]
    %v7524 = vld [vmem:[%s7490 + $0x490] sm:$0xff]
    %v7525 = vld [vmem:[%s7490 + $0x4a0] sm:$0xff]
    %v7526 = vld [vmem:[%s7490 + $0x4b0] sm:$0xff]
    %v7527 = vld [vmem:[%s7490 + $0x4c0] sm:$0xff]
    %v7528 = vld [vmem:[%s7490 + $0x4d0] sm:$0xff]
    %v7529 = vld [vmem:[%s7490 + $0x4e0] sm:$0xff]
    %v7530 = vld [vmem:[%s7490 + $0x4f0] sm:$0xff]
    %v7531 = vld [vmem:[%s7490 + $0x5a0] sm:$0xff]
    %v7532 = vld [vmem:[%s7490 + $0x5b0] sm:$0xff]
    %v7533 = vld [vmem:[%s7490 + $0x5c0] sm:$0xff]
    %v7534 = vld [vmem:[%s7490 + $0x5d0] sm:$0xff]
    %v7535 = vld [vmem:[%s7490 + $0x5e0] sm:$0xff]
    %v7536 = vld [vmem:[%s7490 + $0x5f0] sm:$0xff]
    %v7537 = vld [vmem:[%s7490 + $0x600] sm:$0xff]
    %v7538 = vld [vmem:[%s7490 + $0x610] sm:$0xff]
    %v7539 = vld [vmem:[%s7490 + $0x6c0] sm:$0xff]
    %v7540 = vld [vmem:[%s7490 + $0x6d0] sm:$0xff]
    %v7541 = vld [vmem:[%s7490 + $0x6e0] sm:$0xff]
    %v7542 = vld [vmem:[%s7490 + $0x6f0] sm:$0xff]
    %v7543 = vld [vmem:[%s7490 + $0x700] sm:$0xff]
    %v7544 = vld [vmem:[%s7490 + $0x710] sm:$0xff]
    %v7545 = vld [vmem:[%s7490 + $0x720] sm:$0xff]
    %v7546 = vld [vmem:[%s7490 + $0x730] sm:$0xff]
    %v7547 = vld [vmem:[%s7490 + $0x7e0] sm:$0xff]
    %v7548 = vld [vmem:[%s7490 + $0x7f0] sm:$0xff]
    %v7549 = vld [vmem:[%s7490 + $0x800] sm:$0xff]
    %v7550 = vld [vmem:[%s7490 + $0x810] sm:$0xff]
    %v7551 = vld [vmem:[%s7490 + $0x820] sm:$0xff]
    %v7552 = vld [vmem:[%s7490 + $0x830] sm:$0xff]
    %v7553 = vld [vmem:[%s7490 + $0x840] sm:$0xff]
    %v7554 = vld [vmem:[%s7490 + $0x850] sm:$0xff]
    %v7555 = vpack.c.bf16 %v7492, %v7491
    %v7556 = vpack.c.bf16 %v7494, %v7493
    %v7557 = vpack.c.bf16 %v7496, %v7495
    %v7558 = vpack.c.bf16 %v7498, %v7497
    %v7559 = vpack.c.bf16 %v7500, %v7499
    %v7560 = vpack.c.bf16 %v7502, %v7501
    %v7561 = vpack.c.bf16 %v7504, %v7503
    %v7562 = vpack.c.bf16 %v7506, %v7505
    %v7563 = vpack.c.bf16 %v7508, %v7507
    %v7564 = vpack.c.bf16 %v7510, %v7509
    %v7565 = vpack.c.bf16 %v7512, %v7511
    %v7566 = vpack.c.bf16 %v7514, %v7513
    %v7567 = vpack.c.bf16 %v7516, %v7515
    %v7568 = vpack.c.bf16 %v7518, %v7517
    %v7569 = vpack.c.bf16 %v7520, %v7519
    %v7570 = vpack.c.bf16 %v7522, %v7521
    %v7571 = vpack.c.bf16 %v7524, %v7523
    %v7572 = vpack.c.bf16 %v7526, %v7525
    %v7573 = vpack.c.bf16 %v7528, %v7527
    %v7574 = vpack.c.bf16 %v7530, %v7529
    %v7575 = vpack.c.bf16 %v7532, %v7531
    %v7576 = vpack.c.bf16 %v7534, %v7533
    %v7577 = vpack.c.bf16 %v7536, %v7535
    %v7578 = vpack.c.bf16 %v7538, %v7537
    %v7579 = vpack.c.bf16 %v7540, %v7539
    %v7580 = vpack.c.bf16 %v7542, %v7541
    %v7581 = vpack.c.bf16 %v7544, %v7543
    %v7582 = vpack.c.bf16 %v7546, %v7545
    %v7583 = vpack.c.bf16 %v7548, %v7547
    %v7584 = vpack.c.bf16 %v7550, %v7549
    %v7585 = vpack.c.bf16 %v7552, %v7551
    %v7586 = vpack.c.bf16 %v7554, %v7553
    %s7587 = scalar_lea.vmem [#allocation11], 256
    %v7588 = vld [vmem:[%s7587] sm:$0xf]
    %v7589 = vld [vmem:[%s7587 + $0x4] sm:$0xf]
    %v7590 = vld [vmem:[%s7587 + $0x8] sm:$0xf]
    %v7591 = vld [vmem:[%s7587 + $0xc] sm:$0xf]
    %v7592 = vld [vmem:[%s7587 + $0x10] sm:$0xf]
    %v7593 = vld [vmem:[%s7587 + $0x14] sm:$0xf]
    %v7594 = vld [vmem:[%s7587 + $0x18] sm:$0xf]
    %v7595 = vld [vmem:[%s7587 + $0x1c] sm:$0xf]
    %v7596 = vld [vmem:[%s7587 + $0x20] sm:$0xf]
    %v7597 = vld [vmem:[%s7587 + $0x24] sm:$0xf]
    %v7598 = vld [vmem:[%s7587 + $0x28] sm:$0xf]
    %v7599 = vld [vmem:[%s7587 + $0x2c] sm:$0xf]
    %v7600 = vld [vmem:[%s7587 + $0x30] sm:$0xf]
    %v7601 = vld [vmem:[%s7587 + $0x34] sm:$0xf]
    %v7602 = vld [vmem:[%s7587 + $0x38] sm:$0xf]
    %v7603 = vld [vmem:[%s7587 + $0x3c] sm:$0xf]
    %v7620 = vunpack.c.l.b16 %v7588
    %v7621 = vunpack.c.l.b16 %v7589
    %v7622 = vunpack.c.l.b16 %v7590
    %v7623 = vunpack.c.l.b16 %v7591
    %v7624 = vunpack.c.l.b16 %v7592
    %v7625 = vunpack.c.l.b16 %v7593
    %v7626 = vunpack.c.l.b16 %v7594
    %v7627 = vunpack.c.l.b16 %v7595
    %v7628 = vunpack.c.l.b16 %v7596
    %v7629 = vunpack.c.l.b16 %v7597
    %v7630 = vunpack.c.l.b16 %v7598
    %v7631 = vunpack.c.l.b16 %v7599
    %v7632 = vunpack.c.l.b16 %v7600
    %v7633 = vunpack.c.l.b16 %v7601
    %v7634 = vunpack.c.l.b16 %v7602
    %v7635 = vunpack.c.l.b16 %v7603
    %v7636 = vpack.c.b16 %v7621, %v7620
    %v7637 = vpack.c.b16 %v7623, %v7622
    %v7638 = vpack.c.b16 %v7625, %v7624
    %v7639 = vpack.c.b16 %v7627, %v7626
    %v7640 = vpack.c.b16 %v7629, %v7628
    %v7641 = vpack.c.b16 %v7631, %v7630
    %v7642 = vpack.c.b16 %v7633, %v7632
    %v7643 = vpack.c.b16 %v7635, %v7634
    %7652 = vmatprep.subr.bf16.mxu0 0
    %7653 = vmatpush1.bf16.msra.mxu0 %v7643
    %7654 = vmatprep.subr.bf16.mxu0 0
    %7655 = vmatpush1.bf16.msra.mxu0 %v7642
    %7656 = vmatprep.subr.bf16.mxu0 0
    %7657 = vmatpush1.bf16.msra.mxu0 %v7641
    %7658 = vmatprep.subr.bf16.mxu0 0
    %7659 = vmatpush1.bf16.msra.mxu0 %v7640
    %7660 = vmatprep.subr.bf16.mxu0 0
    %7661 = vmatpush1.bf16.msra.mxu0 %v7639
    %7662 = vmatprep.subr.bf16.mxu0 0
    %7663 = vmatpush1.bf16.msra.mxu0 %v7638
    %7664 = vmatprep.subr.bf16.mxu0 0
    %7665 = vmatpush1.bf16.msra.mxu0 %v7637
    %7666 = vmatprep.subr.bf16.mxu0 0
    %7667 = vmatpush1.bf16.msra.mxu0 %v7636
    %7668 = vmatprep.subr.bf16.mxu0 0
    %7669 = vmatpush2.bf16.msra.mxu0 0
    %7670 = vmatprep.subr.bf16.mxu0 0
    %7671 = vmatpush2.bf16.msra.mxu0 0
    %7672 = vmatprep.subr.bf16.mxu0 0
    %7673 = vmatpush2.bf16.msra.mxu0 0
    %7674 = vmatprep.subr.bf16.mxu0 0
    %7675 = vmatpush2.bf16.msra.mxu0 0
    %7676 = vmatprep.subr.bf16.mxu0 0
    %7677 = vmatpush2.bf16.msra.mxu0 0
    %7678 = vmatprep.subr.bf16.mxu0 0
    %7679 = vmatpush2.bf16.msra.mxu0 0
    %7680 = vmatprep.subr.bf16.mxu0 0
    %7681 = vmatpush2.bf16.msra.mxu0 0
    %7682 = vmatprep.subr.bf16.mxu0 0
    %7683 = vmatpush2.bf16.msra.mxu0 0
    %7684 = vmatprep.mubr.bf16.mxu0 0
    %7685 = vmatmul.mubr.bf16.gmra.mxu0 %v7555
    %v7686 = vpop.f32.mrf.mxu0
    %v7687 = vadd.f32 0.0, %v7686
    %v7688 = vpop.f32.mrf.mxu0
    %v7689 = vpop.f32.mrf.mxu0
    %v7690 = vadd.f32 0.0, %v7689
    %v7691 = vpop.f32.mrf.mxu0
    %7692 = vmatprep.mubr.bf16.mxu0 0
    %7693 = vmatmul.mubr.bf16.gmra.mxu0 %v7556
    %v7694 = vpop.f32.mrf.mxu0
    %v7695 = vadd.f32 0.0, %v7694
    %v7696 = vpop.f32.mrf.mxu0
    %v7697 = vpop.f32.mrf.mxu0
    %v7698 = vadd.f32 0.0, %v7697
    %v7699 = vpop.f32.mrf.mxu0
    %7700 = vmatprep.mubr.bf16.mxu0 0
    %7701 = vmatmul.mubr.bf16.gmra.mxu0 %v7557
    %v7702 = vpop.f32.mrf.mxu0
    %v7703 = vadd.f32 0.0, %v7702
    %v7704 = vpop.f32.mrf.mxu0
    %v7705 = vpop.f32.mrf.mxu0
    %v7706 = vadd.f32 0.0, %v7705
    %v7707 = vpop.f32.mrf.mxu0
    %7708 = vmatprep.mubr.bf16.mxu0 0
    %7709 = vmatmul.mubr.bf16.gmra.mxu0 %v7558
    %v7710 = vpop.f32.mrf.mxu0
    %v7711 = vadd.f32 0.0, %v7710
    %v7712 = vpop.f32.mrf.mxu0
    %v7713 = vpop.f32.mrf.mxu0
    %v7714 = vadd.f32 0.0, %v7713
    %v7715 = vpop.f32.mrf.mxu0
    %7716 = vmatprep.mubr.bf16.mxu0 0
    %7717 = vmatmul.mubr.bf16.gmra.mxu0 %v7559
    %v7718 = vpop.f32.mrf.mxu0
    %v7719 = vadd.f32 0.0, %v7718
    %v7720 = vpop.f32.mrf.mxu0
    %v7721 = vpop.f32.mrf.mxu0
    %v7722 = vadd.f32 0.0, %v7721
    %v7723 = vpop.f32.mrf.mxu0
    %7724 = vmatprep.mubr.bf16.mxu0 0
    %7725 = vmatmul.mubr.bf16.gmra.mxu0 %v7560
    %v7726 = vpop.f32.mrf.mxu0
    %v7727 = vadd.f32 0.0, %v7726
    %v7728 = vpop.f32.mrf.mxu0
    %v7729 = vpop.f32.mrf.mxu0
    %v7730 = vadd.f32 0.0, %v7729
    %v7731 = vpop.f32.mrf.mxu0
    %7732 = vmatprep.mubr.bf16.mxu0 0
    %7733 = vmatmul.mubr.bf16.gmra.mxu0 %v7561
    %v7734 = vpop.f32.mrf.mxu0
    %v7735 = vadd.f32 0.0, %v7734
    %v7736 = vpop.f32.mrf.mxu0
    %v7737 = vpop.f32.mrf.mxu0
    %v7738 = vadd.f32 0.0, %v7737
    %v7739 = vpop.f32.mrf.mxu0
    %7740 = vmatprep.mubr.bf16.mxu0 0
    %7741 = vmatmul.mubr.bf16.gmra.mxu0 %v7562
    %v7742 = vpop.f32.mrf.mxu0
    %v7743 = vadd.f32 0.0, %v7742
    %v7744 = vpop.f32.mrf.mxu0
    %v7745 = vpop.f32.mrf.mxu0
    %v7746 = vadd.f32 0.0, %v7745
    %v7747 = vpop.f32.mrf.mxu0
    %7748 = vmatprep.mubr.bf16.mxu0 0
    %7749 = vmatmul.mubr.bf16.gmra.mxu0 %v7563
    %v7750 = vpop.f32.mrf.mxu0
    %v7751 = vadd.f32 0.0, %v7750
    %v7752 = vpop.f32.mrf.mxu0
    %v7753 = vpop.f32.mrf.mxu0
    %v7754 = vadd.f32 0.0, %v7753
    %v7755 = vpop.f32.mrf.mxu0
    %7756 = vmatprep.mubr.bf16.mxu0 0
    %7757 = vmatmul.mubr.bf16.gmra.mxu0 %v7564
    %v7758 = vpop.f32.mrf.mxu0
    %v7759 = vadd.f32 0.0, %v7758
    %v7760 = vpop.f32.mrf.mxu0
    %v7761 = vpop.f32.mrf.mxu0
    %v7762 = vadd.f32 0.0, %v7761
    %v7763 = vpop.f32.mrf.mxu0
    %7764 = vmatprep.mubr.bf16.mxu0 0
    %7765 = vmatmul.mubr.bf16.gmra.mxu0 %v7565
    %v7766 = vpop.f32.mrf.mxu0
    %v7767 = vadd.f32 0.0, %v7766
    %v7768 = vpop.f32.mrf.mxu0
    %v7769 = vpop.f32.mrf.mxu0
    %v7770 = vadd.f32 0.0, %v7769
    %v7771 = vpop.f32.mrf.mxu0
    %7772 = vmatprep.mubr.bf16.mxu0 0
    %7773 = vmatmul.mubr.bf16.gmra.mxu0 %v7566
    %v7774 = vpop.f32.mrf.mxu0
    %v7775 = vadd.f32 0.0, %v7774
    %v7776 = vpop.f32.mrf.mxu0
    %v7777 = vpop.f32.mrf.mxu0
    %v7778 = vadd.f32 0.0, %v7777
    %v7779 = vpop.f32.mrf.mxu0
    %7780 = vmatprep.mubr.bf16.mxu0 0
    %7781 = vmatmul.mubr.bf16.gmra.mxu0 %v7567
    %v7782 = vpop.f32.mrf.mxu0
    %v7783 = vadd.f32 0.0, %v7782
    %v7784 = vpop.f32.mrf.mxu0
    %v7785 = vpop.f32.mrf.mxu0
    %v7786 = vadd.f32 0.0, %v7785
    %v7787 = vpop.f32.mrf.mxu0
    %7788 = vmatprep.mubr.bf16.mxu0 0
    %7789 = vmatmul.mubr.bf16.gmra.mxu0 %v7568
    %v7790 = vpop.f32.mrf.mxu0
    %v7791 = vadd.f32 0.0, %v7790
    %v7792 = vpop.f32.mrf.mxu0
    %v7793 = vpop.f32.mrf.mxu0
    %v7794 = vadd.f32 0.0, %v7793
    %v7795 = vpop.f32.mrf.mxu0
    %7796 = vmatprep.mubr.bf16.mxu0 0
    %7797 = vmatmul.mubr.bf16.gmra.mxu0 %v7569
    %v7798 = vpop.f32.mrf.mxu0
    %v7799 = vadd.f32 0.0, %v7798
    %v7800 = vpop.f32.mrf.mxu0
    %v7801 = vpop.f32.mrf.mxu0
    %v7802 = vadd.f32 0.0, %v7801
    %v7803 = vpop.f32.mrf.mxu0
    %7804 = vmatprep.mubr.bf16.mxu0 0
    %7805 = vmatmul.mubr.bf16.gmra.mxu0 %v7570
    %v7806 = vpop.f32.mrf.mxu0
    %v7807 = vadd.f32 0.0, %v7806
    %v7808 = vpop.f32.mrf.mxu0
    %v7809 = vpop.f32.mrf.mxu0
    %v7810 = vadd.f32 0.0, %v7809
    %v7811 = vpop.f32.mrf.mxu0
    %7812 = vmatprep.mubr.bf16.mxu0 0
    %7813 = vmatmul.mubr.bf16.gmra.mxu0 %v7571
    %v7814 = vpop.f32.mrf.mxu0
    %v7815 = vadd.f32 0.0, %v7814
    %v7816 = vpop.f32.mrf.mxu0
    %v7817 = vpop.f32.mrf.mxu0
    %v7818 = vadd.f32 0.0, %v7817
    %v7819 = vpop.f32.mrf.mxu0
    %7820 = vmatprep.mubr.bf16.mxu0 0
    %7821 = vmatmul.mubr.bf16.gmra.mxu0 %v7572
    %v7822 = vpop.f32.mrf.mxu0
    %v7823 = vadd.f32 0.0, %v7822
    %v7824 = vpop.f32.mrf.mxu0
    %v7825 = vpop.f32.mrf.mxu0
    %v7826 = vadd.f32 0.0, %v7825
    %v7827 = vpop.f32.mrf.mxu0
    %7828 = vmatprep.mubr.bf16.mxu0 0
    %7829 = vmatmul.mubr.bf16.gmra.mxu0 %v7573
    %v7830 = vpop.f32.mrf.mxu0
    %v7831 = vadd.f32 0.0, %v7830
    %v7832 = vpop.f32.mrf.mxu0
    %v7833 = vpop.f32.mrf.mxu0
    %v7834 = vadd.f32 0.0, %v7833
    %v7835 = vpop.f32.mrf.mxu0
    %7836 = vmatprep.mubr.bf16.mxu0 0
    %7837 = vmatmul.mubr.bf16.gmra.mxu0 %v7574
    %v7838 = vpop.f32.mrf.mxu0
    %v7839 = vadd.f32 0.0, %v7838
    %v7840 = vpop.f32.mrf.mxu0
    %v7841 = vpop.f32.mrf.mxu0
    %v7842 = vadd.f32 0.0, %v7841
    %v7843 = vpop.f32.mrf.mxu0
    %7844 = vmatprep.mubr.bf16.mxu0 0
    %7845 = vmatmul.mubr.bf16.gmra.mxu0 %v7575
    %v7846 = vpop.f32.mrf.mxu0
    %v7847 = vadd.f32 0.0, %v7846
    %v7848 = vpop.f32.mrf.mxu0
    %v7849 = vpop.f32.mrf.mxu0
    %v7850 = vadd.f32 0.0, %v7849
    %v7851 = vpop.f32.mrf.mxu0
    %7852 = vmatprep.mubr.bf16.mxu0 0
    %7853 = vmatmul.mubr.bf16.gmra.mxu0 %v7576
    %v7854 = vpop.f32.mrf.mxu0
    %v7855 = vadd.f32 0.0, %v7854
    %v7856 = vpop.f32.mrf.mxu0
    %v7857 = vpop.f32.mrf.mxu0
    %v7858 = vadd.f32 0.0, %v7857
    %v7859 = vpop.f32.mrf.mxu0
    %7860 = vmatprep.mubr.bf16.mxu0 0
    %7861 = vmatmul.mubr.bf16.gmra.mxu0 %v7577
    %v7862 = vpop.f32.mrf.mxu0
    %v7863 = vadd.f32 0.0, %v7862
    %v7864 = vpop.f32.mrf.mxu0
    %v7865 = vpop.f32.mrf.mxu0
    %v7866 = vadd.f32 0.0, %v7865
    %v7867 = vpop.f32.mrf.mxu0
    %7868 = vmatprep.mubr.bf16.mxu0 0
    %7869 = vmatmul.mubr.bf16.gmra.mxu0 %v7578
    %v7870 = vpop.f32.mrf.mxu0
    %v7871 = vadd.f32 0.0, %v7870
    %v7872 = vpop.f32.mrf.mxu0
    %v7873 = vpop.f32.mrf.mxu0
    %v7874 = vadd.f32 0.0, %v7873
    %v7875 = vpop.f32.mrf.mxu0
    %7876 = vmatprep.mubr.bf16.mxu0 0
    %7877 = vmatmul.mubr.bf16.gmra.mxu0 %v7579
    %v7878 = vpop.f32.mrf.mxu0
    %v7879 = vadd.f32 0.0, %v7878
    %v7880 = vpop.f32.mrf.mxu0
    %v7881 = vpop.f32.mrf.mxu0
    %v7882 = vadd.f32 0.0, %v7881
    %v7883 = vpop.f32.mrf.mxu0
    %7884 = vmatprep.mubr.bf16.mxu0 0
    %7885 = vmatmul.mubr.bf16.gmra.mxu0 %v7580
    %v7886 = vpop.f32.mrf.mxu0
    %v7887 = vadd.f32 0.0, %v7886
    %v7888 = vpop.f32.mrf.mxu0
    %v7889 = vpop.f32.mrf.mxu0
    %v7890 = vadd.f32 0.0, %v7889
    %v7891 = vpop.f32.mrf.mxu0
    %7892 = vmatprep.mubr.bf16.mxu0 0
    %7893 = vmatmul.mubr.bf16.gmra.mxu0 %v7581
    %v7894 = vpop.f32.mrf.mxu0
    %v7895 = vadd.f32 0.0, %v7894
    %v7896 = vpop.f32.mrf.mxu0
    %v7897 = vpop.f32.mrf.mxu0
    %v7898 = vadd.f32 0.0, %v7897
    %v7899 = vpop.f32.mrf.mxu0
    %7900 = vmatprep.mubr.bf16.mxu0 0
    %7901 = vmatmul.mubr.bf16.gmra.mxu0 %v7582
    %v7902 = vpop.f32.mrf.mxu0
    %v7903 = vadd.f32 0.0, %v7902
    %v7904 = vpop.f32.mrf.mxu0
    %v7905 = vpop.f32.mrf.mxu0
    %v7906 = vadd.f32 0.0, %v7905
    %v7907 = vpop.f32.mrf.mxu0
    %7908 = vmatprep.mubr.bf16.mxu0 0
    %7909 = vmatmul.mubr.bf16.gmra.mxu0 %v7583
    %v7910 = vpop.f32.mrf.mxu0
    %v7911 = vadd.f32 0.0, %v7910
    %v7912 = vpop.f32.mrf.mxu0
    %v7913 = vpop.f32.mrf.mxu0
    %v7914 = vadd.f32 0.0, %v7913
    %v7915 = vpop.f32.mrf.mxu0
    %7916 = vmatprep.mubr.bf16.mxu0 0
    %7917 = vmatmul.mubr.bf16.gmra.mxu0 %v7584
    %v7918 = vpop.f32.mrf.mxu0
    %v7919 = vadd.f32 0.0, %v7918
    %v7920 = vpop.f32.mrf.mxu0
    %v7921 = vpop.f32.mrf.mxu0
    %v7922 = vadd.f32 0.0, %v7921
    %v7923 = vpop.f32.mrf.mxu0
    %7924 = vmatprep.mubr.bf16.mxu0 0
    %7925 = vmatmul.mubr.bf16.gmra.mxu0 %v7585
    %v7926 = vpop.f32.mrf.mxu0
    %v7927 = vadd.f32 0.0, %v7926
    %v7928 = vpop.f32.mrf.mxu0
    %v7929 = vpop.f32.mrf.mxu0
    %v7930 = vadd.f32 0.0, %v7929
    %v7931 = vpop.f32.mrf.mxu0
    %7932 = vmatprep.mubr.bf16.mxu0 0
    %7933 = vmatmul.mubr.bf16.gmra.mxu0 %v7586
    %v7934 = vpop.f32.mrf.mxu0
    %v7935 = vadd.f32 0.0, %v7934
    %v7936 = vpop.f32.mrf.mxu0
    %v7937 = vpop.f32.mrf.mxu0
    %v7938 = vadd.f32 0.0, %v7937
    %v7939 = vpop.f32.mrf.mxu0
    %7940 = vdwg.mxu0
    %v7941 = vadd.f32 %v7426, %v7687
    %v7942 = vadd.f32 %v7427, %v7690
    %v7943 = vadd.f32 %v7428, %v7695
    %v7944 = vadd.f32 %v7429, %v7698
    %v7945 = vadd.f32 %v7430, %v7703
    %v7946 = vadd.f32 %v7431, %v7706
    %v7947 = vadd.f32 %v7432, %v7711
    %v7948 = vadd.f32 %v7433, %v7714
    %v7949 = vadd.f32 %v7434, %v7719
    %v7950 = vadd.f32 %v7435, %v7722
    %v7951 = vadd.f32 %v7436, %v7727
    %v7952 = vadd.f32 %v7437, %v7730
    %v7953 = vadd.f32 %v7438, %v7735
    %v7954 = vadd.f32 %v7439, %v7738
    %v7955 = vadd.f32 %v7440, %v7743
    %v7956 = vadd.f32 %v7441, %v7746
    %v7957 = vadd.f32 %v7442, %v7751
    %v7958 = vadd.f32 %v7443, %v7754
    %v7959 = vadd.f32 %v7444, %v7759
    %v7960 = vadd.f32 %v7445, %v7762
    %v7961 = vadd.f32 %v7446, %v7767
    %v7962 = vadd.f32 %v7447, %v7770
    %v7963 = vadd.f32 %v7448, %v7775
    %v7964 = vadd.f32 %v7449, %v7778
    %v7965 = vadd.f32 %v7450, %v7783
    %v7966 = vadd.f32 %v7451, %v7786
    %v7967 = vadd.f32 %v7452, %v7791
    %v7968 = vadd.f32 %v7453, %v7794
    %v7969 = vadd.f32 %v7454, %v7799
    %v7970 = vadd.f32 %v7455, %v7802
    %v7971 = vadd.f32 %v7456, %v7807
    %v7972 = vadd.f32 %v7457, %v7810
    %v7973 = vadd.f32 %v7458, %v7815
    %v7974 = vadd.f32 %v7459, %v7818
    %v7975 = vadd.f32 %v7460, %v7823
    %v7976 = vadd.f32 %v7461, %v7826
    %v7977 = vadd.f32 %v7462, %v7831
    %v7978 = vadd.f32 %v7463, %v7834
    %v7979 = vadd.f32 %v7464, %v7839
    %v7980 = vadd.f32 %v7465, %v7842
    %v7981 = vadd.f32 %v7466, %v7847
    %v7982 = vadd.f32 %v7467, %v7850
    %v7983 = vadd.f32 %v7468, %v7855
    %v7984 = vadd.f32 %v7469, %v7858
    %v7985 = vadd.f32 %v7470, %v7863
    %v7986 = vadd.f32 %v7471, %v7866
    %v7987 = vadd.f32 %v7472, %v7871
    %v7988 = vadd.f32 %v7473, %v7874
    %v7989 = vadd.f32 %v7474, %v7879
    %v7990 = vadd.f32 %v7475, %v7882
    %v7991 = vadd.f32 %v7476, %v7887
    %v7992 = vadd.f32 %v7477, %v7890
    %v7993 = vadd.f32 %v7478, %v7895
    %v7994 = vadd.f32 %v7479, %v7898
    %v7995 = vadd.f32 %v7480, %v7903
    %v7996 = vadd.f32 %v7481, %v7906
    %v7997 = vadd.f32 %v7482, %v7911
    %v7998 = vadd.f32 %v7483, %v7914
    %v7999 = vadd.f32 %v7484, %v7919
    %v8000 = vadd.f32 %v7485, %v7922
    %v8001 = vadd.f32 %v7486, %v7927
    %v8002 = vadd.f32 %v7487, %v7930
    %v8003 = vadd.f32 %v7488, %v7935
    %v8004 = vadd.f32 %v7489, %v7938
    %s8005 = scalar_lea.vmem [#allocation2], 312
    %v8006 = vld [vmem:[%s8005] sm:$0xff]
    %v8007 = vld [vmem:[%s8005 + $0x10] sm:$0xff]
    %v8008 = vld [vmem:[%s8005 + $0x20] sm:$0xff]
    %v8009 = vld [vmem:[%s8005 + $0x30] sm:$0xff]
    %v8010 = vld [vmem:[%s8005 + $0x40] sm:$0xff]
    %v8011 = vld [vmem:[%s8005 + $0x50] sm:$0xff]
    %v8012 = vld [vmem:[%s8005 + $0x60] sm:$0xff]
    %v8013 = vld [vmem:[%s8005 + $0x70] sm:$0xff]
    %v8014 = vld [vmem:[%s8005 + $0x120] sm:$0xff]
    %v8015 = vld [vmem:[%s8005 + $0x130] sm:$0xff]
    %v8016 = vld [vmem:[%s8005 + $0x140] sm:$0xff]
    %v8017 = vld [vmem:[%s8005 + $0x150] sm:$0xff]
    %v8018 = vld [vmem:[%s8005 + $0x160] sm:$0xff]
    %v8019 = vld [vmem:[%s8005 + $0x170] sm:$0xff]
    %v8020 = vld [vmem:[%s8005 + $0x180] sm:$0xff]
    %v8021 = vld [vmem:[%s8005 + $0x190] sm:$0xff]
    %v8022 = vld [vmem:[%s8005 + $0x240] sm:$0xff]
    %v8023 = vld [vmem:[%s8005 + $0x250] sm:$0xff]
    %v8024 = vld [vmem:[%s8005 + $0x260] sm:$0xff]
    %v8025 = vld [vmem:[%s8005 + $0x270] sm:$0xff]
    %v8026 = vld [vmem:[%s8005 + $0x280] sm:$0xff]
    %v8027 = vld [vmem:[%s8005 + $0x290] sm:$0xff]
    %v8028 = vld [vmem:[%s8005 + $0x2a0] sm:$0xff]
    %v8029 = vld [vmem:[%s8005 + $0x2b0] sm:$0xff]
    %v8030 = vld [vmem:[%s8005 + $0x360] sm:$0xff]
    %v8031 = vld [vmem:[%s8005 + $0x370] sm:$0xff]
    %v8032 = vld [vmem:[%s8005 + $0x380] sm:$0xff]
    %v8033 = vld [vmem:[%s8005 + $0x390] sm:$0xff]
    %v8034 = vld [vmem:[%s8005 + $0x3a0] sm:$0xff]
    %v8035 = vld [vmem:[%s8005 + $0x3b0] sm:$0xff]
    %v8036 = vld [vmem:[%s8005 + $0x3c0] sm:$0xff]
    %v8037 = vld [vmem:[%s8005 + $0x3d0] sm:$0xff]
    %v8038 = vld [vmem:[%s8005 + $0x480] sm:$0xff]
    %v8039 = vld [vmem:[%s8005 + $0x490] sm:$0xff]
    %v8040 = vld [vmem:[%s8005 + $0x4a0] sm:$0xff]
    %v8041 = vld [vmem:[%s8005 + $0x4b0] sm:$0xff]
    %v8042 = vld [vmem:[%s8005 + $0x4c0] sm:$0xff]
    %v8043 = vld [vmem:[%s8005 + $0x4d0] sm:$0xff]
    %v8044 = vld [vmem:[%s8005 + $0x4e0] sm:$0xff]
    %v8045 = vld [vmem:[%s8005 + $0x4f0] sm:$0xff]
    %v8046 = vld [vmem:[%s8005 + $0x5a0] sm:$0xff]
    %v8047 = vld [vmem:[%s8005 + $0x5b0] sm:$0xff]
    %v8048 = vld [vmem:[%s8005 + $0x5c0] sm:$0xff]
    %v8049 = vld [vmem:[%s8005 + $0x5d0] sm:$0xff]
    %v8050 = vld [vmem:[%s8005 + $0x5e0] sm:$0xff]
    %v8051 = vld [vmem:[%s8005 + $0x5f0] sm:$0xff]
    %v8052 = vld [vmem:[%s8005 + $0x600] sm:$0xff]
    %v8053 = vld [vmem:[%s8005 + $0x610] sm:$0xff]
    %v8054 = vld [vmem:[%s8005 + $0x6c0] sm:$0xff]
    %v8055 = vld [vmem:[%s8005 + $0x6d0] sm:$0xff]
    %v8056 = vld [vmem:[%s8005 + $0x6e0] sm:$0xff]
    %v8057 = vld [vmem:[%s8005 + $0x6f0] sm:$0xff]
    %v8058 = vld [vmem:[%s8005 + $0x700] sm:$0xff]
    %v8059 = vld [vmem:[%s8005 + $0x710] sm:$0xff]
    %v8060 = vld [vmem:[%s8005 + $0x720] sm:$0xff]
    %v8061 = vld [vmem:[%s8005 + $0x730] sm:$0xff]
    %v8062 = vld [vmem:[%s8005 + $0x7e0] sm:$0xff]
    %v8063 = vld [vmem:[%s8005 + $0x7f0] sm:$0xff]
    %v8064 = vld [vmem:[%s8005 + $0x800] sm:$0xff]
    %v8065 = vld [vmem:[%s8005 + $0x810] sm:$0xff]
    %v8066 = vld [vmem:[%s8005 + $0x820] sm:$0xff]
    %v8067 = vld [vmem:[%s8005 + $0x830] sm:$0xff]
    %v8068 = vld [vmem:[%s8005 + $0x840] sm:$0xff]
    %v8069 = vld [vmem:[%s8005 + $0x850] sm:$0xff]
    %v8070 = vpack.c.bf16 %v8007, %v8006
    %v8071 = vpack.c.bf16 %v8009, %v8008
    %v8072 = vpack.c.bf16 %v8011, %v8010
    %v8073 = vpack.c.bf16 %v8013, %v8012
    %v8074 = vpack.c.bf16 %v8015, %v8014
    %v8075 = vpack.c.bf16 %v8017, %v8016
    %v8076 = vpack.c.bf16 %v8019, %v8018
    %v8077 = vpack.c.bf16 %v8021, %v8020
    %v8078 = vpack.c.bf16 %v8023, %v8022
    %v8079 = vpack.c.bf16 %v8025, %v8024
    %v8080 = vpack.c.bf16 %v8027, %v8026
    %v8081 = vpack.c.bf16 %v8029, %v8028
    %v8082 = vpack.c.bf16 %v8031, %v8030
    %v8083 = vpack.c.bf16 %v8033, %v8032
    %v8084 = vpack.c.bf16 %v8035, %v8034
    %v8085 = vpack.c.bf16 %v8037, %v8036
    %v8086 = vpack.c.bf16 %v8039, %v8038
    %v8087 = vpack.c.bf16 %v8041, %v8040
    %v8088 = vpack.c.bf16 %v8043, %v8042
    %v8089 = vpack.c.bf16 %v8045, %v8044
    %v8090 = vpack.c.bf16 %v8047, %v8046
    %v8091 = vpack.c.bf16 %v8049, %v8048
    %v8092 = vpack.c.bf16 %v8051, %v8050
    %v8093 = vpack.c.bf16 %v8053, %v8052
    %v8094 = vpack.c.bf16 %v8055, %v8054
    %v8095 = vpack.c.bf16 %v8057, %v8056
    %v8096 = vpack.c.bf16 %v8059, %v8058
    %v8097 = vpack.c.bf16 %v8061, %v8060
    %v8098 = vpack.c.bf16 %v8063, %v8062
    %v8099 = vpack.c.bf16 %v8065, %v8064
    %v8100 = vpack.c.bf16 %v8067, %v8066
    %v8101 = vpack.c.bf16 %v8069, %v8068
    %s8102 = scalar_lea.vmem [#allocation11], 320
    %v8103 = vld [vmem:[%s8102] sm:$0xf]
    %v8104 = vld [vmem:[%s8102 + $0x4] sm:$0xf]
    %v8105 = vld [vmem:[%s8102 + $0x8] sm:$0xf]
    %v8106 = vld [vmem:[%s8102 + $0xc] sm:$0xf]
    %v8107 = vld [vmem:[%s8102 + $0x10] sm:$0xf]
    %v8108 = vld [vmem:[%s8102 + $0x14] sm:$0xf]
    %v8109 = vld [vmem:[%s8102 + $0x18] sm:$0xf]
    %v8110 = vld [vmem:[%s8102 + $0x1c] sm:$0xf]
    %v8111 = vld [vmem:[%s8102 + $0x20] sm:$0xf]
    %v8112 = vld [vmem:[%s8102 + $0x24] sm:$0xf]
    %v8113 = vld [vmem:[%s8102 + $0x28] sm:$0xf]
    %v8114 = vld [vmem:[%s8102 + $0x2c] sm:$0xf]
    %v8115 = vld [vmem:[%s8102 + $0x30] sm:$0xf]
    %v8116 = vld [vmem:[%s8102 + $0x34] sm:$0xf]
    %v8117 = vld [vmem:[%s8102 + $0x38] sm:$0xf]
    %v8118 = vld [vmem:[%s8102 + $0x3c] sm:$0xf]
    %v8135 = vunpack.c.l.b16 %v8103
    %v8136 = vunpack.c.l.b16 %v8104
    %v8137 = vunpack.c.l.b16 %v8105
    %v8138 = vunpack.c.l.b16 %v8106
    %v8139 = vunpack.c.l.b16 %v8107
    %v8140 = vunpack.c.l.b16 %v8108
    %v8141 = vunpack.c.l.b16 %v8109
    %v8142 = vunpack.c.l.b16 %v8110
    %v8143 = vunpack.c.l.b16 %v8111
    %v8144 = vunpack.c.l.b16 %v8112
    %v8145 = vunpack.c.l.b16 %v8113
    %v8146 = vunpack.c.l.b16 %v8114
    %v8147 = vunpack.c.l.b16 %v8115
    %v8148 = vunpack.c.l.b16 %v8116
    %v8149 = vunpack.c.l.b16 %v8117
    %v8150 = vunpack.c.l.b16 %v8118
    %v8151 = vpack.c.b16 %v8136, %v8135
    %v8152 = vpack.c.b16 %v8138, %v8137
    %v8153 = vpack.c.b16 %v8140, %v8139
    %v8154 = vpack.c.b16 %v8142, %v8141
    %v8155 = vpack.c.b16 %v8144, %v8143
    %v8156 = vpack.c.b16 %v8146, %v8145
    %v8157 = vpack.c.b16 %v8148, %v8147
    %v8158 = vpack.c.b16 %v8150, %v8149
    %8167 = vmatprep.subr.bf16.mxu0 0
    %8168 = vmatpush1.bf16.msra.mxu0 %v8158
    %8169 = vmatprep.subr.bf16.mxu0 0
    %8170 = vmatpush1.bf16.msra.mxu0 %v8157
    %8171 = vmatprep.subr.bf16.mxu0 0
    %8172 = vmatpush1.bf16.msra.mxu0 %v8156
    %8173 = vmatprep.subr.bf16.mxu0 0
    %8174 = vmatpush1.bf16.msra.mxu0 %v8155
    %8175 = vmatprep.subr.bf16.mxu0 0
    %8176 = vmatpush1.bf16.msra.mxu0 %v8154
    %8177 = vmatprep.subr.bf16.mxu0 0
    %8178 = vmatpush1.bf16.msra.mxu0 %v8153
    %8179 = vmatprep.subr.bf16.mxu0 0
    %8180 = vmatpush1.bf16.msra.mxu0 %v8152
    %8181 = vmatprep.subr.bf16.mxu0 0
    %8182 = vmatpush1.bf16.msra.mxu0 %v8151
    %8183 = vmatprep.subr.bf16.mxu0 0
    %8184 = vmatpush2.bf16.msra.mxu0 0
    %8185 = vmatprep.subr.bf16.mxu0 0
    %8186 = vmatpush2.bf16.msra.mxu0 0
    %8187 = vmatprep.subr.bf16.mxu0 0
    %8188 = vmatpush2.bf16.msra.mxu0 0
    %8189 = vmatprep.subr.bf16.mxu0 0
    %8190 = vmatpush2.bf16.msra.mxu0 0
    %8191 = vmatprep.subr.bf16.mxu0 0
    %8192 = vmatpush2.bf16.msra.mxu0 0
    %8193 = vmatprep.subr.bf16.mxu0 0
    %8194 = vmatpush2.bf16.msra.mxu0 0
    %8195 = vmatprep.subr.bf16.mxu0 0
    %8196 = vmatpush2.bf16.msra.mxu0 0
    %8197 = vmatprep.subr.bf16.mxu0 0
    %8198 = vmatpush2.bf16.msra.mxu0 0
    %8199 = vmatprep.mubr.bf16.mxu0 0
    %8200 = vmatmul.mubr.bf16.gmra.mxu0 %v8070
    %v8201 = vpop.f32.mrf.mxu0
    %v8202 = vadd.f32 0.0, %v8201
    %v8203 = vpop.f32.mrf.mxu0
    %v8204 = vpop.f32.mrf.mxu0
    %v8205 = vadd.f32 0.0, %v8204
    %v8206 = vpop.f32.mrf.mxu0
    %8207 = vmatprep.mubr.bf16.mxu0 0
    %8208 = vmatmul.mubr.bf16.gmra.mxu0 %v8071
    %v8209 = vpop.f32.mrf.mxu0
    %v8210 = vadd.f32 0.0, %v8209
    %v8211 = vpop.f32.mrf.mxu0
    %v8212 = vpop.f32.mrf.mxu0
    %v8213 = vadd.f32 0.0, %v8212
    %v8214 = vpop.f32.mrf.mxu0
    %8215 = vmatprep.mubr.bf16.mxu0 0
    %8216 = vmatmul.mubr.bf16.gmra.mxu0 %v8072
    %v8217 = vpop.f32.mrf.mxu0
    %v8218 = vadd.f32 0.0, %v8217
    %v8219 = vpop.f32.mrf.mxu0
    %v8220 = vpop.f32.mrf.mxu0
    %v8221 = vadd.f32 0.0, %v8220
    %v8222 = vpop.f32.mrf.mxu0
    %8223 = vmatprep.mubr.bf16.mxu0 0
    %8224 = vmatmul.mubr.bf16.gmra.mxu0 %v8073
    %v8225 = vpop.f32.mrf.mxu0
    %v8226 = vadd.f32 0.0, %v8225
    %v8227 = vpop.f32.mrf.mxu0
    %v8228 = vpop.f32.mrf.mxu0
    %v8229 = vadd.f32 0.0, %v8228
    %v8230 = vpop.f32.mrf.mxu0
    %8231 = vmatprep.mubr.bf16.mxu0 0
    %8232 = vmatmul.mubr.bf16.gmra.mxu0 %v8074
    %v8233 = vpop.f32.mrf.mxu0
    %v8234 = vadd.f32 0.0, %v8233
    %v8235 = vpop.f32.mrf.mxu0
    %v8236 = vpop.f32.mrf.mxu0
    %v8237 = vadd.f32 0.0, %v8236
    %v8238 = vpop.f32.mrf.mxu0
    %8239 = vmatprep.mubr.bf16.mxu0 0
    %8240 = vmatmul.mubr.bf16.gmra.mxu0 %v8075
    %v8241 = vpop.f32.mrf.mxu0
    %v8242 = vadd.f32 0.0, %v8241
    %v8243 = vpop.f32.mrf.mxu0
    %v8244 = vpop.f32.mrf.mxu0
    %v8245 = vadd.f32 0.0, %v8244
    %v8246 = vpop.f32.mrf.mxu0
    %8247 = vmatprep.mubr.bf16.mxu0 0
    %8248 = vmatmul.mubr.bf16.gmra.mxu0 %v8076
    %v8249 = vpop.f32.mrf.mxu0
    %v8250 = vadd.f32 0.0, %v8249
    %v8251 = vpop.f32.mrf.mxu0
    %v8252 = vpop.f32.mrf.mxu0
    %v8253 = vadd.f32 0.0, %v8252
    %v8254 = vpop.f32.mrf.mxu0
    %8255 = vmatprep.mubr.bf16.mxu0 0
    %8256 = vmatmul.mubr.bf16.gmra.mxu0 %v8077
    %v8257 = vpop.f32.mrf.mxu0
    %v8258 = vadd.f32 0.0, %v8257
    %v8259 = vpop.f32.mrf.mxu0
    %v8260 = vpop.f32.mrf.mxu0
    %v8261 = vadd.f32 0.0, %v8260
    %v8262 = vpop.f32.mrf.mxu0
    %8263 = vmatprep.mubr.bf16.mxu0 0
    %8264 = vmatmul.mubr.bf16.gmra.mxu0 %v8078
    %v8265 = vpop.f32.mrf.mxu0
    %v8266 = vadd.f32 0.0, %v8265
    %v8267 = vpop.f32.mrf.mxu0
    %v8268 = vpop.f32.mrf.mxu0
    %v8269 = vadd.f32 0.0, %v8268
    %v8270 = vpop.f32.mrf.mxu0
    %8271 = vmatprep.mubr.bf16.mxu0 0
    %8272 = vmatmul.mubr.bf16.gmra.mxu0 %v8079
    %v8273 = vpop.f32.mrf.mxu0
    %v8274 = vadd.f32 0.0, %v8273
    %v8275 = vpop.f32.mrf.mxu0
    %v8276 = vpop.f32.mrf.mxu0
    %v8277 = vadd.f32 0.0, %v8276
    %v8278 = vpop.f32.mrf.mxu0
    %8279 = vmatprep.mubr.bf16.mxu0 0
    %8280 = vmatmul.mubr.bf16.gmra.mxu0 %v8080
    %v8281 = vpop.f32.mrf.mxu0
    %v8282 = vadd.f32 0.0, %v8281
    %v8283 = vpop.f32.mrf.mxu0
    %v8284 = vpop.f32.mrf.mxu0
    %v8285 = vadd.f32 0.0, %v8284
    %v8286 = vpop.f32.mrf.mxu0
    %8287 = vmatprep.mubr.bf16.mxu0 0
    %8288 = vmatmul.mubr.bf16.gmra.mxu0 %v8081
    %v8289 = vpop.f32.mrf.mxu0
    %v8290 = vadd.f32 0.0, %v8289
    %v8291 = vpop.f32.mrf.mxu0
    %v8292 = vpop.f32.mrf.mxu0
    %v8293 = vadd.f32 0.0, %v8292
    %v8294 = vpop.f32.mrf.mxu0
    %8295 = vmatprep.mubr.bf16.mxu0 0
    %8296 = vmatmul.mubr.bf16.gmra.mxu0 %v8082
    %v8297 = vpop.f32.mrf.mxu0
    %v8298 = vadd.f32 0.0, %v8297
    %v8299 = vpop.f32.mrf.mxu0
    %v8300 = vpop.f32.mrf.mxu0
    %v8301 = vadd.f32 0.0, %v8300
    %v8302 = vpop.f32.mrf.mxu0
    %8303 = vmatprep.mubr.bf16.mxu0 0
    %8304 = vmatmul.mubr.bf16.gmra.mxu0 %v8083
    %v8305 = vpop.f32.mrf.mxu0
    %v8306 = vadd.f32 0.0, %v8305
    %v8307 = vpop.f32.mrf.mxu0
    %v8308 = vpop.f32.mrf.mxu0
    %v8309 = vadd.f32 0.0, %v8308
    %v8310 = vpop.f32.mrf.mxu0
    %8311 = vmatprep.mubr.bf16.mxu0 0
    %8312 = vmatmul.mubr.bf16.gmra.mxu0 %v8084
    %v8313 = vpop.f32.mrf.mxu0
    %v8314 = vadd.f32 0.0, %v8313
    %v8315 = vpop.f32.mrf.mxu0
    %v8316 = vpop.f32.mrf.mxu0
    %v8317 = vadd.f32 0.0, %v8316
    %v8318 = vpop.f32.mrf.mxu0
    %8319 = vmatprep.mubr.bf16.mxu0 0
    %8320 = vmatmul.mubr.bf16.gmra.mxu0 %v8085
    %v8321 = vpop.f32.mrf.mxu0
    %v8322 = vadd.f32 0.0, %v8321
    %v8323 = vpop.f32.mrf.mxu0
    %v8324 = vpop.f32.mrf.mxu0
    %v8325 = vadd.f32 0.0, %v8324
    %v8326 = vpop.f32.mrf.mxu0
    %8327 = vmatprep.mubr.bf16.mxu0 0
    %8328 = vmatmul.mubr.bf16.gmra.mxu0 %v8086
    %v8329 = vpop.f32.mrf.mxu0
    %v8330 = vadd.f32 0.0, %v8329
    %v8331 = vpop.f32.mrf.mxu0
    %v8332 = vpop.f32.mrf.mxu0
    %v8333 = vadd.f32 0.0, %v8332
    %v8334 = vpop.f32.mrf.mxu0
    %8335 = vmatprep.mubr.bf16.mxu0 0
    %8336 = vmatmul.mubr.bf16.gmra.mxu0 %v8087
    %v8337 = vpop.f32.mrf.mxu0
    %v8338 = vadd.f32 0.0, %v8337
    %v8339 = vpop.f32.mrf.mxu0
    %v8340 = vpop.f32.mrf.mxu0
    %v8341 = vadd.f32 0.0, %v8340
    %v8342 = vpop.f32.mrf.mxu0
    %8343 = vmatprep.mubr.bf16.mxu0 0
    %8344 = vmatmul.mubr.bf16.gmra.mxu0 %v8088
    %v8345 = vpop.f32.mrf.mxu0
    %v8346 = vadd.f32 0.0, %v8345
    %v8347 = vpop.f32.mrf.mxu0
    %v8348 = vpop.f32.mrf.mxu0
    %v8349 = vadd.f32 0.0, %v8348
    %v8350 = vpop.f32.mrf.mxu0
    %8351 = vmatprep.mubr.bf16.mxu0 0
    %8352 = vmatmul.mubr.bf16.gmra.mxu0 %v8089
    %v8353 = vpop.f32.mrf.mxu0
    %v8354 = vadd.f32 0.0, %v8353
    %v8355 = vpop.f32.mrf.mxu0
    %v8356 = vpop.f32.mrf.mxu0
    %v8357 = vadd.f32 0.0, %v8356
    %v8358 = vpop.f32.mrf.mxu0
    %8359 = vmatprep.mubr.bf16.mxu0 0
    %8360 = vmatmul.mubr.bf16.gmra.mxu0 %v8090
    %v8361 = vpop.f32.mrf.mxu0
    %v8362 = vadd.f32 0.0, %v8361
    %v8363 = vpop.f32.mrf.mxu0
    %v8364 = vpop.f32.mrf.mxu0
    %v8365 = vadd.f32 0.0, %v8364
    %v8366 = vpop.f32.mrf.mxu0
    %8367 = vmatprep.mubr.bf16.mxu0 0
    %8368 = vmatmul.mubr.bf16.gmra.mxu0 %v8091
    %v8369 = vpop.f32.mrf.mxu0
    %v8370 = vadd.f32 0.0, %v8369
    %v8371 = vpop.f32.mrf.mxu0
    %v8372 = vpop.f32.mrf.mxu0
    %v8373 = vadd.f32 0.0, %v8372
    %v8374 = vpop.f32.mrf.mxu0
    %8375 = vmatprep.mubr.bf16.mxu0 0
    %8376 = vmatmul.mubr.bf16.gmra.mxu0 %v8092
    %v8377 = vpop.f32.mrf.mxu0
    %v8378 = vadd.f32 0.0, %v8377
    %v8379 = vpop.f32.mrf.mxu0
    %v8380 = vpop.f32.mrf.mxu0
    %v8381 = vadd.f32 0.0, %v8380
    %v8382 = vpop.f32.mrf.mxu0
    %8383 = vmatprep.mubr.bf16.mxu0 0
    %8384 = vmatmul.mubr.bf16.gmra.mxu0 %v8093
    %v8385 = vpop.f32.mrf.mxu0
    %v8386 = vadd.f32 0.0, %v8385
    %v8387 = vpop.f32.mrf.mxu0
    %v8388 = vpop.f32.mrf.mxu0
    %v8389 = vadd.f32 0.0, %v8388
    %v8390 = vpop.f32.mrf.mxu0
    %8391 = vmatprep.mubr.bf16.mxu0 0
    %8392 = vmatmul.mubr.bf16.gmra.mxu0 %v8094
    %v8393 = vpop.f32.mrf.mxu0
    %v8394 = vadd.f32 0.0, %v8393
    %v8395 = vpop.f32.mrf.mxu0
    %v8396 = vpop.f32.mrf.mxu0
    %v8397 = vadd.f32 0.0, %v8396
    %v8398 = vpop.f32.mrf.mxu0
    %8399 = vmatprep.mubr.bf16.mxu0 0
    %8400 = vmatmul.mubr.bf16.gmra.mxu0 %v8095
    %v8401 = vpop.f32.mrf.mxu0
    %v8402 = vadd.f32 0.0, %v8401
    %v8403 = vpop.f32.mrf.mxu0
    %v8404 = vpop.f32.mrf.mxu0
    %v8405 = vadd.f32 0.0, %v8404
    %v8406 = vpop.f32.mrf.mxu0
    %8407 = vmatprep.mubr.bf16.mxu0 0
    %8408 = vmatmul.mubr.bf16.gmra.mxu0 %v8096
    %v8409 = vpop.f32.mrf.mxu0
    %v8410 = vadd.f32 0.0, %v8409
    %v8411 = vpop.f32.mrf.mxu0
    %v8412 = vpop.f32.mrf.mxu0
    %v8413 = vadd.f32 0.0, %v8412
    %v8414 = vpop.f32.mrf.mxu0
    %8415 = vmatprep.mubr.bf16.mxu0 0
    %8416 = vmatmul.mubr.bf16.gmra.mxu0 %v8097
    %v8417 = vpop.f32.mrf.mxu0
    %v8418 = vadd.f32 0.0, %v8417
    %v8419 = vpop.f32.mrf.mxu0
    %v8420 = vpop.f32.mrf.mxu0
    %v8421 = vadd.f32 0.0, %v8420
    %v8422 = vpop.f32.mrf.mxu0
    %8423 = vmatprep.mubr.bf16.mxu0 0
    %8424 = vmatmul.mubr.bf16.gmra.mxu0 %v8098
    %v8425 = vpop.f32.mrf.mxu0
    %v8426 = vadd.f32 0.0, %v8425
    %v8427 = vpop.f32.mrf.mxu0
    %v8428 = vpop.f32.mrf.mxu0
    %v8429 = vadd.f32 0.0, %v8428
    %v8430 = vpop.f32.mrf.mxu0
    %8431 = vmatprep.mubr.bf16.mxu0 0
    %8432 = vmatmul.mubr.bf16.gmra.mxu0 %v8099
    %v8433 = vpop.f32.mrf.mxu0
    %v8434 = vadd.f32 0.0, %v8433
    %v8435 = vpop.f32.mrf.mxu0
    %v8436 = vpop.f32.mrf.mxu0
    %v8437 = vadd.f32 0.0, %v8436
    %v8438 = vpop.f32.mrf.mxu0
    %8439 = vmatprep.mubr.bf16.mxu0 0
    %8440 = vmatmul.mubr.bf16.gmra.mxu0 %v8100
    %v8441 = vpop.f32.mrf.mxu0
    %v8442 = vadd.f32 0.0, %v8441
    %v8443 = vpop.f32.mrf.mxu0
    %v8444 = vpop.f32.mrf.mxu0
    %v8445 = vadd.f32 0.0, %v8444
    %v8446 = vpop.f32.mrf.mxu0
    %8447 = vmatprep.mubr.bf16.mxu0 0
    %8448 = vmatmul.mubr.bf16.gmra.mxu0 %v8101
    %v8449 = vpop.f32.mrf.mxu0
    %v8450 = vadd.f32 0.0, %v8449
    %v8451 = vpop.f32.mrf.mxu0
    %v8452 = vpop.f32.mrf.mxu0
    %v8453 = vadd.f32 0.0, %v8452
    %v8454 = vpop.f32.mrf.mxu0
    %8455 = vdwg.mxu0
    %v8456 = vadd.f32 %v7941, %v8202
    %v8457 = vadd.f32 %v7942, %v8205
    %v8458 = vadd.f32 %v7943, %v8210
    %v8459 = vadd.f32 %v7944, %v8213
    %v8460 = vadd.f32 %v7945, %v8218
    %v8461 = vadd.f32 %v7946, %v8221
    %v8462 = vadd.f32 %v7947, %v8226
    %v8463 = vadd.f32 %v7948, %v8229
    %v8464 = vadd.f32 %v7949, %v8234
    %v8465 = vadd.f32 %v7950, %v8237
    %v8466 = vadd.f32 %v7951, %v8242
    %v8467 = vadd.f32 %v7952, %v8245
    %v8468 = vadd.f32 %v7953, %v8250
    %v8469 = vadd.f32 %v7954, %v8253
    %v8470 = vadd.f32 %v7955, %v8258
    %v8471 = vadd.f32 %v7956, %v8261
    %v8472 = vadd.f32 %v7957, %v8266
    %v8473 = vadd.f32 %v7958, %v8269
    %v8474 = vadd.f32 %v7959, %v8274
    %v8475 = vadd.f32 %v7960, %v8277
    %v8476 = vadd.f32 %v7961, %v8282
    %v8477 = vadd.f32 %v7962, %v8285
    %v8478 = vadd.f32 %v7963, %v8290
    %v8479 = vadd.f32 %v7964, %v8293
    %v8480 = vadd.f32 %v7965, %v8298
    %v8481 = vadd.f32 %v7966, %v8301
    %v8482 = vadd.f32 %v7967, %v8306
    %v8483 = vadd.f32 %v7968, %v8309
    %v8484 = vadd.f32 %v7969, %v8314
    %v8485 = vadd.f32 %v7970, %v8317
    %v8486 = vadd.f32 %v7971, %v8322
    %v8487 = vadd.f32 %v7972, %v8325
    %v8488 = vadd.f32 %v7973, %v8330
    %v8489 = vadd.f32 %v7974, %v8333
    %v8490 = vadd.f32 %v7975, %v8338
    %v8491 = vadd.f32 %v7976, %v8341
    %v8492 = vadd.f32 %v7977, %v8346
    %v8493 = vadd.f32 %v7978, %v8349
    %v8494 = vadd.f32 %v7979, %v8354
    %v8495 = vadd.f32 %v7980, %v8357
    %v8496 = vadd.f32 %v7981, %v8362
    %v8497 = vadd.f32 %v7982, %v8365
    %v8498 = vadd.f32 %v7983, %v8370
    %v8499 = vadd.f32 %v7984, %v8373
    %v8500 = vadd.f32 %v7985, %v8378
    %v8501 = vadd.f32 %v7986, %v8381
    %v8502 = vadd.f32 %v7987, %v8386
    %v8503 = vadd.f32 %v7988, %v8389
    %v8504 = vadd.f32 %v7989, %v8394
    %v8505 = vadd.f32 %v7990, %v8397
    %v8506 = vadd.f32 %v7991, %v8402
    %v8507 = vadd.f32 %v7992, %v8405
    %v8508 = vadd.f32 %v7993, %v8410
    %v8509 = vadd.f32 %v7994, %v8413
    %v8510 = vadd.f32 %v7995, %v8418
    %v8511 = vadd.f32 %v7996, %v8421
    %v8512 = vadd.f32 %v7997, %v8426
    %v8513 = vadd.f32 %v7998, %v8429
    %v8514 = vadd.f32 %v7999, %v8434
    %v8515 = vadd.f32 %v8000, %v8437
    %v8516 = vadd.f32 %v8001, %v8442
    %v8517 = vadd.f32 %v8002, %v8445
    %v8518 = vadd.f32 %v8003, %v8450
    %v8519 = vadd.f32 %v8004, %v8453
    %s8520 = scalar_lea.vmem [#allocation2], 440
    %v8521 = vld [vmem:[%s8520] sm:$0xff]
    %v8522 = vld [vmem:[%s8520 + $0x10] sm:$0xff]
    %v8523 = vld [vmem:[%s8520 + $0x20] sm:$0xff]
    %v8524 = vld [vmem:[%s8520 + $0x30] sm:$0xff]
    %v8525 = vld [vmem:[%s8520 + $0x40] sm:$0xff]
    %v8526 = vld [vmem:[%s8520 + $0x50] sm:$0xff]
    %v8527 = vld [vmem:[%s8520 + $0x60] sm:$0xff]
    %v8528 = vld [vmem:[%s8520 + $0x70] sm:$0xff]
    %v8529 = vld [vmem:[%s8520 + $0x120] sm:$0xff]
    %v8530 = vld [vmem:[%s8520 + $0x130] sm:$0xff]
    %v8531 = vld [vmem:[%s8520 + $0x140] sm:$0xff]
    %v8532 = vld [vmem:[%s8520 + $0x150] sm:$0xff]
    %v8533 = vld [vmem:[%s8520 + $0x160] sm:$0xff]
    %v8534 = vld [vmem:[%s8520 + $0x170] sm:$0xff]
    %v8535 = vld [vmem:[%s8520 + $0x180] sm:$0xff]
    %v8536 = vld [vmem:[%s8520 + $0x190] sm:$0xff]
    %v8537 = vld [vmem:[%s8520 + $0x240] sm:$0xff]
    %v8538 = vld [vmem:[%s8520 + $0x250] sm:$0xff]
    %v8539 = vld [vmem:[%s8520 + $0x260] sm:$0xff]
    %v8540 = vld [vmem:[%s8520 + $0x270] sm:$0xff]
    %v8541 = vld [vmem:[%s8520 + $0x280] sm:$0xff]
    %v8542 = vld [vmem:[%s8520 + $0x290] sm:$0xff]
    %v8543 = vld [vmem:[%s8520 + $0x2a0] sm:$0xff]
    %v8544 = vld [vmem:[%s8520 + $0x2b0] sm:$0xff]
    %v8545 = vld [vmem:[%s8520 + $0x360] sm:$0xff]
    %v8546 = vld [vmem:[%s8520 + $0x370] sm:$0xff]
    %v8547 = vld [vmem:[%s8520 + $0x380] sm:$0xff]
    %v8548 = vld [vmem:[%s8520 + $0x390] sm:$0xff]
    %v8549 = vld [vmem:[%s8520 + $0x3a0] sm:$0xff]
    %v8550 = vld [vmem:[%s8520 + $0x3b0] sm:$0xff]
    %v8551 = vld [vmem:[%s8520 + $0x3c0] sm:$0xff]
    %v8552 = vld [vmem:[%s8520 + $0x3d0] sm:$0xff]
    %v8553 = vld [vmem:[%s8520 + $0x480] sm:$0xff]
    %v8554 = vld [vmem:[%s8520 + $0x490] sm:$0xff]
    %v8555 = vld [vmem:[%s8520 + $0x4a0] sm:$0xff]
    %v8556 = vld [vmem:[%s8520 + $0x4b0] sm:$0xff]
    %v8557 = vld [vmem:[%s8520 + $0x4c0] sm:$0xff]
    %v8558 = vld [vmem:[%s8520 + $0x4d0] sm:$0xff]
    %v8559 = vld [vmem:[%s8520 + $0x4e0] sm:$0xff]
    %v8560 = vld [vmem:[%s8520 + $0x4f0] sm:$0xff]
    %v8561 = vld [vmem:[%s8520 + $0x5a0] sm:$0xff]
    %v8562 = vld [vmem:[%s8520 + $0x5b0] sm:$0xff]
    %v8563 = vld [vmem:[%s8520 + $0x5c0] sm:$0xff]
    %v8564 = vld [vmem:[%s8520 + $0x5d0] sm:$0xff]
    %v8565 = vld [vmem:[%s8520 + $0x5e0] sm:$0xff]
    %v8566 = vld [vmem:[%s8520 + $0x5f0] sm:$0xff]
    %v8567 = vld [vmem:[%s8520 + $0x600] sm:$0xff]
    %v8568 = vld [vmem:[%s8520 + $0x610] sm:$0xff]
    %v8569 = vld [vmem:[%s8520 + $0x6c0] sm:$0xff]
    %v8570 = vld [vmem:[%s8520 + $0x6d0] sm:$0xff]
    %v8571 = vld [vmem:[%s8520 + $0x6e0] sm:$0xff]
    %v8572 = vld [vmem:[%s8520 + $0x6f0] sm:$0xff]
    %v8573 = vld [vmem:[%s8520 + $0x700] sm:$0xff]
    %v8574 = vld [vmem:[%s8520 + $0x710] sm:$0xff]
    %v8575 = vld [vmem:[%s8520 + $0x720] sm:$0xff]
    %v8576 = vld [vmem:[%s8520 + $0x730] sm:$0xff]
    %v8577 = vld [vmem:[%s8520 + $0x7e0] sm:$0xff]
    %v8578 = vld [vmem:[%s8520 + $0x7f0] sm:$0xff]
    %v8579 = vld [vmem:[%s8520 + $0x800] sm:$0xff]
    %v8580 = vld [vmem:[%s8520 + $0x810] sm:$0xff]
    %v8581 = vld [vmem:[%s8520 + $0x820] sm:$0xff]
    %v8582 = vld [vmem:[%s8520 + $0x830] sm:$0xff]
    %v8583 = vld [vmem:[%s8520 + $0x840] sm:$0xff]
    %v8584 = vld [vmem:[%s8520 + $0x850] sm:$0xff]
    %v8585 = vpack.c.bf16 %v8522, %v8521
    %v8586 = vpack.c.bf16 %v8524, %v8523
    %v8587 = vpack.c.bf16 %v8526, %v8525
    %v8588 = vpack.c.bf16 %v8528, %v8527
    %v8589 = vpack.c.bf16 %v8530, %v8529
    %v8590 = vpack.c.bf16 %v8532, %v8531
    %v8591 = vpack.c.bf16 %v8534, %v8533
    %v8592 = vpack.c.bf16 %v8536, %v8535
    %v8593 = vpack.c.bf16 %v8538, %v8537
    %v8594 = vpack.c.bf16 %v8540, %v8539
    %v8595 = vpack.c.bf16 %v8542, %v8541
    %v8596 = vpack.c.bf16 %v8544, %v8543
    %v8597 = vpack.c.bf16 %v8546, %v8545
    %v8598 = vpack.c.bf16 %v8548, %v8547
    %v8599 = vpack.c.bf16 %v8550, %v8549
    %v8600 = vpack.c.bf16 %v8552, %v8551
    %v8601 = vpack.c.bf16 %v8554, %v8553
    %v8602 = vpack.c.bf16 %v8556, %v8555
    %v8603 = vpack.c.bf16 %v8558, %v8557
    %v8604 = vpack.c.bf16 %v8560, %v8559
    %v8605 = vpack.c.bf16 %v8562, %v8561
    %v8606 = vpack.c.bf16 %v8564, %v8563
    %v8607 = vpack.c.bf16 %v8566, %v8565
    %v8608 = vpack.c.bf16 %v8568, %v8567
    %v8609 = vpack.c.bf16 %v8570, %v8569
    %v8610 = vpack.c.bf16 %v8572, %v8571
    %v8611 = vpack.c.bf16 %v8574, %v8573
    %v8612 = vpack.c.bf16 %v8576, %v8575
    %v8613 = vpack.c.bf16 %v8578, %v8577
    %v8614 = vpack.c.bf16 %v8580, %v8579
    %v8615 = vpack.c.bf16 %v8582, %v8581
    %v8616 = vpack.c.bf16 %v8584, %v8583
    %s8617 = scalar_lea.vmem [#allocation11], 384
    %v8618 = vld [vmem:[%s8617] sm:$0xf]
    %v8619 = vld [vmem:[%s8617 + $0x4] sm:$0xf]
    %v8620 = vld [vmem:[%s8617 + $0x8] sm:$0xf]
    %v8621 = vld [vmem:[%s8617 + $0xc] sm:$0xf]
    %v8622 = vld [vmem:[%s8617 + $0x10] sm:$0xf]
    %v8623 = vld [vmem:[%s8617 + $0x14] sm:$0xf]
    %v8624 = vld [vmem:[%s8617 + $0x18] sm:$0xf]
    %v8625 = vld [vmem:[%s8617 + $0x1c] sm:$0xf]
    %v8626 = vld [vmem:[%s8617 + $0x20] sm:$0xf]
    %v8627 = vld [vmem:[%s8617 + $0x24] sm:$0xf]
    %v8628 = vld [vmem:[%s8617 + $0x28] sm:$0xf]
    %v8629 = vld [vmem:[%s8617 + $0x2c] sm:$0xf]
    %v8630 = vld [vmem:[%s8617 + $0x30] sm:$0xf]
    %v8631 = vld [vmem:[%s8617 + $0x34] sm:$0xf]
    %v8632 = vld [vmem:[%s8617 + $0x38] sm:$0xf]
    %v8633 = vld [vmem:[%s8617 + $0x3c] sm:$0xf]
    %v8650 = vunpack.c.l.b16 %v8618
    %v8651 = vunpack.c.l.b16 %v8619
    %v8652 = vunpack.c.l.b16 %v8620
    %v8653 = vunpack.c.l.b16 %v8621
    %v8654 = vunpack.c.l.b16 %v8622
    %v8655 = vunpack.c.l.b16 %v8623
    %v8656 = vunpack.c.l.b16 %v8624
    %v8657 = vunpack.c.l.b16 %v8625
    %v8658 = vunpack.c.l.b16 %v8626
    %v8659 = vunpack.c.l.b16 %v8627
    %v8660 = vunpack.c.l.b16 %v8628
    %v8661 = vunpack.c.l.b16 %v8629
    %v8662 = vunpack.c.l.b16 %v8630
    %v8663 = vunpack.c.l.b16 %v8631
    %v8664 = vunpack.c.l.b16 %v8632
    %v8665 = vunpack.c.l.b16 %v8633
    %v8666 = vpack.c.b16 %v8651, %v8650
    %v8667 = vpack.c.b16 %v8653, %v8652
    %v8668 = vpack.c.b16 %v8655, %v8654
    %v8669 = vpack.c.b16 %v8657, %v8656
    %v8670 = vpack.c.b16 %v8659, %v8658
    %v8671 = vpack.c.b16 %v8661, %v8660
    %v8672 = vpack.c.b16 %v8663, %v8662
    %v8673 = vpack.c.b16 %v8665, %v8664
    %8682 = vmatprep.subr.bf16.mxu0 0
    %8683 = vmatpush1.bf16.msra.mxu0 %v8673
    %8684 = vmatprep.subr.bf16.mxu0 0
    %8685 = vmatpush1.bf16.msra.mxu0 %v8672
    %8686 = vmatprep.subr.bf16.mxu0 0
    %8687 = vmatpush1.bf16.msra.mxu0 %v8671
    %8688 = vmatprep.subr.bf16.mxu0 0
    %8689 = vmatpush1.bf16.msra.mxu0 %v8670
    %8690 = vmatprep.subr.bf16.mxu0 0
    %8691 = vmatpush1.bf16.msra.mxu0 %v8669
    %8692 = vmatprep.subr.bf16.mxu0 0
    %8693 = vmatpush1.bf16.msra.mxu0 %v8668
    %8694 = vmatprep.subr.bf16.mxu0 0
    %8695 = vmatpush1.bf16.msra.mxu0 %v8667
    %8696 = vmatprep.subr.bf16.mxu0 0
    %8697 = vmatpush1.bf16.msra.mxu0 %v8666
    %8698 = vmatprep.subr.bf16.mxu0 0
    %8699 = vmatpush2.bf16.msra.mxu0 0
    %8700 = vmatprep.subr.bf16.mxu0 0
    %8701 = vmatpush2.bf16.msra.mxu0 0
    %8702 = vmatprep.subr.bf16.mxu0 0
    %8703 = vmatpush2.bf16.msra.mxu0 0
    %8704 = vmatprep.subr.bf16.mxu0 0
    %8705 = vmatpush2.bf16.msra.mxu0 0
    %8706 = vmatprep.subr.bf16.mxu0 0
    %8707 = vmatpush2.bf16.msra.mxu0 0
    %8708 = vmatprep.subr.bf16.mxu0 0
    %8709 = vmatpush2.bf16.msra.mxu0 0
    %8710 = vmatprep.subr.bf16.mxu0 0
    %8711 = vmatpush2.bf16.msra.mxu0 0
    %8712 = vmatprep.subr.bf16.mxu0 0
    %8713 = vmatpush2.bf16.msra.mxu0 0
    %8714 = vmatprep.mubr.bf16.mxu0 0
    %8715 = vmatmul.mubr.bf16.gmra.mxu0 %v8585
    %v8716 = vpop.f32.mrf.mxu0
    %v8717 = vadd.f32 0.0, %v8716
    %v8718 = vpop.f32.mrf.mxu0
    %v8719 = vpop.f32.mrf.mxu0
    %v8720 = vadd.f32 0.0, %v8719
    %v8721 = vpop.f32.mrf.mxu0
    %8722 = vmatprep.mubr.bf16.mxu0 0
    %8723 = vmatmul.mubr.bf16.gmra.mxu0 %v8586
    %v8724 = vpop.f32.mrf.mxu0
    %v8725 = vadd.f32 0.0, %v8724
    %v8726 = vpop.f32.mrf.mxu0
    %v8727 = vpop.f32.mrf.mxu0
    %v8728 = vadd.f32 0.0, %v8727
    %v8729 = vpop.f32.mrf.mxu0
    %8730 = vmatprep.mubr.bf16.mxu0 0
    %8731 = vmatmul.mubr.bf16.gmra.mxu0 %v8587
    %v8732 = vpop.f32.mrf.mxu0
    %v8733 = vadd.f32 0.0, %v8732
    %v8734 = vpop.f32.mrf.mxu0
    %v8735 = vpop.f32.mrf.mxu0
    %v8736 = vadd.f32 0.0, %v8735
    %v8737 = vpop.f32.mrf.mxu0
    %8738 = vmatprep.mubr.bf16.mxu0 0
    %8739 = vmatmul.mubr.bf16.gmra.mxu0 %v8588
    %v8740 = vpop.f32.mrf.mxu0
    %v8741 = vadd.f32 0.0, %v8740
    %v8742 = vpop.f32.mrf.mxu0
    %v8743 = vpop.f32.mrf.mxu0
    %v8744 = vadd.f32 0.0, %v8743
    %v8745 = vpop.f32.mrf.mxu0
    %8746 = vmatprep.mubr.bf16.mxu0 0
    %8747 = vmatmul.mubr.bf16.gmra.mxu0 %v8589
    %v8748 = vpop.f32.mrf.mxu0
    %v8749 = vadd.f32 0.0, %v8748
    %v8750 = vpop.f32.mrf.mxu0
    %v8751 = vpop.f32.mrf.mxu0
    %v8752 = vadd.f32 0.0, %v8751
    %v8753 = vpop.f32.mrf.mxu0
    %8754 = vmatprep.mubr.bf16.mxu0 0
    %8755 = vmatmul.mubr.bf16.gmra.mxu0 %v8590
    %v8756 = vpop.f32.mrf.mxu0
    %v8757 = vadd.f32 0.0, %v8756
    %v8758 = vpop.f32.mrf.mxu0
    %v8759 = vpop.f32.mrf.mxu0
    %v8760 = vadd.f32 0.0, %v8759
    %v8761 = vpop.f32.mrf.mxu0
    %8762 = vmatprep.mubr.bf16.mxu0 0
    %8763 = vmatmul.mubr.bf16.gmra.mxu0 %v8591
    %v8764 = vpop.f32.mrf.mxu0
    %v8765 = vadd.f32 0.0, %v8764
    %v8766 = vpop.f32.mrf.mxu0
    %v8767 = vpop.f32.mrf.mxu0
    %v8768 = vadd.f32 0.0, %v8767
    %v8769 = vpop.f32.mrf.mxu0
    %8770 = vmatprep.mubr.bf16.mxu0 0
    %8771 = vmatmul.mubr.bf16.gmra.mxu0 %v8592
    %v8772 = vpop.f32.mrf.mxu0
    %v8773 = vadd.f32 0.0, %v8772
    %v8774 = vpop.f32.mrf.mxu0
    %v8775 = vpop.f32.mrf.mxu0
    %v8776 = vadd.f32 0.0, %v8775
    %v8777 = vpop.f32.mrf.mxu0
    %8778 = vmatprep.mubr.bf16.mxu0 0
    %8779 = vmatmul.mubr.bf16.gmra.mxu0 %v8593
    %v8780 = vpop.f32.mrf.mxu0
    %v8781 = vadd.f32 0.0, %v8780
    %v8782 = vpop.f32.mrf.mxu0
    %v8783 = vpop.f32.mrf.mxu0
    %v8784 = vadd.f32 0.0, %v8783
    %v8785 = vpop.f32.mrf.mxu0
    %8786 = vmatprep.mubr.bf16.mxu0 0
    %8787 = vmatmul.mubr.bf16.gmra.mxu0 %v8594
    %v8788 = vpop.f32.mrf.mxu0
    %v8789 = vadd.f32 0.0, %v8788
    %v8790 = vpop.f32.mrf.mxu0
    %v8791 = vpop.f32.mrf.mxu0
    %v8792 = vadd.f32 0.0, %v8791
    %v8793 = vpop.f32.mrf.mxu0
    %8794 = vmatprep.mubr.bf16.mxu0 0
    %8795 = vmatmul.mubr.bf16.gmra.mxu0 %v8595
    %v8796 = vpop.f32.mrf.mxu0
    %v8797 = vadd.f32 0.0, %v8796
    %v8798 = vpop.f32.mrf.mxu0
    %v8799 = vpop.f32.mrf.mxu0
    %v8800 = vadd.f32 0.0, %v8799
    %v8801 = vpop.f32.mrf.mxu0
    %8802 = vmatprep.mubr.bf16.mxu0 0
    %8803 = vmatmul.mubr.bf16.gmra.mxu0 %v8596
    %v8804 = vpop.f32.mrf.mxu0
    %v8805 = vadd.f32 0.0, %v8804
    %v8806 = vpop.f32.mrf.mxu0
    %v8807 = vpop.f32.mrf.mxu0
    %v8808 = vadd.f32 0.0, %v8807
    %v8809 = vpop.f32.mrf.mxu0
    %8810 = vmatprep.mubr.bf16.mxu0 0
    %8811 = vmatmul.mubr.bf16.gmra.mxu0 %v8597
    %v8812 = vpop.f32.mrf.mxu0
    %v8813 = vadd.f32 0.0, %v8812
    %v8814 = vpop.f32.mrf.mxu0
    %v8815 = vpop.f32.mrf.mxu0
    %v8816 = vadd.f32 0.0, %v8815
    %v8817 = vpop.f32.mrf.mxu0
    %8818 = vmatprep.mubr.bf16.mxu0 0
    %8819 = vmatmul.mubr.bf16.gmra.mxu0 %v8598
    %v8820 = vpop.f32.mrf.mxu0
    %v8821 = vadd.f32 0.0, %v8820
    %v8822 = vpop.f32.mrf.mxu0
    %v8823 = vpop.f32.mrf.mxu0
    %v8824 = vadd.f32 0.0, %v8823
    %v8825 = vpop.f32.mrf.mxu0
    %8826 = vmatprep.mubr.bf16.mxu0 0
    %8827 = vmatmul.mubr.bf16.gmra.mxu0 %v8599
    %v8828 = vpop.f32.mrf.mxu0
    %v8829 = vadd.f32 0.0, %v8828
    %v8830 = vpop.f32.mrf.mxu0
    %v8831 = vpop.f32.mrf.mxu0
    %v8832 = vadd.f32 0.0, %v8831
    %v8833 = vpop.f32.mrf.mxu0
    %8834 = vmatprep.mubr.bf16.mxu0 0
    %8835 = vmatmul.mubr.bf16.gmra.mxu0 %v8600
    %v8836 = vpop.f32.mrf.mxu0
    %v8837 = vadd.f32 0.0, %v8836
    %v8838 = vpop.f32.mrf.mxu0
    %v8839 = vpop.f32.mrf.mxu0
    %v8840 = vadd.f32 0.0, %v8839
    %v8841 = vpop.f32.mrf.mxu0
    %8842 = vmatprep.mubr.bf16.mxu0 0
    %8843 = vmatmul.mubr.bf16.gmra.mxu0 %v8601
    %v8844 = vpop.f32.mrf.mxu0
    %v8845 = vadd.f32 0.0, %v8844
    %v8846 = vpop.f32.mrf.mxu0
    %v8847 = vpop.f32.mrf.mxu0
    %v8848 = vadd.f32 0.0, %v8847
    %v8849 = vpop.f32.mrf.mxu0
    %8850 = vmatprep.mubr.bf16.mxu0 0
    %8851 = vmatmul.mubr.bf16.gmra.mxu0 %v8602
    %v8852 = vpop.f32.mrf.mxu0
    %v8853 = vadd.f32 0.0, %v8852
    %v8854 = vpop.f32.mrf.mxu0
    %v8855 = vpop.f32.mrf.mxu0
    %v8856 = vadd.f32 0.0, %v8855
    %v8857 = vpop.f32.mrf.mxu0
    %8858 = vmatprep.mubr.bf16.mxu0 0
    %8859 = vmatmul.mubr.bf16.gmra.mxu0 %v8603
    %v8860 = vpop.f32.mrf.mxu0
    %v8861 = vadd.f32 0.0, %v8860
    %v8862 = vpop.f32.mrf.mxu0
    %v8863 = vpop.f32.mrf.mxu0
    %v8864 = vadd.f32 0.0, %v8863
    %v8865 = vpop.f32.mrf.mxu0
    %8866 = vmatprep.mubr.bf16.mxu0 0
    %8867 = vmatmul.mubr.bf16.gmra.mxu0 %v8604
    %v8868 = vpop.f32.mrf.mxu0
    %v8869 = vadd.f32 0.0, %v8868
    %v8870 = vpop.f32.mrf.mxu0
    %v8871 = vpop.f32.mrf.mxu0
    %v8872 = vadd.f32 0.0, %v8871
    %v8873 = vpop.f32.mrf.mxu0
    %8874 = vmatprep.mubr.bf16.mxu0 0
    %8875 = vmatmul.mubr.bf16.gmra.mxu0 %v8605
    %v8876 = vpop.f32.mrf.mxu0
    %v8877 = vadd.f32 0.0, %v8876
    %v8878 = vpop.f32.mrf.mxu0
    %v8879 = vpop.f32.mrf.mxu0
    %v8880 = vadd.f32 0.0, %v8879
    %v8881 = vpop.f32.mrf.mxu0
    %8882 = vmatprep.mubr.bf16.mxu0 0
    %8883 = vmatmul.mubr.bf16.gmra.mxu0 %v8606
    %v8884 = vpop.f32.mrf.mxu0
    %v8885 = vadd.f32 0.0, %v8884
    %v8886 = vpop.f32.mrf.mxu0
    %v8887 = vpop.f32.mrf.mxu0
    %v8888 = vadd.f32 0.0, %v8887
    %v8889 = vpop.f32.mrf.mxu0
    %8890 = vmatprep.mubr.bf16.mxu0 0
    %8891 = vmatmul.mubr.bf16.gmra.mxu0 %v8607
    %v8892 = vpop.f32.mrf.mxu0
    %v8893 = vadd.f32 0.0, %v8892
    %v8894 = vpop.f32.mrf.mxu0
    %v8895 = vpop.f32.mrf.mxu0
    %v8896 = vadd.f32 0.0, %v8895
    %v8897 = vpop.f32.mrf.mxu0
    %8898 = vmatprep.mubr.bf16.mxu0 0
    %8899 = vmatmul.mubr.bf16.gmra.mxu0 %v8608
    %v8900 = vpop.f32.mrf.mxu0
    %v8901 = vadd.f32 0.0, %v8900
    %v8902 = vpop.f32.mrf.mxu0
    %v8903 = vpop.f32.mrf.mxu0
    %v8904 = vadd.f32 0.0, %v8903
    %v8905 = vpop.f32.mrf.mxu0
    %8906 = vmatprep.mubr.bf16.mxu0 0
    %8907 = vmatmul.mubr.bf16.gmra.mxu0 %v8609
    %v8908 = vpop.f32.mrf.mxu0
    %v8909 = vadd.f32 0.0, %v8908
    %v8910 = vpop.f32.mrf.mxu0
    %v8911 = vpop.f32.mrf.mxu0
    %v8912 = vadd.f32 0.0, %v8911
    %v8913 = vpop.f32.mrf.mxu0
    %8914 = vmatprep.mubr.bf16.mxu0 0
    %8915 = vmatmul.mubr.bf16.gmra.mxu0 %v8610
    %v8916 = vpop.f32.mrf.mxu0
    %v8917 = vadd.f32 0.0, %v8916
    %v8918 = vpop.f32.mrf.mxu0
    %v8919 = vpop.f32.mrf.mxu0
    %v8920 = vadd.f32 0.0, %v8919
    %v8921 = vpop.f32.mrf.mxu0
    %8922 = vmatprep.mubr.bf16.mxu0 0
    %8923 = vmatmul.mubr.bf16.gmra.mxu0 %v8611
    %v8924 = vpop.f32.mrf.mxu0
    %v8925 = vadd.f32 0.0, %v8924
    %v8926 = vpop.f32.mrf.mxu0
    %v8927 = vpop.f32.mrf.mxu0
    %v8928 = vadd.f32 0.0, %v8927
    %v8929 = vpop.f32.mrf.mxu0
    %8930 = vmatprep.mubr.bf16.mxu0 0
    %8931 = vmatmul.mubr.bf16.gmra.mxu0 %v8612
    %v8932 = vpop.f32.mrf.mxu0
    %v8933 = vadd.f32 0.0, %v8932
    %v8934 = vpop.f32.mrf.mxu0
    %v8935 = vpop.f32.mrf.mxu0
    %v8936 = vadd.f32 0.0, %v8935
    %v8937 = vpop.f32.mrf.mxu0
    %8938 = vmatprep.mubr.bf16.mxu0 0
    %8939 = vmatmul.mubr.bf16.gmra.mxu0 %v8613
    %v8940 = vpop.f32.mrf.mxu0
    %v8941 = vadd.f32 0.0, %v8940
    %v8942 = vpop.f32.mrf.mxu0
    %v8943 = vpop.f32.mrf.mxu0
    %v8944 = vadd.f32 0.0, %v8943
    %v8945 = vpop.f32.mrf.mxu0
    %8946 = vmatprep.mubr.bf16.mxu0 0
    %8947 = vmatmul.mubr.bf16.gmra.mxu0 %v8614
    %v8948 = vpop.f32.mrf.mxu0
    %v8949 = vadd.f32 0.0, %v8948
    %v8950 = vpop.f32.mrf.mxu0
    %v8951 = vpop.f32.mrf.mxu0
    %v8952 = vadd.f32 0.0, %v8951
    %v8953 = vpop.f32.mrf.mxu0
    %8954 = vmatprep.mubr.bf16.mxu0 0
    %8955 = vmatmul.mubr.bf16.gmra.mxu0 %v8615
    %v8956 = vpop.f32.mrf.mxu0
    %v8957 = vadd.f32 0.0, %v8956
    %v8958 = vpop.f32.mrf.mxu0
    %v8959 = vpop.f32.mrf.mxu0
    %v8960 = vadd.f32 0.0, %v8959
    %v8961 = vpop.f32.mrf.mxu0
    %8962 = vmatprep.mubr.bf16.mxu0 0
    %8963 = vmatmul.mubr.bf16.gmra.mxu0 %v8616
    %v8964 = vpop.f32.mrf.mxu0
    %v8965 = vadd.f32 0.0, %v8964
    %v8966 = vpop.f32.mrf.mxu0
    %v8967 = vpop.f32.mrf.mxu0
    %v8968 = vadd.f32 0.0, %v8967
    %v8969 = vpop.f32.mrf.mxu0
    %8970 = vdwg.mxu0
    %v8971 = vadd.f32 %v8456, %v8717
    %v8972 = vadd.f32 %v8457, %v8720
    %v8973 = vadd.f32 %v8458, %v8725
    %v8974 = vadd.f32 %v8459, %v8728
    %v8975 = vadd.f32 %v8460, %v8733
    %v8976 = vadd.f32 %v8461, %v8736
    %v8977 = vadd.f32 %v8462, %v8741
    %v8978 = vadd.f32 %v8463, %v8744
    %v8979 = vadd.f32 %v8464, %v8749
    %v8980 = vadd.f32 %v8465, %v8752
    %v8981 = vadd.f32 %v8466, %v8757
    %v8982 = vadd.f32 %v8467, %v8760
    %v8983 = vadd.f32 %v8468, %v8765
    %v8984 = vadd.f32 %v8469, %v8768
    %v8985 = vadd.f32 %v8470, %v8773
    %v8986 = vadd.f32 %v8471, %v8776
    %v8987 = vadd.f32 %v8472, %v8781
    %v8988 = vadd.f32 %v8473, %v8784
    %v8989 = vadd.f32 %v8474, %v8789
    %v8990 = vadd.f32 %v8475, %v8792
    %v8991 = vadd.f32 %v8476, %v8797
    %v8992 = vadd.f32 %v8477, %v8800
    %v8993 = vadd.f32 %v8478, %v8805
    %v8994 = vadd.f32 %v8479, %v8808
    %v8995 = vadd.f32 %v8480, %v8813
    %v8996 = vadd.f32 %v8481, %v8816
    %v8997 = vadd.f32 %v8482, %v8821
    %v8998 = vadd.f32 %v8483, %v8824
    %v8999 = vadd.f32 %v8484, %v8829
    %v9000 = vadd.f32 %v8485, %v8832
    %v9001 = vadd.f32 %v8486, %v8837
    %v9002 = vadd.f32 %v8487, %v8840
    %v9003 = vadd.f32 %v8488, %v8845
    %v9004 = vadd.f32 %v8489, %v8848
    %v9005 = vadd.f32 %v8490, %v8853
    %v9006 = vadd.f32 %v8491, %v8856
    %v9007 = vadd.f32 %v8492, %v8861
    %v9008 = vadd.f32 %v8493, %v8864
    %v9009 = vadd.f32 %v8494, %v8869
    %v9010 = vadd.f32 %v8495, %v8872
    %v9011 = vadd.f32 %v8496, %v8877
    %v9012 = vadd.f32 %v8497, %v8880
    %v9013 = vadd.f32 %v8498, %v8885
    %v9014 = vadd.f32 %v8499, %v8888
    %v9015 = vadd.f32 %v8500, %v8893
    %v9016 = vadd.f32 %v8501, %v8896
    %v9017 = vadd.f32 %v8502, %v8901
    %v9018 = vadd.f32 %v8503, %v8904
    %v9019 = vadd.f32 %v8504, %v8909
    %v9020 = vadd.f32 %v8505, %v8912
    %v9021 = vadd.f32 %v8506, %v8917
    %v9022 = vadd.f32 %v8507, %v8920
    %v9023 = vadd.f32 %v8508, %v8925
    %v9024 = vadd.f32 %v8509, %v8928
    %v9025 = vadd.f32 %v8510, %v8933
    %v9026 = vadd.f32 %v8511, %v8936
    %v9027 = vadd.f32 %v8512, %v8941
    %v9028 = vadd.f32 %v8513, %v8944
    %v9029 = vadd.f32 %v8514, %v8949
    %v9030 = vadd.f32 %v8515, %v8952
    %v9031 = vadd.f32 %v8516, %v8957
    %v9032 = vadd.f32 %v8517, %v8960
    %v9033 = vadd.f32 %v8518, %v8965
    %v9034 = vadd.f32 %v8519, %v8968
    %s9035 = scalar_lea.vmem [#allocation2], 448
    %v9036 = vld [vmem:[%s9035] sm:$0xff]
    %v9037 = vld [vmem:[%s9035 + $0x10] sm:$0xff]
    %v9038 = vld [vmem:[%s9035 + $0x20] sm:$0xff]
    %v9039 = vld [vmem:[%s9035 + $0x30] sm:$0xff]
    %v9040 = vld [vmem:[%s9035 + $0x40] sm:$0xff]
    %v9041 = vld [vmem:[%s9035 + $0x50] sm:$0xff]
    %v9042 = vld [vmem:[%s9035 + $0x60] sm:$0xff]
    %v9043 = vld [vmem:[%s9035 + $0x70] sm:$0xff]
    %v9044 = vld [vmem:[%s9035 + $0x120] sm:$0xff]
    %v9045 = vld [vmem:[%s9035 + $0x130] sm:$0xff]
    %v9046 = vld [vmem:[%s9035 + $0x140] sm:$0xff]
    %v9047 = vld [vmem:[%s9035 + $0x150] sm:$0xff]
    %v9048 = vld [vmem:[%s9035 + $0x160] sm:$0xff]
    %v9049 = vld [vmem:[%s9035 + $0x170] sm:$0xff]
    %v9050 = vld [vmem:[%s9035 + $0x180] sm:$0xff]
    %v9051 = vld [vmem:[%s9035 + $0x190] sm:$0xff]
    %v9052 = vld [vmem:[%s9035 + $0x240] sm:$0xff]
    %v9053 = vld [vmem:[%s9035 + $0x250] sm:$0xff]
    %v9054 = vld [vmem:[%s9035 + $0x260] sm:$0xff]
    %v9055 = vld [vmem:[%s9035 + $0x270] sm:$0xff]
    %v9056 = vld [vmem:[%s9035 + $0x280] sm:$0xff]
    %v9057 = vld [vmem:[%s9035 + $0x290] sm:$0xff]
    %v9058 = vld [vmem:[%s9035 + $0x2a0] sm:$0xff]
    %v9059 = vld [vmem:[%s9035 + $0x2b0] sm:$0xff]
    %v9060 = vld [vmem:[%s9035 + $0x360] sm:$0xff]
    %v9061 = vld [vmem:[%s9035 + $0x370] sm:$0xff]
    %v9062 = vld [vmem:[%s9035 + $0x380] sm:$0xff]
    %v9063 = vld [vmem:[%s9035 + $0x390] sm:$0xff]
    %v9064 = vld [vmem:[%s9035 + $0x3a0] sm:$0xff]
    %v9065 = vld [vmem:[%s9035 + $0x3b0] sm:$0xff]
    %v9066 = vld [vmem:[%s9035 + $0x3c0] sm:$0xff]
    %v9067 = vld [vmem:[%s9035 + $0x3d0] sm:$0xff]
    %v9068 = vld [vmem:[%s9035 + $0x480] sm:$0xff]
    %v9069 = vld [vmem:[%s9035 + $0x490] sm:$0xff]
    %v9070 = vld [vmem:[%s9035 + $0x4a0] sm:$0xff]
    %v9071 = vld [vmem:[%s9035 + $0x4b0] sm:$0xff]
    %v9072 = vld [vmem:[%s9035 + $0x4c0] sm:$0xff]
    %v9073 = vld [vmem:[%s9035 + $0x4d0] sm:$0xff]
    %v9074 = vld [vmem:[%s9035 + $0x4e0] sm:$0xff]
    %v9075 = vld [vmem:[%s9035 + $0x4f0] sm:$0xff]
    %v9076 = vld [vmem:[%s9035 + $0x5a0] sm:$0xff]
    %v9077 = vld [vmem:[%s9035 + $0x5b0] sm:$0xff]
    %v9078 = vld [vmem:[%s9035 + $0x5c0] sm:$0xff]
    %v9079 = vld [vmem:[%s9035 + $0x5d0] sm:$0xff]
    %v9080 = vld [vmem:[%s9035 + $0x5e0] sm:$0xff]
    %v9081 = vld [vmem:[%s9035 + $0x5f0] sm:$0xff]
    %v9082 = vld [vmem:[%s9035 + $0x600] sm:$0xff]
    %v9083 = vld [vmem:[%s9035 + $0x610] sm:$0xff]
    %v9084 = vld [vmem:[%s9035 + $0x6c0] sm:$0xff]
    %v9085 = vld [vmem:[%s9035 + $0x6d0] sm:$0xff]
    %v9086 = vld [vmem:[%s9035 + $0x6e0] sm:$0xff]
    %v9087 = vld [vmem:[%s9035 + $0x6f0] sm:$0xff]
    %v9088 = vld [vmem:[%s9035 + $0x700] sm:$0xff]
    %v9089 = vld [vmem:[%s9035 + $0x710] sm:$0xff]
    %v9090 = vld [vmem:[%s9035 + $0x720] sm:$0xff]
    %v9091 = vld [vmem:[%s9035 + $0x730] sm:$0xff]
    %v9092 = vld [vmem:[%s9035 + $0x7e0] sm:$0xff]
    %v9093 = vld [vmem:[%s9035 + $0x7f0] sm:$0xff]
    %v9094 = vld [vmem:[%s9035 + $0x800] sm:$0xff]
    %v9095 = vld [vmem:[%s9035 + $0x810] sm:$0xff]
    %v9096 = vld [vmem:[%s9035 + $0x820] sm:$0xff]
    %v9097 = vld [vmem:[%s9035 + $0x830] sm:$0xff]
    %v9098 = vld [vmem:[%s9035 + $0x840] sm:$0xff]
    %v9099 = vld [vmem:[%s9035 + $0x850] sm:$0xff]
    %v9100 = vpack.c.bf16 %v9037, %v9036
    %v9101 = vpack.c.bf16 %v9039, %v9038
    %v9102 = vpack.c.bf16 %v9041, %v9040
    %v9103 = vpack.c.bf16 %v9043, %v9042
    %v9104 = vpack.c.bf16 %v9045, %v9044
    %v9105 = vpack.c.bf16 %v9047, %v9046
    %v9106 = vpack.c.bf16 %v9049, %v9048
    %v9107 = vpack.c.bf16 %v9051, %v9050
    %v9108 = vpack.c.bf16 %v9053, %v9052
    %v9109 = vpack.c.bf16 %v9055, %v9054
    %v9110 = vpack.c.bf16 %v9057, %v9056
    %v9111 = vpack.c.bf16 %v9059, %v9058
    %v9112 = vpack.c.bf16 %v9061, %v9060
    %v9113 = vpack.c.bf16 %v9063, %v9062
    %v9114 = vpack.c.bf16 %v9065, %v9064
    %v9115 = vpack.c.bf16 %v9067, %v9066
    %v9116 = vpack.c.bf16 %v9069, %v9068
    %v9117 = vpack.c.bf16 %v9071, %v9070
    %v9118 = vpack.c.bf16 %v9073, %v9072
    %v9119 = vpack.c.bf16 %v9075, %v9074
    %v9120 = vpack.c.bf16 %v9077, %v9076
    %v9121 = vpack.c.bf16 %v9079, %v9078
    %v9122 = vpack.c.bf16 %v9081, %v9080
    %v9123 = vpack.c.bf16 %v9083, %v9082
    %v9124 = vpack.c.bf16 %v9085, %v9084
    %v9125 = vpack.c.bf16 %v9087, %v9086
    %v9126 = vpack.c.bf16 %v9089, %v9088
    %v9127 = vpack.c.bf16 %v9091, %v9090
    %v9128 = vpack.c.bf16 %v9093, %v9092
    %v9129 = vpack.c.bf16 %v9095, %v9094
    %v9130 = vpack.c.bf16 %v9097, %v9096
    %v9131 = vpack.c.bf16 %v9099, %v9098
    %s9132 = scalar_lea.vmem [#allocation11], 448
    %v9133 = vld [vmem:[%s9132] sm:$0xf]
    %v9134 = vld [vmem:[%s9132 + $0x4] sm:$0xf]
    %v9135 = vld [vmem:[%s9132 + $0x8] sm:$0xf]
    %v9136 = vld [vmem:[%s9132 + $0xc] sm:$0xf]
    %v9137 = vld [vmem:[%s9132 + $0x10] sm:$0xf]
    %v9138 = vld [vmem:[%s9132 + $0x14] sm:$0xf]
    %v9139 = vld [vmem:[%s9132 + $0x18] sm:$0xf]
    %v9140 = vld [vmem:[%s9132 + $0x1c] sm:$0xf]
    %v9141 = vld [vmem:[%s9132 + $0x20] sm:$0xf]
    %v9142 = vld [vmem:[%s9132 + $0x24] sm:$0xf]
    %v9143 = vld [vmem:[%s9132 + $0x28] sm:$0xf]
    %v9144 = vld [vmem:[%s9132 + $0x2c] sm:$0xf]
    %v9145 = vld [vmem:[%s9132 + $0x30] sm:$0xf]
    %v9146 = vld [vmem:[%s9132 + $0x34] sm:$0xf]
    %v9147 = vld [vmem:[%s9132 + $0x38] sm:$0xf]
    %v9148 = vld [vmem:[%s9132 + $0x3c] sm:$0xf]
    %v9165 = vunpack.c.l.b16 %v9133
    %v9166 = vunpack.c.l.b16 %v9134
    %v9167 = vunpack.c.l.b16 %v9135
    %v9168 = vunpack.c.l.b16 %v9136
    %v9169 = vunpack.c.l.b16 %v9137
    %v9170 = vunpack.c.l.b16 %v9138
    %v9171 = vunpack.c.l.b16 %v9139
    %v9172 = vunpack.c.l.b16 %v9140
    %v9173 = vunpack.c.l.b16 %v9141
    %v9174 = vunpack.c.l.b16 %v9142
    %v9175 = vunpack.c.l.b16 %v9143
    %v9176 = vunpack.c.l.b16 %v9144
    %v9177 = vunpack.c.l.b16 %v9145
    %v9178 = vunpack.c.l.b16 %v9146
    %v9179 = vunpack.c.l.b16 %v9147
    %v9180 = vunpack.c.l.b16 %v9148
    %v9181 = vpack.c.b16 %v9166, %v9165
    %v9182 = vpack.c.b16 %v9168, %v9167
    %v9183 = vpack.c.b16 %v9170, %v9169
    %v9184 = vpack.c.b16 %v9172, %v9171
    %v9185 = vpack.c.b16 %v9174, %v9173
    %v9186 = vpack.c.b16 %v9176, %v9175
    %v9187 = vpack.c.b16 %v9178, %v9177
    %v9188 = vpack.c.b16 %v9180, %v9179
    %9197 = vmatprep.subr.bf16.mxu0 0
    %9198 = vmatpush1.bf16.msra.mxu0 %v9188
    %9199 = vmatprep.subr.bf16.mxu0 0
    %9200 = vmatpush1.bf16.msra.mxu0 %v9187
    %9201 = vmatprep.subr.bf16.mxu0 0
    %9202 = vmatpush1.bf16.msra.mxu0 %v9186
    %9203 = vmatprep.subr.bf16.mxu0 0
    %9204 = vmatpush1.bf16.msra.mxu0 %v9185
    %9205 = vmatprep.subr.bf16.mxu0 0
    %9206 = vmatpush1.bf16.msra.mxu0 %v9184
    %9207 = vmatprep.subr.bf16.mxu0 0
    %9208 = vmatpush1.bf16.msra.mxu0 %v9183
    %9209 = vmatprep.subr.bf16.mxu0 0
    %9210 = vmatpush1.bf16.msra.mxu0 %v9182
    %9211 = vmatprep.subr.bf16.mxu0 0
    %9212 = vmatpush1.bf16.msra.mxu0 %v9181
    %9213 = vmatprep.subr.bf16.mxu0 0
    %9214 = vmatpush2.bf16.msra.mxu0 0
    %9215 = vmatprep.subr.bf16.mxu0 0
    %9216 = vmatpush2.bf16.msra.mxu0 0
    %9217 = vmatprep.subr.bf16.mxu0 0
    %9218 = vmatpush2.bf16.msra.mxu0 0
    %9219 = vmatprep.subr.bf16.mxu0 0
    %9220 = vmatpush2.bf16.msra.mxu0 0
    %9221 = vmatprep.subr.bf16.mxu0 0
    %9222 = vmatpush2.bf16.msra.mxu0 0
    %9223 = vmatprep.subr.bf16.mxu0 0
    %9224 = vmatpush2.bf16.msra.mxu0 0
    %9225 = vmatprep.subr.bf16.mxu0 0
    %9226 = vmatpush2.bf16.msra.mxu0 0
    %9227 = vmatprep.subr.bf16.mxu0 0
    %9228 = vmatpush2.bf16.msra.mxu0 0
    %9229 = vmatprep.mubr.bf16.mxu0 0
    %9230 = vmatmul.mubr.bf16.gmra.mxu0 %v9100
    %v9231 = vpop.f32.mrf.mxu0
    %v9232 = vadd.f32 0.0, %v9231
    %v9233 = vpop.f32.mrf.mxu0
    %v9234 = vpop.f32.mrf.mxu0
    %v9235 = vadd.f32 0.0, %v9234
    %v9236 = vpop.f32.mrf.mxu0
    %9237 = vmatprep.mubr.bf16.mxu0 0
    %9238 = vmatmul.mubr.bf16.gmra.mxu0 %v9101
    %v9239 = vpop.f32.mrf.mxu0
    %v9240 = vadd.f32 0.0, %v9239
    %v9241 = vpop.f32.mrf.mxu0
    %v9242 = vpop.f32.mrf.mxu0
    %v9243 = vadd.f32 0.0, %v9242
    %v9244 = vpop.f32.mrf.mxu0
    %9245 = vmatprep.mubr.bf16.mxu0 0
    %9246 = vmatmul.mubr.bf16.gmra.mxu0 %v9102
    %v9247 = vpop.f32.mrf.mxu0
    %v9248 = vadd.f32 0.0, %v9247
    %v9249 = vpop.f32.mrf.mxu0
    %v9250 = vpop.f32.mrf.mxu0
    %v9251 = vadd.f32 0.0, %v9250
    %v9252 = vpop.f32.mrf.mxu0
    %9253 = vmatprep.mubr.bf16.mxu0 0
    %9254 = vmatmul.mubr.bf16.gmra.mxu0 %v9103
    %v9255 = vpop.f32.mrf.mxu0
    %v9256 = vadd.f32 0.0, %v9255
    %v9257 = vpop.f32.mrf.mxu0
    %v9258 = vpop.f32.mrf.mxu0
    %v9259 = vadd.f32 0.0, %v9258
    %v9260 = vpop.f32.mrf.mxu0
    %9261 = vmatprep.mubr.bf16.mxu0 0
    %9262 = vmatmul.mubr.bf16.gmra.mxu0 %v9104
    %v9263 = vpop.f32.mrf.mxu0
    %v9264 = vadd.f32 0.0, %v9263
    %v9265 = vpop.f32.mrf.mxu0
    %v9266 = vpop.f32.mrf.mxu0
    %v9267 = vadd.f32 0.0, %v9266
    %v9268 = vpop.f32.mrf.mxu0
    %9269 = vmatprep.mubr.bf16.mxu0 0
    %9270 = vmatmul.mubr.bf16.gmra.mxu0 %v9105
    %v9271 = vpop.f32.mrf.mxu0
    %v9272 = vadd.f32 0.0, %v9271
    %v9273 = vpop.f32.mrf.mxu0
    %v9274 = vpop.f32.mrf.mxu0
    %v9275 = vadd.f32 0.0, %v9274
    %v9276 = vpop.f32.mrf.mxu0
    %9277 = vmatprep.mubr.bf16.mxu0 0
    %9278 = vmatmul.mubr.bf16.gmra.mxu0 %v9106
    %v9279 = vpop.f32.mrf.mxu0
    %v9280 = vadd.f32 0.0, %v9279
    %v9281 = vpop.f32.mrf.mxu0
    %v9282 = vpop.f32.mrf.mxu0
    %v9283 = vadd.f32 0.0, %v9282
    %v9284 = vpop.f32.mrf.mxu0
    %9285 = vmatprep.mubr.bf16.mxu0 0
    %9286 = vmatmul.mubr.bf16.gmra.mxu0 %v9107
    %v9287 = vpop.f32.mrf.mxu0
    %v9288 = vadd.f32 0.0, %v9287
    %v9289 = vpop.f32.mrf.mxu0
    %v9290 = vpop.f32.mrf.mxu0
    %v9291 = vadd.f32 0.0, %v9290
    %v9292 = vpop.f32.mrf.mxu0
    %9293 = vmatprep.mubr.bf16.mxu0 0
    %9294 = vmatmul.mubr.bf16.gmra.mxu0 %v9108
    %v9295 = vpop.f32.mrf.mxu0
    %v9296 = vadd.f32 0.0, %v9295
    %v9297 = vpop.f32.mrf.mxu0
    %v9298 = vpop.f32.mrf.mxu0
    %v9299 = vadd.f32 0.0, %v9298
    %v9300 = vpop.f32.mrf.mxu0
    %9301 = vmatprep.mubr.bf16.mxu0 0
    %9302 = vmatmul.mubr.bf16.gmra.mxu0 %v9109
    %v9303 = vpop.f32.mrf.mxu0
    %v9304 = vadd.f32 0.0, %v9303
    %v9305 = vpop.f32.mrf.mxu0
    %v9306 = vpop.f32.mrf.mxu0
    %v9307 = vadd.f32 0.0, %v9306
    %v9308 = vpop.f32.mrf.mxu0
    %9309 = vmatprep.mubr.bf16.mxu0 0
    %9310 = vmatmul.mubr.bf16.gmra.mxu0 %v9110
    %v9311 = vpop.f32.mrf.mxu0
    %v9312 = vadd.f32 0.0, %v9311
    %v9313 = vpop.f32.mrf.mxu0
    %v9314 = vpop.f32.mrf.mxu0
    %v9315 = vadd.f32 0.0, %v9314
    %v9316 = vpop.f32.mrf.mxu0
    %9317 = vmatprep.mubr.bf16.mxu0 0
    %9318 = vmatmul.mubr.bf16.gmra.mxu0 %v9111
    %v9319 = vpop.f32.mrf.mxu0
    %v9320 = vadd.f32 0.0, %v9319
    %v9321 = vpop.f32.mrf.mxu0
    %v9322 = vpop.f32.mrf.mxu0
    %v9323 = vadd.f32 0.0, %v9322
    %v9324 = vpop.f32.mrf.mxu0
    %9325 = vmatprep.mubr.bf16.mxu0 0
    %9326 = vmatmul.mubr.bf16.gmra.mxu0 %v9112
    %v9327 = vpop.f32.mrf.mxu0
    %v9328 = vadd.f32 0.0, %v9327
    %v9329 = vpop.f32.mrf.mxu0
    %v9330 = vpop.f32.mrf.mxu0
    %v9331 = vadd.f32 0.0, %v9330
    %v9332 = vpop.f32.mrf.mxu0
    %9333 = vmatprep.mubr.bf16.mxu0 0
    %9334 = vmatmul.mubr.bf16.gmra.mxu0 %v9113
    %v9335 = vpop.f32.mrf.mxu0
    %v9336 = vadd.f32 0.0, %v9335
    %v9337 = vpop.f32.mrf.mxu0
    %v9338 = vpop.f32.mrf.mxu0
    %v9339 = vadd.f32 0.0, %v9338
    %v9340 = vpop.f32.mrf.mxu0
    %9341 = vmatprep.mubr.bf16.mxu0 0
    %9342 = vmatmul.mubr.bf16.gmra.mxu0 %v9114
    %v9343 = vpop.f32.mrf.mxu0
    %v9344 = vadd.f32 0.0, %v9343
    %v9345 = vpop.f32.mrf.mxu0
    %v9346 = vpop.f32.mrf.mxu0
    %v9347 = vadd.f32 0.0, %v9346
    %v9348 = vpop.f32.mrf.mxu0
    %9349 = vmatprep.mubr.bf16.mxu0 0
    %9350 = vmatmul.mubr.bf16.gmra.mxu0 %v9115
    %v9351 = vpop.f32.mrf.mxu0
    %v9352 = vadd.f32 0.0, %v9351
    %v9353 = vpop.f32.mrf.mxu0
    %v9354 = vpop.f32.mrf.mxu0
    %v9355 = vadd.f32 0.0, %v9354
    %v9356 = vpop.f32.mrf.mxu0
    %9357 = vmatprep.mubr.bf16.mxu0 0
    %9358 = vmatmul.mubr.bf16.gmra.mxu0 %v9116
    %v9359 = vpop.f32.mrf.mxu0
    %v9360 = vadd.f32 0.0, %v9359
    %v9361 = vpop.f32.mrf.mxu0
    %v9362 = vpop.f32.mrf.mxu0
    %v9363 = vadd.f32 0.0, %v9362
    %v9364 = vpop.f32.mrf.mxu0
    %9365 = vmatprep.mubr.bf16.mxu0 0
    %9366 = vmatmul.mubr.bf16.gmra.mxu0 %v9117
    %v9367 = vpop.f32.mrf.mxu0
    %v9368 = vadd.f32 0.0, %v9367
    %v9369 = vpop.f32.mrf.mxu0
    %v9370 = vpop.f32.mrf.mxu0
    %v9371 = vadd.f32 0.0, %v9370
    %v9372 = vpop.f32.mrf.mxu0
    %9373 = vmatprep.mubr.bf16.mxu0 0
    %9374 = vmatmul.mubr.bf16.gmra.mxu0 %v9118
    %v9375 = vpop.f32.mrf.mxu0
    %v9376 = vadd.f32 0.0, %v9375
    %v9377 = vpop.f32.mrf.mxu0
    %v9378 = vpop.f32.mrf.mxu0
    %v9379 = vadd.f32 0.0, %v9378
    %v9380 = vpop.f32.mrf.mxu0
    %9381 = vmatprep.mubr.bf16.mxu0 0
    %9382 = vmatmul.mubr.bf16.gmra.mxu0 %v9119
    %v9383 = vpop.f32.mrf.mxu0
    %v9384 = vadd.f32 0.0, %v9383
    %v9385 = vpop.f32.mrf.mxu0
    %v9386 = vpop.f32.mrf.mxu0
    %v9387 = vadd.f32 0.0, %v9386
    %v9388 = vpop.f32.mrf.mxu0
    %9389 = vmatprep.mubr.bf16.mxu0 0
    %9390 = vmatmul.mubr.bf16.gmra.mxu0 %v9120
    %v9391 = vpop.f32.mrf.mxu0
    %v9392 = vadd.f32 0.0, %v9391
    %v9393 = vpop.f32.mrf.mxu0
    %v9394 = vpop.f32.mrf.mxu0
    %v9395 = vadd.f32 0.0, %v9394
    %v9396 = vpop.f32.mrf.mxu0
    %9397 = vmatprep.mubr.bf16.mxu0 0
    %9398 = vmatmul.mubr.bf16.gmra.mxu0 %v9121
    %v9399 = vpop.f32.mrf.mxu0
    %v9400 = vadd.f32 0.0, %v9399
    %v9401 = vpop.f32.mrf.mxu0
    %v9402 = vpop.f32.mrf.mxu0
    %v9403 = vadd.f32 0.0, %v9402
    %v9404 = vpop.f32.mrf.mxu0
    %9405 = vmatprep.mubr.bf16.mxu0 0
    %9406 = vmatmul.mubr.bf16.gmra.mxu0 %v9122
    %v9407 = vpop.f32.mrf.mxu0
    %v9408 = vadd.f32 0.0, %v9407
    %v9409 = vpop.f32.mrf.mxu0
    %v9410 = vpop.f32.mrf.mxu0
    %v9411 = vadd.f32 0.0, %v9410
    %v9412 = vpop.f32.mrf.mxu0
    %9413 = vmatprep.mubr.bf16.mxu0 0
    %9414 = vmatmul.mubr.bf16.gmra.mxu0 %v9123
    %v9415 = vpop.f32.mrf.mxu0
    %v9416 = vadd.f32 0.0, %v9415
    %v9417 = vpop.f32.mrf.mxu0
    %v9418 = vpop.f32.mrf.mxu0
    %v9419 = vadd.f32 0.0, %v9418
    %v9420 = vpop.f32.mrf.mxu0
    %9421 = vmatprep.mubr.bf16.mxu0 0
    %9422 = vmatmul.mubr.bf16.gmra.mxu0 %v9124
    %v9423 = vpop.f32.mrf.mxu0
    %v9424 = vadd.f32 0.0, %v9423
    %v9425 = vpop.f32.mrf.mxu0
    %v9426 = vpop.f32.mrf.mxu0
    %v9427 = vadd.f32 0.0, %v9426
    %v9428 = vpop.f32.mrf.mxu0
    %9429 = vmatprep.mubr.bf16.mxu0 0
    %9430 = vmatmul.mubr.bf16.gmra.mxu0 %v9125
    %v9431 = vpop.f32.mrf.mxu0
    %v9432 = vadd.f32 0.0, %v9431
    %v9433 = vpop.f32.mrf.mxu0
    %v9434 = vpop.f32.mrf.mxu0
    %v9435 = vadd.f32 0.0, %v9434
    %v9436 = vpop.f32.mrf.mxu0
    %9437 = vmatprep.mubr.bf16.mxu0 0
    %9438 = vmatmul.mubr.bf16.gmra.mxu0 %v9126
    %v9439 = vpop.f32.mrf.mxu0
    %v9440 = vadd.f32 0.0, %v9439
    %v9441 = vpop.f32.mrf.mxu0
    %v9442 = vpop.f32.mrf.mxu0
    %v9443 = vadd.f32 0.0, %v9442
    %v9444 = vpop.f32.mrf.mxu0
    %9445 = vmatprep.mubr.bf16.mxu0 0
    %9446 = vmatmul.mubr.bf16.gmra.mxu0 %v9127
    %v9447 = vpop.f32.mrf.mxu0
    %v9448 = vadd.f32 0.0, %v9447
    %v9449 = vpop.f32.mrf.mxu0
    %v9450 = vpop.f32.mrf.mxu0
    %v9451 = vadd.f32 0.0, %v9450
    %v9452 = vpop.f32.mrf.mxu0
    %9453 = vmatprep.mubr.bf16.mxu0 0
    %9454 = vmatmul.mubr.bf16.gmra.mxu0 %v9128
    %v9455 = vpop.f32.mrf.mxu0
    %v9456 = vadd.f32 0.0, %v9455
    %v9457 = vpop.f32.mrf.mxu0
    %v9458 = vpop.f32.mrf.mxu0
    %v9459 = vadd.f32 0.0, %v9458
    %v9460 = vpop.f32.mrf.mxu0
    %9461 = vmatprep.mubr.bf16.mxu0 0
    %9462 = vmatmul.mubr.bf16.gmra.mxu0 %v9129
    %v9463 = vpop.f32.mrf.mxu0
    %v9464 = vadd.f32 0.0, %v9463
    %v9465 = vpop.f32.mrf.mxu0
    %v9466 = vpop.f32.mrf.mxu0
    %v9467 = vadd.f32 0.0, %v9466
    %v9468 = vpop.f32.mrf.mxu0
    %9469 = vmatprep.mubr.bf16.mxu0 0
    %9470 = vmatmul.mubr.bf16.gmra.mxu0 %v9130
    %v9471 = vpop.f32.mrf.mxu0
    %v9472 = vadd.f32 0.0, %v9471
    %v9473 = vpop.f32.mrf.mxu0
    %v9474 = vpop.f32.mrf.mxu0
    %v9475 = vadd.f32 0.0, %v9474
    %v9476 = vpop.f32.mrf.mxu0
    %9477 = vmatprep.mubr.bf16.mxu0 0
    %9478 = vmatmul.mubr.bf16.gmra.mxu0 %v9131
    %v9479 = vpop.f32.mrf.mxu0
    %v9480 = vadd.f32 0.0, %v9479
    %v9481 = vpop.f32.mrf.mxu0
    %v9482 = vpop.f32.mrf.mxu0
    %v9483 = vadd.f32 0.0, %v9482
    %v9484 = vpop.f32.mrf.mxu0
    %9485 = vdwg.mxu0
    %v9486 = vadd.f32 %v8971, %v9232
    %v9487 = vadd.f32 %v8972, %v9235
    %v9488 = vadd.f32 %v8973, %v9240
    %v9489 = vadd.f32 %v8974, %v9243
    %v9490 = vadd.f32 %v8975, %v9248
    %v9491 = vadd.f32 %v8976, %v9251
    %v9492 = vadd.f32 %v8977, %v9256
    %v9493 = vadd.f32 %v8978, %v9259
    %v9494 = vadd.f32 %v8979, %v9264
    %v9495 = vadd.f32 %v8980, %v9267
    %v9496 = vadd.f32 %v8981, %v9272
    %v9497 = vadd.f32 %v8982, %v9275
    %v9498 = vadd.f32 %v8983, %v9280
    %v9499 = vadd.f32 %v8984, %v9283
    %v9500 = vadd.f32 %v8985, %v9288
    %v9501 = vadd.f32 %v8986, %v9291
    %v9502 = vadd.f32 %v8987, %v9296
    %v9503 = vadd.f32 %v8988, %v9299
    %v9504 = vadd.f32 %v8989, %v9304
    %v9505 = vadd.f32 %v8990, %v9307
    %v9506 = vadd.f32 %v8991, %v9312
    %v9507 = vadd.f32 %v8992, %v9315
    %v9508 = vadd.f32 %v8993, %v9320
    %v9509 = vadd.f32 %v8994, %v9323
    %v9510 = vadd.f32 %v8995, %v9328
    %v9511 = vadd.f32 %v8996, %v9331
    %v9512 = vadd.f32 %v8997, %v9336
    %v9513 = vadd.f32 %v8998, %v9339
    %v9514 = vadd.f32 %v8999, %v9344
    %v9515 = vadd.f32 %v9000, %v9347
    %v9516 = vadd.f32 %v9001, %v9352
    %v9517 = vadd.f32 %v9002, %v9355
    %v9518 = vadd.f32 %v9003, %v9360
    %v9519 = vadd.f32 %v9004, %v9363
    %v9520 = vadd.f32 %v9005, %v9368
    %v9521 = vadd.f32 %v9006, %v9371
    %v9522 = vadd.f32 %v9007, %v9376
    %v9523 = vadd.f32 %v9008, %v9379
    %v9524 = vadd.f32 %v9009, %v9384
    %v9525 = vadd.f32 %v9010, %v9387
    %v9526 = vadd.f32 %v9011, %v9392
    %v9527 = vadd.f32 %v9012, %v9395
    %v9528 = vadd.f32 %v9013, %v9400
    %v9529 = vadd.f32 %v9014, %v9403
    %v9530 = vadd.f32 %v9015, %v9408
    %v9531 = vadd.f32 %v9016, %v9411
    %v9532 = vadd.f32 %v9017, %v9416
    %v9533 = vadd.f32 %v9018, %v9419
    %v9534 = vadd.f32 %v9019, %v9424
    %v9535 = vadd.f32 %v9020, %v9427
    %v9536 = vadd.f32 %v9021, %v9432
    %v9537 = vadd.f32 %v9022, %v9435
    %v9538 = vadd.f32 %v9023, %v9440
    %v9539 = vadd.f32 %v9024, %v9443
    %v9540 = vadd.f32 %v9025, %v9448
    %v9541 = vadd.f32 %v9026, %v9451
    %v9542 = vadd.f32 %v9027, %v9456
    %v9543 = vadd.f32 %v9028, %v9459
    %v9544 = vadd.f32 %v9029, %v9464
    %v9545 = vadd.f32 %v9030, %v9467
    %v9546 = vadd.f32 %v9031, %v9472
    %v9547 = vadd.f32 %v9032, %v9475
    %v9548 = vadd.f32 %v9033, %v9480
    %v9549 = vadd.f32 %v9034, %v9483
    %s9550 = scalar_lea.vmem [#allocation2], 456
    %v9551 = vld [vmem:[%s9550] sm:$0xff]
    %v9552 = vld [vmem:[%s9550 + $0x10] sm:$0xff]
    %v9553 = vld [vmem:[%s9550 + $0x20] sm:$0xff]
    %v9554 = vld [vmem:[%s9550 + $0x30] sm:$0xff]
    %v9555 = vld [vmem:[%s9550 + $0x40] sm:$0xff]
    %v9556 = vld [vmem:[%s9550 + $0x50] sm:$0xff]
    %v9557 = vld [vmem:[%s9550 + $0x60] sm:$0xff]
    %v9558 = vld [vmem:[%s9550 + $0x70] sm:$0xff]
    %v9559 = vld [vmem:[%s9550 + $0x120] sm:$0xff]
    %v9560 = vld [vmem:[%s9550 + $0x130] sm:$0xff]
    %v9561 = vld [vmem:[%s9550 + $0x140] sm:$0xff]
    %v9562 = vld [vmem:[%s9550 + $0x150] sm:$0xff]
    %v9563 = vld [vmem:[%s9550 + $0x160] sm:$0xff]
    %v9564 = vld [vmem:[%s9550 + $0x170] sm:$0xff]
    %v9565 = vld [vmem:[%s9550 + $0x180] sm:$0xff]
    %v9566 = vld [vmem:[%s9550 + $0x190] sm:$0xff]
    %v9567 = vld [vmem:[%s9550 + $0x240] sm:$0xff]
    %v9568 = vld [vmem:[%s9550 + $0x250] sm:$0xff]
    %v9569 = vld [vmem:[%s9550 + $0x260] sm:$0xff]
    %v9570 = vld [vmem:[%s9550 + $0x270] sm:$0xff]
    %v9571 = vld [vmem:[%s9550 + $0x280] sm:$0xff]
    %v9572 = vld [vmem:[%s9550 + $0x290] sm:$0xff]
    %v9573 = vld [vmem:[%s9550 + $0x2a0] sm:$0xff]
    %v9574 = vld [vmem:[%s9550 + $0x2b0] sm:$0xff]
    %v9575 = vld [vmem:[%s9550 + $0x360] sm:$0xff]
    %v9576 = vld [vmem:[%s9550 + $0x370] sm:$0xff]
    %v9577 = vld [vmem:[%s9550 + $0x380] sm:$0xff]
    %v9578 = vld [vmem:[%s9550 + $0x390] sm:$0xff]
    %v9579 = vld [vmem:[%s9550 + $0x3a0] sm:$0xff]
    %v9580 = vld [vmem:[%s9550 + $0x3b0] sm:$0xff]
    %v9581 = vld [vmem:[%s9550 + $0x3c0] sm:$0xff]
    %v9582 = vld [vmem:[%s9550 + $0x3d0] sm:$0xff]
    %v9583 = vld [vmem:[%s9550 + $0x480] sm:$0xff]
    %v9584 = vld [vmem:[%s9550 + $0x490] sm:$0xff]
    %v9585 = vld [vmem:[%s9550 + $0x4a0] sm:$0xff]
    %v9586 = vld [vmem:[%s9550 + $0x4b0] sm:$0xff]
    %v9587 = vld [vmem:[%s9550 + $0x4c0] sm:$0xff]
    %v9588 = vld [vmem:[%s9550 + $0x4d0] sm:$0xff]
    %v9589 = vld [vmem:[%s9550 + $0x4e0] sm:$0xff]
    %v9590 = vld [vmem:[%s9550 + $0x4f0] sm:$0xff]
    %v9591 = vld [vmem:[%s9550 + $0x5a0] sm:$0xff]
    %v9592 = vld [vmem:[%s9550 + $0x5b0] sm:$0xff]
    %v9593 = vld [vmem:[%s9550 + $0x5c0] sm:$0xff]
    %v9594 = vld [vmem:[%s9550 + $0x5d0] sm:$0xff]
    %v9595 = vld [vmem:[%s9550 + $0x5e0] sm:$0xff]
    %v9596 = vld [vmem:[%s9550 + $0x5f0] sm:$0xff]
    %v9597 = vld [vmem:[%s9550 + $0x600] sm:$0xff]
    %v9598 = vld [vmem:[%s9550 + $0x610] sm:$0xff]
    %v9599 = vld [vmem:[%s9550 + $0x6c0] sm:$0xff]
    %v9600 = vld [vmem:[%s9550 + $0x6d0] sm:$0xff]
    %v9601 = vld [vmem:[%s9550 + $0x6e0] sm:$0xff]
    %v9602 = vld [vmem:[%s9550 + $0x6f0] sm:$0xff]
    %v9603 = vld [vmem:[%s9550 + $0x700] sm:$0xff]
    %v9604 = vld [vmem:[%s9550 + $0x710] sm:$0xff]
    %v9605 = vld [vmem:[%s9550 + $0x720] sm:$0xff]
    %v9606 = vld [vmem:[%s9550 + $0x730] sm:$0xff]
    %v9607 = vld [vmem:[%s9550 + $0x7e0] sm:$0xff]
    %v9608 = vld [vmem:[%s9550 + $0x7f0] sm:$0xff]
    %v9609 = vld [vmem:[%s9550 + $0x800] sm:$0xff]
    %v9610 = vld [vmem:[%s9550 + $0x810] sm:$0xff]
    %v9611 = vld [vmem:[%s9550 + $0x820] sm:$0xff]
    %v9612 = vld [vmem:[%s9550 + $0x830] sm:$0xff]
    %v9613 = vld [vmem:[%s9550 + $0x840] sm:$0xff]
    %v9614 = vld [vmem:[%s9550 + $0x850] sm:$0xff]
    %v9615 = vpack.c.bf16 %v9552, %v9551
    %v9616 = vpack.c.bf16 %v9554, %v9553
    %v9617 = vpack.c.bf16 %v9556, %v9555
    %v9618 = vpack.c.bf16 %v9558, %v9557
    %v9619 = vpack.c.bf16 %v9560, %v9559
    %v9620 = vpack.c.bf16 %v9562, %v9561
    %v9621 = vpack.c.bf16 %v9564, %v9563
    %v9622 = vpack.c.bf16 %v9566, %v9565
    %v9623 = vpack.c.bf16 %v9568, %v9567
    %v9624 = vpack.c.bf16 %v9570, %v9569
    %v9625 = vpack.c.bf16 %v9572, %v9571
    %v9626 = vpack.c.bf16 %v9574, %v9573
    %v9627 = vpack.c.bf16 %v9576, %v9575
    %v9628 = vpack.c.bf16 %v9578, %v9577
    %v9629 = vpack.c.bf16 %v9580, %v9579
    %v9630 = vpack.c.bf16 %v9582, %v9581
    %v9631 = vpack.c.bf16 %v9584, %v9583
    %v9632 = vpack.c.bf16 %v9586, %v9585
    %v9633 = vpack.c.bf16 %v9588, %v9587
    %v9634 = vpack.c.bf16 %v9590, %v9589
    %v9635 = vpack.c.bf16 %v9592, %v9591
    %v9636 = vpack.c.bf16 %v9594, %v9593
    %v9637 = vpack.c.bf16 %v9596, %v9595
    %v9638 = vpack.c.bf16 %v9598, %v9597
    %v9639 = vpack.c.bf16 %v9600, %v9599
    %v9640 = vpack.c.bf16 %v9602, %v9601
    %v9641 = vpack.c.bf16 %v9604, %v9603
    %v9642 = vpack.c.bf16 %v9606, %v9605
    %v9643 = vpack.c.bf16 %v9608, %v9607
    %v9644 = vpack.c.bf16 %v9610, %v9609
    %v9645 = vpack.c.bf16 %v9612, %v9611
    %v9646 = vpack.c.bf16 %v9614, %v9613
    %s9647 = scalar_lea.vmem [#allocation11], 512
    %v9648 = vld [vmem:[%s9647] sm:$0xf]
    %v9649 = vld [vmem:[%s9647 + $0x4] sm:$0xf]
    %v9650 = vld [vmem:[%s9647 + $0x8] sm:$0xf]
    %v9651 = vld [vmem:[%s9647 + $0xc] sm:$0xf]
    %v9652 = vld [vmem:[%s9647 + $0x10] sm:$0xf]
    %v9653 = vld [vmem:[%s9647 + $0x14] sm:$0xf]
    %v9654 = vld [vmem:[%s9647 + $0x18] sm:$0xf]
    %v9655 = vld [vmem:[%s9647 + $0x1c] sm:$0xf]
    %v9656 = vld [vmem:[%s9647 + $0x20] sm:$0xf]
    %v9657 = vld [vmem:[%s9647 + $0x24] sm:$0xf]
    %v9658 = vld [vmem:[%s9647 + $0x28] sm:$0xf]
    %v9659 = vld [vmem:[%s9647 + $0x2c] sm:$0xf]
    %v9660 = vld [vmem:[%s9647 + $0x30] sm:$0xf]
    %v9661 = vld [vmem:[%s9647 + $0x34] sm:$0xf]
    %v9662 = vld [vmem:[%s9647 + $0x38] sm:$0xf]
    %v9663 = vld [vmem:[%s9647 + $0x3c] sm:$0xf]
    %v9680 = vunpack.c.l.b16 %v9648
    %v9681 = vunpack.c.l.b16 %v9649
    %v9682 = vunpack.c.l.b16 %v9650
    %v9683 = vunpack.c.l.b16 %v9651
    %v9684 = vunpack.c.l.b16 %v9652
    %v9685 = vunpack.c.l.b16 %v9653
    %v9686 = vunpack.c.l.b16 %v9654
    %v9687 = vunpack.c.l.b16 %v9655
    %v9688 = vunpack.c.l.b16 %v9656
    %v9689 = vunpack.c.l.b16 %v9657
    %v9690 = vunpack.c.l.b16 %v9658
    %v9691 = vunpack.c.l.b16 %v9659
    %v9692 = vunpack.c.l.b16 %v9660
    %v9693 = vunpack.c.l.b16 %v9661
    %v9694 = vunpack.c.l.b16 %v9662
    %v9695 = vunpack.c.l.b16 %v9663
    %v9696 = vpack.c.b16 %v9681, %v9680
    %v9697 = vpack.c.b16 %v9683, %v9682
    %v9698 = vpack.c.b16 %v9685, %v9684
    %v9699 = vpack.c.b16 %v9687, %v9686
    %v9700 = vpack.c.b16 %v9689, %v9688
    %v9701 = vpack.c.b16 %v9691, %v9690
    %v9702 = vpack.c.b16 %v9693, %v9692
    %v9703 = vpack.c.b16 %v9695, %v9694
    %9712 = vmatprep.subr.bf16.mxu0 0
    %9713 = vmatpush1.bf16.msra.mxu0 %v9703
    %9714 = vmatprep.subr.bf16.mxu0 0
    %9715 = vmatpush1.bf16.msra.mxu0 %v9702
    %9716 = vmatprep.subr.bf16.mxu0 0
    %9717 = vmatpush1.bf16.msra.mxu0 %v9701
    %9718 = vmatprep.subr.bf16.mxu0 0
    %9719 = vmatpush1.bf16.msra.mxu0 %v9700
    %9720 = vmatprep.subr.bf16.mxu0 0
    %9721 = vmatpush1.bf16.msra.mxu0 %v9699
    %9722 = vmatprep.subr.bf16.mxu0 0
    %9723 = vmatpush1.bf16.msra.mxu0 %v9698
    %9724 = vmatprep.subr.bf16.mxu0 0
    %9725 = vmatpush1.bf16.msra.mxu0 %v9697
    %9726 = vmatprep.subr.bf16.mxu0 0
    %9727 = vmatpush1.bf16.msra.mxu0 %v9696
    %9728 = vmatprep.subr.bf16.mxu0 0
    %9729 = vmatpush2.bf16.msra.mxu0 0
    %9730 = vmatprep.subr.bf16.mxu0 0
    %9731 = vmatpush2.bf16.msra.mxu0 0
    %9732 = vmatprep.subr.bf16.mxu0 0
    %9733 = vmatpush2.bf16.msra.mxu0 0
    %9734 = vmatprep.subr.bf16.mxu0 0
    %9735 = vmatpush2.bf16.msra.mxu0 0
    %9736 = vmatprep.subr.bf16.mxu0 0
    %9737 = vmatpush2.bf16.msra.mxu0 0
    %9738 = vmatprep.subr.bf16.mxu0 0
    %9739 = vmatpush2.bf16.msra.mxu0 0
    %9740 = vmatprep.subr.bf16.mxu0 0
    %9741 = vmatpush2.bf16.msra.mxu0 0
    %9742 = vmatprep.subr.bf16.mxu0 0
    %9743 = vmatpush2.bf16.msra.mxu0 0
    %9744 = vmatprep.mubr.bf16.mxu0 0
    %9745 = vmatmul.mubr.bf16.gmra.mxu0 %v9615
    %v9746 = vpop.f32.mrf.mxu0
    %v9747 = vadd.f32 0.0, %v9746
    %v9748 = vpop.f32.mrf.mxu0
    %v9749 = vpop.f32.mrf.mxu0
    %v9750 = vadd.f32 0.0, %v9749
    %v9751 = vpop.f32.mrf.mxu0
    %9752 = vmatprep.mubr.bf16.mxu0 0
    %9753 = vmatmul.mubr.bf16.gmra.mxu0 %v9616
    %v9754 = vpop.f32.mrf.mxu0
    %v9755 = vadd.f32 0.0, %v9754
    %v9756 = vpop.f32.mrf.mxu0
    %v9757 = vpop.f32.mrf.mxu0
    %v9758 = vadd.f32 0.0, %v9757
    %v9759 = vpop.f32.mrf.mxu0
    %9760 = vmatprep.mubr.bf16.mxu0 0
    %9761 = vmatmul.mubr.bf16.gmra.mxu0 %v9617
    %v9762 = vpop.f32.mrf.mxu0
    %v9763 = vadd.f32 0.0, %v9762
    %v9764 = vpop.f32.mrf.mxu0
    %v9765 = vpop.f32.mrf.mxu0
    %v9766 = vadd.f32 0.0, %v9765
    %v9767 = vpop.f32.mrf.mxu0
    %9768 = vmatprep.mubr.bf16.mxu0 0
    %9769 = vmatmul.mubr.bf16.gmra.mxu0 %v9618
    %v9770 = vpop.f32.mrf.mxu0
    %v9771 = vadd.f32 0.0, %v9770
    %v9772 = vpop.f32.mrf.mxu0
    %v9773 = vpop.f32.mrf.mxu0
    %v9774 = vadd.f32 0.0, %v9773
    %v9775 = vpop.f32.mrf.mxu0
    %9776 = vmatprep.mubr.bf16.mxu0 0
    %9777 = vmatmul.mubr.bf16.gmra.mxu0 %v9619
    %v9778 = vpop.f32.mrf.mxu0
    %v9779 = vadd.f32 0.0, %v9778
    %v9780 = vpop.f32.mrf.mxu0
    %v9781 = vpop.f32.mrf.mxu0
    %v9782 = vadd.f32 0.0, %v9781
    %v9783 = vpop.f32.mrf.mxu0
    %9784 = vmatprep.mubr.bf16.mxu0 0
    %9785 = vmatmul.mubr.bf16.gmra.mxu0 %v9620
    %v9786 = vpop.f32.mrf.mxu0
    %v9787 = vadd.f32 0.0, %v9786
    %v9788 = vpop.f32.mrf.mxu0
    %v9789 = vpop.f32.mrf.mxu0
    %v9790 = vadd.f32 0.0, %v9789
    %v9791 = vpop.f32.mrf.mxu0
    %9792 = vmatprep.mubr.bf16.mxu0 0
    %9793 = vmatmul.mubr.bf16.gmra.mxu0 %v9621
    %v9794 = vpop.f32.mrf.mxu0
    %v9795 = vadd.f32 0.0, %v9794
    %v9796 = vpop.f32.mrf.mxu0
    %v9797 = vpop.f32.mrf.mxu0
    %v9798 = vadd.f32 0.0, %v9797
    %v9799 = vpop.f32.mrf.mxu0
    %9800 = vmatprep.mubr.bf16.mxu0 0
    %9801 = vmatmul.mubr.bf16.gmra.mxu0 %v9622
    %v9802 = vpop.f32.mrf.mxu0
    %v9803 = vadd.f32 0.0, %v9802
    %v9804 = vpop.f32.mrf.mxu0
    %v9805 = vpop.f32.mrf.mxu0
    %v9806 = vadd.f32 0.0, %v9805
    %v9807 = vpop.f32.mrf.mxu0
    %9808 = vmatprep.mubr.bf16.mxu0 0
    %9809 = vmatmul.mubr.bf16.gmra.mxu0 %v9623
    %v9810 = vpop.f32.mrf.mxu0
    %v9811 = vadd.f32 0.0, %v9810
    %v9812 = vpop.f32.mrf.mxu0
    %v9813 = vpop.f32.mrf.mxu0
    %v9814 = vadd.f32 0.0, %v9813
    %v9815 = vpop.f32.mrf.mxu0
    %9816 = vmatprep.mubr.bf16.mxu0 0
    %9817 = vmatmul.mubr.bf16.gmra.mxu0 %v9624
    %v9818 = vpop.f32.mrf.mxu0
    %v9819 = vadd.f32 0.0, %v9818
    %v9820 = vpop.f32.mrf.mxu0
    %v9821 = vpop.f32.mrf.mxu0
    %v9822 = vadd.f32 0.0, %v9821
    %v9823 = vpop.f32.mrf.mxu0
    %9824 = vmatprep.mubr.bf16.mxu0 0
    %9825 = vmatmul.mubr.bf16.gmra.mxu0 %v9625
    %v9826 = vpop.f32.mrf.mxu0
    %v9827 = vadd.f32 0.0, %v9826
    %v9828 = vpop.f32.mrf.mxu0
    %v9829 = vpop.f32.mrf.mxu0
    %v9830 = vadd.f32 0.0, %v9829
    %v9831 = vpop.f32.mrf.mxu0
    %9832 = vmatprep.mubr.bf16.mxu0 0
    %9833 = vmatmul.mubr.bf16.gmra.mxu0 %v9626
    %v9834 = vpop.f32.mrf.mxu0
    %v9835 = vadd.f32 0.0, %v9834
    %v9836 = vpop.f32.mrf.mxu0
    %v9837 = vpop.f32.mrf.mxu0
    %v9838 = vadd.f32 0.0, %v9837
    %v9839 = vpop.f32.mrf.mxu0
    %9840 = vmatprep.mubr.bf16.mxu0 0
    %9841 = vmatmul.mubr.bf16.gmra.mxu0 %v9627
    %v9842 = vpop.f32.mrf.mxu0
    %v9843 = vadd.f32 0.0, %v9842
    %v9844 = vpop.f32.mrf.mxu0
    %v9845 = vpop.f32.mrf.mxu0
    %v9846 = vadd.f32 0.0, %v9845
    %v9847 = vpop.f32.mrf.mxu0
    %9848 = vmatprep.mubr.bf16.mxu0 0
    %9849 = vmatmul.mubr.bf16.gmra.mxu0 %v9628
    %v9850 = vpop.f32.mrf.mxu0
    %v9851 = vadd.f32 0.0, %v9850
    %v9852 = vpop.f32.mrf.mxu0
    %v9853 = vpop.f32.mrf.mxu0
    %v9854 = vadd.f32 0.0, %v9853
    %v9855 = vpop.f32.mrf.mxu0
    %9856 = vmatprep.mubr.bf16.mxu0 0
    %9857 = vmatmul.mubr.bf16.gmra.mxu0 %v9629
    %v9858 = vpop.f32.mrf.mxu0
    %v9859 = vadd.f32 0.0, %v9858
    %v9860 = vpop.f32.mrf.mxu0
    %v9861 = vpop.f32.mrf.mxu0
    %v9862 = vadd.f32 0.0, %v9861
    %v9863 = vpop.f32.mrf.mxu0
    %9864 = vmatprep.mubr.bf16.mxu0 0
    %9865 = vmatmul.mubr.bf16.gmra.mxu0 %v9630
    %v9866 = vpop.f32.mrf.mxu0
    %v9867 = vadd.f32 0.0, %v9866
    %v9868 = vpop.f32.mrf.mxu0
    %v9869 = vpop.f32.mrf.mxu0
    %v9870 = vadd.f32 0.0, %v9869
    %v9871 = vpop.f32.mrf.mxu0
    %9872 = vmatprep.mubr.bf16.mxu0 0
    %9873 = vmatmul.mubr.bf16.gmra.mxu0 %v9631
    %v9874 = vpop.f32.mrf.mxu0
    %v9875 = vadd.f32 0.0, %v9874
    %v9876 = vpop.f32.mrf.mxu0
    %v9877 = vpop.f32.mrf.mxu0
    %v9878 = vadd.f32 0.0, %v9877
    %v9879 = vpop.f32.mrf.mxu0
    %9880 = vmatprep.mubr.bf16.mxu0 0
    %9881 = vmatmul.mubr.bf16.gmra.mxu0 %v9632
    %v9882 = vpop.f32.mrf.mxu0
    %v9883 = vadd.f32 0.0, %v9882
    %v9884 = vpop.f32.mrf.mxu0
    %v9885 = vpop.f32.mrf.mxu0
    %v9886 = vadd.f32 0.0, %v9885
    %v9887 = vpop.f32.mrf.mxu0
    %9888 = vmatprep.mubr.bf16.mxu0 0
    %9889 = vmatmul.mubr.bf16.gmra.mxu0 %v9633
    %v9890 = vpop.f32.mrf.mxu0
    %v9891 = vadd.f32 0.0, %v9890
    %v9892 = vpop.f32.mrf.mxu0
    %v9893 = vpop.f32.mrf.mxu0
    %v9894 = vadd.f32 0.0, %v9893
    %v9895 = vpop.f32.mrf.mxu0
    %9896 = vmatprep.mubr.bf16.mxu0 0
    %9897 = vmatmul.mubr.bf16.gmra.mxu0 %v9634
    %v9898 = vpop.f32.mrf.mxu0
    %v9899 = vadd.f32 0.0, %v9898
    %v9900 = vpop.f32.mrf.mxu0
    %v9901 = vpop.f32.mrf.mxu0
    %v9902 = vadd.f32 0.0, %v9901
    %v9903 = vpop.f32.mrf.mxu0
    %9904 = vmatprep.mubr.bf16.mxu0 0
    %9905 = vmatmul.mubr.bf16.gmra.mxu0 %v9635
    %v9906 = vpop.f32.mrf.mxu0
    %v9907 = vadd.f32 0.0, %v9906
    %v9908 = vpop.f32.mrf.mxu0
    %v9909 = vpop.f32.mrf.mxu0
    %v9910 = vadd.f32 0.0, %v9909
    %v9911 = vpop.f32.mrf.mxu0
    %9912 = vmatprep.mubr.bf16.mxu0 0
    %9913 = vmatmul.mubr.bf16.gmra.mxu0 %v9636
    %v9914 = vpop.f32.mrf.mxu0
    %v9915 = vadd.f32 0.0, %v9914
    %v9916 = vpop.f32.mrf.mxu0
    %v9917 = vpop.f32.mrf.mxu0
    %v9918 = vadd.f32 0.0, %v9917
    %v9919 = vpop.f32.mrf.mxu0
    %9920 = vmatprep.mubr.bf16.mxu0 0
    %9921 = vmatmul.mubr.bf16.gmra.mxu0 %v9637
    %v9922 = vpop.f32.mrf.mxu0
    %v9923 = vadd.f32 0.0, %v9922
    %v9924 = vpop.f32.mrf.mxu0
    %v9925 = vpop.f32.mrf.mxu0
    %v9926 = vadd.f32 0.0, %v9925
    %v9927 = vpop.f32.mrf.mxu0
    %9928 = vmatprep.mubr.bf16.mxu0 0
    %9929 = vmatmul.mubr.bf16.gmra.mxu0 %v9638
    %v9930 = vpop.f32.mrf.mxu0
    %v9931 = vadd.f32 0.0, %v9930
    %v9932 = vpop.f32.mrf.mxu0
    %v9933 = vpop.f32.mrf.mxu0
    %v9934 = vadd.f32 0.0, %v9933
    %v9935 = vpop.f32.mrf.mxu0
    %9936 = vmatprep.mubr.bf16.mxu0 0
    %9937 = vmatmul.mubr.bf16.gmra.mxu0 %v9639
    %v9938 = vpop.f32.mrf.mxu0
    %v9939 = vadd.f32 0.0, %v9938
    %v9940 = vpop.f32.mrf.mxu0
    %v9941 = vpop.f32.mrf.mxu0
    %v9942 = vadd.f32 0.0, %v9941
    %v9943 = vpop.f32.mrf.mxu0
    %9944 = vmatprep.mubr.bf16.mxu0 0
    %9945 = vmatmul.mubr.bf16.gmra.mxu0 %v9640
    %v9946 = vpop.f32.mrf.mxu0
    %v9947 = vadd.f32 0.0, %v9946
    %v9948 = vpop.f32.mrf.mxu0
    %v9949 = vpop.f32.mrf.mxu0
    %v9950 = vadd.f32 0.0, %v9949
    %v9951 = vpop.f32.mrf.mxu0
    %9952 = vmatprep.mubr.bf16.mxu0 0
    %9953 = vmatmul.mubr.bf16.gmra.mxu0 %v9641
    %v9954 = vpop.f32.mrf.mxu0
    %v9955 = vadd.f32 0.0, %v9954
    %v9956 = vpop.f32.mrf.mxu0
    %v9957 = vpop.f32.mrf.mxu0
    %v9958 = vadd.f32 0.0, %v9957
    %v9959 = vpop.f32.mrf.mxu0
    %9960 = vmatprep.mubr.bf16.mxu0 0
    %9961 = vmatmul.mubr.bf16.gmra.mxu0 %v9642
    %v9962 = vpop.f32.mrf.mxu0
    %v9963 = vadd.f32 0.0, %v9962
    %v9964 = vpop.f32.mrf.mxu0
    %v9965 = vpop.f32.mrf.mxu0
    %v9966 = vadd.f32 0.0, %v9965
    %v9967 = vpop.f32.mrf.mxu0
    %9968 = vmatprep.mubr.bf16.mxu0 0
    %9969 = vmatmul.mubr.bf16.gmra.mxu0 %v9643
    %v9970 = vpop.f32.mrf.mxu0
    %v9971 = vadd.f32 0.0, %v9970
    %v9972 = vpop.f32.mrf.mxu0
    %v9973 = vpop.f32.mrf.mxu0
    %v9974 = vadd.f32 0.0, %v9973
    %v9975 = vpop.f32.mrf.mxu0
    %9976 = vmatprep.mubr.bf16.mxu0 0
    %9977 = vmatmul.mubr.bf16.gmra.mxu0 %v9644
    %v9978 = vpop.f32.mrf.mxu0
    %v9979 = vadd.f32 0.0, %v9978
    %v9980 = vpop.f32.mrf.mxu0
    %v9981 = vpop.f32.mrf.mxu0
    %v9982 = vadd.f32 0.0, %v9981
    %v9983 = vpop.f32.mrf.mxu0
    %9984 = vmatprep.mubr.bf16.mxu0 0
    %9985 = vmatmul.mubr.bf16.gmra.mxu0 %v9645
    %v9986 = vpop.f32.mrf.mxu0
    %v9987 = vadd.f32 0.0, %v9986
    %v9988 = vpop.f32.mrf.mxu0
    %v9989 = vpop.f32.mrf.mxu0
    %v9990 = vadd.f32 0.0, %v9989
    %v9991 = vpop.f32.mrf.mxu0
    %9992 = vmatprep.mubr.bf16.mxu0 0
    %9993 = vmatmul.mubr.bf16.gmra.mxu0 %v9646
    %v9994 = vpop.f32.mrf.mxu0
    %v9995 = vadd.f32 0.0, %v9994
    %v9996 = vpop.f32.mrf.mxu0
    %v9997 = vpop.f32.mrf.mxu0
    %v9998 = vadd.f32 0.0, %v9997
    %v9999 = vpop.f32.mrf.mxu0
    %10000 = vdwg.mxu0
    %v10001 = vadd.f32 %v9486, %v9747
    %v10002 = vadd.f32 %v9487, %v9750
    %v10003 = vadd.f32 %v9488, %v9755
    %v10004 = vadd.f32 %v9489, %v9758
    %v10005 = vadd.f32 %v9490, %v9763
    %v10006 = vadd.f32 %v9491, %v9766
    %v10007 = vadd.f32 %v9492, %v9771
    %v10008 = vadd.f32 %v9493, %v9774
    %v10009 = vadd.f32 %v9494, %v9779
    %v10010 = vadd.f32 %v9495, %v9782
    %v10011 = vadd.f32 %v9496, %v9787
    %v10012 = vadd.f32 %v9497, %v9790
    %v10013 = vadd.f32 %v9498, %v9795
    %v10014 = vadd.f32 %v9499, %v9798
    %v10015 = vadd.f32 %v9500, %v9803
    %v10016 = vadd.f32 %v9501, %v9806
    %v10017 = vadd.f32 %v9502, %v9811
    %v10018 = vadd.f32 %v9503, %v9814
    %v10019 = vadd.f32 %v9504, %v9819
    %v10020 = vadd.f32 %v9505, %v9822
    %v10021 = vadd.f32 %v9506, %v9827
    %v10022 = vadd.f32 %v9507, %v9830
    %v10023 = vadd.f32 %v9508, %v9835
    %v10024 = vadd.f32 %v9509, %v9838
    %v10025 = vadd.f32 %v9510, %v9843
    %v10026 = vadd.f32 %v9511, %v9846
    %v10027 = vadd.f32 %v9512, %v9851
    %v10028 = vadd.f32 %v9513, %v9854
    %v10029 = vadd.f32 %v9514, %v9859
    %v10030 = vadd.f32 %v9515, %v9862
    %v10031 = vadd.f32 %v9516, %v9867
    %v10032 = vadd.f32 %v9517, %v9870
    %v10033 = vadd.f32 %v9518, %v9875
    %v10034 = vadd.f32 %v9519, %v9878
    %v10035 = vadd.f32 %v9520, %v9883
    %v10036 = vadd.f32 %v9521, %v9886
    %v10037 = vadd.f32 %v9522, %v9891
    %v10038 = vadd.f32 %v9523, %v9894
    %v10039 = vadd.f32 %v9524, %v9899
    %v10040 = vadd.f32 %v9525, %v9902
    %v10041 = vadd.f32 %v9526, %v9907
    %v10042 = vadd.f32 %v9527, %v9910
    %v10043 = vadd.f32 %v9528, %v9915
    %v10044 = vadd.f32 %v9529, %v9918
    %v10045 = vadd.f32 %v9530, %v9923
    %v10046 = vadd.f32 %v9531, %v9926
    %v10047 = vadd.f32 %v9532, %v9931
    %v10048 = vadd.f32 %v9533, %v9934
    %v10049 = vadd.f32 %v9534, %v9939
    %v10050 = vadd.f32 %v9535, %v9942
    %v10051 = vadd.f32 %v9536, %v9947
    %v10052 = vadd.f32 %v9537, %v9950
    %v10053 = vadd.f32 %v9538, %v9955
    %v10054 = vadd.f32 %v9539, %v9958
    %v10055 = vadd.f32 %v9540, %v9963
    %v10056 = vadd.f32 %v9541, %v9966
    %v10057 = vadd.f32 %v9542, %v9971
    %v10058 = vadd.f32 %v9543, %v9974
    %v10059 = vadd.f32 %v9544, %v9979
    %v10060 = vadd.f32 %v9545, %v9982
    %v10061 = vadd.f32 %v9546, %v9987
    %v10062 = vadd.f32 %v9547, %v9990
    %v10063 = vadd.f32 %v9548, %v9995
    %v10064 = vadd.f32 %v9549, %v9998
    %v10065 = vadd.f32 %v10001, %v10002
    %v10066 = vadd.f32 %v10065, %v10003
    %v10067 = vadd.f32 %v10066, %v10004
    %v10068 = vadd.f32 %v10067, %v10005
    %v10069 = vadd.f32 %v10068, %v10006
    %v10070 = vadd.f32 %v10069, %v10007
    %v10071 = vadd.f32 %v10070, %v10008
    %v10072 = vadd.f32 %v10071, %v10009
    %v10073 = vadd.f32 %v10072, %v10010
    %v10074 = vadd.f32 %v10073, %v10011
    %v10075 = vadd.f32 %v10074, %v10012
    %v10076 = vadd.f32 %v10075, %v10013
    %v10077 = vadd.f32 %v10076, %v10014
    %v10078 = vadd.f32 %v10077, %v10015
    %v10079 = vadd.f32 %v10078, %v10016
    %v10080 = vadd.f32 %v10079, %v10017
    %v10081 = vadd.f32 %v10080, %v10018
    %v10082 = vadd.f32 %v10081, %v10019
    %v10083 = vadd.f32 %v10082, %v10020
    %v10084 = vadd.f32 %v10083, %v10021
    %v10085 = vadd.f32 %v10084, %v10022
    %v10086 = vadd.f32 %v10085, %v10023
    %v10087 = vadd.f32 %v10086, %v10024
    %v10088 = vadd.f32 %v10087, %v10025
    %v10089 = vadd.f32 %v10088, %v10026
    %v10090 = vadd.f32 %v10089, %v10027
    %v10091 = vadd.f32 %v10090, %v10028
    %v10092 = vadd.f32 %v10091, %v10029
    %v10093 = vadd.f32 %v10092, %v10030
    %v10094 = vadd.f32 %v10093, %v10031
    %v10095 = vadd.f32 %v10094, %v10032
    %v10096 = vadd.f32 %v10095, %v10033
    %v10097 = vadd.f32 %v10096, %v10034
    %v10098 = vadd.f32 %v10097, %v10035
    %v10099 = vadd.f32 %v10098, %v10036
    %v10100 = vadd.f32 %v10099, %v10037
    %v10101 = vadd.f32 %v10100, %v10038
    %v10102 = vadd.f32 %v10101, %v10039
    %v10103 = vadd.f32 %v10102, %v10040
    %v10104 = vadd.f32 %v10103, %v10041
    %v10105 = vadd.f32 %v10104, %v10042
    %v10106 = vadd.f32 %v10105, %v10043
    %v10107 = vadd.f32 %v10106, %v10044
    %v10108 = vadd.f32 %v10107, %v10045
    %v10109 = vadd.f32 %v10108, %v10046
    %v10110 = vadd.f32 %v10109, %v10047
    %v10111 = vadd.f32 %v10110, %v10048
    %v10112 = vadd.f32 %v10111, %v10049
    %v10113 = vadd.f32 %v10112, %v10050
    %v10114 = vadd.f32 %v10113, %v10051
    %v10115 = vadd.f32 %v10114, %v10052
    %v10116 = vadd.f32 %v10115, %v10053
    %v10117 = vadd.f32 %v10116, %v10054
    %v10118 = vadd.f32 %v10117, %v10055
    %v10119 = vadd.f32 %v10118, %v10056
    %v10120 = vadd.f32 %v10119, %v10057
    %v10121 = vadd.f32 %v10120, %v10058
    %v10122 = vadd.f32 %v10121, %v10059
    %v10123 = vadd.f32 %v10122, %v10060
    %v10124 = vadd.f32 %v10123, %v10061
    %v10125 = vadd.f32 %v10124, %v10062
    %v10126 = vadd.f32 %v10125, %v10063
    %v10127 = vadd.f32 %v10126, %v10064
    %v10128 = vrot.slane %v10127, 4
    %v10129 = vadd.f32 %v10127, %v10128
    %v10130 = vrot.slane %v10129, 2
    %v10131 = vadd.f32 %v10129, %v10130
    %v10132 = vrot.slane %v10131, 1
    %v10133 = vadd.f32 %v10131, %v10132
    %v10134 = vmul.f32 %v10133, 0.0078125
    %v10135 = vsub.f32 %v10001, %v10134
    %v10136 = vsub.f32 %v10002, %v10134
    %v10137 = vsub.f32 %v10003, %v10134
    %v10138 = vsub.f32 %v10004, %v10134
    %v10139 = vsub.f32 %v10005, %v10134
    %v10140 = vsub.f32 %v10006, %v10134
    %v10141 = vsub.f32 %v10007, %v10134
    %v10142 = vsub.f32 %v10008, %v10134
    %v10143 = vsub.f32 %v10009, %v10134
    %v10144 = vsub.f32 %v10010, %v10134
    %v10145 = vsub.f32 %v10011, %v10134
    %v10146 = vsub.f32 %v10012, %v10134
    %v10147 = vsub.f32 %v10013, %v10134
    %v10148 = vsub.f32 %v10014, %v10134
    %v10149 = vsub.f32 %v10015, %v10134
    %v10150 = vsub.f32 %v10016, %v10134
    %v10151 = vsub.f32 %v10017, %v10134
    %v10152 = vsub.f32 %v10018, %v10134
    %v10153 = vsub.f32 %v10019, %v10134
    %v10154 = vsub.f32 %v10020, %v10134
    %v10155 = vsub.f32 %v10021, %v10134
    %v10156 = vsub.f32 %v10022, %v10134
    %v10157 = vsub.f32 %v10023, %v10134
    %v10158 = vsub.f32 %v10024, %v10134
    %v10159 = vsub.f32 %v10025, %v10134
    %v10160 = vsub.f32 %v10026, %v10134
    %v10161 = vsub.f32 %v10027, %v10134
    %v10162 = vsub.f32 %v10028, %v10134
    %v10163 = vsub.f32 %v10029, %v10134
    %v10164 = vsub.f32 %v10030, %v10134
    %v10165 = vsub.f32 %v10031, %v10134
    %v10166 = vsub.f32 %v10032, %v10134
    %v10167 = vsub.f32 %v10033, %v10134
    %v10168 = vsub.f32 %v10034, %v10134
    %v10169 = vsub.f32 %v10035, %v10134
    %v10170 = vsub.f32 %v10036, %v10134
    %v10171 = vsub.f32 %v10037, %v10134
    %v10172 = vsub.f32 %v10038, %v10134
    %v10173 = vsub.f32 %v10039, %v10134
    %v10174 = vsub.f32 %v10040, %v10134
    %v10175 = vsub.f32 %v10041, %v10134
    %v10176 = vsub.f32 %v10042, %v10134
    %v10177 = vsub.f32 %v10043, %v10134
    %v10178 = vsub.f32 %v10044, %v10134
    %v10179 = vsub.f32 %v10045, %v10134
    %v10180 = vsub.f32 %v10046, %v10134
    %v10181 = vsub.f32 %v10047, %v10134
    %v10182 = vsub.f32 %v10048, %v10134
    %v10183 = vsub.f32 %v10049, %v10134
    %v10184 = vsub.f32 %v10050, %v10134
    %v10185 = vsub.f32 %v10051, %v10134
    %v10186 = vsub.f32 %v10052, %v10134
    %v10187 = vsub.f32 %v10053, %v10134
    %v10188 = vsub.f32 %v10054, %v10134
    %v10189 = vsub.f32 %v10055, %v10134
    %v10190 = vsub.f32 %v10056, %v10134
    %v10191 = vsub.f32 %v10057, %v10134
    %v10192 = vsub.f32 %v10058, %v10134
    %v10193 = vsub.f32 %v10059, %v10134
    %v10194 = vsub.f32 %v10060, %v10134
    %v10195 = vsub.f32 %v10061, %v10134
    %v10196 = vsub.f32 %v10062, %v10134
    %v10197 = vsub.f32 %v10063, %v10134
    %v10198 = vsub.f32 %v10064, %v10134
    %v10199 = vsel %vm4759, %v10135, 0.0
    %v10200 = vsel %vm4759, %v10136, 0.0
    %v10201 = vsel %vm4759, %v10137, 0.0
    %v10202 = vsel %vm4759, %v10138, 0.0
    %v10203 = vsel %vm4759, %v10139, 0.0
    %v10204 = vsel %vm4759, %v10140, 0.0
    %v10205 = vsel %vm4759, %v10141, 0.0
    %v10206 = vsel %vm4759, %v10142, 0.0
    %v10207 = vsel %vm4759, %v10143, 0.0
    %v10208 = vsel %vm4759, %v10144, 0.0
    %v10209 = vsel %vm4759, %v10145, 0.0
    %v10210 = vsel %vm4759, %v10146, 0.0
    %v10211 = vsel %vm4759, %v10147, 0.0
    %v10212 = vsel %vm4759, %v10148, 0.0
    %v10213 = vsel %vm4759, %v10149, 0.0
    %v10214 = vsel %vm4759, %v10150, 0.0
    %v10215 = vsel %vm4759, %v10151, 0.0
    %v10216 = vsel %vm4759, %v10152, 0.0
    %v10217 = vsel %vm4759, %v10153, 0.0
    %v10218 = vsel %vm4759, %v10154, 0.0
    %v10219 = vsel %vm4759, %v10155, 0.0
    %v10220 = vsel %vm4759, %v10156, 0.0
    %v10221 = vsel %vm4759, %v10157, 0.0
    %v10222 = vsel %vm4759, %v10158, 0.0
    %v10223 = vsel %vm4759, %v10159, 0.0
    %v10224 = vsel %vm4759, %v10160, 0.0
    %v10225 = vsel %vm4759, %v10161, 0.0
    %v10226 = vsel %vm4759, %v10162, 0.0
    %v10227 = vsel %vm4759, %v10163, 0.0
    %v10228 = vsel %vm4759, %v10164, 0.0
    %v10229 = vsel %vm4759, %v10165, 0.0
    %v10230 = vsel %vm4759, %v10166, 0.0
    %v10231 = vsel %vm4759, %v10167, 0.0
    %v10232 = vsel %vm4759, %v10168, 0.0
    %v10233 = vsel %vm4759, %v10169, 0.0
    %v10234 = vsel %vm4759, %v10170, 0.0
    %v10235 = vsel %vm4759, %v10171, 0.0
    %v10236 = vsel %vm4759, %v10172, 0.0
    %v10237 = vsel %vm4759, %v10173, 0.0
    %v10238 = vsel %vm4759, %v10174, 0.0
    %v10239 = vsel %vm4759, %v10175, 0.0
    %v10240 = vsel %vm4759, %v10176, 0.0
    %v10241 = vsel %vm4759, %v10177, 0.0
    %v10242 = vsel %vm4759, %v10178, 0.0
    %v10243 = vsel %vm4759, %v10179, 0.0
    %v10244 = vsel %vm4759, %v10180, 0.0
    %v10245 = vsel %vm4759, %v10181, 0.0
    %v10246 = vsel %vm4759, %v10182, 0.0
    %v10247 = vsel %vm4759, %v10183, 0.0
    %v10248 = vsel %vm4759, %v10184, 0.0
    %v10249 = vsel %vm4759, %v10185, 0.0
    %v10250 = vsel %vm4759, %v10186, 0.0
    %v10251 = vsel %vm4759, %v10187, 0.0
    %v10252 = vsel %vm4759, %v10188, 0.0
    %v10253 = vsel %vm4759, %v10189, 0.0
    %v10254 = vsel %vm4759, %v10190, 0.0
    %v10255 = vsel %vm4759, %v10191, 0.0
    %v10256 = vsel %vm4759, %v10192, 0.0
    %v10257 = vsel %vm4759, %v10193, 0.0
    %v10258 = vsel %vm4759, %v10194, 0.0
    %v10259 = vsel %vm4759, %v10195, 0.0
    %v10260 = vsel %vm4759, %v10196, 0.0
    %v10261 = vsel %vm4759, %v10197, 0.0
    %v10262 = vsel %vm4759, %v10198, 0.0
    %v10263 = vmul.f32 %v10199, %v10199
    %v10264 = vmul.f32 %v10200, %v10200
    %v10265 = vmul.f32 %v10201, %v10201
    %v10266 = vmul.f32 %v10202, %v10202
    %v10267 = vmul.f32 %v10203, %v10203
    %v10268 = vmul.f32 %v10204, %v10204
    %v10269 = vmul.f32 %v10205, %v10205
    %v10270 = vmul.f32 %v10206, %v10206
    %v10271 = vmul.f32 %v10207, %v10207
    %v10272 = vmul.f32 %v10208, %v10208
    %v10273 = vmul.f32 %v10209, %v10209
    %v10274 = vmul.f32 %v10210, %v10210
    %v10275 = vmul.f32 %v10211, %v10211
    %v10276 = vmul.f32 %v10212, %v10212
    %v10277 = vmul.f32 %v10213, %v10213
    %v10278 = vmul.f32 %v10214, %v10214
    %v10279 = vmul.f32 %v10215, %v10215
    %v10280 = vmul.f32 %v10216, %v10216
    %v10281 = vmul.f32 %v10217, %v10217
    %v10282 = vmul.f32 %v10218, %v10218
    %v10283 = vmul.f32 %v10219, %v10219
    %v10284 = vmul.f32 %v10220, %v10220
    %v10285 = vmul.f32 %v10221, %v10221
    %v10286 = vmul.f32 %v10222, %v10222
    %v10287 = vmul.f32 %v10223, %v10223
    %v10288 = vmul.f32 %v10224, %v10224
    %v10289 = vmul.f32 %v10225, %v10225
    %v10290 = vmul.f32 %v10226, %v10226
    %v10291 = vmul.f32 %v10227, %v10227
    %v10292 = vmul.f32 %v10228, %v10228
    %v10293 = vmul.f32 %v10229, %v10229
    %v10294 = vmul.f32 %v10230, %v10230
    %v10295 = vmul.f32 %v10231, %v10231
    %v10296 = vmul.f32 %v10232, %v10232
    %v10297 = vmul.f32 %v10233, %v10233
    %v10298 = vmul.f32 %v10234, %v10234
    %v10299 = vmul.f32 %v10235, %v10235
    %v10300 = vmul.f32 %v10236, %v10236
    %v10301 = vmul.f32 %v10237, %v10237
    %v10302 = vmul.f32 %v10238, %v10238
    %v10303 = vmul.f32 %v10239, %v10239
    %v10304 = vmul.f32 %v10240, %v10240
    %v10305 = vmul.f32 %v10241, %v10241
    %v10306 = vmul.f32 %v10242, %v10242
    %v10307 = vmul.f32 %v10243, %v10243
    %v10308 = vmul.f32 %v10244, %v10244
    %v10309 = vmul.f32 %v10245, %v10245
    %v10310 = vmul.f32 %v10246, %v10246
    %v10311 = vmul.f32 %v10247, %v10247
    %v10312 = vmul.f32 %v10248, %v10248
    %v10313 = vmul.f32 %v10249, %v10249
    %v10314 = vmul.f32 %v10250, %v10250
    %v10315 = vmul.f32 %v10251, %v10251
    %v10316 = vmul.f32 %v10252, %v10252
    %v10317 = vmul.f32 %v10253, %v10253
    %v10318 = vmul.f32 %v10254, %v10254
    %v10319 = vmul.f32 %v10255, %v10255
    %v10320 = vmul.f32 %v10256, %v10256
    %v10321 = vmul.f32 %v10257, %v10257
    %v10322 = vmul.f32 %v10258, %v10258
    %v10323 = vmul.f32 %v10259, %v10259
    %v10324 = vmul.f32 %v10260, %v10260
    %v10325 = vmul.f32 %v10261, %v10261
    %v10326 = vmul.f32 %v10262, %v10262
    %v10327 = vadd.f32 %v10263, %v10264
    %v10328 = vadd.f32 %v10327, %v10265
    %v10329 = vadd.f32 %v10328, %v10266
    %v10330 = vadd.f32 %v10329, %v10267
    %v10331 = vadd.f32 %v10330, %v10268
    %v10332 = vadd.f32 %v10331, %v10269
    %v10333 = vadd.f32 %v10332, %v10270
    %v10334 = vadd.f32 %v10333, %v10271
    %v10335 = vadd.f32 %v10334, %v10272
    %v10336 = vadd.f32 %v10335, %v10273
    %v10337 = vadd.f32 %v10336, %v10274
    %v10338 = vadd.f32 %v10337, %v10275
    %v10339 = vadd.f32 %v10338, %v10276
    %v10340 = vadd.f32 %v10339, %v10277
    %v10341 = vadd.f32 %v10340, %v10278
    %v10342 = vadd.f32 %v10341, %v10279
    %v10343 = vadd.f32 %v10342, %v10280
    %v10344 = vadd.f32 %v10343, %v10281
    %v10345 = vadd.f32 %v10344, %v10282
    %v10346 = vadd.f32 %v10345, %v10283
    %v10347 = vadd.f32 %v10346, %v10284
    %v10348 = vadd.f32 %v10347, %v10285
    %v10349 = vadd.f32 %v10348, %v10286
    %v10350 = vadd.f32 %v10349, %v10287
    %v10351 = vadd.f32 %v10350, %v10288
    %v10352 = vadd.f32 %v10351, %v10289
    %v10353 = vadd.f32 %v10352, %v10290
    %v10354 = vadd.f32 %v10353, %v10291
    %v10355 = vadd.f32 %v10354, %v10292
    %v10356 = vadd.f32 %v10355, %v10293
    %v10357 = vadd.f32 %v10356, %v10294
    %v10358 = vadd.f32 %v10357, %v10295
    %v10359 = vadd.f32 %v10358, %v10296
    %v10360 = vadd.f32 %v10359, %v10297
    %v10361 = vadd.f32 %v10360, %v10298
    %v10362 = vadd.f32 %v10361, %v10299
    %v10363 = vadd.f32 %v10362, %v10300
    %v10364 = vadd.f32 %v10363, %v10301
    %v10365 = vadd.f32 %v10364, %v10302
    %v10366 = vadd.f32 %v10365, %v10303
    %v10367 = vadd.f32 %v10366, %v10304
    %v10368 = vadd.f32 %v10367, %v10305
    %v10369 = vadd.f32 %v10368, %v10306
    %v10370 = vadd.f32 %v10369, %v10307
    %v10371 = vadd.f32 %v10370, %v10308
    %v10372 = vadd.f32 %v10371, %v10309
    %v10373 = vadd.f32 %v10372, %v10310
    %v10374 = vadd.f32 %v10373, %v10311
    %v10375 = vadd.f32 %v10374, %v10312
    %v10376 = vadd.f32 %v10375, %v10313
    %v10377 = vadd.f32 %v10376, %v10314
    %v10378 = vadd.f32 %v10377, %v10315
    %v10379 = vadd.f32 %v10378, %v10316
    %v10380 = vadd.f32 %v10379, %v10317
    %v10381 = vadd.f32 %v10380, %v10318
    %v10382 = vadd.f32 %v10381, %v10319
    %v10383 = vadd.f32 %v10382, %v10320
    %v10384 = vadd.f32 %v10383, %v10321
    %v10385 = vadd.f32 %v10384, %v10322
    %v10386 = vadd.f32 %v10385, %v10323
    %v10387 = vadd.f32 %v10386, %v10324
    %v10388 = vadd.f32 %v10387, %v10325
    %v10389 = vadd.f32 %v10388, %v10326
    %v10390 = vrot.slane %v10389, 4
    %v10391 = vadd.f32 %v10389, %v10390
    %v10392 = vrot.slane %v10391, 2
    %v10393 = vadd.f32 %v10391, %v10392
    %v10394 = vrot.slane %v10393, 1
    %v10395 = vadd.f32 %v10393, %v10394
    %v10396 = vmul.f32 %v10395, 0.0078125
    %v10397 = vld [vmem:[#allocation12] sm:$0x1]
    %v10398 = vadd.f32 %v10396, 1e-05
    %v10399 = vrsqrt.pop %v10398
    %v10400 = vmul.f32 %v10397, %v10399
    %v10402 = vlaneseq
    %v10403 = vshrl.u32 %v10402, 7
    %v10404 = vsub.s32 0, %v10403
    %v10405 = vrot.slane %v10400, %v10404
    %v10407 = vmul.f32 %v10199, %v10405
    %v10408 = vmul.f32 %v10200, %v10405
    %v10409 = vmul.f32 %v10201, %v10405
    %v10410 = vmul.f32 %v10202, %v10405
    %v10411 = vmul.f32 %v10203, %v10405
    %v10412 = vmul.f32 %v10204, %v10405
    %v10413 = vmul.f32 %v10205, %v10405
    %v10414 = vmul.f32 %v10206, %v10405
    %v10415 = vmul.f32 %v10207, %v10405
    %v10416 = vmul.f32 %v10208, %v10405
    %v10417 = vmul.f32 %v10209, %v10405
    %v10418 = vmul.f32 %v10210, %v10405
    %v10419 = vmul.f32 %v10211, %v10405
    %v10420 = vmul.f32 %v10212, %v10405
    %v10421 = vmul.f32 %v10213, %v10405
    %v10422 = vmul.f32 %v10214, %v10405
    %v10423 = vmul.f32 %v10215, %v10405
    %v10424 = vmul.f32 %v10216, %v10405
    %v10425 = vmul.f32 %v10217, %v10405
    %v10426 = vmul.f32 %v10218, %v10405
    %v10427 = vmul.f32 %v10219, %v10405
    %v10428 = vmul.f32 %v10220, %v10405
    %v10429 = vmul.f32 %v10221, %v10405
    %v10430 = vmul.f32 %v10222, %v10405
    %v10431 = vmul.f32 %v10223, %v10405
    %v10432 = vmul.f32 %v10224, %v10405
    %v10433 = vmul.f32 %v10225, %v10405
    %v10434 = vmul.f32 %v10226, %v10405
    %v10435 = vmul.f32 %v10227, %v10405
    %v10436 = vmul.f32 %v10228, %v10405
    %v10437 = vmul.f32 %v10229, %v10405
    %v10438 = vmul.f32 %v10230, %v10405
    %v10439 = vmul.f32 %v10231, %v10405
    %v10440 = vmul.f32 %v10232, %v10405
    %v10441 = vmul.f32 %v10233, %v10405
    %v10442 = vmul.f32 %v10234, %v10405
    %v10443 = vmul.f32 %v10235, %v10405
    %v10444 = vmul.f32 %v10236, %v10405
    %v10445 = vmul.f32 %v10237, %v10405
    %v10446 = vmul.f32 %v10238, %v10405
    %v10447 = vmul.f32 %v10239, %v10405
    %v10448 = vmul.f32 %v10240, %v10405
    %v10449 = vmul.f32 %v10241, %v10405
    %v10450 = vmul.f32 %v10242, %v10405
    %v10451 = vmul.f32 %v10243, %v10405
    %v10452 = vmul.f32 %v10244, %v10405
    %v10453 = vmul.f32 %v10245, %v10405
    %v10454 = vmul.f32 %v10246, %v10405
    %v10455 = vmul.f32 %v10247, %v10405
    %v10456 = vmul.f32 %v10248, %v10405
    %v10457 = vmul.f32 %v10249, %v10405
    %v10458 = vmul.f32 %v10250, %v10405
    %v10459 = vmul.f32 %v10251, %v10405
    %v10460 = vmul.f32 %v10252, %v10405
    %v10461 = vmul.f32 %v10253, %v10405
    %v10462 = vmul.f32 %v10254, %v10405
    %v10463 = vmul.f32 %v10255, %v10405
    %v10464 = vmul.f32 %v10256, %v10405
    %v10465 = vmul.f32 %v10257, %v10405
    %v10466 = vmul.f32 %v10258, %v10405
    %v10467 = vmul.f32 %v10259, %v10405
    %v10468 = vmul.f32 %v10260, %v10405
    %v10469 = vmul.f32 %v10261, %v10405
    %v10470 = vmul.f32 %v10262, %v10405
    %v10471 = vld [vmem:[#allocation14] sm:$0x1]
    %v10473 = vlaneseq
    %v10474 = vshrl.u32 %v10473, 7
    %v10475 = vsub.s32 0, %v10474
    %v10476 = vrot.slane %v10471, %v10475
    %v10478 = vadd.f32 %v10407, %v10476
    %v10479 = vadd.f32 %v10408, %v10476
    %v10480 = vadd.f32 %v10409, %v10476
    %v10481 = vadd.f32 %v10410, %v10476
    %v10482 = vadd.f32 %v10411, %v10476
    %v10483 = vadd.f32 %v10412, %v10476
    %v10484 = vadd.f32 %v10413, %v10476
    %v10485 = vadd.f32 %v10414, %v10476
    %v10486 = vadd.f32 %v10415, %v10476
    %v10487 = vadd.f32 %v10416, %v10476
    %v10488 = vadd.f32 %v10417, %v10476
    %v10489 = vadd.f32 %v10418, %v10476
    %v10490 = vadd.f32 %v10419, %v10476
    %v10491 = vadd.f32 %v10420, %v10476
    %v10492 = vadd.f32 %v10421, %v10476
    %v10493 = vadd.f32 %v10422, %v10476
    %v10494 = vadd.f32 %v10423, %v10476
    %v10495 = vadd.f32 %v10424, %v10476
    %v10496 = vadd.f32 %v10425, %v10476
    %v10497 = vadd.f32 %v10426, %v10476
    %v10498 = vadd.f32 %v10427, %v10476
    %v10499 = vadd.f32 %v10428, %v10476
    %v10500 = vadd.f32 %v10429, %v10476
    %v10501 = vadd.f32 %v10430, %v10476
    %v10502 = vadd.f32 %v10431, %v10476
    %v10503 = vadd.f32 %v10432, %v10476
    %v10504 = vadd.f32 %v10433, %v10476
    %v10505 = vadd.f32 %v10434, %v10476
    %v10506 = vadd.f32 %v10435, %v10476
    %v10507 = vadd.f32 %v10436, %v10476
    %v10508 = vadd.f32 %v10437, %v10476
    %v10509 = vadd.f32 %v10438, %v10476
    %v10510 = vadd.f32 %v10439, %v10476
    %v10511 = vadd.f32 %v10440, %v10476
    %v10512 = vadd.f32 %v10441, %v10476
    %v10513 = vadd.f32 %v10442, %v10476
    %v10514 = vadd.f32 %v10443, %v10476
    %v10515 = vadd.f32 %v10444, %v10476
    %v10516 = vadd.f32 %v10445, %v10476
    %v10517 = vadd.f32 %v10446, %v10476
    %v10518 = vadd.f32 %v10447, %v10476
    %v10519 = vadd.f32 %v10448, %v10476
    %v10520 = vadd.f32 %v10449, %v10476
    %v10521 = vadd.f32 %v10450, %v10476
    %v10522 = vadd.f32 %v10451, %v10476
    %v10523 = vadd.f32 %v10452, %v10476
    %v10524 = vadd.f32 %v10453, %v10476
    %v10525 = vadd.f32 %v10454, %v10476
    %v10526 = vadd.f32 %v10455, %v10476
    %v10527 = vadd.f32 %v10456, %v10476
    %v10528 = vadd.f32 %v10457, %v10476
    %v10529 = vadd.f32 %v10458, %v10476
    %v10530 = vadd.f32 %v10459, %v10476
    %v10531 = vadd.f32 %v10460, %v10476
    %v10532 = vadd.f32 %v10461, %v10476
    %v10533 = vadd.f32 %v10462, %v10476
    %v10534 = vadd.f32 %v10463, %v10476
    %v10535 = vadd.f32 %v10464, %v10476
    %v10536 = vadd.f32 %v10465, %v10476
    %v10537 = vadd.f32 %v10466, %v10476
    %v10538 = vadd.f32 %v10467, %v10476
    %v10539 = vadd.f32 %v10468, %v10476
    %v10540 = vadd.f32 %v10469, %v10476
    %v10541 = vadd.f32 %v10470, %v10476
    %v10542 = vmax.f32 %v10478, 0.0
    %v10543 = vmax.f32 %v10479, 0.0
    %v10544 = vmax.f32 %v10480, 0.0
    %v10545 = vmax.f32 %v10481, 0.0
    %v10546 = vmax.f32 %v10482, 0.0
    %v10547 = vmax.f32 %v10483, 0.0
    %v10548 = vmax.f32 %v10484, 0.0
    %v10549 = vmax.f32 %v10485, 0.0
    %v10550 = vmax.f32 %v10486, 0.0
    %v10551 = vmax.f32 %v10487, 0.0
    %v10552 = vmax.f32 %v10488, 0.0
    %v10553 = vmax.f32 %v10489, 0.0
    %v10554 = vmax.f32 %v10490, 0.0
    %v10555 = vmax.f32 %v10491, 0.0
    %v10556 = vmax.f32 %v10492, 0.0
    %v10557 = vmax.f32 %v10493, 0.0
    %v10558 = vmax.f32 %v10494, 0.0
    %v10559 = vmax.f32 %v10495, 0.0
    %v10560 = vmax.f32 %v10496, 0.0
    %v10561 = vmax.f32 %v10497, 0.0
    %v10562 = vmax.f32 %v10498, 0.0
    %v10563 = vmax.f32 %v10499, 0.0
    %v10564 = vmax.f32 %v10500, 0.0
    %v10565 = vmax.f32 %v10501, 0.0
    %v10566 = vmax.f32 %v10502, 0.0
    %v10567 = vmax.f32 %v10503, 0.0
    %v10568 = vmax.f32 %v10504, 0.0
    %v10569 = vmax.f32 %v10505, 0.0
    %v10570 = vmax.f32 %v10506, 0.0
    %v10571 = vmax.f32 %v10507, 0.0
    %v10572 = vmax.f32 %v10508, 0.0
    %v10573 = vmax.f32 %v10509, 0.0
    %v10574 = vmax.f32 %v10510, 0.0
    %v10575 = vmax.f32 %v10511, 0.0
    %v10576 = vmax.f32 %v10512, 0.0
    %v10577 = vmax.f32 %v10513, 0.0
    %v10578 = vmax.f32 %v10514, 0.0
    %v10579 = vmax.f32 %v10515, 0.0
    %v10580 = vmax.f32 %v10516, 0.0
    %v10581 = vmax.f32 %v10517, 0.0
    %v10582 = vmax.f32 %v10518, 0.0
    %v10583 = vmax.f32 %v10519, 0.0
    %v10584 = vmax.f32 %v10520, 0.0
    %v10585 = vmax.f32 %v10521, 0.0
    %v10586 = vmax.f32 %v10522, 0.0
    %v10587 = vmax.f32 %v10523, 0.0
    %v10588 = vmax.f32 %v10524, 0.0
    %v10589 = vmax.f32 %v10525, 0.0
    %v10590 = vmax.f32 %v10526, 0.0
    %v10591 = vmax.f32 %v10527, 0.0
    %v10592 = vmax.f32 %v10528, 0.0
    %v10593 = vmax.f32 %v10529, 0.0
    %v10594 = vmax.f32 %v10530, 0.0
    %v10595 = vmax.f32 %v10531, 0.0
    %v10596 = vmax.f32 %v10532, 0.0
    %v10597 = vmax.f32 %v10533, 0.0
    %v10598 = vmax.f32 %v10534, 0.0
    %v10599 = vmax.f32 %v10535, 0.0
    %v10600 = vmax.f32 %v10536, 0.0
    %v10601 = vmax.f32 %v10537, 0.0
    %v10602 = vmax.f32 %v10538, 0.0
    %v10603 = vmax.f32 %v10539, 0.0
    %v10604 = vmax.f32 %v10540, 0.0
    %v10605 = vmax.f32 %v10541, 0.0
    %s10606 = scalar_lea.vmem [#allocation3], 912
    %v10607 = vld [vmem:[%s10606] sm:$0xff]
    %v10608 = vld [vmem:[%s10606 + $0x8] sm:$0xff]
    %v10609 = vld [vmem:[%s10606 + $0x10] sm:$0xff]
    %v10610 = vld [vmem:[%s10606 + $0x18] sm:$0xff]
    %v10611 = vld [vmem:[%s10606 + $0x20] sm:$0xff]
    %v10612 = vld [vmem:[%s10606 + $0x28] sm:$0xff]
    %v10613 = vld [vmem:[%s10606 + $0x30] sm:$0xff]
    %v10614 = vld [vmem:[%s10606 + $0x38] sm:$0xff]
    %v10615 = vld [vmem:[%s10606 + $0x90] sm:$0xff]
    %v10616 = vld [vmem:[%s10606 + $0x98] sm:$0xff]
    %v10617 = vld [vmem:[%s10606 + $0xa0] sm:$0xff]
    %v10618 = vld [vmem:[%s10606 + $0xa8] sm:$0xff]
    %v10619 = vld [vmem:[%s10606 + $0xb0] sm:$0xff]
    %v10620 = vld [vmem:[%s10606 + $0xb8] sm:$0xff]
    %v10621 = vld [vmem:[%s10606 + $0xc0] sm:$0xff]
    %v10622 = vld [vmem:[%s10606 + $0xc8] sm:$0xff]
    %v10623 = vld [vmem:[%s10606 + $0x120] sm:$0xff]
    %v10624 = vld [vmem:[%s10606 + $0x128] sm:$0xff]
    %v10625 = vld [vmem:[%s10606 + $0x130] sm:$0xff]
    %v10626 = vld [vmem:[%s10606 + $0x138] sm:$0xff]
    %v10627 = vld [vmem:[%s10606 + $0x140] sm:$0xff]
    %v10628 = vld [vmem:[%s10606 + $0x148] sm:$0xff]
    %v10629 = vld [vmem:[%s10606 + $0x150] sm:$0xff]
    %v10630 = vld [vmem:[%s10606 + $0x158] sm:$0xff]
    %v10631 = vld [vmem:[%s10606 + $0x1b0] sm:$0xff]
    %v10632 = vld [vmem:[%s10606 + $0x1b8] sm:$0xff]
    %v10633 = vld [vmem:[%s10606 + $0x1c0] sm:$0xff]
    %v10634 = vld [vmem:[%s10606 + $0x1c8] sm:$0xff]
    %v10635 = vld [vmem:[%s10606 + $0x1d0] sm:$0xff]
    %v10636 = vld [vmem:[%s10606 + $0x1d8] sm:$0xff]
    %v10637 = vld [vmem:[%s10606 + $0x1e0] sm:$0xff]
    %v10638 = vld [vmem:[%s10606 + $0x1e8] sm:$0xff]
    %v10639 = vld [vmem:[%s10606 + $0x240] sm:$0xff]
    %v10640 = vld [vmem:[%s10606 + $0x248] sm:$0xff]
    %v10641 = vld [vmem:[%s10606 + $0x250] sm:$0xff]
    %v10642 = vld [vmem:[%s10606 + $0x258] sm:$0xff]
    %v10643 = vld [vmem:[%s10606 + $0x260] sm:$0xff]
    %v10644 = vld [vmem:[%s10606 + $0x268] sm:$0xff]
    %v10645 = vld [vmem:[%s10606 + $0x270] sm:$0xff]
    %v10646 = vld [vmem:[%s10606 + $0x278] sm:$0xff]
    %v10647 = vld [vmem:[%s10606 + $0x2d0] sm:$0xff]
    %v10648 = vld [vmem:[%s10606 + $0x2d8] sm:$0xff]
    %v10649 = vld [vmem:[%s10606 + $0x2e0] sm:$0xff]
    %v10650 = vld [vmem:[%s10606 + $0x2e8] sm:$0xff]
    %v10651 = vld [vmem:[%s10606 + $0x2f0] sm:$0xff]
    %v10652 = vld [vmem:[%s10606 + $0x2f8] sm:$0xff]
    %v10653 = vld [vmem:[%s10606 + $0x300] sm:$0xff]
    %v10654 = vld [vmem:[%s10606 + $0x308] sm:$0xff]
    %v10655 = vld [vmem:[%s10606 + $0x360] sm:$0xff]
    %v10656 = vld [vmem:[%s10606 + $0x368] sm:$0xff]
    %v10657 = vld [vmem:[%s10606 + $0x370] sm:$0xff]
    %v10658 = vld [vmem:[%s10606 + $0x378] sm:$0xff]
    %v10659 = vld [vmem:[%s10606 + $0x380] sm:$0xff]
    %v10660 = vld [vmem:[%s10606 + $0x388] sm:$0xff]
    %v10661 = vld [vmem:[%s10606 + $0x390] sm:$0xff]
    %v10662 = vld [vmem:[%s10606 + $0x398] sm:$0xff]
    %v10663 = vld [vmem:[%s10606 + $0x3f0] sm:$0xff]
    %v10664 = vld [vmem:[%s10606 + $0x3f8] sm:$0xff]
    %v10665 = vld [vmem:[%s10606 + $0x400] sm:$0xff]
    %v10666 = vld [vmem:[%s10606 + $0x408] sm:$0xff]
    %v10667 = vld [vmem:[%s10606 + $0x410] sm:$0xff]
    %v10668 = vld [vmem:[%s10606 + $0x418] sm:$0xff]
    %v10669 = vld [vmem:[%s10606 + $0x420] sm:$0xff]
    %v10670 = vld [vmem:[%s10606 + $0x428] sm:$0xff]
    %v10671 = vadd.f32 %v10542, %v10607
    %v10672 = vadd.f32 %v10543, %v10608
    %v10673 = vadd.f32 %v10544, %v10609
    %v10674 = vadd.f32 %v10545, %v10610
    %v10675 = vadd.f32 %v10546, %v10611
    %v10676 = vadd.f32 %v10547, %v10612
    %v10677 = vadd.f32 %v10548, %v10613
    %v10678 = vadd.f32 %v10549, %v10614
    %v10679 = vadd.f32 %v10550, %v10615
    %v10680 = vadd.f32 %v10551, %v10616
    %v10681 = vadd.f32 %v10552, %v10617
    %v10682 = vadd.f32 %v10553, %v10618
    %v10683 = vadd.f32 %v10554, %v10619
    %v10684 = vadd.f32 %v10555, %v10620
    %v10685 = vadd.f32 %v10556, %v10621
    %v10686 = vadd.f32 %v10557, %v10622
    %v10687 = vadd.f32 %v10558, %v10623
    %v10688 = vadd.f32 %v10559, %v10624
    %v10689 = vadd.f32 %v10560, %v10625
    %v10690 = vadd.f32 %v10561, %v10626
    %v10691 = vadd.f32 %v10562, %v10627
    %v10692 = vadd.f32 %v10563, %v10628
    %v10693 = vadd.f32 %v10564, %v10629
    %v10694 = vadd.f32 %v10565, %v10630
    %v10695 = vadd.f32 %v10566, %v10631
    %v10696 = vadd.f32 %v10567, %v10632
    %v10697 = vadd.f32 %v10568, %v10633
    %v10698 = vadd.f32 %v10569, %v10634
    %v10699 = vadd.f32 %v10570, %v10635
    %v10700 = vadd.f32 %v10571, %v10636
    %v10701 = vadd.f32 %v10572, %v10637
    %v10702 = vadd.f32 %v10573, %v10638
    %v10703 = vadd.f32 %v10574, %v10639
    %v10704 = vadd.f32 %v10575, %v10640
    %v10705 = vadd.f32 %v10576, %v10641
    %v10706 = vadd.f32 %v10577, %v10642
    %v10707 = vadd.f32 %v10578, %v10643
    %v10708 = vadd.f32 %v10579, %v10644
    %v10709 = vadd.f32 %v10580, %v10645
    %v10710 = vadd.f32 %v10581, %v10646
    %v10711 = vadd.f32 %v10582, %v10647
    %v10712 = vadd.f32 %v10583, %v10648
    %v10713 = vadd.f32 %v10584, %v10649
    %v10714 = vadd.f32 %v10585, %v10650
    %v10715 = vadd.f32 %v10586, %v10651
    %v10716 = vadd.f32 %v10587, %v10652
    %v10717 = vadd.f32 %v10588, %v10653
    %v10718 = vadd.f32 %v10589, %v10654
    %v10719 = vadd.f32 %v10590, %v10655
    %v10720 = vadd.f32 %v10591, %v10656
    %v10721 = vadd.f32 %v10592, %v10657
    %v10722 = vadd.f32 %v10593, %v10658
    %v10723 = vadd.f32 %v10594, %v10659
    %v10724 = vadd.f32 %v10595, %v10660
    %v10725 = vadd.f32 %v10596, %v10661
    %v10726 = vadd.f32 %v10597, %v10662
    %v10727 = vadd.f32 %v10598, %v10663
    %v10728 = vadd.f32 %v10599, %v10664
    %v10729 = vadd.f32 %v10600, %v10665
    %v10730 = vadd.f32 %v10601, %v10666
    %v10731 = vadd.f32 %v10602, %v10667
    %v10732 = vadd.f32 %v10603, %v10668
    %v10733 = vadd.f32 %v10604, %v10669
    %v10734 = vadd.f32 %v10605, %v10670
    %10735 = vst [vmem:[#allocation15] sm:$0xff] %v10671
    %10736 = vst [vmem:[#allocation15 + $0x8] sm:$0xff] %v10672
    %10737 = vst [vmem:[#allocation15 + $0x10] sm:$0xff] %v10673
    %10738 = vst [vmem:[#allocation15 + $0x18] sm:$0xff] %v10674
    %10739 = vst [vmem:[#allocation15 + $0x20] sm:$0xff] %v10675
    %10740 = vst [vmem:[#allocation15 + $0x28] sm:$0xff] %v10676
    %10741 = vst [vmem:[#allocation15 + $0x30] sm:$0xff] %v10677
    %10742 = vst [vmem:[#allocation15 + $0x38] sm:$0xff] %v10678
    %10743 = vst [vmem:[#allocation15 + $0x40] sm:$0xff] %v10679
    %10744 = vst [vmem:[#allocation15 + $0x48] sm:$0xff] %v10680
    %10745 = vst [vmem:[#allocation15 + $0x50] sm:$0xff] %v10681
    %10746 = vst [vmem:[#allocation15 + $0x58] sm:$0xff] %v10682
    %10747 = vst [vmem:[#allocation15 + $0x60] sm:$0xff] %v10683
    %10748 = vst [vmem:[#allocation15 + $0x68] sm:$0xff] %v10684
    %10749 = vst [vmem:[#allocation15 + $0x70] sm:$0xff] %v10685
    %10750 = vst [vmem:[#allocation15 + $0x78] sm:$0xff] %v10686
    %10751 = vst [vmem:[#allocation15 + $0x80] sm:$0xff] %v10687
    %10752 = vst [vmem:[#allocation15 + $0x88] sm:$0xff] %v10688
    %10753 = vst [vmem:[#allocation15 + $0x90] sm:$0xff] %v10689
    %10754 = vst [vmem:[#allocation15 + $0x98] sm:$0xff] %v10690
    %10755 = vst [vmem:[#allocation15 + $0xa0] sm:$0xff] %v10691
    %10756 = vst [vmem:[#allocation15 + $0xa8] sm:$0xff] %v10692
    %10757 = vst [vmem:[#allocation15 + $0xb0] sm:$0xff] %v10693
    %10758 = vst [vmem:[#allocation15 + $0xb8] sm:$0xff] %v10694
    %10759 = vst [vmem:[#allocation15 + $0xc0] sm:$0xff] %v10695
    %10760 = vst [vmem:[#allocation15 + $0xc8] sm:$0xff] %v10696
    %10761 = vst [vmem:[#allocation15 + $0xd0] sm:$0xff] %v10697
    %10762 = vst [vmem:[#allocation15 + $0xd8] sm:$0xff] %v10698
    %10763 = vst [vmem:[#allocation15 + $0xe0] sm:$0xff] %v10699
    %10764 = vst [vmem:[#allocation15 + $0xe8] sm:$0xff] %v10700
    %10765 = vst [vmem:[#allocation15 + $0xf0] sm:$0xff] %v10701
    %10766 = vst [vmem:[#allocation15 + $0xf8] sm:$0xff] %v10702
    %10767 = vst [vmem:[#allocation15 + $0x100] sm:$0xff] %v10703
    %10768 = vst [vmem:[#allocation15 + $0x108] sm:$0xff] %v10704
    %10769 = vst [vmem:[#allocation15 + $0x110] sm:$0xff] %v10705
    %10770 = vst [vmem:[#allocation15 + $0x118] sm:$0xff] %v10706
    %10771 = vst [vmem:[#allocation15 + $0x120] sm:$0xff] %v10707
    %10772 = vst [vmem:[#allocation15 + $0x128] sm:$0xff] %v10708
    %10773 = vst [vmem:[#allocation15 + $0x130] sm:$0xff] %v10709
    %10774 = vst [vmem:[#allocation15 + $0x138] sm:$0xff] %v10710
    %10775 = vst [vmem:[#allocation15 + $0x140] sm:$0xff] %v10711
    %10776 = vst [vmem:[#allocation15 + $0x148] sm:$0xff] %v10712
    %10777 = vst [vmem:[#allocation15 + $0x150] sm:$0xff] %v10713
    %10778 = vst [vmem:[#allocation15 + $0x158] sm:$0xff] %v10714
    %10779 = vst [vmem:[#allocation15 + $0x160] sm:$0xff] %v10715
    %10780 = vst [vmem:[#allocation15 + $0x168] sm:$0xff] %v10716
    %10781 = vst [vmem:[#allocation15 + $0x170] sm:$0xff] %v10717
    %10782 = vst [vmem:[#allocation15 + $0x178] sm:$0xff] %v10718
    %10783 = vst [vmem:[#allocation15 + $0x180] sm:$0xff] %v10719
    %10784 = vst [vmem:[#allocation15 + $0x188] sm:$0xff] %v10720
    %10785 = vst [vmem:[#allocation15 + $0x190] sm:$0xff] %v10721
    %10786 = vst [vmem:[#allocation15 + $0x198] sm:$0xff] %v10722
    %10787 = vst [vmem:[#allocation15 + $0x1a0] sm:$0xff] %v10723
    %10788 = vst [vmem:[#allocation15 + $0x1a8] sm:$0xff] %v10724
    %10789 = vst [vmem:[#allocation15 + $0x1b0] sm:$0xff] %v10725
    %10790 = vst [vmem:[#allocation15 + $0x1b8] sm:$0xff] %v10726
    %10791 = vst [vmem:[#allocation15 + $0x1c0] sm:$0xff] %v10727
    %10792 = vst [vmem:[#allocation15 + $0x1c8] sm:$0xff] %v10728
    %10793 = vst [vmem:[#allocation15 + $0x1d0] sm:$0xff] %v10729
    %10794 = vst [vmem:[#allocation15 + $0x1d8] sm:$0xff] %v10730
    %10795 = vst [vmem:[#allocation15 + $0x1e0] sm:$0xff] %v10731
    %10796 = vst [vmem:[#allocation15 + $0x1e8] sm:$0xff] %v10732
    %10797 = vst [vmem:[#allocation15 + $0x1f0] sm:$0xff] %v10733
    %10798 = vst [vmem:[#allocation15 + $0x1f8] sm:$0xff] %v10734
    // Predicated region
    $region58: #{tpu_custom_call.1} parent=1 // pred_check
      _
    $region59: #{tpu_custom_call.1} parent=1 // pred_check_branch
      %10800 = sbr.rel (0) target = $region61
    $region60: #{tpu_custom_call.1} parent=1 // pred_region
      %s10802 = ssub.s32 8192, 8192
      %10803 = vsyncadd [#allocation5], %s10802
      %s10804 = sshll.u32 [#allocation15], 4
      %s10805 = int_to_ptr.vmem [resolvable:$true] %s10804
      %10810 = dma.vmem_to_hbm [thread:$0]  %s10805, 8192, %s7, [#allocation5], 128, 128, 8
    $region61: #{tpu_custom_call.1} parent=1 // pred_fallthru
      _
    // Predicated region
    $region62: #{tpu_custom_call.1} parent=1 // pred_check
      _
    $region63: #{tpu_custom_call.1} parent=1 // pred_check_branch
      %10812 = sbr.rel (0) target = $region65
    $region64: #{tpu_custom_call.1} parent=1 // pred_region
      %10813 = dma.done [#allocation5], 8192
    $region65: #{tpu_custom_call.1} parent=1 // pred_fallthru
      _
    %10814 = vsyncpa [#allocation4], 1
    %10815 = vsyncpa [#allocation7], 1
    %10816 = vsyncpa [#allocation10], 1
    %10817 = vsyncpa [#allocation13], 1
    %10818 = vsyncpa [#allocation5], 1

</llo_original>
